<compile_context>
chip_gen: v7x
topology: tpu7x:2x2x1
jax: 0.10.0
libtpu: 0.0.40
codegen_flags: <defaults>
</compile_context>

<pallas_src>
import numpy as np
import jax
import jax.numpy as jnp
from jax.experimental import pallas as pl
from jax.experimental.pallas import tpu as pltpu

# ---- static module hyper-parameters (match Critic.__init__) -------------------
NODE_SIZE = 4
EDGE_SIZE = 2
HIDDEN = 32
OUT_CH = 1
NUM_FACTORIES = 3
NNODES = 4
EDGES = np.array([[0, 1], [0, 2], [0, 3]], dtype=np.int32)  # static per-graph edges
B = 2                                                       # batch size (graphs)

OUT_LANES = 128   # lane-dense padded output width (batch must be <= 128)
CONST_LANES = 32  # lane width of the packed weights/selectors buffer (>= HIDDEN)
DATA_LANES = 8    # lane width of the packed activations buffer (>= NODE_SIZE)


def _pad8(n):
    return (n + 7) // 8 * 8


def _onehot(idx, n):
    out = np.zeros((len(idx), n), np.float32)
    out[np.arange(len(idx)), np.asarray(idx, np.int64)] = 1.0
    return out


def _build_critic_fwd(ei, n_nodes):
    """Build (and jit) the fused Critic forward for a fixed graph topology.

    NOTE: `ei` (edge_index) must be concrete (it defines the static selector
    matrices baked into the kernel); the head's slot layout comes from the
    module's static `self.edges`, so the two are handled independently and
    correctly even if they differ.
    """
    src = np.asarray(ei[0], np.int64)
    dst = np.asarray(ei[1], np.int64)
    n_edges = int(ei.shape[1])
    bsz = n_nodes // NNODES
    assert n_nodes == bsz * NNODES, "x rows must be batch * nnodes"
    assert bsz <= OUT_LANES, "lane-packed output supports batch <= 128"
    d = NODE_SIZE + HIDDEN

    # ---- head slot node indices (module's static self.edges, per graph) ------
    left, right = [], []
    for b in range(bsz):
        base = b * NNODES
        for k in range(EDGES.shape[0]):                 # edge slots
            left.append(base + int(EDGES[k, 0]))
            right.append(base + int(EDGES[k, 1]))
        for f in range(NUM_FACTORIES):                  # factory/product slots
            node = base + NNODES - NUM_FACTORIES + f
            left.append(node)
            right.append(node)
    bm = len(left)                                      # B * (Ne + num_factories)
    m_slots = bm // bsz

    # ---- trace-time selector matrices (gather / scatter-add as GEMMs) --------
    g_i = _onehot(src, n_nodes)                         # [E, N]   x_i = g_i @ x
    g_j = _onehot(dst, n_nodes)                         # [E, N]   x_j = g_j @ x
    scat = np.zeros((n_nodes, n_edges), np.float32)     # [N, E]   x_pp = scat @ msg
    scat[src, np.arange(n_edges)] = 1.0
    g_left = _onehot(left, n_nodes)                     # [BM, N]
    g_right = _onehot(right, n_nodes)                   # [BM, N]
    gls = g_left @ scat                                 # [BM, E]  gather(left) ∘ scatter
    grs = g_right @ scat                                # [BM, E]  gather(right) ∘ scatter

    # ---- packed const buffer layout (8-row aligned, lane-0-based segments) ----
    layout = {}
    off = 0

    def add(name, rows, cols):
        nonlocal off
        layout[name] = (off, rows, cols)
        off += _pad8(rows)

    add("w1i", NODE_SIZE, HIDDEN); add("w1j", NODE_SIZE, HIDDEN); add("w1e", EDGE_SIZE, HIDDEN)
    add("b1", 1, HIDDEN); add("w2", HIDDEN, HIDDEN); add("b2", 1, HIDDEN)
    add("wlxl", NODE_SIZE, HIDDEN); add("wlpl", HIDDEN, HIDDEN)
    add("wlxr", NODE_SIZE, HIDDEN); add("wlpr", HIDDEN, HIDDEN)
    add("wla", 1, HIDDEN); add("bl", 1, HIDDEN)
    add("wv", HIDDEN, OUT_CH); add("bv", 1, OUT_CH)
    add("g_i", n_edges, n_nodes); add("g_j", n_edges, n_nodes)
    add("g_left", bm, n_nodes); add("g_right", bm, n_nodes)
    add("gls", bm, n_edges); add("grs", bm, n_edges)
    n_c_rows = off                                      # ~36 KiB total

    # ---- packed activations buffer layout -------------------------------------
    d_x = 0
    d_ea = _pad8(n_nodes)
    d_act = d_ea + _pad8(n_edges)
    n_d_rows = d_act + _pad8(bm)                        # ~1 KiB total

    # ------------------------------------------------------------------------ #
    # fused kernel
    # ------------------------------------------------------------------------ #
    def kernel(data_ref, cst_ref, out_ref):
        def cst(name):
            o, r, c = layout[name]
            return cst_ref[o:o + r, 0:c]                # static ref slice (view)

        def dot(a, b):
            return jnp.dot(a, b, preferred_element_type=jnp.float32)

        x = data_ref[d_x:d_x + n_nodes, 0:NODE_SIZE]        # [N, node]
        ea = data_ref[d_ea:d_ea + n_edges, 0:EDGE_SIZE]     # [E, edge]
        act = data_ref[d_act:d_act + bm, 0:1]               # [BM, 1]

        # ---- EdgeConv message MLP (gathers = selector GEMMs, concat = split W)
        x_i = dot(cst("g_i"), x)                            # x[edge_index[0]]
        x_j = dot(cst("g_j"), x)                            # x[edge_index[1]]
        h1 = jnp.maximum(
            dot(x_i, cst("w1i")) + dot(x_j, cst("w1j")) + dot(ea, cst("w1e"))
            + cst("b1"), 0.0)
        msg = dot(h1, cst("w2")) + cst("b2")                # [E, HIDDEN]

        # ---- head: scatter-add + gathers folded into GLS/GRS selector GEMMs ---
        lx = dot(cst("g_left"), x)                          # x[left]
        rx = dot(cst("g_right"), x)                         # x[right]
        lp = dot(cst("gls"), msg)                           # x_pp[left]
        rp = dot(cst("grs"), msg)                           # x_pp[right]
        h2 = jnp.maximum(
            dot(lx, cst("wlxl")) + dot(lp, cst("wlpl"))
            + dot(rx, cst("wlxr")) + dot(rp, cst("wlpr"))
            + act * cst("wla")                              # rank-1 action term
            + cst("bl"), 0.0)                               # [BM, HIDDEN]
        val = dot(h2, cst("wv")) + cst("bv")                # [BM, 1]

        # ---- per-batch sum + lane-dense placement: row r -> lane r // m_slots -
        row = jax.lax.broadcasted_iota(jnp.int32, (bm, OUT_LANES), 0)
        lane = jax.lax.broadcasted_iota(jnp.int32, (bm, OUT_LANES), 1)
        sel = (row >= lane * m_slots) & (row < (lane + 1) * m_slots)
        out_ref[...] = jnp.sum(jnp.where(sel, val, 0.0), axis=0, keepdims=True)

    # ------------------------------------------------------------------------ #
    # host-side packing + launch (jitted so packing fuses into one executable)
    # ------------------------------------------------------------------------ #
    def pack_const(params):
        wl = params["wl"]
        segs = {
            "w1i": params["w1"][0:NODE_SIZE],
            "w1j": params["w1"][NODE_SIZE:2 * NODE_SIZE],
            "w1e": params["w1"][2 * NODE_SIZE:2 * NODE_SIZE + EDGE_SIZE],
            "b1": params["b1"], "w2": params["w2"], "b2": params["b2"],
            "wlxl": wl[0:NODE_SIZE],
            "wlpl": wl[NODE_SIZE:d],
            "wlxr": wl[d:d + NODE_SIZE],
            "wlpr": wl[d + NODE_SIZE:2 * d],
            "wla": wl[2 * d:2 * d + 1],
            "bl": params["bl"], "wv": params["wv"], "bv": params["bv"],
            "g_i": g_i, "g_j": g_j, "g_left": g_left, "g_right": g_right,
            "gls": gls, "grs": grs,
        }
        buf = jnp.zeros((n_c_rows, CONST_LANES), jnp.float32)
        for name, arr in segs.items():
            o, r, c = layout[name]
            buf = buf.at[o:o + r, 0:c].set(jnp.asarray(arr, jnp.float32))
        return buf

    @jax.jit
    def fwd(params, x, edge_attr, action):
        cst = pack_const(params)
        data = jnp.zeros((n_d_rows, DATA_LANES), jnp.float32)
        data = data.at[d_x:d_x + n_nodes, 0:NODE_SIZE].set(x.astype(jnp.float32))
        data = data.at[d_ea:d_ea + n_edges, 0:EDGE_SIZE].set(
            edge_attr.astype(jnp.float32))
        data = data.at[d_act:d_act + bm, 0:1].set(
            action.reshape(-1, 1).astype(jnp.float32))

        vmem = pltpu.MemorySpace.VMEM
        out = pl.pallas_call(
            kernel,
            out_shape=jax.ShapeDtypeStruct((1, OUT_LANES), jnp.float32),
            in_specs=[pl.BlockSpec(memory_space=vmem)] * 2,
            out_specs=pl.BlockSpec(memory_space=vmem),
        )(data, cst)
        # TODO(synk): for large batches, switch to a 1-D grid over batch tiles
        # with a resident const buffer and dimension_semantics=("parallel",) so
        # v7x's two TensorCores split the batch; size tiles for 64 MiB VMEM
        # (and the x2 double-buffer factor).
        return out[0, :bsz]

    return fwd


_FWD_CACHE = {}


def critic_forward(params, x, edge_index, edge_attr, action):
    # Graph topology is static (the module hard-codes self.edges); edge_index
    # must therefore be a concrete array (not a tracer).
    ei = np.asarray(edge_index)
    key = (ei.tobytes(), ei.shape, int(x.shape[0]))
    fwd = _FWD_CACHE.get(key)
    if fwd is None:
        fwd = _build_critic_fwd(ei, int(x.shape[0]))
        _FWD_CACHE[key] = fwd
    return fwd(params, x, edge_attr, action)


# ---------------------------------------------------------------------------- #
# pure-JAX reference for correctness check
# ---------------------------------------------------------------------------- #
def critic_reference(params, x, edge_index, edge_attr, action):
    src, dst = edge_index[0], edge_index[1]
    msg_in = jnp.concatenate([x[src], x[dst], edge_attr], axis=1)
    h = jax.nn.relu(msg_in @ params["w1"] + params["b1"])
    msg = h @ params["w2"] + params["b2"]
    x_pp = jnp.zeros((x.shape[0], HIDDEN), jnp.float32).at[src].add(msg)
    d = NODE_SIZE + HIDDEN
    xf = jnp.concatenate([x, x_pp], axis=1).reshape(-1, NNODES, d)
    ef = jnp.concatenate([xf[:, EDGES[:, 0], :], xf[:, EDGES[:, 1], :]], axis=2)
    prod = xf[:, -NUM_FACTORIES:, :]
    ef = jnp.concatenate([ef, jnp.concatenate([prod, prod], axis=-1)], axis=1)
    feats = jnp.concatenate([ef, action[..., None]], axis=-1)
    h2 = jax.nn.relu(feats @ params["wl"] + params["bl"])
    val = h2 @ params["wv"] + params["bv"]
    return jnp.sum(val, axis=1)[:, 0]


if __name__ == "__main__":
    # Full-precision f32 matmuls on both the reference and the kernel path.
    jax.config.update("jax_default_matmul_precision", "highest")

    key = jax.random.PRNGKey(0)
    ks = jax.random.split(key, 12)

    d = NODE_SIZE + HIDDEN
    params = {
        "w1": 0.1 * jax.random.normal(ks[0], (2 * NODE_SIZE + EDGE_SIZE, HIDDEN), jnp.float32),
        "b1": 0.1 * jax.random.normal(ks[1], (1, HIDDEN), jnp.float32),
        "w2": 0.1 * jax.random.normal(ks[2], (HIDDEN, HIDDEN), jnp.float32),
        "b2": 0.1 * jax.random.normal(ks[3], (1, HIDDEN), jnp.float32),
        "wl": 0.1 * jax.random.normal(ks[4], (2 * d + 1, HIDDEN), jnp.float32),
        "bl": 0.1 * jax.random.normal(ks[5], (1, HIDDEN), jnp.float32),
        "wv": 0.1 * jax.random.normal(ks[6], (HIDDEN, OUT_CH), jnp.float32),
        "bv": 0.1 * jax.random.normal(ks[7], (1, OUT_CH), jnp.float32),
    }

    n_total = B * NNODES
    x = jax.random.normal(ks[8], (n_total, NODE_SIZE), jnp.float32)
    # batched edge_index built from the static per-graph edge list
    ei = np.concatenate([(EDGES + b * NNODES).T for b in range(B)], axis=1).astype(np.int32)
    edge_index = jnp.asarray(ei)                                    # [2, B*Ne]
    edge_attr = jax.random.normal(ks[9], (edge_index.shape[1], EDGE_SIZE), jnp.float32)
    action = jax.random.normal(ks[10], (B, EDGES.shape[0] + NUM_FACTORIES), jnp.float32)

    v = critic_forward(params, x, edge_index, edge_attr, action)
    v = jax.block_until_ready(v)

    v_ref = critic_reference(params, x, edge_index, edge_attr, action)
    assert v.shape == (B,), v.shape
    assert np.allclose(np.asarray(v), np.asarray(v_ref), rtol=1e-3, atol=1e-3), (v, v_ref)

    print("KERNEL_OK")
</pallas_src>

<mosaic_0001>
module attributes {stable_mosaic.version = 11 : i64} {
  func.func @kernel(%arg0: memref<32x8xf32, #tpu.memory_space<vmem>>, %arg1: memref<288x32xf32, #tpu.memory_space<vmem>>, %arg2: memref<1x128xf32, #tpu.memory_space<vmem>>) attributes {dimension_semantics = [], scalar_prefetch = 0 : i64, scratch_operands = 0 : i64, tpu.core_type = #tpu.core_type<tc>} {
    %c0 = arith.constant 0 : index
    %c0_0 = arith.constant 0 : index
    %0 = vector.load %arg0[%c0, %c0_0] : memref<32x8xf32, #tpu.memory_space<vmem>>, vector<8x4xf32>
    %c8 = arith.constant 8 : index
    %c0_1 = arith.constant 0 : index
    %1 = vector.load %arg0[%c8, %c0_1] : memref<32x8xf32, #tpu.memory_space<vmem>>, vector<6x2xf32>
    %c16 = arith.constant 16 : index
    %c0_2 = arith.constant 0 : index
    %2 = vector.load %arg0[%c16, %c0_2] : memref<32x8xf32, #tpu.memory_space<vmem>>, vector<12x1xf32>
    %c208 = arith.constant 208 : index
    %c0_3 = arith.constant 0 : index
    %3 = vector.load %arg1[%c208, %c0_3] : memref<288x32xf32, #tpu.memory_space<vmem>>, vector<6x8xf32>
    %cst = arith.constant dense<0.000000e+00> : vector<6x4xf32>
    %4 = tpu.matmul %3, %0, %cst {dimension_numbers = #tpu.dot_dimension_numbers<[1], [0], [0], [1], [0, 0, 1, 1], [], []>, precision = #tpu.contract_precision<fp32>} : vector<6x8xf32>, vector<8x4xf32>, vector<6x4xf32> -> vector<6x4xf32>
    %c216 = arith.constant 216 : index
    %c0_4 = arith.constant 0 : index
    %5 = vector.load %arg1[%c216, %c0_4] : memref<288x32xf32, #tpu.memory_space<vmem>>, vector<6x8xf32>
    %cst_5 = arith.constant dense<0.000000e+00> : vector<6x4xf32>
    %6 = tpu.matmul %5, %0, %cst_5 {dimension_numbers = #tpu.dot_dimension_numbers<[1], [0], [0], [1], [0, 0, 1, 1], [], []>, precision = #tpu.contract_precision<fp32>} : vector<6x8xf32>, vector<8x4xf32>, vector<6x4xf32> -> vector<6x4xf32>
    %c0_6 = arith.constant 0 : index
    %c0_7 = arith.constant 0 : index
    %7 = vector.load %arg1[%c0_6, %c0_7] : memref<288x32xf32, #tpu.memory_space<vmem>>, vector<4x32xf32>
    %cst_8 = arith.constant dense<0.000000e+00> : vector<6x32xf32>
    %8 = tpu.matmul %4, %7, %cst_8 {dimension_numbers = #tpu.dot_dimension_numbers<[1], [0], [0], [1], [0, 0, 1, 1], [], []>, precision = #tpu.contract_precision<fp32>} : vector<6x4xf32>, vector<4x32xf32>, vector<6x32xf32> -> vector<6x32xf32>
    %c8_9 = arith.constant 8 : index
    %c0_10 = arith.constant 0 : index
    %9 = vector.load %arg1[%c8_9, %c0_10] : memref<288x32xf32, #tpu.memory_space<vmem>>, vector<4x32xf32>
    %cst_11 = arith.constant dense<0.000000e+00> : vector<6x32xf32>
    %10 = tpu.matmul %6, %9, %cst_11 {dimension_numbers = #tpu.dot_dimension_numbers<[1], [0], [0], [1], [0, 0, 1, 1], [], []>, precision = #tpu.contract_precision<fp32>} : vector<6x4xf32>, vector<4x32xf32>, vector<6x32xf32> -> vector<6x32xf32>
    %11 = arith.addf %8, %10 : vector<6x32xf32>
    %c16_12 = arith.constant 16 : index
    %c0_13 = arith.constant 0 : index
    %12 = vector.load %arg1[%c16_12, %c0_13] : memref<288x32xf32, #tpu.memory_space<vmem>>, vector<2x32xf32>
    %cst_14 = arith.constant dense<0.000000e+00> : vector<6x32xf32>
    %13 = tpu.matmul %1, %12, %cst_14 {dimension_numbers = #tpu.dot_dimension_numbers<[1], [0], [0], [1], [0, 0, 1, 1], [], []>, precision = #tpu.contract_precision<fp32>} : vector<6x2xf32>, vector<2x32xf32>, vector<6x32xf32> -> vector<6x32xf32>
    %14 = arith.addf %11, %13 : vector<6x32xf32>
    %c24 = arith.constant 24 : index
    %c0_15 = arith.constant 0 : index
    %15 = vector.load %arg1[%c24, %c0_15] : memref<288x32xf32, #tpu.memory_space<vmem>>, vector<1x32xf32>
    %16 = vector.broadcast %15 : vector<1x32xf32> to vector<6x32xf32>
    %17 = arith.addf %14, %16 : vector<6x32xf32>
    %cst_16 = arith.constant 0.000000e+00 : f32
    %18 = vector.broadcast %cst_16 : f32 to vector<6x32xf32>
    %19 = arith.maximumf %17, %18 : vector<6x32xf32>
    %c32 = arith.constant 32 : index
    %c0_17 = arith.constant 0 : index
    %20 = vector.load %arg1[%c32, %c0_17] : memref<288x32xf32, #tpu.memory_space<vmem>>, vector<32x32xf32>
    %cst_18 = arith.constant dense<0.000000e+00> : vector<6x32xf32>
    %21 = tpu.matmul %19, %20, %cst_18 {dimension_numbers = #tpu.dot_dimension_numbers<[1], [0], [0], [1], [0, 0, 1, 1], [], []>, precision = #tpu.contract_precision<fp32>} : vector<6x32xf32>, vector<32x32xf32>, vector<6x32xf32> -> vector<6x32xf32>
    %c64 = arith.constant 64 : index
    %c0_19 = arith.constant 0 : index
    %22 = vector.load %arg1[%c64, %c0_19] : memref<288x32xf32, #tpu.memory_space<vmem>>, vector<1x32xf32>
    %23 = vector.broadcast %22 : vector<1x32xf32> to vector<6x32xf32>
    %24 = arith.addf %21, %23 : vector<6x32xf32>
    %c224 = arith.constant 224 : index
    %c0_20 = arith.constant 0 : index
    %25 = vector.load %arg1[%c224, %c0_20] : memref<288x32xf32, #tpu.memory_space<vmem>>, vector<12x8xf32>
    %cst_21 = arith.constant dense<0.000000e+00> : vector<12x4xf32>
    %26 = tpu.matmul %25, %0, %cst_21 {dimension_numbers = #tpu.dot_dimension_numbers<[1], [0], [0], [1], [0, 0, 1, 1], [], []>, precision = #tpu.contract_precision<fp32>} : vector<12x8xf32>, vector<8x4xf32>, vector<12x4xf32> -> vector<12x4xf32>
    %c240 = arith.constant 240 : index
    %c0_22 = arith.constant 0 : index
    %27 = vector.load %arg1[%c240, %c0_22] : memref<288x32xf32, #tpu.memory_space<vmem>>, vector<12x8xf32>
    %cst_23 = arith.constant dense<0.000000e+00> : vector<12x4xf32>
    %28 = tpu.matmul %27, %0, %cst_23 {dimension_numbers = #tpu.dot_dimension_numbers<[1], [0], [0], [1], [0, 0, 1, 1], [], []>, precision = #tpu.contract_precision<fp32>} : vector<12x8xf32>, vector<8x4xf32>, vector<12x4xf32> -> vector<12x4xf32>
    %c256 = arith.constant 256 : index
    %c0_24 = arith.constant 0 : index
    %29 = vector.load %arg1[%c256, %c0_24] : memref<288x32xf32, #tpu.memory_space<vmem>>, vector<12x6xf32>
    %cst_25 = arith.constant dense<0.000000e+00> : vector<12x32xf32>
    %30 = tpu.matmul %29, %24, %cst_25 {dimension_numbers = #tpu.dot_dimension_numbers<[1], [0], [0], [1], [0, 0, 1, 1], [], []>, precision = #tpu.contract_precision<fp32>} : vector<12x6xf32>, vector<6x32xf32>, vector<12x32xf32> -> vector<12x32xf32>
    %c272 = arith.constant 272 : index
    %c0_26 = arith.constant 0 : index
    %31 = vector.load %arg1[%c272, %c0_26] : memref<288x32xf32, #tpu.memory_space<vmem>>, vector<12x6xf32>
    %cst_27 = arith.constant dense<0.000000e+00> : vector<12x32xf32>
    %32 = tpu.matmul %31, %24, %cst_27 {dimension_numbers = #tpu.dot_dimension_numbers<[1], [0], [0], [1], [0, 0, 1, 1], [], []>, precision = #tpu.contract_precision<fp32>} : vector<12x6xf32>, vector<6x32xf32>, vector<12x32xf32> -> vector<12x32xf32>
    %c72 = arith.constant 72 : index
    %c0_28 = arith.constant 0 : index
    %33 = vector.load %arg1[%c72, %c0_28] : memref<288x32xf32, #tpu.memory_space<vmem>>, vector<4x32xf32>
    %cst_29 = arith.constant dense<0.000000e+00> : vector<12x32xf32>
    %34 = tpu.matmul %26, %33, %cst_29 {dimension_numbers = #tpu.dot_dimension_numbers<[1], [0], [0], [1], [0, 0, 1, 1], [], []>, precision = #tpu.contract_precision<fp32>} : vector<12x4xf32>, vector<4x32xf32>, vector<12x32xf32> -> vector<12x32xf32>
    %c80 = arith.constant 80 : index
    %c0_30 = arith.constant 0 : index
    %35 = vector.load %arg1[%c80, %c0_30] : memref<288x32xf32, #tpu.memory_space<vmem>>, vector<32x32xf32>
    %cst_31 = arith.constant dense<0.000000e+00> : vector<12x32xf32>
    %36 = tpu.matmul %30, %35, %cst_31 {dimension_numbers = #tpu.dot_dimension_numbers<[1], [0], [0], [1], [0, 0, 1, 1], [], []>, precision = #tpu.contract_precision<fp32>} : vector<12x32xf32>, vector<32x32xf32>, vector<12x32xf32> -> vector<12x32xf32>
    %37 = arith.addf %34, %36 : vector<12x32xf32>
    %c112 = arith.constant 112 : index
    %c0_32 = arith.constant 0 : index
    %38 = vector.load %arg1[%c112, %c0_32] : memref<288x32xf32, #tpu.memory_space<vmem>>, vector<4x32xf32>
    %cst_33 = arith.constant dense<0.000000e+00> : vector<12x32xf32>
    %39 = tpu.matmul %28, %38, %cst_33 {dimension_numbers = #tpu.dot_dimension_numbers<[1], [0], [0], [1], [0, 0, 1, 1], [], []>, precision = #tpu.contract_precision<fp32>} : vector<12x4xf32>, vector<4x32xf32>, vector<12x32xf32> -> vector<12x32xf32>
    %40 = arith.addf %37, %39 : vector<12x32xf32>
    %c120 = arith.constant 120 : index
    %c0_34 = arith.constant 0 : index
    %41 = vector.load %arg1[%c120, %c0_34] : memref<288x32xf32, #tpu.memory_space<vmem>>, vector<32x32xf32>
    %cst_35 = arith.constant dense<0.000000e+00> : vector<12x32xf32>
    %42 = tpu.matmul %32, %41, %cst_35 {dimension_numbers = #tpu.dot_dimension_numbers<[1], [0], [0], [1], [0, 0, 1, 1], [], []>, precision = #tpu.contract_precision<fp32>} : vector<12x32xf32>, vector<32x32xf32>, vector<12x32xf32> -> vector<12x32xf32>
    %43 = arith.addf %40, %42 : vector<12x32xf32>
    %c152 = arith.constant 152 : index
    %c0_36 = arith.constant 0 : index
    %44 = vector.load %arg1[%c152, %c0_36] : memref<288x32xf32, #tpu.memory_space<vmem>>, vector<1x32xf32>
    %45 = vector.broadcast %2 : vector<12x1xf32> to vector<12x32xf32>
    %46 = vector.broadcast %44 : vector<1x32xf32> to vector<12x32xf32>
    %47 = arith.mulf %45, %46 : vector<12x32xf32>
    %48 = arith.addf %43, %47 : vector<12x32xf32>
    %c160 = arith.constant 160 : index
    %c0_37 = arith.constant 0 : index
    %49 = vector.load %arg1[%c160, %c0_37] : memref<288x32xf32, #tpu.memory_space<vmem>>, vector<1x32xf32>
    %50 = vector.broadcast %49 : vector<1x32xf32> to vector<12x32xf32>
    %51 = arith.addf %48, %50 : vector<12x32xf32>
    %cst_38 = arith.constant 0.000000e+00 : f32
    %52 = vector.broadcast %cst_38 : f32 to vector<12x32xf32>
    %53 = arith.maximumf %51, %52 : vector<12x32xf32>
    %c168 = arith.constant 168 : index
    %c0_39 = arith.constant 0 : index
    %54 = vector.load %arg1[%c168, %c0_39] : memref<288x32xf32, #tpu.memory_space<vmem>>, vector<32x1xf32>
    %cst_40 = arith.constant dense<0.000000e+00> : vector<12x1xf32>
    %55 = tpu.matmul %53, %54, %cst_40 {dimension_numbers = #tpu.dot_dimension_numbers<[1], [0], [0], [1], [0, 0, 1, 1], [], []>, precision = #tpu.contract_precision<fp32>} : vector<12x32xf32>, vector<32x1xf32>, vector<12x1xf32> -> vector<12x1xf32>
    %c200 = arith.constant 200 : index
    %c0_41 = arith.constant 0 : index
    %56 = vector.load %arg1[%c200, %c0_41] : memref<288x32xf32, #tpu.memory_space<vmem>>, vector<1x1xf32>
    %57 = vector.broadcast %56 : vector<1x1xf32> to vector<12x1xf32>
    %58 = arith.addf %55, %57 : vector<12x1xf32>
    %59 = tpu.iota {dimensions = array<i32: 0>} : vector<12x128xi32>
    %60 = tpu.iota {dimensions = array<i32: 1>} : vector<12x128xi32>
    %c6_i32 = arith.constant 6 : i32
    %61 = vector.broadcast %c6_i32 : i32 to vector<12x128xi32>
    %62 = arith.muli %60, %61 : vector<12x128xi32>
    %63 = arith.cmpi sge, %59, %62 : vector<12x128xi32>
    %c1_i32 = arith.constant 1 : i32
    %64 = vector.broadcast %c1_i32 : i32 to vector<12x128xi32>
    %65 = arith.addi %60, %64 : vector<12x128xi32>
    %c6_i32_42 = arith.constant 6 : i32
    %66 = vector.broadcast %c6_i32_42 : i32 to vector<12x128xi32>
    %67 = arith.muli %65, %66 : vector<12x128xi32>
    %68 = arith.cmpi slt, %59, %67 : vector<12x128xi32>
    %69 = arith.andi %63, %68 : vector<12x128xi1>
    %cst_43 = arith.constant 0.000000e+00 : f32
    %70 = vector.shape_cast %58 : vector<12x1xf32> to vector<12x1xf32>
    %71 = vector.broadcast %70 : vector<12x1xf32> to vector<12x128xf32>
    %72 = vector.broadcast %cst_43 : f32 to vector<12x128xf32>
    %73 = arith.select %69, %71, %72 : vector<12x128xi1>, vector<12x128xf32>
    %cst_44 = arith.constant dense<0.000000e+00> : vector<128xf32>
    %74 = vector.multi_reduction <add>, %73, %cst_44 [0] : vector<12x128xf32> to vector<128xf32>
    %75 = vector.shape_cast %74 : vector<128xf32> to vector<1x128xf32>
    %c0_45 = arith.constant 0 : index
    %c0_46 = arith.constant 0 : index
    %76 = vector.load %arg2[%c0_45, %c0_46] : memref<1x128xf32, #tpu.memory_space<vmem>>, vector<1x128xf32>
    tpu.vector_store %arg2[%c0_45, %c0_46], %75 {strides = array<i32>} : memref<1x128xf32, #tpu.memory_space<vmem>>, vector<1x128xf32>,
    return
  }
}

</mosaic_0001>

<llo_original>
// kernel: fwd.1
$region0: #{fwd.1}
  #allocation0 [shape = 'u32[]', space=smem, size = 0x4, offset = 0x4, fixed_abs, tag = 'smem constant byte address 0x4 - core index']
  #allocation1 [shape = 'u32[144,128]{1,0:T(1,128)}', space=vmem, size = 0x12000, scoped, tag = 'internal scratch']
  %s0 = inlined_call_operand.vmem [shape: f32[32,8], index: 0, kind: input, shape index: {}]
  %s1 = inlined_call_operand.vmem [shape: f32[288,32], index: 1, kind: input, shape index: {}]
  %s2 = inlined_call_operand.vmem [shape: f32[1,128], index: 2, kind: output, shape index: {}]
  %s3 = sld [smem:[#allocation0]]
  $region18: #{fwd.1} parent=0
    _
  %s5 = ssub.s32 1, %s3
  %s6 = scalar_select 0, %s5, %s3
  // Predicated region
  $region2: #{fwd.1} parent=0 // pred_check
    _
  $region3: #{fwd.1} parent=0 // pred_check_branch
    %8 = sbr.rel (0) target = $region5
  $region4: #{fwd.1} parent=0 // pred_region
    _
  $region5: #{fwd.1} parent=0 // pred_fallthru
    _
  // Predicated region
  $region6: #{fwd.1} parent=0 // pred_check
    _
  $region7: #{fwd.1} parent=0 // pred_check_branch
    %10 = sbr.rel (0) target = $region9
  $region8: #{fwd.1} parent=0 // pred_region
    _
  $region9: #{fwd.1} parent=0 // pred_fallthru
    _
  %v11 = vld [vmem:[%s0] sm:$0xff]
  %v12 = vld [vmem:[%s0 + $0x8] sm:$0x3f]
  %v13 = vld [vmem:[%s0 + $0x10] sm:$0xff]
  %v14 = vld [vmem:[%s0 + $0x18] sm:$0xf]
  %v15 = vld [vmem:[%s1 + $0xd0] sm:$0x3f]
  %vm16 = vcmask 64512
  %v18 = vsel %vm16, %v15, 0
  %20 = vmatprep.subr.mxu0 0.0
  %v21 = vand.u32 %v11, 4294901760
  %22 = vmatpush1.msra.mxu0 %v21
  %23 = vmatprep.subr.mxu0 0.0
  %24 = vmatpush1.msra.mxu0 0.0
  %25 = vmatprep.subr.mxu0 0.0
  %26 = vmatpush1.msra.mxu0 0.0
  %27 = vmatprep.subr.mxu0 0.0
  %28 = vmatpush1.msra.mxu0 0.0
  %29 = vmatprep.subr.mxu0 0.0
  %30 = vmatpush1.msra.mxu0 0.0
  %31 = vmatprep.subr.mxu0 0.0
  %32 = vmatpush1.msra.mxu0 0.0
  %33 = vmatprep.subr.mxu0 0.0
  %34 = vmatpush1.msra.mxu0 0.0
  %35 = vmatprep.subr.mxu0 0.0
  %36 = vmatpush1.msra.mxu0 0.0
  %37 = vmatprep.subr.mxu0 0.0
  %38 = vmatpush1.msra.mxu0 0.0
  %39 = vmatprep.subr.mxu0 0.0
  %40 = vmatpush1.msra.mxu0 0.0
  %41 = vmatprep.subr.mxu0 0.0
  %42 = vmatpush1.msra.mxu0 0.0
  %43 = vmatprep.subr.mxu0 0.0
  %44 = vmatpush1.msra.mxu0 0.0
  %45 = vmatprep.subr.mxu0 0.0
  %46 = vmatpush1.msra.mxu0 0.0
  %47 = vmatprep.subr.mxu0 0.0
  %48 = vmatpush1.msra.mxu0 0.0
  %49 = vmatprep.subr.mxu0 0.0
  %50 = vmatpush1.msra.mxu0 0.0
  %51 = vmatprep.subr.mxu0 0.0
  %52 = vmatpush1.msra.mxu0 0.0
  %53 = vmatprep.subr.mxu0 0.0
  %54 = vmatpush1.msra.mxu0 0.0
  %55 = vmatprep.subr.mxu0 0.0
  %56 = vmatpush1.msra.mxu0 0.0
  %57 = vmatprep.subr.mxu0 0.0
  %58 = vmatpush1.msra.mxu0 0.0
  %59 = vmatprep.subr.mxu0 0.0
  %60 = vmatpush1.msra.mxu0 0.0
  %61 = vmatprep.subr.mxu0 0.0
  %62 = vmatpush1.msra.mxu0 0.0
  %63 = vmatprep.subr.mxu0 0.0
  %64 = vmatpush1.msra.mxu0 0.0
  %65 = vmatprep.subr.mxu0 0.0
  %66 = vmatpush1.msra.mxu0 0.0
  %67 = vmatprep.subr.mxu0 0.0
  %68 = vmatpush1.msra.mxu0 0.0
  %69 = vmatprep.subr.mxu0 0.0
  %70 = vmatpush1.msra.mxu0 0.0
  %71 = vmatprep.subr.mxu0 0.0
  %72 = vmatpush1.msra.mxu0 0.0
  %73 = vmatprep.subr.mxu0 0.0
  %74 = vmatpush1.msra.mxu0 0.0
  %75 = vmatprep.subr.mxu0 0.0
  %76 = vmatpush1.msra.mxu0 0.0
  %77 = vmatprep.subr.mxu0 0.0
  %78 = vmatpush1.msra.mxu0 0.0
  %79 = vmatprep.subr.mxu0 0.0
  %80 = vmatpush1.msra.mxu0 0.0
  %81 = vmatprep.subr.mxu0 0.0
  %82 = vmatpush1.msra.mxu0 0.0
  %83 = vmatprep.subr.mxu0 0.0
  %84 = vmatpush1.msra.mxu0 0.0
  %85 = vmatprep.mubr.f32.mxu0 0.0
  %v86 = vand.u32 %v18, 4294901760
  %v87 = vsub.f32 %v18, %v86
  %v88 = vand.u32 %v87, 4294901760
  %v89 = vsub.f32 %v87, %v88
  %v90 = vand.u32 %v89, 4294901760
  %91 = vmatmul.mubr.f32.gmra.mrb[0].mxu0 %v90
  %v92 = vpop.f32.mrb[0].mxu0
  %v93 = vadd.f32 0.0, %v92
  %v94 = vpop.f32.mrb[0].mxu0
  %95 = vdwg.mxu0
  %96 = vmatprep.subr.mxu0 0.0
  %v97 = vand.u32 %v11, 4294901760
  %v98 = vsub.f32 %v11, %v97
  %v99 = vand.u32 %v98, 4294901760
  %v100 = vsub.f32 %v98, %v99
  %v101 = vand.u32 %v100, 4294901760
  %102 = vmatpush1.msra.mxu0 %v101
  %103 = vmatprep.subr.mxu0 0.0
  %104 = vmatpush1.msra.mxu0 0.0
  %105 = vmatprep.subr.mxu0 0.0
  %106 = vmatpush1.msra.mxu0 0.0
  %107 = vmatprep.subr.mxu0 0.0
  %108 = vmatpush1.msra.mxu0 0.0
  %109 = vmatprep.subr.mxu0 0.0
  %110 = vmatpush1.msra.mxu0 0.0
  %111 = vmatprep.subr.mxu0 0.0
  %112 = vmatpush1.msra.mxu0 0.0
  %113 = vmatprep.subr.mxu0 0.0
  %114 = vmatpush1.msra.mxu0 0.0
  %115 = vmatprep.subr.mxu0 0.0
  %116 = vmatpush1.msra.mxu0 0.0
  %117 = vmatprep.subr.mxu0 0.0
  %118 = vmatpush1.msra.mxu0 0.0
  %119 = vmatprep.subr.mxu0 0.0
  %120 = vmatpush1.msra.mxu0 0.0
  %121 = vmatprep.subr.mxu0 0.0
  %122 = vmatpush1.msra.mxu0 0.0
  %123 = vmatprep.subr.mxu0 0.0
  %124 = vmatpush1.msra.mxu0 0.0
  %125 = vmatprep.subr.mxu0 0.0
  %126 = vmatpush1.msra.mxu0 0.0
  %127 = vmatprep.subr.mxu0 0.0
  %128 = vmatpush1.msra.mxu0 0.0
  %129 = vmatprep.subr.mxu0 0.0
  %130 = vmatpush1.msra.mxu0 0.0
  %131 = vmatprep.subr.mxu0 0.0
  %132 = vmatpush1.msra.mxu0 0.0
  %133 = vmatprep.subr.mxu0 0.0
  %134 = vmatpush1.msra.mxu0 0.0
  %135 = vmatprep.subr.mxu0 0.0
  %136 = vmatpush1.msra.mxu0 0.0
  %137 = vmatprep.subr.mxu0 0.0
  %138 = vmatpush1.msra.mxu0 0.0
  %139 = vmatprep.subr.mxu0 0.0
  %140 = vmatpush1.msra.mxu0 0.0
  %141 = vmatprep.subr.mxu0 0.0
  %142 = vmatpush1.msra.mxu0 0.0
  %143 = vmatprep.subr.mxu0 0.0
  %144 = vmatpush1.msra.mxu0 0.0
  %145 = vmatprep.subr.mxu0 0.0
  %146 = vmatpush1.msra.mxu0 0.0
  %147 = vmatprep.subr.mxu0 0.0
  %148 = vmatpush1.msra.mxu0 0.0
  %149 = vmatprep.subr.mxu0 0.0
  %150 = vmatpush1.msra.mxu0 0.0
  %151 = vmatprep.subr.mxu0 0.0
  %152 = vmatpush1.msra.mxu0 0.0
  %153 = vmatprep.subr.mxu0 0.0
  %154 = vmatpush1.msra.mxu0 0.0
  %155 = vmatprep.subr.mxu0 0.0
  %156 = vmatpush1.msra.mxu0 0.0
  %157 = vmatprep.subr.mxu0 0.0
  %158 = vmatpush1.msra.mxu0 0.0
  %159 = vmatprep.subr.mxu0 0.0
  %160 = vmatpush1.msra.mxu0 0.0
  %161 = vmatprep.subr.mxu0 0.0
  %162 = vmatpush1.msra.mxu0 0.0
  %163 = vmatprep.subr.mxu0 0.0
  %164 = vmatpush1.msra.mxu0 0.0
  %165 = vmatprep.mubr.f32.mxu0 0.0
  %v166 = vand.u32 %v18, 4294901760
  %167 = vmatmul.mubr.f32.gmra.mrb[0].mxu0 %v166
  %v168 = vpop.f32.mrb[0].mxu0
  %v169 = vadd.f32 %v93, %v168
  %v170 = vpop.f32.mrb[0].mxu0
  %171 = vdwg.mxu0
  %172 = vmatprep.subr.mxu0 0.0
  %v173 = vand.u32 %v11, 4294901760
  %v174 = vsub.f32 %v11, %v173
  %175 = vmatpush1.msra.mxu0 %v174
  %176 = vmatprep.subr.mxu0 0.0
  %177 = vmatpush1.msra.mxu0 0.0
  %178 = vmatprep.subr.mxu0 0.0
  %179 = vmatpush1.msra.mxu0 0.0
  %180 = vmatprep.subr.mxu0 0.0
  %181 = vmatpush1.msra.mxu0 0.0
  %182 = vmatprep.subr.mxu0 0.0
  %183 = vmatpush1.msra.mxu0 0.0
  %184 = vmatprep.subr.mxu0 0.0
  %185 = vmatpush1.msra.mxu0 0.0
  %186 = vmatprep.subr.mxu0 0.0
  %187 = vmatpush1.msra.mxu0 0.0
  %188 = vmatprep.subr.mxu0 0.0
  %189 = vmatpush1.msra.mxu0 0.0
  %190 = vmatprep.subr.mxu0 0.0
  %191 = vmatpush1.msra.mxu0 0.0
  %192 = vmatprep.subr.mxu0 0.0
  %193 = vmatpush1.msra.mxu0 0.0
  %194 = vmatprep.subr.mxu0 0.0
  %195 = vmatpush1.msra.mxu0 0.0
  %196 = vmatprep.subr.mxu0 0.0
  %197 = vmatpush1.msra.mxu0 0.0
  %198 = vmatprep.subr.mxu0 0.0
  %199 = vmatpush1.msra.mxu0 0.0
  %200 = vmatprep.subr.mxu0 0.0
  %201 = vmatpush1.msra.mxu0 0.0
  %202 = vmatprep.subr.mxu0 0.0
  %203 = vmatpush1.msra.mxu0 0.0
  %204 = vmatprep.subr.mxu0 0.0
  %205 = vmatpush1.msra.mxu0 0.0
  %206 = vmatprep.subr.mxu0 0.0
  %207 = vmatpush1.msra.mxu0 0.0
  %208 = vmatprep.subr.mxu0 0.0
  %209 = vmatpush1.msra.mxu0 0.0
  %210 = vmatprep.subr.mxu0 0.0
  %211 = vmatpush1.msra.mxu0 0.0
  %212 = vmatprep.subr.mxu0 0.0
  %213 = vmatpush1.msra.mxu0 0.0
  %214 = vmatprep.subr.mxu0 0.0
  %215 = vmatpush1.msra.mxu0 0.0
  %216 = vmatprep.subr.mxu0 0.0
  %217 = vmatpush1.msra.mxu0 0.0
  %218 = vmatprep.subr.mxu0 0.0
  %219 = vmatpush1.msra.mxu0 0.0
  %220 = vmatprep.subr.mxu0 0.0
  %221 = vmatpush1.msra.mxu0 0.0
  %222 = vmatprep.subr.mxu0 0.0
  %223 = vmatpush1.msra.mxu0 0.0
  %224 = vmatprep.subr.mxu0 0.0
  %225 = vmatpush1.msra.mxu0 0.0
  %226 = vmatprep.subr.mxu0 0.0
  %227 = vmatpush1.msra.mxu0 0.0
  %228 = vmatprep.subr.mxu0 0.0
  %229 = vmatpush1.msra.mxu0 0.0
  %230 = vmatprep.subr.mxu0 0.0
  %231 = vmatpush1.msra.mxu0 0.0
  %232 = vmatprep.subr.mxu0 0.0
  %233 = vmatpush1.msra.mxu0 0.0
  %234 = vmatprep.subr.mxu0 0.0
  %235 = vmatpush1.msra.mxu0 0.0
  %236 = vmatprep.subr.mxu0 0.0
  %237 = vmatpush1.msra.mxu0 0.0
  %238 = vmatprep.mubr.f32.mxu0 0.0
  %v239 = vand.u32 %v18, 4294901760
  %v240 = vsub.f32 %v18, %v239
  %241 = vmatmul.mubr.f32.gmra.mrb[0].mxu0 %v240
  %v242 = vpop.f32.mrb[0].mxu0
  %v243 = vadd.f32 %v169, %v242
  %v244 = vpop.f32.mrb[0].mxu0
  %245 = vdwg.mxu0
  %246 = vmatprep.subr.mxu0 0.0
  %v247 = vand.u32 %v11, 4294901760
  %248 = vmatpush1.msra.mxu0 %v247
  %249 = vmatprep.subr.mxu0 0.0
  %250 = vmatpush1.msra.mxu0 0.0
  %251 = vmatprep.subr.mxu0 0.0
  %252 = vmatpush1.msra.mxu0 0.0
  %253 = vmatprep.subr.mxu0 0.0
  %254 = vmatpush1.msra.mxu0 0.0
  %255 = vmatprep.subr.mxu0 0.0
  %256 = vmatpush1.msra.mxu0 0.0
  %257 = vmatprep.subr.mxu0 0.0
  %258 = vmatpush1.msra.mxu0 0.0
  %259 = vmatprep.subr.mxu0 0.0
  %260 = vmatpush1.msra.mxu0 0.0
  %261 = vmatprep.subr.mxu0 0.0
  %262 = vmatpush1.msra.mxu0 0.0
  %263 = vmatprep.subr.mxu0 0.0
  %264 = vmatpush1.msra.mxu0 0.0
  %265 = vmatprep.subr.mxu0 0.0
  %266 = vmatpush1.msra.mxu0 0.0
  %267 = vmatprep.subr.mxu0 0.0
  %268 = vmatpush1.msra.mxu0 0.0
  %269 = vmatprep.subr.mxu0 0.0
  %270 = vmatpush1.msra.mxu0 0.0
  %271 = vmatprep.subr.mxu0 0.0
  %272 = vmatpush1.msra.mxu0 0.0
  %273 = vmatprep.subr.mxu0 0.0
  %274 = vmatpush1.msra.mxu0 0.0
  %275 = vmatprep.subr.mxu0 0.0
  %276 = vmatpush1.msra.mxu0 0.0
  %277 = vmatprep.subr.mxu0 0.0
  %278 = vmatpush1.msra.mxu0 0.0
  %279 = vmatprep.subr.mxu0 0.0
  %280 = vmatpush1.msra.mxu0 0.0
  %281 = vmatprep.subr.mxu0 0.0
  %282 = vmatpush1.msra.mxu0 0.0
  %283 = vmatprep.subr.mxu0 0.0
  %284 = vmatpush1.msra.mxu0 0.0
  %285 = vmatprep.subr.mxu0 0.0
  %286 = vmatpush1.msra.mxu0 0.0
  %287 = vmatprep.subr.mxu0 0.0
  %288 = vmatpush1.msra.mxu0 0.0
  %289 = vmatprep.subr.mxu0 0.0
  %290 = vmatpush1.msra.mxu0 0.0
  %291 = vmatprep.subr.mxu0 0.0
  %292 = vmatpush1.msra.mxu0 0.0
  %293 = vmatprep.subr.mxu0 0.0
  %294 = vmatpush1.msra.mxu0 0.0
  %295 = vmatprep.subr.mxu0 0.0
  %296 = vmatpush1.msra.mxu0 0.0
  %297 = vmatprep.subr.mxu0 0.0
  %298 = vmatpush1.msra.mxu0 0.0
  %299 = vmatprep.subr.mxu0 0.0
  %300 = vmatpush1.msra.mxu0 0.0
  %301 = vmatprep.subr.mxu0 0.0
  %302 = vmatpush1.msra.mxu0 0.0
  %303 = vmatprep.subr.mxu0 0.0
  %304 = vmatpush1.msra.mxu0 0.0
  %305 = vmatprep.subr.mxu0 0.0
  %306 = vmatpush1.msra.mxu0 0.0
  %307 = vmatprep.subr.mxu0 0.0
  %308 = vmatpush1.msra.mxu0 0.0
  %309 = vmatprep.subr.mxu0 0.0
  %310 = vmatpush1.msra.mxu0 0.0
  %311 = vmatprep.mubr.f32.mxu0 0.0
  %v312 = vand.u32 %v18, 4294901760
  %v313 = vsub.f32 %v18, %v312
  %v314 = vand.u32 %v313, 4294901760
  %315 = vmatmul.mubr.f32.gmra.mrb[0].mxu0 %v314
  %v316 = vpop.f32.mrb[0].mxu0
  %v317 = vadd.f32 %v243, %v316
  %v318 = vpop.f32.mrb[0].mxu0
  %319 = vdwg.mxu0
  %320 = vmatprep.subr.mxu0 0.0
  %v321 = vand.u32 %v11, 4294901760
  %v322 = vsub.f32 %v11, %v321
  %v323 = vand.u32 %v322, 4294901760
  %324 = vmatpush1.msra.mxu0 %v323
  %325 = vmatprep.subr.mxu0 0.0
  %326 = vmatpush1.msra.mxu0 0.0
  %327 = vmatprep.subr.mxu0 0.0
  %328 = vmatpush1.msra.mxu0 0.0
  %329 = vmatprep.subr.mxu0 0.0
  %330 = vmatpush1.msra.mxu0 0.0
  %331 = vmatprep.subr.mxu0 0.0
  %332 = vmatpush1.msra.mxu0 0.0
  %333 = vmatprep.subr.mxu0 0.0
  %334 = vmatpush1.msra.mxu0 0.0
  %335 = vmatprep.subr.mxu0 0.0
  %336 = vmatpush1.msra.mxu0 0.0
  %337 = vmatprep.subr.mxu0 0.0
  %338 = vmatpush1.msra.mxu0 0.0
  %339 = vmatprep.subr.mxu0 0.0
  %340 = vmatpush1.msra.mxu0 0.0
  %341 = vmatprep.subr.mxu0 0.0
  %342 = vmatpush1.msra.mxu0 0.0
  %343 = vmatprep.subr.mxu0 0.0
  %344 = vmatpush1.msra.mxu0 0.0
  %345 = vmatprep.subr.mxu0 0.0
  %346 = vmatpush1.msra.mxu0 0.0
  %347 = vmatprep.subr.mxu0 0.0
  %348 = vmatpush1.msra.mxu0 0.0
  %349 = vmatprep.subr.mxu0 0.0
  %350 = vmatpush1.msra.mxu0 0.0
  %351 = vmatprep.subr.mxu0 0.0
  %352 = vmatpush1.msra.mxu0 0.0
  %353 = vmatprep.subr.mxu0 0.0
  %354 = vmatpush1.msra.mxu0 0.0
  %355 = vmatprep.subr.mxu0 0.0
  %356 = vmatpush1.msra.mxu0 0.0
  %357 = vmatprep.subr.mxu0 0.0
  %358 = vmatpush1.msra.mxu0 0.0
  %359 = vmatprep.subr.mxu0 0.0
  %360 = vmatpush1.msra.mxu0 0.0
  %361 = vmatprep.subr.mxu0 0.0
  %362 = vmatpush1.msra.mxu0 0.0
  %363 = vmatprep.subr.mxu0 0.0
  %364 = vmatpush1.msra.mxu0 0.0
  %365 = vmatprep.subr.mxu0 0.0
  %366 = vmatpush1.msra.mxu0 0.0
  %367 = vmatprep.subr.mxu0 0.0
  %368 = vmatpush1.msra.mxu0 0.0
  %369 = vmatprep.subr.mxu0 0.0
  %370 = vmatpush1.msra.mxu0 0.0
  %371 = vmatprep.subr.mxu0 0.0
  %372 = vmatpush1.msra.mxu0 0.0
  %373 = vmatprep.subr.mxu0 0.0
  %374 = vmatpush1.msra.mxu0 0.0
  %375 = vmatprep.subr.mxu0 0.0
  %376 = vmatpush1.msra.mxu0 0.0
  %377 = vmatprep.subr.mxu0 0.0
  %378 = vmatpush1.msra.mxu0 0.0
  %379 = vmatprep.subr.mxu0 0.0
  %380 = vmatpush1.msra.mxu0 0.0
  %381 = vmatprep.subr.mxu0 0.0
  %382 = vmatpush1.msra.mxu0 0.0
  %383 = vmatprep.subr.mxu0 0.0
  %384 = vmatpush1.msra.mxu0 0.0
  %385 = vmatprep.subr.mxu0 0.0
  %386 = vmatpush1.msra.mxu0 0.0
  %387 = vmatprep.mubr.f32.mxu0 0.0
  %v388 = vand.u32 %v18, 4294901760
  %389 = vmatmul.mubr.f32.gmra.mrb[0].mxu0 %v388
  %v390 = vpop.f32.mrb[0].mxu0
  %v391 = vadd.f32 %v317, %v390
  %v392 = vpop.f32.mrb[0].mxu0
  %393 = vdwg.mxu0
  %394 = vmatprep.subr.mxu0 0.0
  %v395 = vand.u32 %v11, 4294901760
  %396 = vmatpush1.msra.mxu0 %v395
  %397 = vmatprep.subr.mxu0 0.0
  %398 = vmatpush1.msra.mxu0 0.0
  %399 = vmatprep.subr.mxu0 0.0
  %400 = vmatpush1.msra.mxu0 0.0
  %401 = vmatprep.subr.mxu0 0.0
  %402 = vmatpush1.msra.mxu0 0.0
  %403 = vmatprep.subr.mxu0 0.0
  %404 = vmatpush1.msra.mxu0 0.0
  %405 = vmatprep.subr.mxu0 0.0
  %406 = vmatpush1.msra.mxu0 0.0
  %407 = vmatprep.subr.mxu0 0.0
  %408 = vmatpush1.msra.mxu0 0.0
  %409 = vmatprep.subr.mxu0 0.0
  %410 = vmatpush1.msra.mxu0 0.0
  %411 = vmatprep.subr.mxu0 0.0
  %412 = vmatpush1.msra.mxu0 0.0
  %413 = vmatprep.subr.mxu0 0.0
  %414 = vmatpush1.msra.mxu0 0.0
  %415 = vmatprep.subr.mxu0 0.0
  %416 = vmatpush1.msra.mxu0 0.0
  %417 = vmatprep.subr.mxu0 0.0
  %418 = vmatpush1.msra.mxu0 0.0
  %419 = vmatprep.subr.mxu0 0.0
  %420 = vmatpush1.msra.mxu0 0.0
  %421 = vmatprep.subr.mxu0 0.0
  %422 = vmatpush1.msra.mxu0 0.0
  %423 = vmatprep.subr.mxu0 0.0
  %424 = vmatpush1.msra.mxu0 0.0
  %425 = vmatprep.subr.mxu0 0.0
  %426 = vmatpush1.msra.mxu0 0.0
  %427 = vmatprep.subr.mxu0 0.0
  %428 = vmatpush1.msra.mxu0 0.0
  %429 = vmatprep.subr.mxu0 0.0
  %430 = vmatpush1.msra.mxu0 0.0
  %431 = vmatprep.subr.mxu0 0.0
  %432 = vmatpush1.msra.mxu0 0.0
  %433 = vmatprep.subr.mxu0 0.0
  %434 = vmatpush1.msra.mxu0 0.0
  %435 = vmatprep.subr.mxu0 0.0
  %436 = vmatpush1.msra.mxu0 0.0
  %437 = vmatprep.subr.mxu0 0.0
  %438 = vmatpush1.msra.mxu0 0.0
  %439 = vmatprep.subr.mxu0 0.0
  %440 = vmatpush1.msra.mxu0 0.0
  %441 = vmatprep.subr.mxu0 0.0
  %442 = vmatpush1.msra.mxu0 0.0
  %443 = vmatprep.subr.mxu0 0.0
  %444 = vmatpush1.msra.mxu0 0.0
  %445 = vmatprep.subr.mxu0 0.0
  %446 = vmatpush1.msra.mxu0 0.0
  %447 = vmatprep.subr.mxu0 0.0
  %448 = vmatpush1.msra.mxu0 0.0
  %449 = vmatprep.subr.mxu0 0.0
  %450 = vmatpush1.msra.mxu0 0.0
  %451 = vmatprep.subr.mxu0 0.0
  %452 = vmatpush1.msra.mxu0 0.0
  %453 = vmatprep.subr.mxu0 0.0
  %454 = vmatpush1.msra.mxu0 0.0
  %455 = vmatprep.subr.mxu0 0.0
  %456 = vmatpush1.msra.mxu0 0.0
  %457 = vmatprep.subr.mxu0 0.0
  %458 = vmatpush1.msra.mxu0 0.0
  %459 = vmatprep.mubr.f32.mxu0 0.0
  %v460 = vand.u32 %v18, 4294901760
  %461 = vmatmul.mubr.f32.gmra.mrb[0].mxu0 %v460
  %v462 = vpop.f32.mrb[0].mxu0
  %v463 = vadd.f32 %v391, %v462
  %v464 = vpop.f32.mrb[0].mxu0
  %465 = vdwg.mxu0
  %v466 = vld [vmem:[%s1 + $0xd8] sm:$0x3f]
  %v468 = vsel %vm16, %v466, 0
  %470 = vmatprep.subr.mxu0 0.0
  %v471 = vand.u32 %v11, 4294901760
  %472 = vmatpush1.msra.mxu0 %v471
  %473 = vmatprep.subr.mxu0 0.0
  %474 = vmatpush1.msra.mxu0 0.0
  %475 = vmatprep.subr.mxu0 0.0
  %476 = vmatpush1.msra.mxu0 0.0
  %477 = vmatprep.subr.mxu0 0.0
  %478 = vmatpush1.msra.mxu0 0.0
  %479 = vmatprep.subr.mxu0 0.0
  %480 = vmatpush1.msra.mxu0 0.0
  %481 = vmatprep.subr.mxu0 0.0
  %482 = vmatpush1.msra.mxu0 0.0
  %483 = vmatprep.subr.mxu0 0.0
  %484 = vmatpush1.msra.mxu0 0.0
  %485 = vmatprep.subr.mxu0 0.0
  %486 = vmatpush1.msra.mxu0 0.0
  %487 = vmatprep.subr.mxu0 0.0
  %488 = vmatpush1.msra.mxu0 0.0
  %489 = vmatprep.subr.mxu0 0.0
  %490 = vmatpush1.msra.mxu0 0.0
  %491 = vmatprep.subr.mxu0 0.0
  %492 = vmatpush1.msra.mxu0 0.0
  %493 = vmatprep.subr.mxu0 0.0
  %494 = vmatpush1.msra.mxu0 0.0
  %495 = vmatprep.subr.mxu0 0.0
  %496 = vmatpush1.msra.mxu0 0.0
  %497 = vmatprep.subr.mxu0 0.0
  %498 = vmatpush1.msra.mxu0 0.0
  %499 = vmatprep.subr.mxu0 0.0
  %500 = vmatpush1.msra.mxu0 0.0
  %501 = vmatprep.subr.mxu0 0.0
  %502 = vmatpush1.msra.mxu0 0.0
  %503 = vmatprep.subr.mxu0 0.0
  %504 = vmatpush1.msra.mxu0 0.0
  %505 = vmatprep.subr.mxu0 0.0
  %506 = vmatpush1.msra.mxu0 0.0
  %507 = vmatprep.subr.mxu0 0.0
  %508 = vmatpush1.msra.mxu0 0.0
  %509 = vmatprep.subr.mxu0 0.0
  %510 = vmatpush1.msra.mxu0 0.0
  %511 = vmatprep.subr.mxu0 0.0
  %512 = vmatpush1.msra.mxu0 0.0
  %513 = vmatprep.subr.mxu0 0.0
  %514 = vmatpush1.msra.mxu0 0.0
  %515 = vmatprep.subr.mxu0 0.0
  %516 = vmatpush1.msra.mxu0 0.0
  %517 = vmatprep.subr.mxu0 0.0
  %518 = vmatpush1.msra.mxu0 0.0
  %519 = vmatprep.subr.mxu0 0.0
  %520 = vmatpush1.msra.mxu0 0.0
  %521 = vmatprep.subr.mxu0 0.0
  %522 = vmatpush1.msra.mxu0 0.0
  %523 = vmatprep.subr.mxu0 0.0
  %524 = vmatpush1.msra.mxu0 0.0
  %525 = vmatprep.subr.mxu0 0.0
  %526 = vmatpush1.msra.mxu0 0.0
  %527 = vmatprep.subr.mxu0 0.0
  %528 = vmatpush1.msra.mxu0 0.0
  %529 = vmatprep.subr.mxu0 0.0
  %530 = vmatpush1.msra.mxu0 0.0
  %531 = vmatprep.subr.mxu0 0.0
  %532 = vmatpush1.msra.mxu0 0.0
  %533 = vmatprep.subr.mxu0 0.0
  %534 = vmatpush1.msra.mxu0 0.0
  %535 = vmatprep.mubr.f32.mxu0 0.0
  %v536 = vand.u32 %v468, 4294901760
  %v537 = vsub.f32 %v468, %v536
  %v538 = vand.u32 %v537, 4294901760
  %v539 = vsub.f32 %v537, %v538
  %v540 = vand.u32 %v539, 4294901760
  %541 = vmatmul.mubr.f32.gmra.mrb[0].mxu0 %v540
  %v542 = vpop.f32.mrb[0].mxu0
  %v543 = vadd.f32 0.0, %v542
  %v544 = vpop.f32.mrb[0].mxu0
  %545 = vdwg.mxu0
  %546 = vmatprep.subr.mxu0 0.0
  %v547 = vand.u32 %v11, 4294901760
  %v548 = vsub.f32 %v11, %v547
  %v549 = vand.u32 %v548, 4294901760
  %v550 = vsub.f32 %v548, %v549
  %v551 = vand.u32 %v550, 4294901760
  %552 = vmatpush1.msra.mxu0 %v551
  %553 = vmatprep.subr.mxu0 0.0
  %554 = vmatpush1.msra.mxu0 0.0
  %555 = vmatprep.subr.mxu0 0.0
  %556 = vmatpush1.msra.mxu0 0.0
  %557 = vmatprep.subr.mxu0 0.0
  %558 = vmatpush1.msra.mxu0 0.0
  %559 = vmatprep.subr.mxu0 0.0
  %560 = vmatpush1.msra.mxu0 0.0
  %561 = vmatprep.subr.mxu0 0.0
  %562 = vmatpush1.msra.mxu0 0.0
  %563 = vmatprep.subr.mxu0 0.0
  %564 = vmatpush1.msra.mxu0 0.0
  %565 = vmatprep.subr.mxu0 0.0
  %566 = vmatpush1.msra.mxu0 0.0
  %567 = vmatprep.subr.mxu0 0.0
  %568 = vmatpush1.msra.mxu0 0.0
  %569 = vmatprep.subr.mxu0 0.0
  %570 = vmatpush1.msra.mxu0 0.0
  %571 = vmatprep.subr.mxu0 0.0
  %572 = vmatpush1.msra.mxu0 0.0
  %573 = vmatprep.subr.mxu0 0.0
  %574 = vmatpush1.msra.mxu0 0.0
  %575 = vmatprep.subr.mxu0 0.0
  %576 = vmatpush1.msra.mxu0 0.0
  %577 = vmatprep.subr.mxu0 0.0
  %578 = vmatpush1.msra.mxu0 0.0
  %579 = vmatprep.subr.mxu0 0.0
  %580 = vmatpush1.msra.mxu0 0.0
  %581 = vmatprep.subr.mxu0 0.0
  %582 = vmatpush1.msra.mxu0 0.0
  %583 = vmatprep.subr.mxu0 0.0
  %584 = vmatpush1.msra.mxu0 0.0
  %585 = vmatprep.subr.mxu0 0.0
  %586 = vmatpush1.msra.mxu0 0.0
  %587 = vmatprep.subr.mxu0 0.0
  %588 = vmatpush1.msra.mxu0 0.0
  %589 = vmatprep.subr.mxu0 0.0
  %590 = vmatpush1.msra.mxu0 0.0
  %591 = vmatprep.subr.mxu0 0.0
  %592 = vmatpush1.msra.mxu0 0.0
  %593 = vmatprep.subr.mxu0 0.0
  %594 = vmatpush1.msra.mxu0 0.0
  %595 = vmatprep.subr.mxu0 0.0
  %596 = vmatpush1.msra.mxu0 0.0
  %597 = vmatprep.subr.mxu0 0.0
  %598 = vmatpush1.msra.mxu0 0.0
  %599 = vmatprep.subr.mxu0 0.0
  %600 = vmatpush1.msra.mxu0 0.0
  %601 = vmatprep.subr.mxu0 0.0
  %602 = vmatpush1.msra.mxu0 0.0
  %603 = vmatprep.subr.mxu0 0.0
  %604 = vmatpush1.msra.mxu0 0.0
  %605 = vmatprep.subr.mxu0 0.0
  %606 = vmatpush1.msra.mxu0 0.0
  %607 = vmatprep.subr.mxu0 0.0
  %608 = vmatpush1.msra.mxu0 0.0
  %609 = vmatprep.subr.mxu0 0.0
  %610 = vmatpush1.msra.mxu0 0.0
  %611 = vmatprep.subr.mxu0 0.0
  %612 = vmatpush1.msra.mxu0 0.0
  %613 = vmatprep.subr.mxu0 0.0
  %614 = vmatpush1.msra.mxu0 0.0
  %615 = vmatprep.mubr.f32.mxu0 0.0
  %v616 = vand.u32 %v468, 4294901760
  %617 = vmatmul.mubr.f32.gmra.mrb[0].mxu0 %v616
  %v618 = vpop.f32.mrb[0].mxu0
  %v619 = vadd.f32 %v543, %v618
  %v620 = vpop.f32.mrb[0].mxu0
  %621 = vdwg.mxu0
  %622 = vmatprep.subr.mxu0 0.0
  %v623 = vand.u32 %v11, 4294901760
  %v624 = vsub.f32 %v11, %v623
  %625 = vmatpush1.msra.mxu0 %v624
  %626 = vmatprep.subr.mxu0 0.0
  %627 = vmatpush1.msra.mxu0 0.0
  %628 = vmatprep.subr.mxu0 0.0
  %629 = vmatpush1.msra.mxu0 0.0
  %630 = vmatprep.subr.mxu0 0.0
  %631 = vmatpush1.msra.mxu0 0.0
  %632 = vmatprep.subr.mxu0 0.0
  %633 = vmatpush1.msra.mxu0 0.0
  %634 = vmatprep.subr.mxu0 0.0
  %635 = vmatpush1.msra.mxu0 0.0
  %636 = vmatprep.subr.mxu0 0.0
  %637 = vmatpush1.msra.mxu0 0.0
  %638 = vmatprep.subr.mxu0 0.0
  %639 = vmatpush1.msra.mxu0 0.0
  %640 = vmatprep.subr.mxu0 0.0
  %641 = vmatpush1.msra.mxu0 0.0
  %642 = vmatprep.subr.mxu0 0.0
  %643 = vmatpush1.msra.mxu0 0.0
  %644 = vmatprep.subr.mxu0 0.0
  %645 = vmatpush1.msra.mxu0 0.0
  %646 = vmatprep.subr.mxu0 0.0
  %647 = vmatpush1.msra.mxu0 0.0
  %648 = vmatprep.subr.mxu0 0.0
  %649 = vmatpush1.msra.mxu0 0.0
  %650 = vmatprep.subr.mxu0 0.0
  %651 = vmatpush1.msra.mxu0 0.0
  %652 = vmatprep.subr.mxu0 0.0
  %653 = vmatpush1.msra.mxu0 0.0
  %654 = vmatprep.subr.mxu0 0.0
  %655 = vmatpush1.msra.mxu0 0.0
  %656 = vmatprep.subr.mxu0 0.0
  %657 = vmatpush1.msra.mxu0 0.0
  %658 = vmatprep.subr.mxu0 0.0
  %659 = vmatpush1.msra.mxu0 0.0
  %660 = vmatprep.subr.mxu0 0.0
  %661 = vmatpush1.msra.mxu0 0.0
  %662 = vmatprep.subr.mxu0 0.0
  %663 = vmatpush1.msra.mxu0 0.0
  %664 = vmatprep.subr.mxu0 0.0
  %665 = vmatpush1.msra.mxu0 0.0
  %666 = vmatprep.subr.mxu0 0.0
  %667 = vmatpush1.msra.mxu0 0.0
  %668 = vmatprep.subr.mxu0 0.0
  %669 = vmatpush1.msra.mxu0 0.0
  %670 = vmatprep.subr.mxu0 0.0
  %671 = vmatpush1.msra.mxu0 0.0
  %672 = vmatprep.subr.mxu0 0.0
  %673 = vmatpush1.msra.mxu0 0.0
  %674 = vmatprep.subr.mxu0 0.0
  %675 = vmatpush1.msra.mxu0 0.0
  %676 = vmatprep.subr.mxu0 0.0
  %677 = vmatpush1.msra.mxu0 0.0
  %678 = vmatprep.subr.mxu0 0.0
  %679 = vmatpush1.msra.mxu0 0.0
  %680 = vmatprep.subr.mxu0 0.0
  %681 = vmatpush1.msra.mxu0 0.0
  %682 = vmatprep.subr.mxu0 0.0
  %683 = vmatpush1.msra.mxu0 0.0
  %684 = vmatprep.subr.mxu0 0.0
  %685 = vmatpush1.msra.mxu0 0.0
  %686 = vmatprep.subr.mxu0 0.0
  %687 = vmatpush1.msra.mxu0 0.0
  %688 = vmatprep.mubr.f32.mxu0 0.0
  %v689 = vand.u32 %v468, 4294901760
  %v690 = vsub.f32 %v468, %v689
  %691 = vmatmul.mubr.f32.gmra.mrb[0].mxu0 %v690
  %v692 = vpop.f32.mrb[0].mxu0
  %v693 = vadd.f32 %v619, %v692
  %v694 = vpop.f32.mrb[0].mxu0
  %695 = vdwg.mxu0
  %696 = vmatprep.subr.mxu0 0.0
  %v697 = vand.u32 %v11, 4294901760
  %698 = vmatpush1.msra.mxu0 %v697
  %699 = vmatprep.subr.mxu0 0.0
  %700 = vmatpush1.msra.mxu0 0.0
  %701 = vmatprep.subr.mxu0 0.0
  %702 = vmatpush1.msra.mxu0 0.0
  %703 = vmatprep.subr.mxu0 0.0
  %704 = vmatpush1.msra.mxu0 0.0
  %705 = vmatprep.subr.mxu0 0.0
  %706 = vmatpush1.msra.mxu0 0.0
  %707 = vmatprep.subr.mxu0 0.0
  %708 = vmatpush1.msra.mxu0 0.0
  %709 = vmatprep.subr.mxu0 0.0
  %710 = vmatpush1.msra.mxu0 0.0
  %711 = vmatprep.subr.mxu0 0.0
  %712 = vmatpush1.msra.mxu0 0.0
  %713 = vmatprep.subr.mxu0 0.0
  %714 = vmatpush1.msra.mxu0 0.0
  %715 = vmatprep.subr.mxu0 0.0
  %716 = vmatpush1.msra.mxu0 0.0
  %717 = vmatprep.subr.mxu0 0.0
  %718 = vmatpush1.msra.mxu0 0.0
  %719 = vmatprep.subr.mxu0 0.0
  %720 = vmatpush1.msra.mxu0 0.0
  %721 = vmatprep.subr.mxu0 0.0
  %722 = vmatpush1.msra.mxu0 0.0
  %723 = vmatprep.subr.mxu0 0.0
  %724 = vmatpush1.msra.mxu0 0.0
  %725 = vmatprep.subr.mxu0 0.0
  %726 = vmatpush1.msra.mxu0 0.0
  %727 = vmatprep.subr.mxu0 0.0
  %728 = vmatpush1.msra.mxu0 0.0
  %729 = vmatprep.subr.mxu0 0.0
  %730 = vmatpush1.msra.mxu0 0.0
  %731 = vmatprep.subr.mxu0 0.0
  %732 = vmatpush1.msra.mxu0 0.0
  %733 = vmatprep.subr.mxu0 0.0
  %734 = vmatpush1.msra.mxu0 0.0
  %735 = vmatprep.subr.mxu0 0.0
  %736 = vmatpush1.msra.mxu0 0.0
  %737 = vmatprep.subr.mxu0 0.0
  %738 = vmatpush1.msra.mxu0 0.0
  %739 = vmatprep.subr.mxu0 0.0
  %740 = vmatpush1.msra.mxu0 0.0
  %741 = vmatprep.subr.mxu0 0.0
  %742 = vmatpush1.msra.mxu0 0.0
  %743 = vmatprep.subr.mxu0 0.0
  %744 = vmatpush1.msra.mxu0 0.0
  %745 = vmatprep.subr.mxu0 0.0
  %746 = vmatpush1.msra.mxu0 0.0
  %747 = vmatprep.subr.mxu0 0.0
  %748 = vmatpush1.msra.mxu0 0.0
  %749 = vmatprep.subr.mxu0 0.0
  %750 = vmatpush1.msra.mxu0 0.0
  %751 = vmatprep.subr.mxu0 0.0
  %752 = vmatpush1.msra.mxu0 0.0
  %753 = vmatprep.subr.mxu0 0.0
  %754 = vmatpush1.msra.mxu0 0.0
  %755 = vmatprep.subr.mxu0 0.0
  %756 = vmatpush1.msra.mxu0 0.0
  %757 = vmatprep.subr.mxu0 0.0
  %758 = vmatpush1.msra.mxu0 0.0
  %759 = vmatprep.subr.mxu0 0.0
  %760 = vmatpush1.msra.mxu0 0.0
  %761 = vmatprep.mubr.f32.mxu0 0.0
  %v762 = vand.u32 %v468, 4294901760
  %v763 = vsub.f32 %v468, %v762
  %v764 = vand.u32 %v763, 4294901760
  %765 = vmatmul.mubr.f32.gmra.mrb[0].mxu0 %v764
  %v766 = vpop.f32.mrb[0].mxu0
  %v767 = vadd.f32 %v693, %v766
  %v768 = vpop.f32.mrb[0].mxu0
  %769 = vdwg.mxu0
  %770 = vmatprep.subr.mxu0 0.0
  %v771 = vand.u32 %v11, 4294901760
  %v772 = vsub.f32 %v11, %v771
  %v773 = vand.u32 %v772, 4294901760
  %774 = vmatpush1.msra.mxu0 %v773
  %775 = vmatprep.subr.mxu0 0.0
  %776 = vmatpush1.msra.mxu0 0.0
  %777 = vmatprep.subr.mxu0 0.0
  %778 = vmatpush1.msra.mxu0 0.0
  %779 = vmatprep.subr.mxu0 0.0
  %780 = vmatpush1.msra.mxu0 0.0
  %781 = vmatprep.subr.mxu0 0.0
  %782 = vmatpush1.msra.mxu0 0.0
  %783 = vmatprep.subr.mxu0 0.0
  %784 = vmatpush1.msra.mxu0 0.0
  %785 = vmatprep.subr.mxu0 0.0
  %786 = vmatpush1.msra.mxu0 0.0
  %787 = vmatprep.subr.mxu0 0.0
  %788 = vmatpush1.msra.mxu0 0.0
  %789 = vmatprep.subr.mxu0 0.0
  %790 = vmatpush1.msra.mxu0 0.0
  %791 = vmatprep.subr.mxu0 0.0
  %792 = vmatpush1.msra.mxu0 0.0
  %793 = vmatprep.subr.mxu0 0.0
  %794 = vmatpush1.msra.mxu0 0.0
  %795 = vmatprep.subr.mxu0 0.0
  %796 = vmatpush1.msra.mxu0 0.0
  %797 = vmatprep.subr.mxu0 0.0
  %798 = vmatpush1.msra.mxu0 0.0
  %799 = vmatprep.subr.mxu0 0.0
  %800 = vmatpush1.msra.mxu0 0.0
  %801 = vmatprep.subr.mxu0 0.0
  %802 = vmatpush1.msra.mxu0 0.0
  %803 = vmatprep.subr.mxu0 0.0
  %804 = vmatpush1.msra.mxu0 0.0
  %805 = vmatprep.subr.mxu0 0.0
  %806 = vmatpush1.msra.mxu0 0.0
  %807 = vmatprep.subr.mxu0 0.0
  %808 = vmatpush1.msra.mxu0 0.0
  %809 = vmatprep.subr.mxu0 0.0
  %810 = vmatpush1.msra.mxu0 0.0
  %811 = vmatprep.subr.mxu0 0.0
  %812 = vmatpush1.msra.mxu0 0.0
  %813 = vmatprep.subr.mxu0 0.0
  %814 = vmatpush1.msra.mxu0 0.0
  %815 = vmatprep.subr.mxu0 0.0
  %816 = vmatpush1.msra.mxu0 0.0
  %817 = vmatprep.subr.mxu0 0.0
  %818 = vmatpush1.msra.mxu0 0.0
  %819 = vmatprep.subr.mxu0 0.0
  %820 = vmatpush1.msra.mxu0 0.0
  %821 = vmatprep.subr.mxu0 0.0
  %822 = vmatpush1.msra.mxu0 0.0
  %823 = vmatprep.subr.mxu0 0.0
  %824 = vmatpush1.msra.mxu0 0.0
  %825 = vmatprep.subr.mxu0 0.0
  %826 = vmatpush1.msra.mxu0 0.0
  %827 = vmatprep.subr.mxu0 0.0
  %828 = vmatpush1.msra.mxu0 0.0
  %829 = vmatprep.subr.mxu0 0.0
  %830 = vmatpush1.msra.mxu0 0.0
  %831 = vmatprep.subr.mxu0 0.0
  %832 = vmatpush1.msra.mxu0 0.0
  %833 = vmatprep.subr.mxu0 0.0
  %834 = vmatpush1.msra.mxu0 0.0
  %835 = vmatprep.subr.mxu0 0.0
  %836 = vmatpush1.msra.mxu0 0.0
  %837 = vmatprep.mubr.f32.mxu0 0.0
  %v838 = vand.u32 %v468, 4294901760
  %839 = vmatmul.mubr.f32.gmra.mrb[0].mxu0 %v838
  %v840 = vpop.f32.mrb[0].mxu0
  %v841 = vadd.f32 %v767, %v840
  %v842 = vpop.f32.mrb[0].mxu0
  %843 = vdwg.mxu0
  %844 = vmatprep.subr.mxu0 0.0
  %v845 = vand.u32 %v11, 4294901760
  %846 = vmatpush1.msra.mxu0 %v845
  %847 = vmatprep.subr.mxu0 0.0
  %848 = vmatpush1.msra.mxu0 0.0
  %849 = vmatprep.subr.mxu0 0.0
  %850 = vmatpush1.msra.mxu0 0.0
  %851 = vmatprep.subr.mxu0 0.0
  %852 = vmatpush1.msra.mxu0 0.0
  %853 = vmatprep.subr.mxu0 0.0
  %854 = vmatpush1.msra.mxu0 0.0
  %855 = vmatprep.subr.mxu0 0.0
  %856 = vmatpush1.msra.mxu0 0.0
  %857 = vmatprep.subr.mxu0 0.0
  %858 = vmatpush1.msra.mxu0 0.0
  %859 = vmatprep.subr.mxu0 0.0
  %860 = vmatpush1.msra.mxu0 0.0
  %861 = vmatprep.subr.mxu0 0.0
  %862 = vmatpush1.msra.mxu0 0.0
  %863 = vmatprep.subr.mxu0 0.0
  %864 = vmatpush1.msra.mxu0 0.0
  %865 = vmatprep.subr.mxu0 0.0
  %866 = vmatpush1.msra.mxu0 0.0
  %867 = vmatprep.subr.mxu0 0.0
  %868 = vmatpush1.msra.mxu0 0.0
  %869 = vmatprep.subr.mxu0 0.0
  %870 = vmatpush1.msra.mxu0 0.0
  %871 = vmatprep.subr.mxu0 0.0
  %872 = vmatpush1.msra.mxu0 0.0
  %873 = vmatprep.subr.mxu0 0.0
  %874 = vmatpush1.msra.mxu0 0.0
  %875 = vmatprep.subr.mxu0 0.0
  %876 = vmatpush1.msra.mxu0 0.0
  %877 = vmatprep.subr.mxu0 0.0
  %878 = vmatpush1.msra.mxu0 0.0
  %879 = vmatprep.subr.mxu0 0.0
  %880 = vmatpush1.msra.mxu0 0.0
  %881 = vmatprep.subr.mxu0 0.0
  %882 = vmatpush1.msra.mxu0 0.0
  %883 = vmatprep.subr.mxu0 0.0
  %884 = vmatpush1.msra.mxu0 0.0
  %885 = vmatprep.subr.mxu0 0.0
  %886 = vmatpush1.msra.mxu0 0.0
  %887 = vmatprep.subr.mxu0 0.0
  %888 = vmatpush1.msra.mxu0 0.0
  %889 = vmatprep.subr.mxu0 0.0
  %890 = vmatpush1.msra.mxu0 0.0
  %891 = vmatprep.subr.mxu0 0.0
  %892 = vmatpush1.msra.mxu0 0.0
  %893 = vmatprep.subr.mxu0 0.0
  %894 = vmatpush1.msra.mxu0 0.0
  %895 = vmatprep.subr.mxu0 0.0
  %896 = vmatpush1.msra.mxu0 0.0
  %897 = vmatprep.subr.mxu0 0.0
  %898 = vmatpush1.msra.mxu0 0.0
  %899 = vmatprep.subr.mxu0 0.0
  %900 = vmatpush1.msra.mxu0 0.0
  %901 = vmatprep.subr.mxu0 0.0
  %902 = vmatpush1.msra.mxu0 0.0
  %903 = vmatprep.subr.mxu0 0.0
  %904 = vmatpush1.msra.mxu0 0.0
  %905 = vmatprep.subr.mxu0 0.0
  %906 = vmatpush1.msra.mxu0 0.0
  %907 = vmatprep.subr.mxu0 0.0
  %908 = vmatpush1.msra.mxu0 0.0
  %909 = vmatprep.mubr.f32.mxu0 0.0
  %v910 = vand.u32 %v468, 4294901760
  %911 = vmatmul.mubr.f32.gmra.mrb[0].mxu0 %v910
  %v912 = vpop.f32.mrb[0].mxu0
  %v913 = vadd.f32 %v841, %v912
  %v914 = vpop.f32.mrb[0].mxu0
  %915 = vdwg.mxu0
  %v916 = vld [vmem:[%s1] sm:$0xf]
  %v917 = vld [vmem:[%s1 + $0x8] sm:$0xf]
  %vm918 = vcmask 31744
  %v920 = vsel %vm918, %v913, 0
  %vm922 = vcmask 1043456
  %v924 = vsel %vm922, %v917, 0
  %926 = vmatprep.subr.mxu0 0.0
  %v927 = vand.u32 %v924, 4294901760
  %928 = vmatpush1.msra.mxu0 %v927
  %929 = vmatprep.subr.mxu0 0.0
  %930 = vmatpush1.msra.mxu0 0.0
  %931 = vmatprep.subr.mxu0 0.0
  %932 = vmatpush1.msra.mxu0 0.0
  %933 = vmatprep.subr.mxu0 0.0
  %934 = vmatpush1.msra.mxu0 0.0
  %935 = vmatprep.subr.mxu0 0.0
  %936 = vmatpush1.msra.mxu0 0.0
  %937 = vmatprep.subr.mxu0 0.0
  %938 = vmatpush1.msra.mxu0 0.0
  %939 = vmatprep.subr.mxu0 0.0
  %940 = vmatpush1.msra.mxu0 0.0
  %941 = vmatprep.subr.mxu0 0.0
  %942 = vmatpush1.msra.mxu0 0.0
  %943 = vmatprep.subr.mxu0 0.0
  %944 = vmatpush1.msra.mxu0 0.0
  %945 = vmatprep.subr.mxu0 0.0
  %946 = vmatpush1.msra.mxu0 0.0
  %947 = vmatprep.subr.mxu0 0.0
  %948 = vmatpush1.msra.mxu0 0.0
  %949 = vmatprep.subr.mxu0 0.0
  %950 = vmatpush1.msra.mxu0 0.0
  %951 = vmatprep.subr.mxu0 0.0
  %952 = vmatpush1.msra.mxu0 0.0
  %953 = vmatprep.subr.mxu0 0.0
  %954 = vmatpush1.msra.mxu0 0.0
  %955 = vmatprep.subr.mxu0 0.0
  %956 = vmatpush1.msra.mxu0 0.0
  %957 = vmatprep.subr.mxu0 0.0
  %958 = vmatpush1.msra.mxu0 0.0
  %959 = vmatprep.subr.mxu0 0.0
  %960 = vmatpush1.msra.mxu0 0.0
  %961 = vmatprep.subr.mxu0 0.0
  %962 = vmatpush1.msra.mxu0 0.0
  %963 = vmatprep.subr.mxu0 0.0
  %964 = vmatpush1.msra.mxu0 0.0
  %965 = vmatprep.subr.mxu0 0.0
  %966 = vmatpush1.msra.mxu0 0.0
  %967 = vmatprep.subr.mxu0 0.0
  %968 = vmatpush1.msra.mxu0 0.0
  %969 = vmatprep.subr.mxu0 0.0
  %970 = vmatpush1.msra.mxu0 0.0
  %971 = vmatprep.subr.mxu0 0.0
  %972 = vmatpush1.msra.mxu0 0.0
  %973 = vmatprep.subr.mxu0 0.0
  %974 = vmatpush1.msra.mxu0 0.0
  %975 = vmatprep.subr.mxu0 0.0
  %976 = vmatpush1.msra.mxu0 0.0
  %977 = vmatprep.subr.mxu0 0.0
  %978 = vmatpush1.msra.mxu0 0.0
  %979 = vmatprep.subr.mxu0 0.0
  %980 = vmatpush1.msra.mxu0 0.0
  %981 = vmatprep.subr.mxu0 0.0
  %982 = vmatpush1.msra.mxu0 0.0
  %983 = vmatprep.subr.mxu0 0.0
  %984 = vmatpush1.msra.mxu0 0.0
  %985 = vmatprep.subr.mxu0 0.0
  %986 = vmatpush1.msra.mxu0 0.0
  %987 = vmatprep.subr.mxu0 0.0
  %988 = vmatpush1.msra.mxu0 0.0
  %989 = vmatprep.subr.mxu0 0.0
  %990 = vmatpush1.msra.mxu0 0.0
  %991 = vmatprep.mubr.f32.mxu0 0.0
  %v992 = vand.u32 %v920, 4294901760
  %v993 = vsub.f32 %v920, %v992
  %v994 = vand.u32 %v993, 4294901760
  %v995 = vsub.f32 %v993, %v994
  %v996 = vand.u32 %v995, 4294901760
  %997 = vmatmul.mubr.f32.gmra.mrb[0].mxu0 %v996
  %v998 = vpop.f32.mrb[0].mxu0
  %v999 = vadd.f32 0.0, %v998
  %v1000 = vpop.f32.mrb[0].mxu0
  %1001 = vdwg.mxu0
  %1002 = vmatprep.subr.mxu0 0.0
  %v1003 = vand.u32 %v924, 4294901760
  %v1004 = vsub.f32 %v924, %v1003
  %v1005 = vand.u32 %v1004, 4294901760
  %v1006 = vsub.f32 %v1004, %v1005
  %v1007 = vand.u32 %v1006, 4294901760
  %1008 = vmatpush1.msra.mxu0 %v1007
  %1009 = vmatprep.subr.mxu0 0.0
  %1010 = vmatpush1.msra.mxu0 0.0
  %1011 = vmatprep.subr.mxu0 0.0
  %1012 = vmatpush1.msra.mxu0 0.0
  %1013 = vmatprep.subr.mxu0 0.0
  %1014 = vmatpush1.msra.mxu0 0.0
  %1015 = vmatprep.subr.mxu0 0.0
  %1016 = vmatpush1.msra.mxu0 0.0
  %1017 = vmatprep.subr.mxu0 0.0
  %1018 = vmatpush1.msra.mxu0 0.0
  %1019 = vmatprep.subr.mxu0 0.0
  %1020 = vmatpush1.msra.mxu0 0.0
  %1021 = vmatprep.subr.mxu0 0.0
  %1022 = vmatpush1.msra.mxu0 0.0
  %1023 = vmatprep.subr.mxu0 0.0
  %1024 = vmatpush1.msra.mxu0 0.0
  %1025 = vmatprep.subr.mxu0 0.0
  %1026 = vmatpush1.msra.mxu0 0.0
  %1027 = vmatprep.subr.mxu0 0.0
  %1028 = vmatpush1.msra.mxu0 0.0
  %1029 = vmatprep.subr.mxu0 0.0
  %1030 = vmatpush1.msra.mxu0 0.0
  %1031 = vmatprep.subr.mxu0 0.0
  %1032 = vmatpush1.msra.mxu0 0.0
  %1033 = vmatprep.subr.mxu0 0.0
  %1034 = vmatpush1.msra.mxu0 0.0
  %1035 = vmatprep.subr.mxu0 0.0
  %1036 = vmatpush1.msra.mxu0 0.0
  %1037 = vmatprep.subr.mxu0 0.0
  %1038 = vmatpush1.msra.mxu0 0.0
  %1039 = vmatprep.subr.mxu0 0.0
  %1040 = vmatpush1.msra.mxu0 0.0
  %1041 = vmatprep.subr.mxu0 0.0
  %1042 = vmatpush1.msra.mxu0 0.0
  %1043 = vmatprep.subr.mxu0 0.0
  %1044 = vmatpush1.msra.mxu0 0.0
  %1045 = vmatprep.subr.mxu0 0.0
  %1046 = vmatpush1.msra.mxu0 0.0
  %1047 = vmatprep.subr.mxu0 0.0
  %1048 = vmatpush1.msra.mxu0 0.0
  %1049 = vmatprep.subr.mxu0 0.0
  %1050 = vmatpush1.msra.mxu0 0.0
  %1051 = vmatprep.subr.mxu0 0.0
  %1052 = vmatpush1.msra.mxu0 0.0
  %1053 = vmatprep.subr.mxu0 0.0
  %1054 = vmatpush1.msra.mxu0 0.0
  %1055 = vmatprep.subr.mxu0 0.0
  %1056 = vmatpush1.msra.mxu0 0.0
  %1057 = vmatprep.subr.mxu0 0.0
  %1058 = vmatpush1.msra.mxu0 0.0
  %1059 = vmatprep.subr.mxu0 0.0
  %1060 = vmatpush1.msra.mxu0 0.0
  %1061 = vmatprep.subr.mxu0 0.0
  %1062 = vmatpush1.msra.mxu0 0.0
  %1063 = vmatprep.subr.mxu0 0.0
  %1064 = vmatpush1.msra.mxu0 0.0
  %1065 = vmatprep.subr.mxu0 0.0
  %1066 = vmatpush1.msra.mxu0 0.0
  %1067 = vmatprep.subr.mxu0 0.0
  %1068 = vmatpush1.msra.mxu0 0.0
  %1069 = vmatprep.subr.mxu0 0.0
  %1070 = vmatpush1.msra.mxu0 0.0
  %1071 = vmatprep.mubr.f32.mxu0 0.0
  %v1072 = vand.u32 %v920, 4294901760
  %1073 = vmatmul.mubr.f32.gmra.mrb[0].mxu0 %v1072
  %v1074 = vpop.f32.mrb[0].mxu0
  %v1075 = vadd.f32 %v999, %v1074
  %v1076 = vpop.f32.mrb[0].mxu0
  %1077 = vdwg.mxu0
  %1078 = vmatprep.subr.mxu0 0.0
  %v1079 = vand.u32 %v924, 4294901760
  %v1080 = vsub.f32 %v924, %v1079
  %1081 = vmatpush1.msra.mxu0 %v1080
  %1082 = vmatprep.subr.mxu0 0.0
  %1083 = vmatpush1.msra.mxu0 0.0
  %1084 = vmatprep.subr.mxu0 0.0
  %1085 = vmatpush1.msra.mxu0 0.0
  %1086 = vmatprep.subr.mxu0 0.0
  %1087 = vmatpush1.msra.mxu0 0.0
  %1088 = vmatprep.subr.mxu0 0.0
  %1089 = vmatpush1.msra.mxu0 0.0
  %1090 = vmatprep.subr.mxu0 0.0
  %1091 = vmatpush1.msra.mxu0 0.0
  %1092 = vmatprep.subr.mxu0 0.0
  %1093 = vmatpush1.msra.mxu0 0.0
  %1094 = vmatprep.subr.mxu0 0.0
  %1095 = vmatpush1.msra.mxu0 0.0
  %1096 = vmatprep.subr.mxu0 0.0
  %1097 = vmatpush1.msra.mxu0 0.0
  %1098 = vmatprep.subr.mxu0 0.0
  %1099 = vmatpush1.msra.mxu0 0.0
  %1100 = vmatprep.subr.mxu0 0.0
  %1101 = vmatpush1.msra.mxu0 0.0
  %1102 = vmatprep.subr.mxu0 0.0
  %1103 = vmatpush1.msra.mxu0 0.0
  %1104 = vmatprep.subr.mxu0 0.0
  %1105 = vmatpush1.msra.mxu0 0.0
  %1106 = vmatprep.subr.mxu0 0.0
  %1107 = vmatpush1.msra.mxu0 0.0
  %1108 = vmatprep.subr.mxu0 0.0
  %1109 = vmatpush1.msra.mxu0 0.0
  %1110 = vmatprep.subr.mxu0 0.0
  %1111 = vmatpush1.msra.mxu0 0.0
  %1112 = vmatprep.subr.mxu0 0.0
  %1113 = vmatpush1.msra.mxu0 0.0
  %1114 = vmatprep.subr.mxu0 0.0
  %1115 = vmatpush1.msra.mxu0 0.0
  %1116 = vmatprep.subr.mxu0 0.0
  %1117 = vmatpush1.msra.mxu0 0.0
  %1118 = vmatprep.subr.mxu0 0.0
  %1119 = vmatpush1.msra.mxu0 0.0
  %1120 = vmatprep.subr.mxu0 0.0
  %1121 = vmatpush1.msra.mxu0 0.0
  %1122 = vmatprep.subr.mxu0 0.0
  %1123 = vmatpush1.msra.mxu0 0.0
  %1124 = vmatprep.subr.mxu0 0.0
  %1125 = vmatpush1.msra.mxu0 0.0
  %1126 = vmatprep.subr.mxu0 0.0
  %1127 = vmatpush1.msra.mxu0 0.0
  %1128 = vmatprep.subr.mxu0 0.0
  %1129 = vmatpush1.msra.mxu0 0.0
  %1130 = vmatprep.subr.mxu0 0.0
  %1131 = vmatpush1.msra.mxu0 0.0
  %1132 = vmatprep.subr.mxu0 0.0
  %1133 = vmatpush1.msra.mxu0 0.0
  %1134 = vmatprep.subr.mxu0 0.0
  %1135 = vmatpush1.msra.mxu0 0.0
  %1136 = vmatprep.subr.mxu0 0.0
  %1137 = vmatpush1.msra.mxu0 0.0
  %1138 = vmatprep.subr.mxu0 0.0
  %1139 = vmatpush1.msra.mxu0 0.0
  %1140 = vmatprep.subr.mxu0 0.0
  %1141 = vmatpush1.msra.mxu0 0.0
  %1142 = vmatprep.subr.mxu0 0.0
  %1143 = vmatpush1.msra.mxu0 0.0
  %1144 = vmatprep.mubr.f32.mxu0 0.0
  %v1145 = vand.u32 %v920, 4294901760
  %v1146 = vsub.f32 %v920, %v1145
  %1147 = vmatmul.mubr.f32.gmra.mrb[0].mxu0 %v1146
  %v1148 = vpop.f32.mrb[0].mxu0
  %v1149 = vadd.f32 %v1075, %v1148
  %v1150 = vpop.f32.mrb[0].mxu0
  %1151 = vdwg.mxu0
  %1152 = vmatprep.subr.mxu0 0.0
  %v1153 = vand.u32 %v924, 4294901760
  %1154 = vmatpush1.msra.mxu0 %v1153
  %1155 = vmatprep.subr.mxu0 0.0
  %1156 = vmatpush1.msra.mxu0 0.0
  %1157 = vmatprep.subr.mxu0 0.0
  %1158 = vmatpush1.msra.mxu0 0.0
  %1159 = vmatprep.subr.mxu0 0.0
  %1160 = vmatpush1.msra.mxu0 0.0
  %1161 = vmatprep.subr.mxu0 0.0
  %1162 = vmatpush1.msra.mxu0 0.0
  %1163 = vmatprep.subr.mxu0 0.0
  %1164 = vmatpush1.msra.mxu0 0.0
  %1165 = vmatprep.subr.mxu0 0.0
  %1166 = vmatpush1.msra.mxu0 0.0
  %1167 = vmatprep.subr.mxu0 0.0
  %1168 = vmatpush1.msra.mxu0 0.0
  %1169 = vmatprep.subr.mxu0 0.0
  %1170 = vmatpush1.msra.mxu0 0.0
  %1171 = vmatprep.subr.mxu0 0.0
  %1172 = vmatpush1.msra.mxu0 0.0
  %1173 = vmatprep.subr.mxu0 0.0
  %1174 = vmatpush1.msra.mxu0 0.0
  %1175 = vmatprep.subr.mxu0 0.0
  %1176 = vmatpush1.msra.mxu0 0.0
  %1177 = vmatprep.subr.mxu0 0.0
  %1178 = vmatpush1.msra.mxu0 0.0
  %1179 = vmatprep.subr.mxu0 0.0
  %1180 = vmatpush1.msra.mxu0 0.0
  %1181 = vmatprep.subr.mxu0 0.0
  %1182 = vmatpush1.msra.mxu0 0.0
  %1183 = vmatprep.subr.mxu0 0.0
  %1184 = vmatpush1.msra.mxu0 0.0
  %1185 = vmatprep.subr.mxu0 0.0
  %1186 = vmatpush1.msra.mxu0 0.0
  %1187 = vmatprep.subr.mxu0 0.0
  %1188 = vmatpush1.msra.mxu0 0.0
  %1189 = vmatprep.subr.mxu0 0.0
  %1190 = vmatpush1.msra.mxu0 0.0
  %1191 = vmatprep.subr.mxu0 0.0
  %1192 = vmatpush1.msra.mxu0 0.0
  %1193 = vmatprep.subr.mxu0 0.0
  %1194 = vmatpush1.msra.mxu0 0.0
  %1195 = vmatprep.subr.mxu0 0.0
  %1196 = vmatpush1.msra.mxu0 0.0
  %1197 = vmatprep.subr.mxu0 0.0
  %1198 = vmatpush1.msra.mxu0 0.0
  %1199 = vmatprep.subr.mxu0 0.0
  %1200 = vmatpush1.msra.mxu0 0.0
  %1201 = vmatprep.subr.mxu0 0.0
  %1202 = vmatpush1.msra.mxu0 0.0
  %1203 = vmatprep.subr.mxu0 0.0
  %1204 = vmatpush1.msra.mxu0 0.0
  %1205 = vmatprep.subr.mxu0 0.0
  %1206 = vmatpush1.msra.mxu0 0.0
  %1207 = vmatprep.subr.mxu0 0.0
  %1208 = vmatpush1.msra.mxu0 0.0
  %1209 = vmatprep.subr.mxu0 0.0
  %1210 = vmatpush1.msra.mxu0 0.0
  %1211 = vmatprep.subr.mxu0 0.0
  %1212 = vmatpush1.msra.mxu0 0.0
  %1213 = vmatprep.subr.mxu0 0.0
  %1214 = vmatpush1.msra.mxu0 0.0
  %1215 = vmatprep.subr.mxu0 0.0
  %1216 = vmatpush1.msra.mxu0 0.0
  %1217 = vmatprep.mubr.f32.mxu0 0.0
  %v1218 = vand.u32 %v920, 4294901760
  %v1219 = vsub.f32 %v920, %v1218
  %v1220 = vand.u32 %v1219, 4294901760
  %1221 = vmatmul.mubr.f32.gmra.mrb[0].mxu0 %v1220
  %v1222 = vpop.f32.mrb[0].mxu0
  %v1223 = vadd.f32 %v1149, %v1222
  %v1224 = vpop.f32.mrb[0].mxu0
  %1225 = vdwg.mxu0
  %1226 = vmatprep.subr.mxu0 0.0
  %v1227 = vand.u32 %v924, 4294901760
  %v1228 = vsub.f32 %v924, %v1227
  %v1229 = vand.u32 %v1228, 4294901760
  %1230 = vmatpush1.msra.mxu0 %v1229
  %1231 = vmatprep.subr.mxu0 0.0
  %1232 = vmatpush1.msra.mxu0 0.0
  %1233 = vmatprep.subr.mxu0 0.0
  %1234 = vmatpush1.msra.mxu0 0.0
  %1235 = vmatprep.subr.mxu0 0.0
  %1236 = vmatpush1.msra.mxu0 0.0
  %1237 = vmatprep.subr.mxu0 0.0
  %1238 = vmatpush1.msra.mxu0 0.0
  %1239 = vmatprep.subr.mxu0 0.0
  %1240 = vmatpush1.msra.mxu0 0.0
  %1241 = vmatprep.subr.mxu0 0.0
  %1242 = vmatpush1.msra.mxu0 0.0
  %1243 = vmatprep.subr.mxu0 0.0
  %1244 = vmatpush1.msra.mxu0 0.0
  %1245 = vmatprep.subr.mxu0 0.0
  %1246 = vmatpush1.msra.mxu0 0.0
  %1247 = vmatprep.subr.mxu0 0.0
  %1248 = vmatpush1.msra.mxu0 0.0
  %1249 = vmatprep.subr.mxu0 0.0
  %1250 = vmatpush1.msra.mxu0 0.0
  %1251 = vmatprep.subr.mxu0 0.0
  %1252 = vmatpush1.msra.mxu0 0.0
  %1253 = vmatprep.subr.mxu0 0.0
  %1254 = vmatpush1.msra.mxu0 0.0
  %1255 = vmatprep.subr.mxu0 0.0
  %1256 = vmatpush1.msra.mxu0 0.0
  %1257 = vmatprep.subr.mxu0 0.0
  %1258 = vmatpush1.msra.mxu0 0.0
  %1259 = vmatprep.subr.mxu0 0.0
  %1260 = vmatpush1.msra.mxu0 0.0
  %1261 = vmatprep.subr.mxu0 0.0
  %1262 = vmatpush1.msra.mxu0 0.0
  %1263 = vmatprep.subr.mxu0 0.0
  %1264 = vmatpush1.msra.mxu0 0.0
  %1265 = vmatprep.subr.mxu0 0.0
  %1266 = vmatpush1.msra.mxu0 0.0
  %1267 = vmatprep.subr.mxu0 0.0
  %1268 = vmatpush1.msra.mxu0 0.0
  %1269 = vmatprep.subr.mxu0 0.0
  %1270 = vmatpush1.msra.mxu0 0.0
  %1271 = vmatprep.subr.mxu0 0.0
  %1272 = vmatpush1.msra.mxu0 0.0
  %1273 = vmatprep.subr.mxu0 0.0
  %1274 = vmatpush1.msra.mxu0 0.0
  %1275 = vmatprep.subr.mxu0 0.0
  %1276 = vmatpush1.msra.mxu0 0.0
  %1277 = vmatprep.subr.mxu0 0.0
  %1278 = vmatpush1.msra.mxu0 0.0
  %1279 = vmatprep.subr.mxu0 0.0
  %1280 = vmatpush1.msra.mxu0 0.0
  %1281 = vmatprep.subr.mxu0 0.0
  %1282 = vmatpush1.msra.mxu0 0.0
  %1283 = vmatprep.subr.mxu0 0.0
  %1284 = vmatpush1.msra.mxu0 0.0
  %1285 = vmatprep.subr.mxu0 0.0
  %1286 = vmatpush1.msra.mxu0 0.0
  %1287 = vmatprep.subr.mxu0 0.0
  %1288 = vmatpush1.msra.mxu0 0.0
  %1289 = vmatprep.subr.mxu0 0.0
  %1290 = vmatpush1.msra.mxu0 0.0
  %1291 = vmatprep.subr.mxu0 0.0
  %1292 = vmatpush1.msra.mxu0 0.0
  %1293 = vmatprep.mubr.f32.mxu0 0.0
  %v1294 = vand.u32 %v920, 4294901760
  %1295 = vmatmul.mubr.f32.gmra.mrb[0].mxu0 %v1294
  %v1296 = vpop.f32.mrb[0].mxu0
  %v1297 = vadd.f32 %v1223, %v1296
  %v1298 = vpop.f32.mrb[0].mxu0
  %1299 = vdwg.mxu0
  %1300 = vmatprep.subr.mxu0 0.0
  %v1301 = vand.u32 %v924, 4294901760
  %1302 = vmatpush1.msra.mxu0 %v1301
  %1303 = vmatprep.subr.mxu0 0.0
  %1304 = vmatpush1.msra.mxu0 0.0
  %1305 = vmatprep.subr.mxu0 0.0
  %1306 = vmatpush1.msra.mxu0 0.0
  %1307 = vmatprep.subr.mxu0 0.0
  %1308 = vmatpush1.msra.mxu0 0.0
  %1309 = vmatprep.subr.mxu0 0.0
  %1310 = vmatpush1.msra.mxu0 0.0
  %1311 = vmatprep.subr.mxu0 0.0
  %1312 = vmatpush1.msra.mxu0 0.0
  %1313 = vmatprep.subr.mxu0 0.0
  %1314 = vmatpush1.msra.mxu0 0.0
  %1315 = vmatprep.subr.mxu0 0.0
  %1316 = vmatpush1.msra.mxu0 0.0
  %1317 = vmatprep.subr.mxu0 0.0
  %1318 = vmatpush1.msra.mxu0 0.0
  %1319 = vmatprep.subr.mxu0 0.0
  %1320 = vmatpush1.msra.mxu0 0.0
  %1321 = vmatprep.subr.mxu0 0.0
  %1322 = vmatpush1.msra.mxu0 0.0
  %1323 = vmatprep.subr.mxu0 0.0
  %1324 = vmatpush1.msra.mxu0 0.0
  %1325 = vmatprep.subr.mxu0 0.0
  %1326 = vmatpush1.msra.mxu0 0.0
  %1327 = vmatprep.subr.mxu0 0.0
  %1328 = vmatpush1.msra.mxu0 0.0
  %1329 = vmatprep.subr.mxu0 0.0
  %1330 = vmatpush1.msra.mxu0 0.0
  %1331 = vmatprep.subr.mxu0 0.0
  %1332 = vmatpush1.msra.mxu0 0.0
  %1333 = vmatprep.subr.mxu0 0.0
  %1334 = vmatpush1.msra.mxu0 0.0
  %1335 = vmatprep.subr.mxu0 0.0
  %1336 = vmatpush1.msra.mxu0 0.0
  %1337 = vmatprep.subr.mxu0 0.0
  %1338 = vmatpush1.msra.mxu0 0.0
  %1339 = vmatprep.subr.mxu0 0.0
  %1340 = vmatpush1.msra.mxu0 0.0
  %1341 = vmatprep.subr.mxu0 0.0
  %1342 = vmatpush1.msra.mxu0 0.0
  %1343 = vmatprep.subr.mxu0 0.0
  %1344 = vmatpush1.msra.mxu0 0.0
  %1345 = vmatprep.subr.mxu0 0.0
  %1346 = vmatpush1.msra.mxu0 0.0
  %1347 = vmatprep.subr.mxu0 0.0
  %1348 = vmatpush1.msra.mxu0 0.0
  %1349 = vmatprep.subr.mxu0 0.0
  %1350 = vmatpush1.msra.mxu0 0.0
  %1351 = vmatprep.subr.mxu0 0.0
  %1352 = vmatpush1.msra.mxu0 0.0
  %1353 = vmatprep.subr.mxu0 0.0
  %1354 = vmatpush1.msra.mxu0 0.0
  %1355 = vmatprep.subr.mxu0 0.0
  %1356 = vmatpush1.msra.mxu0 0.0
  %1357 = vmatprep.subr.mxu0 0.0
  %1358 = vmatpush1.msra.mxu0 0.0
  %1359 = vmatprep.subr.mxu0 0.0
  %1360 = vmatpush1.msra.mxu0 0.0
  %1361 = vmatprep.subr.mxu0 0.0
  %1362 = vmatpush1.msra.mxu0 0.0
  %1363 = vmatprep.subr.mxu0 0.0
  %1364 = vmatpush1.msra.mxu0 0.0
  %1365 = vmatprep.mubr.f32.mxu0 0.0
  %v1366 = vand.u32 %v920, 4294901760
  %1367 = vmatmul.mubr.f32.gmra.mrb[0].mxu0 %v1366
  %v1368 = vpop.f32.mrb[0].mxu0
  %v1369 = vadd.f32 %v1297, %v1368
  %v1370 = vpop.f32.mrb[0].mxu0
  %1371 = vdwg.mxu0
  %v1373 = vsel %vm918, %v463, 0
  %v1376 = vsel %vm922, %v916, 0
  %1378 = vmatprep.subr.mxu0 0.0
  %v1379 = vand.u32 %v1376, 4294901760
  %1380 = vmatpush1.msra.mxu0 %v1379
  %1381 = vmatprep.subr.mxu0 0.0
  %1382 = vmatpush1.msra.mxu0 0.0
  %1383 = vmatprep.subr.mxu0 0.0
  %1384 = vmatpush1.msra.mxu0 0.0
  %1385 = vmatprep.subr.mxu0 0.0
  %1386 = vmatpush1.msra.mxu0 0.0
  %1387 = vmatprep.subr.mxu0 0.0
  %1388 = vmatpush1.msra.mxu0 0.0
  %1389 = vmatprep.subr.mxu0 0.0
  %1390 = vmatpush1.msra.mxu0 0.0
  %1391 = vmatprep.subr.mxu0 0.0
  %1392 = vmatpush1.msra.mxu0 0.0
  %1393 = vmatprep.subr.mxu0 0.0
  %1394 = vmatpush1.msra.mxu0 0.0
  %1395 = vmatprep.subr.mxu0 0.0
  %1396 = vmatpush1.msra.mxu0 0.0
  %1397 = vmatprep.subr.mxu0 0.0
  %1398 = vmatpush1.msra.mxu0 0.0
  %1399 = vmatprep.subr.mxu0 0.0
  %1400 = vmatpush1.msra.mxu0 0.0
  %1401 = vmatprep.subr.mxu0 0.0
  %1402 = vmatpush1.msra.mxu0 0.0
  %1403 = vmatprep.subr.mxu0 0.0
  %1404 = vmatpush1.msra.mxu0 0.0
  %1405 = vmatprep.subr.mxu0 0.0
  %1406 = vmatpush1.msra.mxu0 0.0
  %1407 = vmatprep.subr.mxu0 0.0
  %1408 = vmatpush1.msra.mxu0 0.0
  %1409 = vmatprep.subr.mxu0 0.0
  %1410 = vmatpush1.msra.mxu0 0.0
  %1411 = vmatprep.subr.mxu0 0.0
  %1412 = vmatpush1.msra.mxu0 0.0
  %1413 = vmatprep.subr.mxu0 0.0
  %1414 = vmatpush1.msra.mxu0 0.0
  %1415 = vmatprep.subr.mxu0 0.0
  %1416 = vmatpush1.msra.mxu0 0.0
  %1417 = vmatprep.subr.mxu0 0.0
  %1418 = vmatpush1.msra.mxu0 0.0
  %1419 = vmatprep.subr.mxu0 0.0
  %1420 = vmatpush1.msra.mxu0 0.0
  %1421 = vmatprep.subr.mxu0 0.0
  %1422 = vmatpush1.msra.mxu0 0.0
  %1423 = vmatprep.subr.mxu0 0.0
  %1424 = vmatpush1.msra.mxu0 0.0
  %1425 = vmatprep.subr.mxu0 0.0
  %1426 = vmatpush1.msra.mxu0 0.0
  %1427 = vmatprep.subr.mxu0 0.0
  %1428 = vmatpush1.msra.mxu0 0.0
  %1429 = vmatprep.subr.mxu0 0.0
  %1430 = vmatpush1.msra.mxu0 0.0
  %1431 = vmatprep.subr.mxu0 0.0
  %1432 = vmatpush1.msra.mxu0 0.0
  %1433 = vmatprep.subr.mxu0 0.0
  %1434 = vmatpush1.msra.mxu0 0.0
  %1435 = vmatprep.subr.mxu0 0.0
  %1436 = vmatpush1.msra.mxu0 0.0
  %1437 = vmatprep.subr.mxu0 0.0
  %1438 = vmatpush1.msra.mxu0 0.0
  %1439 = vmatprep.subr.mxu0 0.0
  %1440 = vmatpush1.msra.mxu0 0.0
  %1441 = vmatprep.subr.mxu0 0.0
  %1442 = vmatpush1.msra.mxu0 0.0
  %1443 = vmatprep.mubr.f32.mxu0 0.0
  %v1444 = vand.u32 %v1373, 4294901760
  %v1445 = vsub.f32 %v1373, %v1444
  %v1446 = vand.u32 %v1445, 4294901760
  %v1447 = vsub.f32 %v1445, %v1446
  %v1448 = vand.u32 %v1447, 4294901760
  %1449 = vmatmul.mubr.f32.gmra.mrb[0].mxu0 %v1448
  %v1450 = vpop.f32.mrb[0].mxu0
  %v1451 = vadd.f32 %v1369, %v1450
  %v1452 = vpop.f32.mrb[0].mxu0
  %1453 = vdwg.mxu0
  %1454 = vmatprep.subr.mxu0 0.0
  %v1455 = vand.u32 %v1376, 4294901760
  %v1456 = vsub.f32 %v1376, %v1455
  %v1457 = vand.u32 %v1456, 4294901760
  %v1458 = vsub.f32 %v1456, %v1457
  %v1459 = vand.u32 %v1458, 4294901760
  %1460 = vmatpush1.msra.mxu0 %v1459
  %1461 = vmatprep.subr.mxu0 0.0
  %1462 = vmatpush1.msra.mxu0 0.0
  %1463 = vmatprep.subr.mxu0 0.0
  %1464 = vmatpush1.msra.mxu0 0.0
  %1465 = vmatprep.subr.mxu0 0.0
  %1466 = vmatpush1.msra.mxu0 0.0
  %1467 = vmatprep.subr.mxu0 0.0
  %1468 = vmatpush1.msra.mxu0 0.0
  %1469 = vmatprep.subr.mxu0 0.0
  %1470 = vmatpush1.msra.mxu0 0.0
  %1471 = vmatprep.subr.mxu0 0.0
  %1472 = vmatpush1.msra.mxu0 0.0
  %1473 = vmatprep.subr.mxu0 0.0
  %1474 = vmatpush1.msra.mxu0 0.0
  %1475 = vmatprep.subr.mxu0 0.0
  %1476 = vmatpush1.msra.mxu0 0.0
  %1477 = vmatprep.subr.mxu0 0.0
  %1478 = vmatpush1.msra.mxu0 0.0
  %1479 = vmatprep.subr.mxu0 0.0
  %1480 = vmatpush1.msra.mxu0 0.0
  %1481 = vmatprep.subr.mxu0 0.0
  %1482 = vmatpush1.msra.mxu0 0.0
  %1483 = vmatprep.subr.mxu0 0.0
  %1484 = vmatpush1.msra.mxu0 0.0
  %1485 = vmatprep.subr.mxu0 0.0
  %1486 = vmatpush1.msra.mxu0 0.0
  %1487 = vmatprep.subr.mxu0 0.0
  %1488 = vmatpush1.msra.mxu0 0.0
  %1489 = vmatprep.subr.mxu0 0.0
  %1490 = vmatpush1.msra.mxu0 0.0
  %1491 = vmatprep.subr.mxu0 0.0
  %1492 = vmatpush1.msra.mxu0 0.0
  %1493 = vmatprep.subr.mxu0 0.0
  %1494 = vmatpush1.msra.mxu0 0.0
  %1495 = vmatprep.subr.mxu0 0.0
  %1496 = vmatpush1.msra.mxu0 0.0
  %1497 = vmatprep.subr.mxu0 0.0
  %1498 = vmatpush1.msra.mxu0 0.0
  %1499 = vmatprep.subr.mxu0 0.0
  %1500 = vmatpush1.msra.mxu0 0.0
  %1501 = vmatprep.subr.mxu0 0.0
  %1502 = vmatpush1.msra.mxu0 0.0
  %1503 = vmatprep.subr.mxu0 0.0
  %1504 = vmatpush1.msra.mxu0 0.0
  %1505 = vmatprep.subr.mxu0 0.0
  %1506 = vmatpush1.msra.mxu0 0.0
  %1507 = vmatprep.subr.mxu0 0.0
  %1508 = vmatpush1.msra.mxu0 0.0
  %1509 = vmatprep.subr.mxu0 0.0
  %1510 = vmatpush1.msra.mxu0 0.0
  %1511 = vmatprep.subr.mxu0 0.0
  %1512 = vmatpush1.msra.mxu0 0.0
  %1513 = vmatprep.subr.mxu0 0.0
  %1514 = vmatpush1.msra.mxu0 0.0
  %1515 = vmatprep.subr.mxu0 0.0
  %1516 = vmatpush1.msra.mxu0 0.0
  %1517 = vmatprep.subr.mxu0 0.0
  %1518 = vmatpush1.msra.mxu0 0.0
  %1519 = vmatprep.subr.mxu0 0.0
  %1520 = vmatpush1.msra.mxu0 0.0
  %1521 = vmatprep.subr.mxu0 0.0
  %1522 = vmatpush1.msra.mxu0 0.0
  %1523 = vmatprep.mubr.f32.mxu0 0.0
  %v1524 = vand.u32 %v1373, 4294901760
  %1525 = vmatmul.mubr.f32.gmra.mrb[0].mxu0 %v1524
  %v1526 = vpop.f32.mrb[0].mxu0
  %v1527 = vadd.f32 %v1451, %v1526
  %v1528 = vpop.f32.mrb[0].mxu0
  %1529 = vdwg.mxu0
  %1530 = vmatprep.subr.mxu0 0.0
  %v1531 = vand.u32 %v1376, 4294901760
  %v1532 = vsub.f32 %v1376, %v1531
  %1533 = vmatpush1.msra.mxu0 %v1532
  %1534 = vmatprep.subr.mxu0 0.0
  %1535 = vmatpush1.msra.mxu0 0.0
  %1536 = vmatprep.subr.mxu0 0.0
  %1537 = vmatpush1.msra.mxu0 0.0
  %1538 = vmatprep.subr.mxu0 0.0
  %1539 = vmatpush1.msra.mxu0 0.0
  %1540 = vmatprep.subr.mxu0 0.0
  %1541 = vmatpush1.msra.mxu0 0.0
  %1542 = vmatprep.subr.mxu0 0.0
  %1543 = vmatpush1.msra.mxu0 0.0
  %1544 = vmatprep.subr.mxu0 0.0
  %1545 = vmatpush1.msra.mxu0 0.0
  %1546 = vmatprep.subr.mxu0 0.0
  %1547 = vmatpush1.msra.mxu0 0.0
  %1548 = vmatprep.subr.mxu0 0.0
  %1549 = vmatpush1.msra.mxu0 0.0
  %1550 = vmatprep.subr.mxu0 0.0
  %1551 = vmatpush1.msra.mxu0 0.0
  %1552 = vmatprep.subr.mxu0 0.0
  %1553 = vmatpush1.msra.mxu0 0.0
  %1554 = vmatprep.subr.mxu0 0.0
  %1555 = vmatpush1.msra.mxu0 0.0
  %1556 = vmatprep.subr.mxu0 0.0
  %1557 = vmatpush1.msra.mxu0 0.0
  %1558 = vmatprep.subr.mxu0 0.0
  %1559 = vmatpush1.msra.mxu0 0.0
  %1560 = vmatprep.subr.mxu0 0.0
  %1561 = vmatpush1.msra.mxu0 0.0
  %1562 = vmatprep.subr.mxu0 0.0
  %1563 = vmatpush1.msra.mxu0 0.0
  %1564 = vmatprep.subr.mxu0 0.0
  %1565 = vmatpush1.msra.mxu0 0.0
  %1566 = vmatprep.subr.mxu0 0.0
  %1567 = vmatpush1.msra.mxu0 0.0
  %1568 = vmatprep.subr.mxu0 0.0
  %1569 = vmatpush1.msra.mxu0 0.0
  %1570 = vmatprep.subr.mxu0 0.0
  %1571 = vmatpush1.msra.mxu0 0.0
  %1572 = vmatprep.subr.mxu0 0.0
  %1573 = vmatpush1.msra.mxu0 0.0
  %1574 = vmatprep.subr.mxu0 0.0
  %1575 = vmatpush1.msra.mxu0 0.0
  %1576 = vmatprep.subr.mxu0 0.0
  %1577 = vmatpush1.msra.mxu0 0.0
  %1578 = vmatprep.subr.mxu0 0.0
  %1579 = vmatpush1.msra.mxu0 0.0
  %1580 = vmatprep.subr.mxu0 0.0
  %1581 = vmatpush1.msra.mxu0 0.0
  %1582 = vmatprep.subr.mxu0 0.0
  %1583 = vmatpush1.msra.mxu0 0.0
  %1584 = vmatprep.subr.mxu0 0.0
  %1585 = vmatpush1.msra.mxu0 0.0
  %1586 = vmatprep.subr.mxu0 0.0
  %1587 = vmatpush1.msra.mxu0 0.0
  %1588 = vmatprep.subr.mxu0 0.0
  %1589 = vmatpush1.msra.mxu0 0.0
  %1590 = vmatprep.subr.mxu0 0.0
  %1591 = vmatpush1.msra.mxu0 0.0
  %1592 = vmatprep.subr.mxu0 0.0
  %1593 = vmatpush1.msra.mxu0 0.0
  %1594 = vmatprep.subr.mxu0 0.0
  %1595 = vmatpush1.msra.mxu0 0.0
  %1596 = vmatprep.mubr.f32.mxu0 0.0
  %v1597 = vand.u32 %v1373, 4294901760
  %v1598 = vsub.f32 %v1373, %v1597
  %1599 = vmatmul.mubr.f32.gmra.mrb[0].mxu0 %v1598
  %v1600 = vpop.f32.mrb[0].mxu0
  %v1601 = vadd.f32 %v1527, %v1600
  %v1602 = vpop.f32.mrb[0].mxu0
  %1603 = vdwg.mxu0
  %1604 = vmatprep.subr.mxu0 0.0
  %v1605 = vand.u32 %v1376, 4294901760
  %1606 = vmatpush1.msra.mxu0 %v1605
  %1607 = vmatprep.subr.mxu0 0.0
  %1608 = vmatpush1.msra.mxu0 0.0
  %1609 = vmatprep.subr.mxu0 0.0
  %1610 = vmatpush1.msra.mxu0 0.0
  %1611 = vmatprep.subr.mxu0 0.0
  %1612 = vmatpush1.msra.mxu0 0.0
  %1613 = vmatprep.subr.mxu0 0.0
  %1614 = vmatpush1.msra.mxu0 0.0
  %1615 = vmatprep.subr.mxu0 0.0
  %1616 = vmatpush1.msra.mxu0 0.0
  %1617 = vmatprep.subr.mxu0 0.0
  %1618 = vmatpush1.msra.mxu0 0.0
  %1619 = vmatprep.subr.mxu0 0.0
  %1620 = vmatpush1.msra.mxu0 0.0
  %1621 = vmatprep.subr.mxu0 0.0
  %1622 = vmatpush1.msra.mxu0 0.0
  %1623 = vmatprep.subr.mxu0 0.0
  %1624 = vmatpush1.msra.mxu0 0.0
  %1625 = vmatprep.subr.mxu0 0.0
  %1626 = vmatpush1.msra.mxu0 0.0
  %1627 = vmatprep.subr.mxu0 0.0
  %1628 = vmatpush1.msra.mxu0 0.0
  %1629 = vmatprep.subr.mxu0 0.0
  %1630 = vmatpush1.msra.mxu0 0.0
  %1631 = vmatprep.subr.mxu0 0.0
  %1632 = vmatpush1.msra.mxu0 0.0
  %1633 = vmatprep.subr.mxu0 0.0
  %1634 = vmatpush1.msra.mxu0 0.0
  %1635 = vmatprep.subr.mxu0 0.0
  %1636 = vmatpush1.msra.mxu0 0.0
  %1637 = vmatprep.subr.mxu0 0.0
  %1638 = vmatpush1.msra.mxu0 0.0
  %1639 = vmatprep.subr.mxu0 0.0
  %1640 = vmatpush1.msra.mxu0 0.0
  %1641 = vmatprep.subr.mxu0 0.0
  %1642 = vmatpush1.msra.mxu0 0.0
  %1643 = vmatprep.subr.mxu0 0.0
  %1644 = vmatpush1.msra.mxu0 0.0
  %1645 = vmatprep.subr.mxu0 0.0
  %1646 = vmatpush1.msra.mxu0 0.0
  %1647 = vmatprep.subr.mxu0 0.0
  %1648 = vmatpush1.msra.mxu0 0.0
  %1649 = vmatprep.subr.mxu0 0.0
  %1650 = vmatpush1.msra.mxu0 0.0
  %1651 = vmatprep.subr.mxu0 0.0
  %1652 = vmatpush1.msra.mxu0 0.0
  %1653 = vmatprep.subr.mxu0 0.0
  %1654 = vmatpush1.msra.mxu0 0.0
  %1655 = vmatprep.subr.mxu0 0.0
  %1656 = vmatpush1.msra.mxu0 0.0
  %1657 = vmatprep.subr.mxu0 0.0
  %1658 = vmatpush1.msra.mxu0 0.0
  %1659 = vmatprep.subr.mxu0 0.0
  %1660 = vmatpush1.msra.mxu0 0.0
  %1661 = vmatprep.subr.mxu0 0.0
  %1662 = vmatpush1.msra.mxu0 0.0
  %1663 = vmatprep.subr.mxu0 0.0
  %1664 = vmatpush1.msra.mxu0 0.0
  %1665 = vmatprep.subr.mxu0 0.0
  %1666 = vmatpush1.msra.mxu0 0.0
  %1667 = vmatprep.subr.mxu0 0.0
  %1668 = vmatpush1.msra.mxu0 0.0
  %1669 = vmatprep.mubr.f32.mxu0 0.0
  %v1670 = vand.u32 %v1373, 4294901760
  %v1671 = vsub.f32 %v1373, %v1670
  %v1672 = vand.u32 %v1671, 4294901760
  %1673 = vmatmul.mubr.f32.gmra.mrb[0].mxu0 %v1672
  %v1674 = vpop.f32.mrb[0].mxu0
  %v1675 = vadd.f32 %v1601, %v1674
  %v1676 = vpop.f32.mrb[0].mxu0
  %1677 = vdwg.mxu0
  %1678 = vmatprep.subr.mxu0 0.0
  %v1679 = vand.u32 %v1376, 4294901760
  %v1680 = vsub.f32 %v1376, %v1679
  %v1681 = vand.u32 %v1680, 4294901760
  %1682 = vmatpush1.msra.mxu0 %v1681
  %1683 = vmatprep.subr.mxu0 0.0
  %1684 = vmatpush1.msra.mxu0 0.0
  %1685 = vmatprep.subr.mxu0 0.0
  %1686 = vmatpush1.msra.mxu0 0.0
  %1687 = vmatprep.subr.mxu0 0.0
  %1688 = vmatpush1.msra.mxu0 0.0
  %1689 = vmatprep.subr.mxu0 0.0
  %1690 = vmatpush1.msra.mxu0 0.0
  %1691 = vmatprep.subr.mxu0 0.0
  %1692 = vmatpush1.msra.mxu0 0.0
  %1693 = vmatprep.subr.mxu0 0.0
  %1694 = vmatpush1.msra.mxu0 0.0
  %1695 = vmatprep.subr.mxu0 0.0
  %1696 = vmatpush1.msra.mxu0 0.0
  %1697 = vmatprep.subr.mxu0 0.0
  %1698 = vmatpush1.msra.mxu0 0.0
  %1699 = vmatprep.subr.mxu0 0.0
  %1700 = vmatpush1.msra.mxu0 0.0
  %1701 = vmatprep.subr.mxu0 0.0
  %1702 = vmatpush1.msra.mxu0 0.0
  %1703 = vmatprep.subr.mxu0 0.0
  %1704 = vmatpush1.msra.mxu0 0.0
  %1705 = vmatprep.subr.mxu0 0.0
  %1706 = vmatpush1.msra.mxu0 0.0
  %1707 = vmatprep.subr.mxu0 0.0
  %1708 = vmatpush1.msra.mxu0 0.0
  %1709 = vmatprep.subr.mxu0 0.0
  %1710 = vmatpush1.msra.mxu0 0.0
  %1711 = vmatprep.subr.mxu0 0.0
  %1712 = vmatpush1.msra.mxu0 0.0
  %1713 = vmatprep.subr.mxu0 0.0
  %1714 = vmatpush1.msra.mxu0 0.0
  %1715 = vmatprep.subr.mxu0 0.0
  %1716 = vmatpush1.msra.mxu0 0.0
  %1717 = vmatprep.subr.mxu0 0.0
  %1718 = vmatpush1.msra.mxu0 0.0
  %1719 = vmatprep.subr.mxu0 0.0
  %1720 = vmatpush1.msra.mxu0 0.0
  %1721 = vmatprep.subr.mxu0 0.0
  %1722 = vmatpush1.msra.mxu0 0.0
  %1723 = vmatprep.subr.mxu0 0.0
  %1724 = vmatpush1.msra.mxu0 0.0
  %1725 = vmatprep.subr.mxu0 0.0
  %1726 = vmatpush1.msra.mxu0 0.0
  %1727 = vmatprep.subr.mxu0 0.0
  %1728 = vmatpush1.msra.mxu0 0.0
  %1729 = vmatprep.subr.mxu0 0.0
  %1730 = vmatpush1.msra.mxu0 0.0
  %1731 = vmatprep.subr.mxu0 0.0
  %1732 = vmatpush1.msra.mxu0 0.0
  %1733 = vmatprep.subr.mxu0 0.0
  %1734 = vmatpush1.msra.mxu0 0.0
  %1735 = vmatprep.subr.mxu0 0.0
  %1736 = vmatpush1.msra.mxu0 0.0
  %1737 = vmatprep.subr.mxu0 0.0
  %1738 = vmatpush1.msra.mxu0 0.0
  %1739 = vmatprep.subr.mxu0 0.0
  %1740 = vmatpush1.msra.mxu0 0.0
  %1741 = vmatprep.subr.mxu0 0.0
  %1742 = vmatpush1.msra.mxu0 0.0
  %1743 = vmatprep.subr.mxu0 0.0
  %1744 = vmatpush1.msra.mxu0 0.0
  %1745 = vmatprep.mubr.f32.mxu0 0.0
  %v1746 = vand.u32 %v1373, 4294901760
  %1747 = vmatmul.mubr.f32.gmra.mrb[0].mxu0 %v1746
  %v1748 = vpop.f32.mrb[0].mxu0
  %v1749 = vadd.f32 %v1675, %v1748
  %v1750 = vpop.f32.mrb[0].mxu0
  %1751 = vdwg.mxu0
  %1752 = vmatprep.subr.mxu0 0.0
  %v1753 = vand.u32 %v1376, 4294901760
  %1754 = vmatpush1.msra.mxu0 %v1753
  %1755 = vmatprep.subr.mxu0 0.0
  %1756 = vmatpush1.msra.mxu0 0.0
  %1757 = vmatprep.subr.mxu0 0.0
  %1758 = vmatpush1.msra.mxu0 0.0
  %1759 = vmatprep.subr.mxu0 0.0
  %1760 = vmatpush1.msra.mxu0 0.0
  %1761 = vmatprep.subr.mxu0 0.0
  %1762 = vmatpush1.msra.mxu0 0.0
  %1763 = vmatprep.subr.mxu0 0.0
  %1764 = vmatpush1.msra.mxu0 0.0
  %1765 = vmatprep.subr.mxu0 0.0
  %1766 = vmatpush1.msra.mxu0 0.0
  %1767 = vmatprep.subr.mxu0 0.0
  %1768 = vmatpush1.msra.mxu0 0.0
  %1769 = vmatprep.subr.mxu0 0.0
  %1770 = vmatpush1.msra.mxu0 0.0
  %1771 = vmatprep.subr.mxu0 0.0
  %1772 = vmatpush1.msra.mxu0 0.0
  %1773 = vmatprep.subr.mxu0 0.0
  %1774 = vmatpush1.msra.mxu0 0.0
  %1775 = vmatprep.subr.mxu0 0.0
  %1776 = vmatpush1.msra.mxu0 0.0
  %1777 = vmatprep.subr.mxu0 0.0
  %1778 = vmatpush1.msra.mxu0 0.0
  %1779 = vmatprep.subr.mxu0 0.0
  %1780 = vmatpush1.msra.mxu0 0.0
  %1781 = vmatprep.subr.mxu0 0.0
  %1782 = vmatpush1.msra.mxu0 0.0
  %1783 = vmatprep.subr.mxu0 0.0
  %1784 = vmatpush1.msra.mxu0 0.0
  %1785 = vmatprep.subr.mxu0 0.0
  %1786 = vmatpush1.msra.mxu0 0.0
  %1787 = vmatprep.subr.mxu0 0.0
  %1788 = vmatpush1.msra.mxu0 0.0
  %1789 = vmatprep.subr.mxu0 0.0
  %1790 = vmatpush1.msra.mxu0 0.0
  %1791 = vmatprep.subr.mxu0 0.0
  %1792 = vmatpush1.msra.mxu0 0.0
  %1793 = vmatprep.subr.mxu0 0.0
  %1794 = vmatpush1.msra.mxu0 0.0
  %1795 = vmatprep.subr.mxu0 0.0
  %1796 = vmatpush1.msra.mxu0 0.0
  %1797 = vmatprep.subr.mxu0 0.0
  %1798 = vmatpush1.msra.mxu0 0.0
  %1799 = vmatprep.subr.mxu0 0.0
  %1800 = vmatpush1.msra.mxu0 0.0
  %1801 = vmatprep.subr.mxu0 0.0
  %1802 = vmatpush1.msra.mxu0 0.0
  %1803 = vmatprep.subr.mxu0 0.0
  %1804 = vmatpush1.msra.mxu0 0.0
  %1805 = vmatprep.subr.mxu0 0.0
  %1806 = vmatpush1.msra.mxu0 0.0
  %1807 = vmatprep.subr.mxu0 0.0
  %1808 = vmatpush1.msra.mxu0 0.0
  %1809 = vmatprep.subr.mxu0 0.0
  %1810 = vmatpush1.msra.mxu0 0.0
  %1811 = vmatprep.subr.mxu0 0.0
  %1812 = vmatpush1.msra.mxu0 0.0
  %1813 = vmatprep.subr.mxu0 0.0
  %1814 = vmatpush1.msra.mxu0 0.0
  %1815 = vmatprep.subr.mxu0 0.0
  %1816 = vmatpush1.msra.mxu0 0.0
  %1817 = vmatprep.mubr.f32.mxu0 0.0
  %v1818 = vand.u32 %v1373, 4294901760
  %1819 = vmatmul.mubr.f32.gmra.mrb[0].mxu0 %v1818
  %v1820 = vpop.f32.mrb[0].mxu0
  %v1821 = vadd.f32 %v1749, %v1820
  %v1822 = vpop.f32.mrb[0].mxu0
  %1823 = vdwg.mxu0
  %v1824 = vld [vmem:[%s1 + $0x10] sm:$0x3]
  %vm1825 = vcmask 15360
  %v1827 = vsel %vm1825, %v12, 0
  %vm1829 = vcmask 1041408
  %v1831 = vsel %vm1829, %v1824, 0
  %1833 = vmatprep.subr.mxu0 0.0
  %v1834 = vand.u32 %v1831, 4294901760
  %1835 = vmatpush1.msra.mxu0 %v1834
  %1836 = vmatprep.subr.mxu0 0.0
  %1837 = vmatpush1.msra.mxu0 0.0
  %1838 = vmatprep.subr.mxu0 0.0
  %1839 = vmatpush1.msra.mxu0 0.0
  %1840 = vmatprep.subr.mxu0 0.0
  %1841 = vmatpush1.msra.mxu0 0.0
  %1842 = vmatprep.subr.mxu0 0.0
  %1843 = vmatpush1.msra.mxu0 0.0
  %1844 = vmatprep.subr.mxu0 0.0
  %1845 = vmatpush1.msra.mxu0 0.0
  %1846 = vmatprep.subr.mxu0 0.0
  %1847 = vmatpush1.msra.mxu0 0.0
  %1848 = vmatprep.subr.mxu0 0.0
  %1849 = vmatpush1.msra.mxu0 0.0
  %1850 = vmatprep.subr.mxu0 0.0
  %1851 = vmatpush1.msra.mxu0 0.0
  %1852 = vmatprep.subr.mxu0 0.0
  %1853 = vmatpush1.msra.mxu0 0.0
  %1854 = vmatprep.subr.mxu0 0.0
  %1855 = vmatpush1.msra.mxu0 0.0
  %1856 = vmatprep.subr.mxu0 0.0
  %1857 = vmatpush1.msra.mxu0 0.0
  %1858 = vmatprep.subr.mxu0 0.0
  %1859 = vmatpush1.msra.mxu0 0.0
  %1860 = vmatprep.subr.mxu0 0.0
  %1861 = vmatpush1.msra.mxu0 0.0
  %1862 = vmatprep.subr.mxu0 0.0
  %1863 = vmatpush1.msra.mxu0 0.0
  %1864 = vmatprep.subr.mxu0 0.0
  %1865 = vmatpush1.msra.mxu0 0.0
  %1866 = vmatprep.subr.mxu0 0.0
  %1867 = vmatpush1.msra.mxu0 0.0
  %1868 = vmatprep.subr.mxu0 0.0
  %1869 = vmatpush1.msra.mxu0 0.0
  %1870 = vmatprep.subr.mxu0 0.0
  %1871 = vmatpush1.msra.mxu0 0.0
  %1872 = vmatprep.subr.mxu0 0.0
  %1873 = vmatpush1.msra.mxu0 0.0
  %1874 = vmatprep.subr.mxu0 0.0
  %1875 = vmatpush1.msra.mxu0 0.0
  %1876 = vmatprep.subr.mxu0 0.0
  %1877 = vmatpush1.msra.mxu0 0.0
  %1878 = vmatprep.subr.mxu0 0.0
  %1879 = vmatpush1.msra.mxu0 0.0
  %1880 = vmatprep.subr.mxu0 0.0
  %1881 = vmatpush1.msra.mxu0 0.0
  %1882 = vmatprep.subr.mxu0 0.0
  %1883 = vmatpush1.msra.mxu0 0.0
  %1884 = vmatprep.subr.mxu0 0.0
  %1885 = vmatpush1.msra.mxu0 0.0
  %1886 = vmatprep.subr.mxu0 0.0
  %1887 = vmatpush1.msra.mxu0 0.0
  %1888 = vmatprep.subr.mxu0 0.0
  %1889 = vmatpush1.msra.mxu0 0.0
  %1890 = vmatprep.subr.mxu0 0.0
  %1891 = vmatpush1.msra.mxu0 0.0
  %1892 = vmatprep.subr.mxu0 0.0
  %1893 = vmatpush1.msra.mxu0 0.0
  %1894 = vmatprep.subr.mxu0 0.0
  %1895 = vmatpush1.msra.mxu0 0.0
  %1896 = vmatprep.subr.mxu0 0.0
  %1897 = vmatpush1.msra.mxu0 0.0
  %1898 = vmatprep.mubr.f32.mxu0 0.0
  %v1899 = vand.u32 %v1827, 4294901760
  %v1900 = vsub.f32 %v1827, %v1899
  %v1901 = vand.u32 %v1900, 4294901760
  %v1902 = vsub.f32 %v1900, %v1901
  %v1903 = vand.u32 %v1902, 4294901760
  %1904 = vmatmul.mubr.f32.gmra.mrb[0].mxu0 %v1903
  %v1905 = vpop.f32.mrb[0].mxu0
  %v1906 = vadd.f32 0.0, %v1905
  %v1907 = vpop.f32.mrb[0].mxu0
  %1908 = vdwg.mxu0
  %1909 = vmatprep.subr.mxu0 0.0
  %v1910 = vand.u32 %v1831, 4294901760
  %v1911 = vsub.f32 %v1831, %v1910
  %v1912 = vand.u32 %v1911, 4294901760
  %v1913 = vsub.f32 %v1911, %v1912
  %v1914 = vand.u32 %v1913, 4294901760
  %1915 = vmatpush1.msra.mxu0 %v1914
  %1916 = vmatprep.subr.mxu0 0.0
  %1917 = vmatpush1.msra.mxu0 0.0
  %1918 = vmatprep.subr.mxu0 0.0
  %1919 = vmatpush1.msra.mxu0 0.0
  %1920 = vmatprep.subr.mxu0 0.0
  %1921 = vmatpush1.msra.mxu0 0.0
  %1922 = vmatprep.subr.mxu0 0.0
  %1923 = vmatpush1.msra.mxu0 0.0
  %1924 = vmatprep.subr.mxu0 0.0
  %1925 = vmatpush1.msra.mxu0 0.0
  %1926 = vmatprep.subr.mxu0 0.0
  %1927 = vmatpush1.msra.mxu0 0.0
  %1928 = vmatprep.subr.mxu0 0.0
  %1929 = vmatpush1.msra.mxu0 0.0
  %1930 = vmatprep.subr.mxu0 0.0
  %1931 = vmatpush1.msra.mxu0 0.0
  %1932 = vmatprep.subr.mxu0 0.0
  %1933 = vmatpush1.msra.mxu0 0.0
  %1934 = vmatprep.subr.mxu0 0.0
  %1935 = vmatpush1.msra.mxu0 0.0
  %1936 = vmatprep.subr.mxu0 0.0
  %1937 = vmatpush1.msra.mxu0 0.0
  %1938 = vmatprep.subr.mxu0 0.0
  %1939 = vmatpush1.msra.mxu0 0.0
  %1940 = vmatprep.subr.mxu0 0.0
  %1941 = vmatpush1.msra.mxu0 0.0
  %1942 = vmatprep.subr.mxu0 0.0
  %1943 = vmatpush1.msra.mxu0 0.0
  %1944 = vmatprep.subr.mxu0 0.0
  %1945 = vmatpush1.msra.mxu0 0.0
  %1946 = vmatprep.subr.mxu0 0.0
  %1947 = vmatpush1.msra.mxu0 0.0
  %1948 = vmatprep.subr.mxu0 0.0
  %1949 = vmatpush1.msra.mxu0 0.0
  %1950 = vmatprep.subr.mxu0 0.0
  %1951 = vmatpush1.msra.mxu0 0.0
  %1952 = vmatprep.subr.mxu0 0.0
  %1953 = vmatpush1.msra.mxu0 0.0
  %1954 = vmatprep.subr.mxu0 0.0
  %1955 = vmatpush1.msra.mxu0 0.0
  %1956 = vmatprep.subr.mxu0 0.0
  %1957 = vmatpush1.msra.mxu0 0.0
  %1958 = vmatprep.subr.mxu0 0.0
  %1959 = vmatpush1.msra.mxu0 0.0
  %1960 = vmatprep.subr.mxu0 0.0
  %1961 = vmatpush1.msra.mxu0 0.0
  %1962 = vmatprep.subr.mxu0 0.0
  %1963 = vmatpush1.msra.mxu0 0.0
  %1964 = vmatprep.subr.mxu0 0.0
  %1965 = vmatpush1.msra.mxu0 0.0
  %1966 = vmatprep.subr.mxu0 0.0
  %1967 = vmatpush1.msra.mxu0 0.0
  %1968 = vmatprep.subr.mxu0 0.0
  %1969 = vmatpush1.msra.mxu0 0.0
  %1970 = vmatprep.subr.mxu0 0.0
  %1971 = vmatpush1.msra.mxu0 0.0
  %1972 = vmatprep.subr.mxu0 0.0
  %1973 = vmatpush1.msra.mxu0 0.0
  %1974 = vmatprep.subr.mxu0 0.0
  %1975 = vmatpush1.msra.mxu0 0.0
  %1976 = vmatprep.subr.mxu0 0.0
  %1977 = vmatpush1.msra.mxu0 0.0
  %1978 = vmatprep.mubr.f32.mxu0 0.0
  %v1979 = vand.u32 %v1827, 4294901760
  %1980 = vmatmul.mubr.f32.gmra.mrb[0].mxu0 %v1979
  %v1981 = vpop.f32.mrb[0].mxu0
  %v1982 = vadd.f32 %v1906, %v1981
  %v1983 = vpop.f32.mrb[0].mxu0
  %1984 = vdwg.mxu0
  %1985 = vmatprep.subr.mxu0 0.0
  %v1986 = vand.u32 %v1831, 4294901760
  %v1987 = vsub.f32 %v1831, %v1986
  %1988 = vmatpush1.msra.mxu0 %v1987
  %1989 = vmatprep.subr.mxu0 0.0
  %1990 = vmatpush1.msra.mxu0 0.0
  %1991 = vmatprep.subr.mxu0 0.0
  %1992 = vmatpush1.msra.mxu0 0.0
  %1993 = vmatprep.subr.mxu0 0.0
  %1994 = vmatpush1.msra.mxu0 0.0
  %1995 = vmatprep.subr.mxu0 0.0
  %1996 = vmatpush1.msra.mxu0 0.0
  %1997 = vmatprep.subr.mxu0 0.0
  %1998 = vmatpush1.msra.mxu0 0.0
  %1999 = vmatprep.subr.mxu0 0.0
  %2000 = vmatpush1.msra.mxu0 0.0
  %2001 = vmatprep.subr.mxu0 0.0
  %2002 = vmatpush1.msra.mxu0 0.0
  %2003 = vmatprep.subr.mxu0 0.0
  %2004 = vmatpush1.msra.mxu0 0.0
  %2005 = vmatprep.subr.mxu0 0.0
  %2006 = vmatpush1.msra.mxu0 0.0
  %2007 = vmatprep.subr.mxu0 0.0
  %2008 = vmatpush1.msra.mxu0 0.0
  %2009 = vmatprep.subr.mxu0 0.0
  %2010 = vmatpush1.msra.mxu0 0.0
  %2011 = vmatprep.subr.mxu0 0.0
  %2012 = vmatpush1.msra.mxu0 0.0
  %2013 = vmatprep.subr.mxu0 0.0
  %2014 = vmatpush1.msra.mxu0 0.0
  %2015 = vmatprep.subr.mxu0 0.0
  %2016 = vmatpush1.msra.mxu0 0.0
  %2017 = vmatprep.subr.mxu0 0.0
  %2018 = vmatpush1.msra.mxu0 0.0
  %2019 = vmatprep.subr.mxu0 0.0
  %2020 = vmatpush1.msra.mxu0 0.0
  %2021 = vmatprep.subr.mxu0 0.0
  %2022 = vmatpush1.msra.mxu0 0.0
  %2023 = vmatprep.subr.mxu0 0.0
  %2024 = vmatpush1.msra.mxu0 0.0
  %2025 = vmatprep.subr.mxu0 0.0
  %2026 = vmatpush1.msra.mxu0 0.0
  %2027 = vmatprep.subr.mxu0 0.0
  %2028 = vmatpush1.msra.mxu0 0.0
  %2029 = vmatprep.subr.mxu0 0.0
  %2030 = vmatpush1.msra.mxu0 0.0
  %2031 = vmatprep.subr.mxu0 0.0
  %2032 = vmatpush1.msra.mxu0 0.0
  %2033 = vmatprep.subr.mxu0 0.0
  %2034 = vmatpush1.msra.mxu0 0.0
  %2035 = vmatprep.subr.mxu0 0.0
  %2036 = vmatpush1.msra.mxu0 0.0
  %2037 = vmatprep.subr.mxu0 0.0
  %2038 = vmatpush1.msra.mxu0 0.0
  %2039 = vmatprep.subr.mxu0 0.0
  %2040 = vmatpush1.msra.mxu0 0.0
  %2041 = vmatprep.subr.mxu0 0.0
  %2042 = vmatpush1.msra.mxu0 0.0
  %2043 = vmatprep.subr.mxu0 0.0
  %2044 = vmatpush1.msra.mxu0 0.0
  %2045 = vmatprep.subr.mxu0 0.0
  %2046 = vmatpush1.msra.mxu0 0.0
  %2047 = vmatprep.subr.mxu0 0.0
  %2048 = vmatpush1.msra.mxu0 0.0
  %2049 = vmatprep.subr.mxu0 0.0
  %2050 = vmatpush1.msra.mxu0 0.0
  %2051 = vmatprep.mubr.f32.mxu0 0.0
  %v2052 = vand.u32 %v1827, 4294901760
  %v2053 = vsub.f32 %v1827, %v2052
  %2054 = vmatmul.mubr.f32.gmra.mrb[0].mxu0 %v2053
  %v2055 = vpop.f32.mrb[0].mxu0
  %v2056 = vadd.f32 %v1982, %v2055
  %v2057 = vpop.f32.mrb[0].mxu0
  %2058 = vdwg.mxu0
  %2059 = vmatprep.subr.mxu0 0.0
  %v2060 = vand.u32 %v1831, 4294901760
  %2061 = vmatpush1.msra.mxu0 %v2060
  %2062 = vmatprep.subr.mxu0 0.0
  %2063 = vmatpush1.msra.mxu0 0.0
  %2064 = vmatprep.subr.mxu0 0.0
  %2065 = vmatpush1.msra.mxu0 0.0
  %2066 = vmatprep.subr.mxu0 0.0
  %2067 = vmatpush1.msra.mxu0 0.0
  %2068 = vmatprep.subr.mxu0 0.0
  %2069 = vmatpush1.msra.mxu0 0.0
  %2070 = vmatprep.subr.mxu0 0.0
  %2071 = vmatpush1.msra.mxu0 0.0
  %2072 = vmatprep.subr.mxu0 0.0
  %2073 = vmatpush1.msra.mxu0 0.0
  %2074 = vmatprep.subr.mxu0 0.0
  %2075 = vmatpush1.msra.mxu0 0.0
  %2076 = vmatprep.subr.mxu0 0.0
  %2077 = vmatpush1.msra.mxu0 0.0
  %2078 = vmatprep.subr.mxu0 0.0
  %2079 = vmatpush1.msra.mxu0 0.0
  %2080 = vmatprep.subr.mxu0 0.0
  %2081 = vmatpush1.msra.mxu0 0.0
  %2082 = vmatprep.subr.mxu0 0.0
  %2083 = vmatpush1.msra.mxu0 0.0
  %2084 = vmatprep.subr.mxu0 0.0
  %2085 = vmatpush1.msra.mxu0 0.0
  %2086 = vmatprep.subr.mxu0 0.0
  %2087 = vmatpush1.msra.mxu0 0.0
  %2088 = vmatprep.subr.mxu0 0.0
  %2089 = vmatpush1.msra.mxu0 0.0
  %2090 = vmatprep.subr.mxu0 0.0
  %2091 = vmatpush1.msra.mxu0 0.0
  %2092 = vmatprep.subr.mxu0 0.0
  %2093 = vmatpush1.msra.mxu0 0.0
  %2094 = vmatprep.subr.mxu0 0.0
  %2095 = vmatpush1.msra.mxu0 0.0
  %2096 = vmatprep.subr.mxu0 0.0
  %2097 = vmatpush1.msra.mxu0 0.0
  %2098 = vmatprep.subr.mxu0 0.0
  %2099 = vmatpush1.msra.mxu0 0.0
  %2100 = vmatprep.subr.mxu0 0.0
  %2101 = vmatpush1.msra.mxu0 0.0
  %2102 = vmatprep.subr.mxu0 0.0
  %2103 = vmatpush1.msra.mxu0 0.0
  %2104 = vmatprep.subr.mxu0 0.0
  %2105 = vmatpush1.msra.mxu0 0.0
  %2106 = vmatprep.subr.mxu0 0.0
  %2107 = vmatpush1.msra.mxu0 0.0
  %2108 = vmatprep.subr.mxu0 0.0
  %2109 = vmatpush1.msra.mxu0 0.0
  %2110 = vmatprep.subr.mxu0 0.0
  %2111 = vmatpush1.msra.mxu0 0.0
  %2112 = vmatprep.subr.mxu0 0.0
  %2113 = vmatpush1.msra.mxu0 0.0
  %2114 = vmatprep.subr.mxu0 0.0
  %2115 = vmatpush1.msra.mxu0 0.0
  %2116 = vmatprep.subr.mxu0 0.0
  %2117 = vmatpush1.msra.mxu0 0.0
  %2118 = vmatprep.subr.mxu0 0.0
  %2119 = vmatpush1.msra.mxu0 0.0
  %2120 = vmatprep.subr.mxu0 0.0
  %2121 = vmatpush1.msra.mxu0 0.0
  %2122 = vmatprep.subr.mxu0 0.0
  %2123 = vmatpush1.msra.mxu0 0.0
  %2124 = vmatprep.mubr.f32.mxu0 0.0
  %v2125 = vand.u32 %v1827, 4294901760
  %v2126 = vsub.f32 %v1827, %v2125
  %v2127 = vand.u32 %v2126, 4294901760
  %2128 = vmatmul.mubr.f32.gmra.mrb[0].mxu0 %v2127
  %v2129 = vpop.f32.mrb[0].mxu0
  %v2130 = vadd.f32 %v2056, %v2129
  %v2131 = vpop.f32.mrb[0].mxu0
  %2132 = vdwg.mxu0
  %2133 = vmatprep.subr.mxu0 0.0
  %v2134 = vand.u32 %v1831, 4294901760
  %v2135 = vsub.f32 %v1831, %v2134
  %v2136 = vand.u32 %v2135, 4294901760
  %2137 = vmatpush1.msra.mxu0 %v2136
  %2138 = vmatprep.subr.mxu0 0.0
  %2139 = vmatpush1.msra.mxu0 0.0
  %2140 = vmatprep.subr.mxu0 0.0
  %2141 = vmatpush1.msra.mxu0 0.0
  %2142 = vmatprep.subr.mxu0 0.0
  %2143 = vmatpush1.msra.mxu0 0.0
  %2144 = vmatprep.subr.mxu0 0.0
  %2145 = vmatpush1.msra.mxu0 0.0
  %2146 = vmatprep.subr.mxu0 0.0
  %2147 = vmatpush1.msra.mxu0 0.0
  %2148 = vmatprep.subr.mxu0 0.0
  %2149 = vmatpush1.msra.mxu0 0.0
  %2150 = vmatprep.subr.mxu0 0.0
  %2151 = vmatpush1.msra.mxu0 0.0
  %2152 = vmatprep.subr.mxu0 0.0
  %2153 = vmatpush1.msra.mxu0 0.0
  %2154 = vmatprep.subr.mxu0 0.0
  %2155 = vmatpush1.msra.mxu0 0.0
  %2156 = vmatprep.subr.mxu0 0.0
  %2157 = vmatpush1.msra.mxu0 0.0
  %2158 = vmatprep.subr.mxu0 0.0
  %2159 = vmatpush1.msra.mxu0 0.0
  %2160 = vmatprep.subr.mxu0 0.0
  %2161 = vmatpush1.msra.mxu0 0.0
  %2162 = vmatprep.subr.mxu0 0.0
  %2163 = vmatpush1.msra.mxu0 0.0
  %2164 = vmatprep.subr.mxu0 0.0
  %2165 = vmatpush1.msra.mxu0 0.0
  %2166 = vmatprep.subr.mxu0 0.0
  %2167 = vmatpush1.msra.mxu0 0.0
  %2168 = vmatprep.subr.mxu0 0.0
  %2169 = vmatpush1.msra.mxu0 0.0
  %2170 = vmatprep.subr.mxu0 0.0
  %2171 = vmatpush1.msra.mxu0 0.0
  %2172 = vmatprep.subr.mxu0 0.0
  %2173 = vmatpush1.msra.mxu0 0.0
  %2174 = vmatprep.subr.mxu0 0.0
  %2175 = vmatpush1.msra.mxu0 0.0
  %2176 = vmatprep.subr.mxu0 0.0
  %2177 = vmatpush1.msra.mxu0 0.0
  %2178 = vmatprep.subr.mxu0 0.0
  %2179 = vmatpush1.msra.mxu0 0.0
  %2180 = vmatprep.subr.mxu0 0.0
  %2181 = vmatpush1.msra.mxu0 0.0
  %2182 = vmatprep.subr.mxu0 0.0
  %2183 = vmatpush1.msra.mxu0 0.0
  %2184 = vmatprep.subr.mxu0 0.0
  %2185 = vmatpush1.msra.mxu0 0.0
  %2186 = vmatprep.subr.mxu0 0.0
  %2187 = vmatpush1.msra.mxu0 0.0
  %2188 = vmatprep.subr.mxu0 0.0
  %2189 = vmatpush1.msra.mxu0 0.0
  %2190 = vmatprep.subr.mxu0 0.0
  %2191 = vmatpush1.msra.mxu0 0.0
  %2192 = vmatprep.subr.mxu0 0.0
  %2193 = vmatpush1.msra.mxu0 0.0
  %2194 = vmatprep.subr.mxu0 0.0
  %2195 = vmatpush1.msra.mxu0 0.0
  %2196 = vmatprep.subr.mxu0 0.0
  %2197 = vmatpush1.msra.mxu0 0.0
  %2198 = vmatprep.subr.mxu0 0.0
  %2199 = vmatpush1.msra.mxu0 0.0
  %2200 = vmatprep.mubr.f32.mxu0 0.0
  %v2201 = vand.u32 %v1827, 4294901760
  %2202 = vmatmul.mubr.f32.gmra.mrb[0].mxu0 %v2201
  %v2203 = vpop.f32.mrb[0].mxu0
  %v2204 = vadd.f32 %v2130, %v2203
  %v2205 = vpop.f32.mrb[0].mxu0
  %2206 = vdwg.mxu0
  %2207 = vmatprep.subr.mxu0 0.0
  %v2208 = vand.u32 %v1831, 4294901760
  %2209 = vmatpush1.msra.mxu0 %v2208
  %2210 = vmatprep.subr.mxu0 0.0
  %2211 = vmatpush1.msra.mxu0 0.0
  %2212 = vmatprep.subr.mxu0 0.0
  %2213 = vmatpush1.msra.mxu0 0.0
  %2214 = vmatprep.subr.mxu0 0.0
  %2215 = vmatpush1.msra.mxu0 0.0
  %2216 = vmatprep.subr.mxu0 0.0
  %2217 = vmatpush1.msra.mxu0 0.0
  %2218 = vmatprep.subr.mxu0 0.0
  %2219 = vmatpush1.msra.mxu0 0.0
  %2220 = vmatprep.subr.mxu0 0.0
  %2221 = vmatpush1.msra.mxu0 0.0
  %2222 = vmatprep.subr.mxu0 0.0
  %2223 = vmatpush1.msra.mxu0 0.0
  %2224 = vmatprep.subr.mxu0 0.0
  %2225 = vmatpush1.msra.mxu0 0.0
  %2226 = vmatprep.subr.mxu0 0.0
  %2227 = vmatpush1.msra.mxu0 0.0
  %2228 = vmatprep.subr.mxu0 0.0
  %2229 = vmatpush1.msra.mxu0 0.0
  %2230 = vmatprep.subr.mxu0 0.0
  %2231 = vmatpush1.msra.mxu0 0.0
  %2232 = vmatprep.subr.mxu0 0.0
  %2233 = vmatpush1.msra.mxu0 0.0
  %2234 = vmatprep.subr.mxu0 0.0
  %2235 = vmatpush1.msra.mxu0 0.0
  %2236 = vmatprep.subr.mxu0 0.0
  %2237 = vmatpush1.msra.mxu0 0.0
  %2238 = vmatprep.subr.mxu0 0.0
  %2239 = vmatpush1.msra.mxu0 0.0
  %2240 = vmatprep.subr.mxu0 0.0
  %2241 = vmatpush1.msra.mxu0 0.0
  %2242 = vmatprep.subr.mxu0 0.0
  %2243 = vmatpush1.msra.mxu0 0.0
  %2244 = vmatprep.subr.mxu0 0.0
  %2245 = vmatpush1.msra.mxu0 0.0
  %2246 = vmatprep.subr.mxu0 0.0
  %2247 = vmatpush1.msra.mxu0 0.0
  %2248 = vmatprep.subr.mxu0 0.0
  %2249 = vmatpush1.msra.mxu0 0.0
  %2250 = vmatprep.subr.mxu0 0.0
  %2251 = vmatpush1.msra.mxu0 0.0
  %2252 = vmatprep.subr.mxu0 0.0
  %2253 = vmatpush1.msra.mxu0 0.0
  %2254 = vmatprep.subr.mxu0 0.0
  %2255 = vmatpush1.msra.mxu0 0.0
  %2256 = vmatprep.subr.mxu0 0.0
  %2257 = vmatpush1.msra.mxu0 0.0
  %2258 = vmatprep.subr.mxu0 0.0
  %2259 = vmatpush1.msra.mxu0 0.0
  %2260 = vmatprep.subr.mxu0 0.0
  %2261 = vmatpush1.msra.mxu0 0.0
  %2262 = vmatprep.subr.mxu0 0.0
  %2263 = vmatpush1.msra.mxu0 0.0
  %2264 = vmatprep.subr.mxu0 0.0
  %2265 = vmatpush1.msra.mxu0 0.0
  %2266 = vmatprep.subr.mxu0 0.0
  %2267 = vmatpush1.msra.mxu0 0.0
  %2268 = vmatprep.subr.mxu0 0.0
  %2269 = vmatpush1.msra.mxu0 0.0
  %2270 = vmatprep.subr.mxu0 0.0
  %2271 = vmatpush1.msra.mxu0 0.0
  %2272 = vmatprep.mubr.f32.mxu0 0.0
  %v2273 = vand.u32 %v1827, 4294901760
  %2274 = vmatmul.mubr.f32.gmra.mrb[0].mxu0 %v2273
  %v2275 = vpop.f32.mrb[0].mxu0
  %v2276 = vadd.f32 %v2204, %v2275
  %v2277 = vpop.f32.mrb[0].mxu0
  %2278 = vdwg.mxu0
  %v2279 = vadd.f32 %v1821, %v2276
  %v2280 = vld [vmem:[%s1 + $0x18] sm:$0x1]
  %v2281 = vlaneseq
  %v2282 = vshrl.u32 %v2281, 7
  %v2283 = vsub.s32 0, %v2282
  %v2284 = vrot.slane %v2280, %v2283
  %v2285 = vadd.f32 %v2279, %v2284
  %v2286 = vmax.f32 %v2285, 0.0
  %v2287 = vld [vmem:[%s1 + $0x20] sm:$0xff]
  %v2288 = vld [vmem:[%s1 + $0x28] sm:$0xff]
  %v2289 = vld [vmem:[%s1 + $0x30] sm:$0xff]
  %v2290 = vld [vmem:[%s1 + $0x38] sm:$0xff]
  %v2291 = vld [vmem:[%s1 + $0x40] sm:$0x1]
  %v2292 = vlaneseq
  %v2293 = vshrl.u32 %v2292, 7
  %v2294 = vsub.s32 0, %v2293
  %v2295 = vrot.slane %v2291, %v2294
  %vm2296 = vcmask 261120
  %v2298 = vsel %vm2296, %v2286, 0
  %2300 = vmatprep.subr.mxu0 0.0
  %v2301 = vand.u32 %v2287, 4294901760
  %2302 = vmatpush1.msra.mxu0 %v2301
  %2303 = vmatprep.subr.mxu0 0.0
  %v2304 = vand.u32 %v2288, 4294901760
  %2305 = vmatpush1.msra.mxu0 %v2304
  %2306 = vmatprep.subr.mxu0 0.0
  %v2307 = vand.u32 %v2289, 4294901760
  %2308 = vmatpush1.msra.mxu0 %v2307
  %2309 = vmatprep.subr.mxu0 0.0
  %v2310 = vand.u32 %v2290, 4294901760
  %2311 = vmatpush1.msra.mxu0 %v2310
  %2312 = vmatprep.subr.mxu0 0.0
  %2313 = vmatpush1.msra.mxu0 0.0
  %2314 = vmatprep.subr.mxu0 0.0
  %2315 = vmatpush1.msra.mxu0 0.0
  %2316 = vmatprep.subr.mxu0 0.0
  %2317 = vmatpush1.msra.mxu0 0.0
  %2318 = vmatprep.subr.mxu0 0.0
  %2319 = vmatpush1.msra.mxu0 0.0
  %2320 = vmatprep.subr.mxu0 0.0
  %2321 = vmatpush1.msra.mxu0 0.0
  %2322 = vmatprep.subr.mxu0 0.0
  %2323 = vmatpush1.msra.mxu0 0.0
  %2324 = vmatprep.subr.mxu0 0.0
  %2325 = vmatpush1.msra.mxu0 0.0
  %2326 = vmatprep.subr.mxu0 0.0
  %2327 = vmatpush1.msra.mxu0 0.0
  %2328 = vmatprep.subr.mxu0 0.0
  %2329 = vmatpush1.msra.mxu0 0.0
  %2330 = vmatprep.subr.mxu0 0.0
  %2331 = vmatpush1.msra.mxu0 0.0
  %2332 = vmatprep.subr.mxu0 0.0
  %2333 = vmatpush1.msra.mxu0 0.0
  %2334 = vmatprep.subr.mxu0 0.0
  %2335 = vmatpush1.msra.mxu0 0.0
  %2336 = vmatprep.subr.mxu0 0.0
  %2337 = vmatpush1.msra.mxu0 0.0
  %2338 = vmatprep.subr.mxu0 0.0
  %2339 = vmatpush1.msra.mxu0 0.0
  %2340 = vmatprep.subr.mxu0 0.0
  %2341 = vmatpush1.msra.mxu0 0.0
  %2342 = vmatprep.subr.mxu0 0.0
  %2343 = vmatpush1.msra.mxu0 0.0
  %2344 = vmatprep.subr.mxu0 0.0
  %2345 = vmatpush1.msra.mxu0 0.0
  %2346 = vmatprep.subr.mxu0 0.0
  %2347 = vmatpush1.msra.mxu0 0.0
  %2348 = vmatprep.subr.mxu0 0.0
  %2349 = vmatpush1.msra.mxu0 0.0
  %2350 = vmatprep.subr.mxu0 0.0
  %2351 = vmatpush1.msra.mxu0 0.0
  %2352 = vmatprep.subr.mxu0 0.0
  %2353 = vmatpush1.msra.mxu0 0.0
  %2354 = vmatprep.subr.mxu0 0.0
  %2355 = vmatpush1.msra.mxu0 0.0
  %2356 = vmatprep.subr.mxu0 0.0
  %2357 = vmatpush1.msra.mxu0 0.0
  %2358 = vmatprep.subr.mxu0 0.0
  %2359 = vmatpush1.msra.mxu0 0.0
  %2360 = vmatprep.subr.mxu0 0.0
  %2361 = vmatpush1.msra.mxu0 0.0
  %2362 = vmatprep.subr.mxu0 0.0
  %2363 = vmatpush1.msra.mxu0 0.0
  %2364 = vmatprep.subr.mxu0 0.0
  %2365 = vmatpush1.msra.mxu0 0.0
  %2366 = vmatprep.subr.mxu0 0.0
  %2367 = vmatpush1.msra.mxu0 0.0
  %2368 = vmatprep.mubr.f32.mxu0 0.0
  %v2369 = vand.u32 %v2298, 4294901760
  %v2370 = vsub.f32 %v2298, %v2369
  %v2371 = vand.u32 %v2370, 4294901760
  %v2372 = vsub.f32 %v2370, %v2371
  %v2373 = vand.u32 %v2372, 4294901760
  %2374 = vmatmul.mubr.f32.gmra.mrb[0].mxu0 %v2373
  %v2375 = vpop.f32.mrb[0].mxu0
  %v2376 = vadd.f32 %v2295, %v2375
  %v2377 = vpop.f32.mrb[0].mxu0
  %2378 = vdwg.mxu0
  %2379 = vmatprep.subr.mxu0 0.0
  %v2380 = vand.u32 %v2287, 4294901760
  %v2381 = vsub.f32 %v2287, %v2380
  %v2382 = vand.u32 %v2381, 4294901760
  %v2383 = vsub.f32 %v2381, %v2382
  %v2384 = vand.u32 %v2383, 4294901760
  %2385 = vmatpush1.msra.mxu0 %v2384
  %2386 = vmatprep.subr.mxu0 0.0
  %v2387 = vand.u32 %v2288, 4294901760
  %v2388 = vsub.f32 %v2288, %v2387
  %v2389 = vand.u32 %v2388, 4294901760
  %v2390 = vsub.f32 %v2388, %v2389
  %v2391 = vand.u32 %v2390, 4294901760
  %2392 = vmatpush1.msra.mxu0 %v2391
  %2393 = vmatprep.subr.mxu0 0.0
  %v2394 = vand.u32 %v2289, 4294901760
  %v2395 = vsub.f32 %v2289, %v2394
  %v2396 = vand.u32 %v2395, 4294901760
  %v2397 = vsub.f32 %v2395, %v2396
  %v2398 = vand.u32 %v2397, 4294901760
  %2399 = vmatpush1.msra.mxu0 %v2398
  %2400 = vmatprep.subr.mxu0 0.0
  %v2401 = vand.u32 %v2290, 4294901760
  %v2402 = vsub.f32 %v2290, %v2401
  %v2403 = vand.u32 %v2402, 4294901760
  %v2404 = vsub.f32 %v2402, %v2403
  %v2405 = vand.u32 %v2404, 4294901760
  %2406 = vmatpush1.msra.mxu0 %v2405
  %2407 = vmatprep.subr.mxu0 0.0
  %2408 = vmatpush1.msra.mxu0 0.0
  %2409 = vmatprep.subr.mxu0 0.0
  %2410 = vmatpush1.msra.mxu0 0.0
  %2411 = vmatprep.subr.mxu0 0.0
  %2412 = vmatpush1.msra.mxu0 0.0
  %2413 = vmatprep.subr.mxu0 0.0
  %2414 = vmatpush1.msra.mxu0 0.0
  %2415 = vmatprep.subr.mxu0 0.0
  %2416 = vmatpush1.msra.mxu0 0.0
  %2417 = vmatprep.subr.mxu0 0.0
  %2418 = vmatpush1.msra.mxu0 0.0
  %2419 = vmatprep.subr.mxu0 0.0
  %2420 = vmatpush1.msra.mxu0 0.0
  %2421 = vmatprep.subr.mxu0 0.0
  %2422 = vmatpush1.msra.mxu0 0.0
  %2423 = vmatprep.subr.mxu0 0.0
  %2424 = vmatpush1.msra.mxu0 0.0
  %2425 = vmatprep.subr.mxu0 0.0
  %2426 = vmatpush1.msra.mxu0 0.0
  %2427 = vmatprep.subr.mxu0 0.0
  %2428 = vmatpush1.msra.mxu0 0.0
  %2429 = vmatprep.subr.mxu0 0.0
  %2430 = vmatpush1.msra.mxu0 0.0
  %2431 = vmatprep.subr.mxu0 0.0
  %2432 = vmatpush1.msra.mxu0 0.0
  %2433 = vmatprep.subr.mxu0 0.0
  %2434 = vmatpush1.msra.mxu0 0.0
  %2435 = vmatprep.subr.mxu0 0.0
  %2436 = vmatpush1.msra.mxu0 0.0
  %2437 = vmatprep.subr.mxu0 0.0
  %2438 = vmatpush1.msra.mxu0 0.0
  %2439 = vmatprep.subr.mxu0 0.0
  %2440 = vmatpush1.msra.mxu0 0.0
  %2441 = vmatprep.subr.mxu0 0.0
  %2442 = vmatpush1.msra.mxu0 0.0
  %2443 = vmatprep.subr.mxu0 0.0
  %2444 = vmatpush1.msra.mxu0 0.0
  %2445 = vmatprep.subr.mxu0 0.0
  %2446 = vmatpush1.msra.mxu0 0.0
  %2447 = vmatprep.subr.mxu0 0.0
  %2448 = vmatpush1.msra.mxu0 0.0
  %2449 = vmatprep.subr.mxu0 0.0
  %2450 = vmatpush1.msra.mxu0 0.0
  %2451 = vmatprep.subr.mxu0 0.0
  %2452 = vmatpush1.msra.mxu0 0.0
  %2453 = vmatprep.subr.mxu0 0.0
  %2454 = vmatpush1.msra.mxu0 0.0
  %2455 = vmatprep.subr.mxu0 0.0
  %2456 = vmatpush1.msra.mxu0 0.0
  %2457 = vmatprep.subr.mxu0 0.0
  %2458 = vmatpush1.msra.mxu0 0.0
  %2459 = vmatprep.subr.mxu0 0.0
  %2460 = vmatpush1.msra.mxu0 0.0
  %2461 = vmatprep.subr.mxu0 0.0
  %2462 = vmatpush1.msra.mxu0 0.0
  %2463 = vmatprep.mubr.f32.mxu0 0.0
  %v2464 = vand.u32 %v2298, 4294901760
  %2465 = vmatmul.mubr.f32.gmra.mrb[0].mxu0 %v2464
  %v2466 = vpop.f32.mrb[0].mxu0
  %v2467 = vadd.f32 %v2376, %v2466
  %v2468 = vpop.f32.mrb[0].mxu0
  %2469 = vdwg.mxu0
  %2470 = vmatprep.subr.mxu0 0.0
  %v2471 = vand.u32 %v2287, 4294901760
  %v2472 = vsub.f32 %v2287, %v2471
  %2473 = vmatpush1.msra.mxu0 %v2472
  %2474 = vmatprep.subr.mxu0 0.0
  %v2475 = vand.u32 %v2288, 4294901760
  %v2476 = vsub.f32 %v2288, %v2475
  %2477 = vmatpush1.msra.mxu0 %v2476
  %2478 = vmatprep.subr.mxu0 0.0
  %v2479 = vand.u32 %v2289, 4294901760
  %v2480 = vsub.f32 %v2289, %v2479
  %2481 = vmatpush1.msra.mxu0 %v2480
  %2482 = vmatprep.subr.mxu0 0.0
  %v2483 = vand.u32 %v2290, 4294901760
  %v2484 = vsub.f32 %v2290, %v2483
  %2485 = vmatpush1.msra.mxu0 %v2484
  %2486 = vmatprep.subr.mxu0 0.0
  %2487 = vmatpush1.msra.mxu0 0.0
  %2488 = vmatprep.subr.mxu0 0.0
  %2489 = vmatpush1.msra.mxu0 0.0
  %2490 = vmatprep.subr.mxu0 0.0
  %2491 = vmatpush1.msra.mxu0 0.0
  %2492 = vmatprep.subr.mxu0 0.0
  %2493 = vmatpush1.msra.mxu0 0.0
  %2494 = vmatprep.subr.mxu0 0.0
  %2495 = vmatpush1.msra.mxu0 0.0
  %2496 = vmatprep.subr.mxu0 0.0
  %2497 = vmatpush1.msra.mxu0 0.0
  %2498 = vmatprep.subr.mxu0 0.0
  %2499 = vmatpush1.msra.mxu0 0.0
  %2500 = vmatprep.subr.mxu0 0.0
  %2501 = vmatpush1.msra.mxu0 0.0
  %2502 = vmatprep.subr.mxu0 0.0
  %2503 = vmatpush1.msra.mxu0 0.0
  %2504 = vmatprep.subr.mxu0 0.0
  %2505 = vmatpush1.msra.mxu0 0.0
  %2506 = vmatprep.subr.mxu0 0.0
  %2507 = vmatpush1.msra.mxu0 0.0
  %2508 = vmatprep.subr.mxu0 0.0
  %2509 = vmatpush1.msra.mxu0 0.0
  %2510 = vmatprep.subr.mxu0 0.0
  %2511 = vmatpush1.msra.mxu0 0.0
  %2512 = vmatprep.subr.mxu0 0.0
  %2513 = vmatpush1.msra.mxu0 0.0
  %2514 = vmatprep.subr.mxu0 0.0
  %2515 = vmatpush1.msra.mxu0 0.0
  %2516 = vmatprep.subr.mxu0 0.0
  %2517 = vmatpush1.msra.mxu0 0.0
  %2518 = vmatprep.subr.mxu0 0.0
  %2519 = vmatpush1.msra.mxu0 0.0
  %2520 = vmatprep.subr.mxu0 0.0
  %2521 = vmatpush1.msra.mxu0 0.0
  %2522 = vmatprep.subr.mxu0 0.0
  %2523 = vmatpush1.msra.mxu0 0.0
  %2524 = vmatprep.subr.mxu0 0.0
  %2525 = vmatpush1.msra.mxu0 0.0
  %2526 = vmatprep.subr.mxu0 0.0
  %2527 = vmatpush1.msra.mxu0 0.0
  %2528 = vmatprep.subr.mxu0 0.0
  %2529 = vmatpush1.msra.mxu0 0.0
  %2530 = vmatprep.subr.mxu0 0.0
  %2531 = vmatpush1.msra.mxu0 0.0
  %2532 = vmatprep.subr.mxu0 0.0
  %2533 = vmatpush1.msra.mxu0 0.0
  %2534 = vmatprep.subr.mxu0 0.0
  %2535 = vmatpush1.msra.mxu0 0.0
  %2536 = vmatprep.subr.mxu0 0.0
  %2537 = vmatpush1.msra.mxu0 0.0
  %2538 = vmatprep.subr.mxu0 0.0
  %2539 = vmatpush1.msra.mxu0 0.0
  %2540 = vmatprep.subr.mxu0 0.0
  %2541 = vmatpush1.msra.mxu0 0.0
  %2542 = vmatprep.mubr.f32.mxu0 0.0
  %v2543 = vand.u32 %v2298, 4294901760
  %v2544 = vsub.f32 %v2298, %v2543
  %2545 = vmatmul.mubr.f32.gmra.mrb[0].mxu0 %v2544
  %v2546 = vpop.f32.mrb[0].mxu0
  %v2547 = vadd.f32 %v2467, %v2546
  %v2548 = vpop.f32.mrb[0].mxu0
  %2549 = vdwg.mxu0
  %2550 = vmatprep.subr.mxu0 0.0
  %v2551 = vand.u32 %v2287, 4294901760
  %2552 = vmatpush1.msra.mxu0 %v2551
  %2553 = vmatprep.subr.mxu0 0.0
  %v2554 = vand.u32 %v2288, 4294901760
  %2555 = vmatpush1.msra.mxu0 %v2554
  %2556 = vmatprep.subr.mxu0 0.0
  %v2557 = vand.u32 %v2289, 4294901760
  %2558 = vmatpush1.msra.mxu0 %v2557
  %2559 = vmatprep.subr.mxu0 0.0
  %v2560 = vand.u32 %v2290, 4294901760
  %2561 = vmatpush1.msra.mxu0 %v2560
  %2562 = vmatprep.subr.mxu0 0.0
  %2563 = vmatpush1.msra.mxu0 0.0
  %2564 = vmatprep.subr.mxu0 0.0
  %2565 = vmatpush1.msra.mxu0 0.0
  %2566 = vmatprep.subr.mxu0 0.0
  %2567 = vmatpush1.msra.mxu0 0.0
  %2568 = vmatprep.subr.mxu0 0.0
  %2569 = vmatpush1.msra.mxu0 0.0
  %2570 = vmatprep.subr.mxu0 0.0
  %2571 = vmatpush1.msra.mxu0 0.0
  %2572 = vmatprep.subr.mxu0 0.0
  %2573 = vmatpush1.msra.mxu0 0.0
  %2574 = vmatprep.subr.mxu0 0.0
  %2575 = vmatpush1.msra.mxu0 0.0
  %2576 = vmatprep.subr.mxu0 0.0
  %2577 = vmatpush1.msra.mxu0 0.0
  %2578 = vmatprep.subr.mxu0 0.0
  %2579 = vmatpush1.msra.mxu0 0.0
  %2580 = vmatprep.subr.mxu0 0.0
  %2581 = vmatpush1.msra.mxu0 0.0
  %2582 = vmatprep.subr.mxu0 0.0
  %2583 = vmatpush1.msra.mxu0 0.0
  %2584 = vmatprep.subr.mxu0 0.0
  %2585 = vmatpush1.msra.mxu0 0.0
  %2586 = vmatprep.subr.mxu0 0.0
  %2587 = vmatpush1.msra.mxu0 0.0
  %2588 = vmatprep.subr.mxu0 0.0
  %2589 = vmatpush1.msra.mxu0 0.0
  %2590 = vmatprep.subr.mxu0 0.0
  %2591 = vmatpush1.msra.mxu0 0.0
  %2592 = vmatprep.subr.mxu0 0.0
  %2593 = vmatpush1.msra.mxu0 0.0
  %2594 = vmatprep.subr.mxu0 0.0
  %2595 = vmatpush1.msra.mxu0 0.0
  %2596 = vmatprep.subr.mxu0 0.0
  %2597 = vmatpush1.msra.mxu0 0.0
  %2598 = vmatprep.subr.mxu0 0.0
  %2599 = vmatpush1.msra.mxu0 0.0
  %2600 = vmatprep.subr.mxu0 0.0
  %2601 = vmatpush1.msra.mxu0 0.0
  %2602 = vmatprep.subr.mxu0 0.0
  %2603 = vmatpush1.msra.mxu0 0.0
  %2604 = vmatprep.subr.mxu0 0.0
  %2605 = vmatpush1.msra.mxu0 0.0
  %2606 = vmatprep.subr.mxu0 0.0
  %2607 = vmatpush1.msra.mxu0 0.0
  %2608 = vmatprep.subr.mxu0 0.0
  %2609 = vmatpush1.msra.mxu0 0.0
  %2610 = vmatprep.subr.mxu0 0.0
  %2611 = vmatpush1.msra.mxu0 0.0
  %2612 = vmatprep.subr.mxu0 0.0
  %2613 = vmatpush1.msra.mxu0 0.0
  %2614 = vmatprep.subr.mxu0 0.0
  %2615 = vmatpush1.msra.mxu0 0.0
  %2616 = vmatprep.subr.mxu0 0.0
  %2617 = vmatpush1.msra.mxu0 0.0
  %2618 = vmatprep.mubr.f32.mxu0 0.0
  %v2619 = vand.u32 %v2298, 4294901760
  %v2620 = vsub.f32 %v2298, %v2619
  %v2621 = vand.u32 %v2620, 4294901760
  %2622 = vmatmul.mubr.f32.gmra.mrb[0].mxu0 %v2621
  %v2623 = vpop.f32.mrb[0].mxu0
  %v2624 = vadd.f32 %v2547, %v2623
  %v2625 = vpop.f32.mrb[0].mxu0
  %2626 = vdwg.mxu0
  %2627 = vmatprep.subr.mxu0 0.0
  %v2628 = vand.u32 %v2287, 4294901760
  %v2629 = vsub.f32 %v2287, %v2628
  %v2630 = vand.u32 %v2629, 4294901760
  %2631 = vmatpush1.msra.mxu0 %v2630
  %2632 = vmatprep.subr.mxu0 0.0
  %v2633 = vand.u32 %v2288, 4294901760
  %v2634 = vsub.f32 %v2288, %v2633
  %v2635 = vand.u32 %v2634, 4294901760
  %2636 = vmatpush1.msra.mxu0 %v2635
  %2637 = vmatprep.subr.mxu0 0.0
  %v2638 = vand.u32 %v2289, 4294901760
  %v2639 = vsub.f32 %v2289, %v2638
  %v2640 = vand.u32 %v2639, 4294901760
  %2641 = vmatpush1.msra.mxu0 %v2640
  %2642 = vmatprep.subr.mxu0 0.0
  %v2643 = vand.u32 %v2290, 4294901760
  %v2644 = vsub.f32 %v2290, %v2643
  %v2645 = vand.u32 %v2644, 4294901760
  %2646 = vmatpush1.msra.mxu0 %v2645
  %2647 = vmatprep.subr.mxu0 0.0
  %2648 = vmatpush1.msra.mxu0 0.0
  %2649 = vmatprep.subr.mxu0 0.0
  %2650 = vmatpush1.msra.mxu0 0.0
  %2651 = vmatprep.subr.mxu0 0.0
  %2652 = vmatpush1.msra.mxu0 0.0
  %2653 = vmatprep.subr.mxu0 0.0
  %2654 = vmatpush1.msra.mxu0 0.0
  %2655 = vmatprep.subr.mxu0 0.0
  %2656 = vmatpush1.msra.mxu0 0.0
  %2657 = vmatprep.subr.mxu0 0.0
  %2658 = vmatpush1.msra.mxu0 0.0
  %2659 = vmatprep.subr.mxu0 0.0
  %2660 = vmatpush1.msra.mxu0 0.0
  %2661 = vmatprep.subr.mxu0 0.0
  %2662 = vmatpush1.msra.mxu0 0.0
  %2663 = vmatprep.subr.mxu0 0.0
  %2664 = vmatpush1.msra.mxu0 0.0
  %2665 = vmatprep.subr.mxu0 0.0
  %2666 = vmatpush1.msra.mxu0 0.0
  %2667 = vmatprep.subr.mxu0 0.0
  %2668 = vmatpush1.msra.mxu0 0.0
  %2669 = vmatprep.subr.mxu0 0.0
  %2670 = vmatpush1.msra.mxu0 0.0
  %2671 = vmatprep.subr.mxu0 0.0
  %2672 = vmatpush1.msra.mxu0 0.0
  %2673 = vmatprep.subr.mxu0 0.0
  %2674 = vmatpush1.msra.mxu0 0.0
  %2675 = vmatprep.subr.mxu0 0.0
  %2676 = vmatpush1.msra.mxu0 0.0
  %2677 = vmatprep.subr.mxu0 0.0
  %2678 = vmatpush1.msra.mxu0 0.0
  %2679 = vmatprep.subr.mxu0 0.0
  %2680 = vmatpush1.msra.mxu0 0.0
  %2681 = vmatprep.subr.mxu0 0.0
  %2682 = vmatpush1.msra.mxu0 0.0
  %2683 = vmatprep.subr.mxu0 0.0
  %2684 = vmatpush1.msra.mxu0 0.0
  %2685 = vmatprep.subr.mxu0 0.0
  %2686 = vmatpush1.msra.mxu0 0.0
  %2687 = vmatprep.subr.mxu0 0.0
  %2688 = vmatpush1.msra.mxu0 0.0
  %2689 = vmatprep.subr.mxu0 0.0
  %2690 = vmatpush1.msra.mxu0 0.0
  %2691 = vmatprep.subr.mxu0 0.0
  %2692 = vmatpush1.msra.mxu0 0.0
  %2693 = vmatprep.subr.mxu0 0.0
  %2694 = vmatpush1.msra.mxu0 0.0
  %2695 = vmatprep.subr.mxu0 0.0
  %2696 = vmatpush1.msra.mxu0 0.0
  %2697 = vmatprep.subr.mxu0 0.0
  %2698 = vmatpush1.msra.mxu0 0.0
  %2699 = vmatprep.subr.mxu0 0.0
  %2700 = vmatpush1.msra.mxu0 0.0
  %2701 = vmatprep.subr.mxu0 0.0
  %2702 = vmatpush1.msra.mxu0 0.0
  %2703 = vmatprep.mubr.f32.mxu0 0.0
  %v2704 = vand.u32 %v2298, 4294901760
  %2705 = vmatmul.mubr.f32.gmra.mrb[0].mxu0 %v2704
  %v2706 = vpop.f32.mrb[0].mxu0
  %v2707 = vadd.f32 %v2624, %v2706
  %v2708 = vpop.f32.mrb[0].mxu0
  %2709 = vdwg.mxu0
  %2710 = vmatprep.subr.mxu0 0.0
  %v2711 = vand.u32 %v2287, 4294901760
  %2712 = vmatpush1.msra.mxu0 %v2711
  %2713 = vmatprep.subr.mxu0 0.0
  %v2714 = vand.u32 %v2288, 4294901760
  %2715 = vmatpush1.msra.mxu0 %v2714
  %2716 = vmatprep.subr.mxu0 0.0
  %v2717 = vand.u32 %v2289, 4294901760
  %2718 = vmatpush1.msra.mxu0 %v2717
  %2719 = vmatprep.subr.mxu0 0.0
  %v2720 = vand.u32 %v2290, 4294901760
  %2721 = vmatpush1.msra.mxu0 %v2720
  %2722 = vmatprep.subr.mxu0 0.0
  %2723 = vmatpush1.msra.mxu0 0.0
  %2724 = vmatprep.subr.mxu0 0.0
  %2725 = vmatpush1.msra.mxu0 0.0
  %2726 = vmatprep.subr.mxu0 0.0
  %2727 = vmatpush1.msra.mxu0 0.0
  %2728 = vmatprep.subr.mxu0 0.0
  %2729 = vmatpush1.msra.mxu0 0.0
  %2730 = vmatprep.subr.mxu0 0.0
  %2731 = vmatpush1.msra.mxu0 0.0
  %2732 = vmatprep.subr.mxu0 0.0
  %2733 = vmatpush1.msra.mxu0 0.0
  %2734 = vmatprep.subr.mxu0 0.0
  %2735 = vmatpush1.msra.mxu0 0.0
  %2736 = vmatprep.subr.mxu0 0.0
  %2737 = vmatpush1.msra.mxu0 0.0
  %2738 = vmatprep.subr.mxu0 0.0
  %2739 = vmatpush1.msra.mxu0 0.0
  %2740 = vmatprep.subr.mxu0 0.0
  %2741 = vmatpush1.msra.mxu0 0.0
  %2742 = vmatprep.subr.mxu0 0.0
  %2743 = vmatpush1.msra.mxu0 0.0
  %2744 = vmatprep.subr.mxu0 0.0
  %2745 = vmatpush1.msra.mxu0 0.0
  %2746 = vmatprep.subr.mxu0 0.0
  %2747 = vmatpush1.msra.mxu0 0.0
  %2748 = vmatprep.subr.mxu0 0.0
  %2749 = vmatpush1.msra.mxu0 0.0
  %2750 = vmatprep.subr.mxu0 0.0
  %2751 = vmatpush1.msra.mxu0 0.0
  %2752 = vmatprep.subr.mxu0 0.0
  %2753 = vmatpush1.msra.mxu0 0.0
  %2754 = vmatprep.subr.mxu0 0.0
  %2755 = vmatpush1.msra.mxu0 0.0
  %2756 = vmatprep.subr.mxu0 0.0
  %2757 = vmatpush1.msra.mxu0 0.0
  %2758 = vmatprep.subr.mxu0 0.0
  %2759 = vmatpush1.msra.mxu0 0.0
  %2760 = vmatprep.subr.mxu0 0.0
  %2761 = vmatpush1.msra.mxu0 0.0
  %2762 = vmatprep.subr.mxu0 0.0
  %2763 = vmatpush1.msra.mxu0 0.0
  %2764 = vmatprep.subr.mxu0 0.0
  %2765 = vmatpush1.msra.mxu0 0.0
  %2766 = vmatprep.subr.mxu0 0.0
  %2767 = vmatpush1.msra.mxu0 0.0
  %2768 = vmatprep.subr.mxu0 0.0
  %2769 = vmatpush1.msra.mxu0 0.0
  %2770 = vmatprep.subr.mxu0 0.0
  %2771 = vmatpush1.msra.mxu0 0.0
  %2772 = vmatprep.subr.mxu0 0.0
  %2773 = vmatpush1.msra.mxu0 0.0
  %2774 = vmatprep.subr.mxu0 0.0
  %2775 = vmatpush1.msra.mxu0 0.0
  %2776 = vmatprep.subr.mxu0 0.0
  %2777 = vmatpush1.msra.mxu0 0.0
  %2778 = vmatprep.mubr.f32.mxu0 0.0
  %v2779 = vand.u32 %v2298, 4294901760
  %2780 = vmatmul.mubr.f32.gmra.mrb[0].mxu0 %v2779
  %v2781 = vpop.f32.mrb[0].mxu0
  %v2782 = vadd.f32 %v2707, %v2781
  %v2783 = vpop.f32.mrb[0].mxu0
  %2784 = vdwg.mxu0
  %v2785 = vld [vmem:[%s1 + $0xe0] sm:$0xff]
  %v2786 = vld [vmem:[%s1 + $0xe8] sm:$0xf]
  %v2788 = vsel %vm16, %v2785, 0
  %v2791 = vsel %vm16, %v2786, 0
  %2793 = vmatprep.subr.mxu0 0.0
  %v2794 = vand.u32 %v11, 4294901760
  %2795 = vmatpush1.msra.mxu0 %v2794
  %2796 = vmatprep.subr.mxu0 0.0
  %2797 = vmatpush1.msra.mxu0 0.0
  %2798 = vmatprep.subr.mxu0 0.0
  %2799 = vmatpush1.msra.mxu0 0.0
  %2800 = vmatprep.subr.mxu0 0.0
  %2801 = vmatpush1.msra.mxu0 0.0
  %2802 = vmatprep.subr.mxu0 0.0
  %2803 = vmatpush1.msra.mxu0 0.0
  %2804 = vmatprep.subr.mxu0 0.0
  %2805 = vmatpush1.msra.mxu0 0.0
  %2806 = vmatprep.subr.mxu0 0.0
  %2807 = vmatpush1.msra.mxu0 0.0
  %2808 = vmatprep.subr.mxu0 0.0
  %2809 = vmatpush1.msra.mxu0 0.0
  %2810 = vmatprep.subr.mxu0 0.0
  %2811 = vmatpush1.msra.mxu0 0.0
  %2812 = vmatprep.subr.mxu0 0.0
  %2813 = vmatpush1.msra.mxu0 0.0
  %2814 = vmatprep.subr.mxu0 0.0
  %2815 = vmatpush1.msra.mxu0 0.0
  %2816 = vmatprep.subr.mxu0 0.0
  %2817 = vmatpush1.msra.mxu0 0.0
  %2818 = vmatprep.subr.mxu0 0.0
  %2819 = vmatpush1.msra.mxu0 0.0
  %2820 = vmatprep.subr.mxu0 0.0
  %2821 = vmatpush1.msra.mxu0 0.0
  %2822 = vmatprep.subr.mxu0 0.0
  %2823 = vmatpush1.msra.mxu0 0.0
  %2824 = vmatprep.subr.mxu0 0.0
  %2825 = vmatpush1.msra.mxu0 0.0
  %2826 = vmatprep.subr.mxu0 0.0
  %2827 = vmatpush1.msra.mxu0 0.0
  %2828 = vmatprep.subr.mxu0 0.0
  %2829 = vmatpush1.msra.mxu0 0.0
  %2830 = vmatprep.subr.mxu0 0.0
  %2831 = vmatpush1.msra.mxu0 0.0
  %2832 = vmatprep.subr.mxu0 0.0
  %2833 = vmatpush1.msra.mxu0 0.0
  %2834 = vmatprep.subr.mxu0 0.0
  %2835 = vmatpush1.msra.mxu0 0.0
  %2836 = vmatprep.subr.mxu0 0.0
  %2837 = vmatpush1.msra.mxu0 0.0
  %2838 = vmatprep.subr.mxu0 0.0
  %2839 = vmatpush1.msra.mxu0 0.0
  %2840 = vmatprep.subr.mxu0 0.0
  %2841 = vmatpush1.msra.mxu0 0.0
  %2842 = vmatprep.subr.mxu0 0.0
  %2843 = vmatpush1.msra.mxu0 0.0
  %2844 = vmatprep.subr.mxu0 0.0
  %2845 = vmatpush1.msra.mxu0 0.0
  %2846 = vmatprep.subr.mxu0 0.0
  %2847 = vmatpush1.msra.mxu0 0.0
  %2848 = vmatprep.subr.mxu0 0.0
  %2849 = vmatpush1.msra.mxu0 0.0
  %2850 = vmatprep.subr.mxu0 0.0
  %2851 = vmatpush1.msra.mxu0 0.0
  %2852 = vmatprep.subr.mxu0 0.0
  %2853 = vmatpush1.msra.mxu0 0.0
  %2854 = vmatprep.subr.mxu0 0.0
  %2855 = vmatpush1.msra.mxu0 0.0
  %2856 = vmatprep.subr.mxu0 0.0
  %2857 = vmatpush1.msra.mxu0 0.0
  %2858 = vmatprep.mubr.f32.mxu0 0.0
  %v2859 = vand.u32 %v2788, 4294901760
  %v2860 = vsub.f32 %v2788, %v2859
  %v2861 = vand.u32 %v2860, 4294901760
  %v2862 = vsub.f32 %v2860, %v2861
  %v2863 = vand.u32 %v2862, 4294901760
  %2864 = vmatmul.mubr.f32.gmra.mrb[0].mxu0 %v2863
  %v2865 = vpop.f32.mrb[0].mxu0
  %v2866 = vadd.f32 0.0, %v2865
  %v2867 = vpop.f32.mrb[0].mxu0
  %2868 = vmatprep.mubr.f32.mxu0 0.0
  %v2869 = vand.u32 %v2791, 4294901760
  %v2870 = vsub.f32 %v2791, %v2869
  %v2871 = vand.u32 %v2870, 4294901760
  %v2872 = vsub.f32 %v2870, %v2871
  %v2873 = vand.u32 %v2872, 4294901760
  %2874 = vmatmul.mubr.f32.gmra.mrb[0].mxu0 %v2873
  %v2875 = vpop.f32.mrb[0].mxu0
  %v2876 = vadd.f32 0.0, %v2875
  %v2877 = vpop.f32.mrb[0].mxu0
  %2878 = vdwg.mxu0
  %2879 = vmatprep.subr.mxu0 0.0
  %v2880 = vand.u32 %v11, 4294901760
  %v2881 = vsub.f32 %v11, %v2880
  %v2882 = vand.u32 %v2881, 4294901760
  %v2883 = vsub.f32 %v2881, %v2882
  %v2884 = vand.u32 %v2883, 4294901760
  %2885 = vmatpush1.msra.mxu0 %v2884
  %2886 = vmatprep.subr.mxu0 0.0
  %2887 = vmatpush1.msra.mxu0 0.0
  %2888 = vmatprep.subr.mxu0 0.0
  %2889 = vmatpush1.msra.mxu0 0.0
  %2890 = vmatprep.subr.mxu0 0.0
  %2891 = vmatpush1.msra.mxu0 0.0
  %2892 = vmatprep.subr.mxu0 0.0
  %2893 = vmatpush1.msra.mxu0 0.0
  %2894 = vmatprep.subr.mxu0 0.0
  %2895 = vmatpush1.msra.mxu0 0.0
  %2896 = vmatprep.subr.mxu0 0.0
  %2897 = vmatpush1.msra.mxu0 0.0
  %2898 = vmatprep.subr.mxu0 0.0
  %2899 = vmatpush1.msra.mxu0 0.0
  %2900 = vmatprep.subr.mxu0 0.0
  %2901 = vmatpush1.msra.mxu0 0.0
  %2902 = vmatprep.subr.mxu0 0.0
  %2903 = vmatpush1.msra.mxu0 0.0
  %2904 = vmatprep.subr.mxu0 0.0
  %2905 = vmatpush1.msra.mxu0 0.0
  %2906 = vmatprep.subr.mxu0 0.0
  %2907 = vmatpush1.msra.mxu0 0.0
  %2908 = vmatprep.subr.mxu0 0.0
  %2909 = vmatpush1.msra.mxu0 0.0
  %2910 = vmatprep.subr.mxu0 0.0
  %2911 = vmatpush1.msra.mxu0 0.0
  %2912 = vmatprep.subr.mxu0 0.0
  %2913 = vmatpush1.msra.mxu0 0.0
  %2914 = vmatprep.subr.mxu0 0.0
  %2915 = vmatpush1.msra.mxu0 0.0
  %2916 = vmatprep.subr.mxu0 0.0
  %2917 = vmatpush1.msra.mxu0 0.0
  %2918 = vmatprep.subr.mxu0 0.0
  %2919 = vmatpush1.msra.mxu0 0.0
  %2920 = vmatprep.subr.mxu0 0.0
  %2921 = vmatpush1.msra.mxu0 0.0
  %2922 = vmatprep.subr.mxu0 0.0
  %2923 = vmatpush1.msra.mxu0 0.0
  %2924 = vmatprep.subr.mxu0 0.0
  %2925 = vmatpush1.msra.mxu0 0.0
  %2926 = vmatprep.subr.mxu0 0.0
  %2927 = vmatpush1.msra.mxu0 0.0
  %2928 = vmatprep.subr.mxu0 0.0
  %2929 = vmatpush1.msra.mxu0 0.0
  %2930 = vmatprep.subr.mxu0 0.0
  %2931 = vmatpush1.msra.mxu0 0.0
  %2932 = vmatprep.subr.mxu0 0.0
  %2933 = vmatpush1.msra.mxu0 0.0
  %2934 = vmatprep.subr.mxu0 0.0
  %2935 = vmatpush1.msra.mxu0 0.0
  %2936 = vmatprep.subr.mxu0 0.0
  %2937 = vmatpush1.msra.mxu0 0.0
  %2938 = vmatprep.subr.mxu0 0.0
  %2939 = vmatpush1.msra.mxu0 0.0
  %2940 = vmatprep.subr.mxu0 0.0
  %2941 = vmatpush1.msra.mxu0 0.0
  %2942 = vmatprep.subr.mxu0 0.0
  %2943 = vmatpush1.msra.mxu0 0.0
  %2944 = vmatprep.subr.mxu0 0.0
  %2945 = vmatpush1.msra.mxu0 0.0
  %2946 = vmatprep.subr.mxu0 0.0
  %2947 = vmatpush1.msra.mxu0 0.0
  %2948 = vmatprep.mubr.f32.mxu0 0.0
  %v2949 = vand.u32 %v2788, 4294901760
  %2950 = vmatmul.mubr.f32.gmra.mrb[0].mxu0 %v2949
  %v2951 = vpop.f32.mrb[0].mxu0
  %v2952 = vadd.f32 %v2866, %v2951
  %v2953 = vpop.f32.mrb[0].mxu0
  %2954 = vmatprep.mubr.f32.mxu0 0.0
  %v2955 = vand.u32 %v2791, 4294901760
  %2956 = vmatmul.mubr.f32.gmra.mrb[0].mxu0 %v2955
  %v2957 = vpop.f32.mrb[0].mxu0
  %v2958 = vadd.f32 %v2876, %v2957
  %v2959 = vpop.f32.mrb[0].mxu0
  %2960 = vdwg.mxu0
  %2961 = vmatprep.subr.mxu0 0.0
  %v2962 = vand.u32 %v11, 4294901760
  %v2963 = vsub.f32 %v11, %v2962
  %2964 = vmatpush1.msra.mxu0 %v2963
  %2965 = vmatprep.subr.mxu0 0.0
  %2966 = vmatpush1.msra.mxu0 0.0
  %2967 = vmatprep.subr.mxu0 0.0
  %2968 = vmatpush1.msra.mxu0 0.0
  %2969 = vmatprep.subr.mxu0 0.0
  %2970 = vmatpush1.msra.mxu0 0.0
  %2971 = vmatprep.subr.mxu0 0.0
  %2972 = vmatpush1.msra.mxu0 0.0
  %2973 = vmatprep.subr.mxu0 0.0
  %2974 = vmatpush1.msra.mxu0 0.0
  %2975 = vmatprep.subr.mxu0 0.0
  %2976 = vmatpush1.msra.mxu0 0.0
  %2977 = vmatprep.subr.mxu0 0.0
  %2978 = vmatpush1.msra.mxu0 0.0
  %2979 = vmatprep.subr.mxu0 0.0
  %2980 = vmatpush1.msra.mxu0 0.0
  %2981 = vmatprep.subr.mxu0 0.0
  %2982 = vmatpush1.msra.mxu0 0.0
  %2983 = vmatprep.subr.mxu0 0.0
  %2984 = vmatpush1.msra.mxu0 0.0
  %2985 = vmatprep.subr.mxu0 0.0
  %2986 = vmatpush1.msra.mxu0 0.0
  %2987 = vmatprep.subr.mxu0 0.0
  %2988 = vmatpush1.msra.mxu0 0.0
  %2989 = vmatprep.subr.mxu0 0.0
  %2990 = vmatpush1.msra.mxu0 0.0
  %2991 = vmatprep.subr.mxu0 0.0
  %2992 = vmatpush1.msra.mxu0 0.0
  %2993 = vmatprep.subr.mxu0 0.0
  %2994 = vmatpush1.msra.mxu0 0.0
  %2995 = vmatprep.subr.mxu0 0.0
  %2996 = vmatpush1.msra.mxu0 0.0
  %2997 = vmatprep.subr.mxu0 0.0
  %2998 = vmatpush1.msra.mxu0 0.0
  %2999 = vmatprep.subr.mxu0 0.0
  %3000 = vmatpush1.msra.mxu0 0.0
  %3001 = vmatprep.subr.mxu0 0.0
  %3002 = vmatpush1.msra.mxu0 0.0
  %3003 = vmatprep.subr.mxu0 0.0
  %3004 = vmatpush1.msra.mxu0 0.0
  %3005 = vmatprep.subr.mxu0 0.0
  %3006 = vmatpush1.msra.mxu0 0.0
  %3007 = vmatprep.subr.mxu0 0.0
  %3008 = vmatpush1.msra.mxu0 0.0
  %3009 = vmatprep.subr.mxu0 0.0
  %3010 = vmatpush1.msra.mxu0 0.0
  %3011 = vmatprep.subr.mxu0 0.0
  %3012 = vmatpush1.msra.mxu0 0.0
  %3013 = vmatprep.subr.mxu0 0.0
  %3014 = vmatpush1.msra.mxu0 0.0
  %3015 = vmatprep.subr.mxu0 0.0
  %3016 = vmatpush1.msra.mxu0 0.0
  %3017 = vmatprep.subr.mxu0 0.0
  %3018 = vmatpush1.msra.mxu0 0.0
  %3019 = vmatprep.subr.mxu0 0.0
  %3020 = vmatpush1.msra.mxu0 0.0
  %3021 = vmatprep.subr.mxu0 0.0
  %3022 = vmatpush1.msra.mxu0 0.0
  %3023 = vmatprep.subr.mxu0 0.0
  %3024 = vmatpush1.msra.mxu0 0.0
  %3025 = vmatprep.subr.mxu0 0.0
  %3026 = vmatpush1.msra.mxu0 0.0
  %3027 = vmatprep.mubr.f32.mxu0 0.0
  %v3028 = vand.u32 %v2788, 4294901760
  %v3029 = vsub.f32 %v2788, %v3028
  %3030 = vmatmul.mubr.f32.gmra.mrb[0].mxu0 %v3029
  %v3031 = vpop.f32.mrb[0].mxu0
  %v3032 = vadd.f32 %v2952, %v3031
  %v3033 = vpop.f32.mrb[0].mxu0
  %3034 = vmatprep.mubr.f32.mxu0 0.0
  %v3035 = vand.u32 %v2791, 4294901760
  %v3036 = vsub.f32 %v2791, %v3035
  %3037 = vmatmul.mubr.f32.gmra.mrb[0].mxu0 %v3036
  %v3038 = vpop.f32.mrb[0].mxu0
  %v3039 = vadd.f32 %v2958, %v3038
  %v3040 = vpop.f32.mrb[0].mxu0
  %3041 = vdwg.mxu0
  %3042 = vmatprep.subr.mxu0 0.0
  %v3043 = vand.u32 %v11, 4294901760
  %3044 = vmatpush1.msra.mxu0 %v3043
  %3045 = vmatprep.subr.mxu0 0.0
  %3046 = vmatpush1.msra.mxu0 0.0
  %3047 = vmatprep.subr.mxu0 0.0
  %3048 = vmatpush1.msra.mxu0 0.0
  %3049 = vmatprep.subr.mxu0 0.0
  %3050 = vmatpush1.msra.mxu0 0.0
  %3051 = vmatprep.subr.mxu0 0.0
  %3052 = vmatpush1.msra.mxu0 0.0
  %3053 = vmatprep.subr.mxu0 0.0
  %3054 = vmatpush1.msra.mxu0 0.0
  %3055 = vmatprep.subr.mxu0 0.0
  %3056 = vmatpush1.msra.mxu0 0.0
  %3057 = vmatprep.subr.mxu0 0.0
  %3058 = vmatpush1.msra.mxu0 0.0
  %3059 = vmatprep.subr.mxu0 0.0
  %3060 = vmatpush1.msra.mxu0 0.0
  %3061 = vmatprep.subr.mxu0 0.0
  %3062 = vmatpush1.msra.mxu0 0.0
  %3063 = vmatprep.subr.mxu0 0.0
  %3064 = vmatpush1.msra.mxu0 0.0
  %3065 = vmatprep.subr.mxu0 0.0
  %3066 = vmatpush1.msra.mxu0 0.0
  %3067 = vmatprep.subr.mxu0 0.0
  %3068 = vmatpush1.msra.mxu0 0.0
  %3069 = vmatprep.subr.mxu0 0.0
  %3070 = vmatpush1.msra.mxu0 0.0
  %3071 = vmatprep.subr.mxu0 0.0
  %3072 = vmatpush1.msra.mxu0 0.0
  %3073 = vmatprep.subr.mxu0 0.0
  %3074 = vmatpush1.msra.mxu0 0.0
  %3075 = vmatprep.subr.mxu0 0.0
  %3076 = vmatpush1.msra.mxu0 0.0
  %3077 = vmatprep.subr.mxu0 0.0
  %3078 = vmatpush1.msra.mxu0 0.0
  %3079 = vmatprep.subr.mxu0 0.0
  %3080 = vmatpush1.msra.mxu0 0.0
  %3081 = vmatprep.subr.mxu0 0.0
  %3082 = vmatpush1.msra.mxu0 0.0
  %3083 = vmatprep.subr.mxu0 0.0
  %3084 = vmatpush1.msra.mxu0 0.0
  %3085 = vmatprep.subr.mxu0 0.0
  %3086 = vmatpush1.msra.mxu0 0.0
  %3087 = vmatprep.subr.mxu0 0.0
  %3088 = vmatpush1.msra.mxu0 0.0
  %3089 = vmatprep.subr.mxu0 0.0
  %3090 = vmatpush1.msra.mxu0 0.0
  %3091 = vmatprep.subr.mxu0 0.0
  %3092 = vmatpush1.msra.mxu0 0.0
  %3093 = vmatprep.subr.mxu0 0.0
  %3094 = vmatpush1.msra.mxu0 0.0
  %3095 = vmatprep.subr.mxu0 0.0
  %3096 = vmatpush1.msra.mxu0 0.0
  %3097 = vmatprep.subr.mxu0 0.0
  %3098 = vmatpush1.msra.mxu0 0.0
  %3099 = vmatprep.subr.mxu0 0.0
  %3100 = vmatpush1.msra.mxu0 0.0
  %3101 = vmatprep.subr.mxu0 0.0
  %3102 = vmatpush1.msra.mxu0 0.0
  %3103 = vmatprep.subr.mxu0 0.0
  %3104 = vmatpush1.msra.mxu0 0.0
  %3105 = vmatprep.subr.mxu0 0.0
  %3106 = vmatpush1.msra.mxu0 0.0
  %3107 = vmatprep.mubr.f32.mxu0 0.0
  %v3108 = vand.u32 %v2788, 4294901760
  %v3109 = vsub.f32 %v2788, %v3108
  %v3110 = vand.u32 %v3109, 4294901760
  %3111 = vmatmul.mubr.f32.gmra.mrb[0].mxu0 %v3110
  %v3112 = vpop.f32.mrb[0].mxu0
  %v3113 = vadd.f32 %v3032, %v3112
  %v3114 = vpop.f32.mrb[0].mxu0
  %3115 = vmatprep.mubr.f32.mxu0 0.0
  %v3116 = vand.u32 %v2791, 4294901760
  %v3117 = vsub.f32 %v2791, %v3116
  %v3118 = vand.u32 %v3117, 4294901760
  %3119 = vmatmul.mubr.f32.gmra.mrb[0].mxu0 %v3118
  %v3120 = vpop.f32.mrb[0].mxu0
  %v3121 = vadd.f32 %v3039, %v3120
  %v3122 = vpop.f32.mrb[0].mxu0
  %3123 = vdwg.mxu0
  %3124 = vmatprep.subr.mxu0 0.0
  %v3125 = vand.u32 %v11, 4294901760
  %v3126 = vsub.f32 %v11, %v3125
  %v3127 = vand.u32 %v3126, 4294901760
  %3128 = vmatpush1.msra.mxu0 %v3127
  %3129 = vmatprep.subr.mxu0 0.0
  %3130 = vmatpush1.msra.mxu0 0.0
  %3131 = vmatprep.subr.mxu0 0.0
  %3132 = vmatpush1.msra.mxu0 0.0
  %3133 = vmatprep.subr.mxu0 0.0
  %3134 = vmatpush1.msra.mxu0 0.0
  %3135 = vmatprep.subr.mxu0 0.0
  %3136 = vmatpush1.msra.mxu0 0.0
  %3137 = vmatprep.subr.mxu0 0.0
  %3138 = vmatpush1.msra.mxu0 0.0
  %3139 = vmatprep.subr.mxu0 0.0
  %3140 = vmatpush1.msra.mxu0 0.0
  %3141 = vmatprep.subr.mxu0 0.0
  %3142 = vmatpush1.msra.mxu0 0.0
  %3143 = vmatprep.subr.mxu0 0.0
  %3144 = vmatpush1.msra.mxu0 0.0
  %3145 = vmatprep.subr.mxu0 0.0
  %3146 = vmatpush1.msra.mxu0 0.0
  %3147 = vmatprep.subr.mxu0 0.0
  %3148 = vmatpush1.msra.mxu0 0.0
  %3149 = vmatprep.subr.mxu0 0.0
  %3150 = vmatpush1.msra.mxu0 0.0
  %3151 = vmatprep.subr.mxu0 0.0
  %3152 = vmatpush1.msra.mxu0 0.0
  %3153 = vmatprep.subr.mxu0 0.0
  %3154 = vmatpush1.msra.mxu0 0.0
  %3155 = vmatprep.subr.mxu0 0.0
  %3156 = vmatpush1.msra.mxu0 0.0
  %3157 = vmatprep.subr.mxu0 0.0
  %3158 = vmatpush1.msra.mxu0 0.0
  %3159 = vmatprep.subr.mxu0 0.0
  %3160 = vmatpush1.msra.mxu0 0.0
  %3161 = vmatprep.subr.mxu0 0.0
  %3162 = vmatpush1.msra.mxu0 0.0
  %3163 = vmatprep.subr.mxu0 0.0
  %3164 = vmatpush1.msra.mxu0 0.0
  %3165 = vmatprep.subr.mxu0 0.0
  %3166 = vmatpush1.msra.mxu0 0.0
  %3167 = vmatprep.subr.mxu0 0.0
  %3168 = vmatpush1.msra.mxu0 0.0
  %3169 = vmatprep.subr.mxu0 0.0
  %3170 = vmatpush1.msra.mxu0 0.0
  %3171 = vmatprep.subr.mxu0 0.0
  %3172 = vmatpush1.msra.mxu0 0.0
  %3173 = vmatprep.subr.mxu0 0.0
  %3174 = vmatpush1.msra.mxu0 0.0
  %3175 = vmatprep.subr.mxu0 0.0
  %3176 = vmatpush1.msra.mxu0 0.0
  %3177 = vmatprep.subr.mxu0 0.0
  %3178 = vmatpush1.msra.mxu0 0.0
  %3179 = vmatprep.subr.mxu0 0.0
  %3180 = vmatpush1.msra.mxu0 0.0
  %3181 = vmatprep.subr.mxu0 0.0
  %3182 = vmatpush1.msra.mxu0 0.0
  %3183 = vmatprep.subr.mxu0 0.0
  %3184 = vmatpush1.msra.mxu0 0.0
  %3185 = vmatprep.subr.mxu0 0.0
  %3186 = vmatpush1.msra.mxu0 0.0
  %3187 = vmatprep.subr.mxu0 0.0
  %3188 = vmatpush1.msra.mxu0 0.0
  %3189 = vmatprep.subr.mxu0 0.0
  %3190 = vmatpush1.msra.mxu0 0.0
  %3191 = vmatprep.mubr.f32.mxu0 0.0
  %v3192 = vand.u32 %v2788, 4294901760
  %3193 = vmatmul.mubr.f32.gmra.mrb[0].mxu0 %v3192
  %v3194 = vpop.f32.mrb[0].mxu0
  %v3195 = vadd.f32 %v3113, %v3194
  %v3196 = vpop.f32.mrb[0].mxu0
  %3197 = vmatprep.mubr.f32.mxu0 0.0
  %v3198 = vand.u32 %v2791, 4294901760
  %3199 = vmatmul.mubr.f32.gmra.mrb[0].mxu0 %v3198
  %v3200 = vpop.f32.mrb[0].mxu0
  %v3201 = vadd.f32 %v3121, %v3200
  %v3202 = vpop.f32.mrb[0].mxu0
  %3203 = vdwg.mxu0
  %3204 = vmatprep.subr.mxu0 0.0
  %v3205 = vand.u32 %v11, 4294901760
  %3206 = vmatpush1.msra.mxu0 %v3205
  %3207 = vmatprep.subr.mxu0 0.0
  %3208 = vmatpush1.msra.mxu0 0.0
  %3209 = vmatprep.subr.mxu0 0.0
  %3210 = vmatpush1.msra.mxu0 0.0
  %3211 = vmatprep.subr.mxu0 0.0
  %3212 = vmatpush1.msra.mxu0 0.0
  %3213 = vmatprep.subr.mxu0 0.0
  %3214 = vmatpush1.msra.mxu0 0.0
  %3215 = vmatprep.subr.mxu0 0.0
  %3216 = vmatpush1.msra.mxu0 0.0
  %3217 = vmatprep.subr.mxu0 0.0
  %3218 = vmatpush1.msra.mxu0 0.0
  %3219 = vmatprep.subr.mxu0 0.0
  %3220 = vmatpush1.msra.mxu0 0.0
  %3221 = vmatprep.subr.mxu0 0.0
  %3222 = vmatpush1.msra.mxu0 0.0
  %3223 = vmatprep.subr.mxu0 0.0
  %3224 = vmatpush1.msra.mxu0 0.0
  %3225 = vmatprep.subr.mxu0 0.0
  %3226 = vmatpush1.msra.mxu0 0.0
  %3227 = vmatprep.subr.mxu0 0.0
  %3228 = vmatpush1.msra.mxu0 0.0
  %3229 = vmatprep.subr.mxu0 0.0
  %3230 = vmatpush1.msra.mxu0 0.0
  %3231 = vmatprep.subr.mxu0 0.0
  %3232 = vmatpush1.msra.mxu0 0.0
  %3233 = vmatprep.subr.mxu0 0.0
  %3234 = vmatpush1.msra.mxu0 0.0
  %3235 = vmatprep.subr.mxu0 0.0
  %3236 = vmatpush1.msra.mxu0 0.0
  %3237 = vmatprep.subr.mxu0 0.0
  %3238 = vmatpush1.msra.mxu0 0.0
  %3239 = vmatprep.subr.mxu0 0.0
  %3240 = vmatpush1.msra.mxu0 0.0
  %3241 = vmatprep.subr.mxu0 0.0
  %3242 = vmatpush1.msra.mxu0 0.0
  %3243 = vmatprep.subr.mxu0 0.0
  %3244 = vmatpush1.msra.mxu0 0.0
  %3245 = vmatprep.subr.mxu0 0.0
  %3246 = vmatpush1.msra.mxu0 0.0
  %3247 = vmatprep.subr.mxu0 0.0
  %3248 = vmatpush1.msra.mxu0 0.0
  %3249 = vmatprep.subr.mxu0 0.0
  %3250 = vmatpush1.msra.mxu0 0.0
  %3251 = vmatprep.subr.mxu0 0.0
  %3252 = vmatpush1.msra.mxu0 0.0
  %3253 = vmatprep.subr.mxu0 0.0
  %3254 = vmatpush1.msra.mxu0 0.0
  %3255 = vmatprep.subr.mxu0 0.0
  %3256 = vmatpush1.msra.mxu0 0.0
  %3257 = vmatprep.subr.mxu0 0.0
  %3258 = vmatpush1.msra.mxu0 0.0
  %3259 = vmatprep.subr.mxu0 0.0
  %3260 = vmatpush1.msra.mxu0 0.0
  %3261 = vmatprep.subr.mxu0 0.0
  %3262 = vmatpush1.msra.mxu0 0.0
  %3263 = vmatprep.subr.mxu0 0.0
  %3264 = vmatpush1.msra.mxu0 0.0
  %3265 = vmatprep.subr.mxu0 0.0
  %3266 = vmatpush1.msra.mxu0 0.0
  %3267 = vmatprep.subr.mxu0 0.0
  %3268 = vmatpush1.msra.mxu0 0.0
  %3269 = vmatprep.mubr.f32.mxu0 0.0
  %v3270 = vand.u32 %v2788, 4294901760
  %3271 = vmatmul.mubr.f32.gmra.mrb[0].mxu0 %v3270
  %v3272 = vpop.f32.mrb[0].mxu0
  %v3273 = vadd.f32 %v3195, %v3272
  %v3274 = vpop.f32.mrb[0].mxu0
  %3275 = vmatprep.mubr.f32.mxu0 0.0
  %v3276 = vand.u32 %v2791, 4294901760
  %3277 = vmatmul.mubr.f32.gmra.mrb[0].mxu0 %v3276
  %v3278 = vpop.f32.mrb[0].mxu0
  %v3279 = vadd.f32 %v3201, %v3278
  %v3280 = vpop.f32.mrb[0].mxu0
  %3281 = vdwg.mxu0
  %v3282 = vld [vmem:[%s1 + $0xf0] sm:$0xff]
  %v3283 = vld [vmem:[%s1 + $0xf8] sm:$0xf]
  %v3285 = vsel %vm16, %v3282, 0
  %v3288 = vsel %vm16, %v3283, 0
  %3290 = vmatprep.subr.mxu0 0.0
  %v3291 = vand.u32 %v11, 4294901760
  %3292 = vmatpush1.msra.mxu0 %v3291
  %3293 = vmatprep.subr.mxu0 0.0
  %3294 = vmatpush1.msra.mxu0 0.0
  %3295 = vmatprep.subr.mxu0 0.0
  %3296 = vmatpush1.msra.mxu0 0.0
  %3297 = vmatprep.subr.mxu0 0.0
  %3298 = vmatpush1.msra.mxu0 0.0
  %3299 = vmatprep.subr.mxu0 0.0
  %3300 = vmatpush1.msra.mxu0 0.0
  %3301 = vmatprep.subr.mxu0 0.0
  %3302 = vmatpush1.msra.mxu0 0.0
  %3303 = vmatprep.subr.mxu0 0.0
  %3304 = vmatpush1.msra.mxu0 0.0
  %3305 = vmatprep.subr.mxu0 0.0
  %3306 = vmatpush1.msra.mxu0 0.0
  %3307 = vmatprep.subr.mxu0 0.0
  %3308 = vmatpush1.msra.mxu0 0.0
  %3309 = vmatprep.subr.mxu0 0.0
  %3310 = vmatpush1.msra.mxu0 0.0
  %3311 = vmatprep.subr.mxu0 0.0
  %3312 = vmatpush1.msra.mxu0 0.0
  %3313 = vmatprep.subr.mxu0 0.0
  %3314 = vmatpush1.msra.mxu0 0.0
  %3315 = vmatprep.subr.mxu0 0.0
  %3316 = vmatpush1.msra.mxu0 0.0
  %3317 = vmatprep.subr.mxu0 0.0
  %3318 = vmatpush1.msra.mxu0 0.0
  %3319 = vmatprep.subr.mxu0 0.0
  %3320 = vmatpush1.msra.mxu0 0.0
  %3321 = vmatprep.subr.mxu0 0.0
  %3322 = vmatpush1.msra.mxu0 0.0
  %3323 = vmatprep.subr.mxu0 0.0
  %3324 = vmatpush1.msra.mxu0 0.0
  %3325 = vmatprep.subr.mxu0 0.0
  %3326 = vmatpush1.msra.mxu0 0.0
  %3327 = vmatprep.subr.mxu0 0.0
  %3328 = vmatpush1.msra.mxu0 0.0
  %3329 = vmatprep.subr.mxu0 0.0
  %3330 = vmatpush1.msra.mxu0 0.0
  %3331 = vmatprep.subr.mxu0 0.0
  %3332 = vmatpush1.msra.mxu0 0.0
  %3333 = vmatprep.subr.mxu0 0.0
  %3334 = vmatpush1.msra.mxu0 0.0
  %3335 = vmatprep.subr.mxu0 0.0
  %3336 = vmatpush1.msra.mxu0 0.0
  %3337 = vmatprep.subr.mxu0 0.0
  %3338 = vmatpush1.msra.mxu0 0.0
  %3339 = vmatprep.subr.mxu0 0.0
  %3340 = vmatpush1.msra.mxu0 0.0
  %3341 = vmatprep.subr.mxu0 0.0
  %3342 = vmatpush1.msra.mxu0 0.0
  %3343 = vmatprep.subr.mxu0 0.0
  %3344 = vmatpush1.msra.mxu0 0.0
  %3345 = vmatprep.subr.mxu0 0.0
  %3346 = vmatpush1.msra.mxu0 0.0
  %3347 = vmatprep.subr.mxu0 0.0
  %3348 = vmatpush1.msra.mxu0 0.0
  %3349 = vmatprep.subr.mxu0 0.0
  %3350 = vmatpush1.msra.mxu0 0.0
  %3351 = vmatprep.subr.mxu0 0.0
  %3352 = vmatpush1.msra.mxu0 0.0
  %3353 = vmatprep.subr.mxu0 0.0
  %3354 = vmatpush1.msra.mxu0 0.0
  %3355 = vmatprep.mubr.f32.mxu0 0.0
  %v3356 = vand.u32 %v3285, 4294901760
  %v3357 = vsub.f32 %v3285, %v3356
  %v3358 = vand.u32 %v3357, 4294901760
  %v3359 = vsub.f32 %v3357, %v3358
  %v3360 = vand.u32 %v3359, 4294901760
  %3361 = vmatmul.mubr.f32.gmra.mrb[0].mxu0 %v3360
  %v3362 = vpop.f32.mrb[0].mxu0
  %v3363 = vadd.f32 0.0, %v3362
  %v3364 = vpop.f32.mrb[0].mxu0
  %3365 = vmatprep.mubr.f32.mxu0 0.0
  %v3366 = vand.u32 %v3288, 4294901760
  %v3367 = vsub.f32 %v3288, %v3366
  %v3368 = vand.u32 %v3367, 4294901760
  %v3369 = vsub.f32 %v3367, %v3368
  %v3370 = vand.u32 %v3369, 4294901760
  %3371 = vmatmul.mubr.f32.gmra.mrb[0].mxu0 %v3370
  %v3372 = vpop.f32.mrb[0].mxu0
  %v3373 = vadd.f32 0.0, %v3372
  %v3374 = vpop.f32.mrb[0].mxu0
  %3375 = vdwg.mxu0
  %3376 = vmatprep.subr.mxu0 0.0
  %v3377 = vand.u32 %v11, 4294901760
  %v3378 = vsub.f32 %v11, %v3377
  %v3379 = vand.u32 %v3378, 4294901760
  %v3380 = vsub.f32 %v3378, %v3379
  %v3381 = vand.u32 %v3380, 4294901760
  %3382 = vmatpush1.msra.mxu0 %v3381
  %3383 = vmatprep.subr.mxu0 0.0
  %3384 = vmatpush1.msra.mxu0 0.0
  %3385 = vmatprep.subr.mxu0 0.0
  %3386 = vmatpush1.msra.mxu0 0.0
  %3387 = vmatprep.subr.mxu0 0.0
  %3388 = vmatpush1.msra.mxu0 0.0
  %3389 = vmatprep.subr.mxu0 0.0
  %3390 = vmatpush1.msra.mxu0 0.0
  %3391 = vmatprep.subr.mxu0 0.0
  %3392 = vmatpush1.msra.mxu0 0.0
  %3393 = vmatprep.subr.mxu0 0.0
  %3394 = vmatpush1.msra.mxu0 0.0
  %3395 = vmatprep.subr.mxu0 0.0
  %3396 = vmatpush1.msra.mxu0 0.0
  %3397 = vmatprep.subr.mxu0 0.0
  %3398 = vmatpush1.msra.mxu0 0.0
  %3399 = vmatprep.subr.mxu0 0.0
  %3400 = vmatpush1.msra.mxu0 0.0
  %3401 = vmatprep.subr.mxu0 0.0
  %3402 = vmatpush1.msra.mxu0 0.0
  %3403 = vmatprep.subr.mxu0 0.0
  %3404 = vmatpush1.msra.mxu0 0.0
  %3405 = vmatprep.subr.mxu0 0.0
  %3406 = vmatpush1.msra.mxu0 0.0
  %3407 = vmatprep.subr.mxu0 0.0
  %3408 = vmatpush1.msra.mxu0 0.0
  %3409 = vmatprep.subr.mxu0 0.0
  %3410 = vmatpush1.msra.mxu0 0.0
  %3411 = vmatprep.subr.mxu0 0.0
  %3412 = vmatpush1.msra.mxu0 0.0
  %3413 = vmatprep.subr.mxu0 0.0
  %3414 = vmatpush1.msra.mxu0 0.0
  %3415 = vmatprep.subr.mxu0 0.0
  %3416 = vmatpush1.msra.mxu0 0.0
  %3417 = vmatprep.subr.mxu0 0.0
  %3418 = vmatpush1.msra.mxu0 0.0
  %3419 = vmatprep.subr.mxu0 0.0
  %3420 = vmatpush1.msra.mxu0 0.0
  %3421 = vmatprep.subr.mxu0 0.0
  %3422 = vmatpush1.msra.mxu0 0.0
  %3423 = vmatprep.subr.mxu0 0.0
  %3424 = vmatpush1.msra.mxu0 0.0
  %3425 = vmatprep.subr.mxu0 0.0
  %3426 = vmatpush1.msra.mxu0 0.0
  %3427 = vmatprep.subr.mxu0 0.0
  %3428 = vmatpush1.msra.mxu0 0.0
  %3429 = vmatprep.subr.mxu0 0.0
  %3430 = vmatpush1.msra.mxu0 0.0
  %3431 = vmatprep.subr.mxu0 0.0
  %3432 = vmatpush1.msra.mxu0 0.0
  %3433 = vmatprep.subr.mxu0 0.0
  %3434 = vmatpush1.msra.mxu0 0.0
  %3435 = vmatprep.subr.mxu0 0.0
  %3436 = vmatpush1.msra.mxu0 0.0
  %3437 = vmatprep.subr.mxu0 0.0
  %3438 = vmatpush1.msra.mxu0 0.0
  %3439 = vmatprep.subr.mxu0 0.0
  %3440 = vmatpush1.msra.mxu0 0.0
  %3441 = vmatprep.subr.mxu0 0.0
  %3442 = vmatpush1.msra.mxu0 0.0
  %3443 = vmatprep.subr.mxu0 0.0
  %3444 = vmatpush1.msra.mxu0 0.0
  %3445 = vmatprep.mubr.f32.mxu0 0.0
  %v3446 = vand.u32 %v3285, 4294901760
  %3447 = vmatmul.mubr.f32.gmra.mrb[0].mxu0 %v3446
  %v3448 = vpop.f32.mrb[0].mxu0
  %v3449 = vadd.f32 %v3363, %v3448
  %v3450 = vpop.f32.mrb[0].mxu0
  %3451 = vmatprep.mubr.f32.mxu0 0.0
  %v3452 = vand.u32 %v3288, 4294901760
  %3453 = vmatmul.mubr.f32.gmra.mrb[0].mxu0 %v3452
  %v3454 = vpop.f32.mrb[0].mxu0
  %v3455 = vadd.f32 %v3373, %v3454
  %v3456 = vpop.f32.mrb[0].mxu0
  %3457 = vdwg.mxu0
  %3458 = vmatprep.subr.mxu0 0.0
  %v3459 = vand.u32 %v11, 4294901760
  %v3460 = vsub.f32 %v11, %v3459
  %3461 = vmatpush1.msra.mxu0 %v3460
  %3462 = vmatprep.subr.mxu0 0.0
  %3463 = vmatpush1.msra.mxu0 0.0
  %3464 = vmatprep.subr.mxu0 0.0
  %3465 = vmatpush1.msra.mxu0 0.0
  %3466 = vmatprep.subr.mxu0 0.0
  %3467 = vmatpush1.msra.mxu0 0.0
  %3468 = vmatprep.subr.mxu0 0.0
  %3469 = vmatpush1.msra.mxu0 0.0
  %3470 = vmatprep.subr.mxu0 0.0
  %3471 = vmatpush1.msra.mxu0 0.0
  %3472 = vmatprep.subr.mxu0 0.0
  %3473 = vmatpush1.msra.mxu0 0.0
  %3474 = vmatprep.subr.mxu0 0.0
  %3475 = vmatpush1.msra.mxu0 0.0
  %3476 = vmatprep.subr.mxu0 0.0
  %3477 = vmatpush1.msra.mxu0 0.0
  %3478 = vmatprep.subr.mxu0 0.0
  %3479 = vmatpush1.msra.mxu0 0.0
  %3480 = vmatprep.subr.mxu0 0.0
  %3481 = vmatpush1.msra.mxu0 0.0
  %3482 = vmatprep.subr.mxu0 0.0
  %3483 = vmatpush1.msra.mxu0 0.0
  %3484 = vmatprep.subr.mxu0 0.0
  %3485 = vmatpush1.msra.mxu0 0.0
  %3486 = vmatprep.subr.mxu0 0.0
  %3487 = vmatpush1.msra.mxu0 0.0
  %3488 = vmatprep.subr.mxu0 0.0
  %3489 = vmatpush1.msra.mxu0 0.0
  %3490 = vmatprep.subr.mxu0 0.0
  %3491 = vmatpush1.msra.mxu0 0.0
  %3492 = vmatprep.subr.mxu0 0.0
  %3493 = vmatpush1.msra.mxu0 0.0
  %3494 = vmatprep.subr.mxu0 0.0
  %3495 = vmatpush1.msra.mxu0 0.0
  %3496 = vmatprep.subr.mxu0 0.0
  %3497 = vmatpush1.msra.mxu0 0.0
  %3498 = vmatprep.subr.mxu0 0.0
  %3499 = vmatpush1.msra.mxu0 0.0
  %3500 = vmatprep.subr.mxu0 0.0
  %3501 = vmatpush1.msra.mxu0 0.0
  %3502 = vmatprep.subr.mxu0 0.0
  %3503 = vmatpush1.msra.mxu0 0.0
  %3504 = vmatprep.subr.mxu0 0.0
  %3505 = vmatpush1.msra.mxu0 0.0
  %3506 = vmatprep.subr.mxu0 0.0
  %3507 = vmatpush1.msra.mxu0 0.0
  %3508 = vmatprep.subr.mxu0 0.0
  %3509 = vmatpush1.msra.mxu0 0.0
  %3510 = vmatprep.subr.mxu0 0.0
  %3511 = vmatpush1.msra.mxu0 0.0
  %3512 = vmatprep.subr.mxu0 0.0
  %3513 = vmatpush1.msra.mxu0 0.0
  %3514 = vmatprep.subr.mxu0 0.0
  %3515 = vmatpush1.msra.mxu0 0.0
  %3516 = vmatprep.subr.mxu0 0.0
  %3517 = vmatpush1.msra.mxu0 0.0
  %3518 = vmatprep.subr.mxu0 0.0
  %3519 = vmatpush1.msra.mxu0 0.0
  %3520 = vmatprep.subr.mxu0 0.0
  %3521 = vmatpush1.msra.mxu0 0.0
  %3522 = vmatprep.subr.mxu0 0.0
  %3523 = vmatpush1.msra.mxu0 0.0
  %3524 = vmatprep.mubr.f32.mxu0 0.0
  %v3525 = vand.u32 %v3285, 4294901760
  %v3526 = vsub.f32 %v3285, %v3525
  %3527 = vmatmul.mubr.f32.gmra.mrb[0].mxu0 %v3526
  %v3528 = vpop.f32.mrb[0].mxu0
  %v3529 = vadd.f32 %v3449, %v3528
  %v3530 = vpop.f32.mrb[0].mxu0
  %3531 = vmatprep.mubr.f32.mxu0 0.0
  %v3532 = vand.u32 %v3288, 4294901760
  %v3533 = vsub.f32 %v3288, %v3532
  %3534 = vmatmul.mubr.f32.gmra.mrb[0].mxu0 %v3533
  %v3535 = vpop.f32.mrb[0].mxu0
  %v3536 = vadd.f32 %v3455, %v3535
  %v3537 = vpop.f32.mrb[0].mxu0
  %3538 = vdwg.mxu0
  %3539 = vmatprep.subr.mxu0 0.0
  %v3540 = vand.u32 %v11, 4294901760
  %3541 = vmatpush1.msra.mxu0 %v3540
  %3542 = vmatprep.subr.mxu0 0.0
  %3543 = vmatpush1.msra.mxu0 0.0
  %3544 = vmatprep.subr.mxu0 0.0
  %3545 = vmatpush1.msra.mxu0 0.0
  %3546 = vmatprep.subr.mxu0 0.0
  %3547 = vmatpush1.msra.mxu0 0.0
  %3548 = vmatprep.subr.mxu0 0.0
  %3549 = vmatpush1.msra.mxu0 0.0
  %3550 = vmatprep.subr.mxu0 0.0
  %3551 = vmatpush1.msra.mxu0 0.0
  %3552 = vmatprep.subr.mxu0 0.0
  %3553 = vmatpush1.msra.mxu0 0.0
  %3554 = vmatprep.subr.mxu0 0.0
  %3555 = vmatpush1.msra.mxu0 0.0
  %3556 = vmatprep.subr.mxu0 0.0
  %3557 = vmatpush1.msra.mxu0 0.0
  %3558 = vmatprep.subr.mxu0 0.0
  %3559 = vmatpush1.msra.mxu0 0.0
  %3560 = vmatprep.subr.mxu0 0.0
  %3561 = vmatpush1.msra.mxu0 0.0
  %3562 = vmatprep.subr.mxu0 0.0
  %3563 = vmatpush1.msra.mxu0 0.0
  %3564 = vmatprep.subr.mxu0 0.0
  %3565 = vmatpush1.msra.mxu0 0.0
  %3566 = vmatprep.subr.mxu0 0.0
  %3567 = vmatpush1.msra.mxu0 0.0
  %3568 = vmatprep.subr.mxu0 0.0
  %3569 = vmatpush1.msra.mxu0 0.0
  %3570 = vmatprep.subr.mxu0 0.0
  %3571 = vmatpush1.msra.mxu0 0.0
  %3572 = vmatprep.subr.mxu0 0.0
  %3573 = vmatpush1.msra.mxu0 0.0
  %3574 = vmatprep.subr.mxu0 0.0
  %3575 = vmatpush1.msra.mxu0 0.0
  %3576 = vmatprep.subr.mxu0 0.0
  %3577 = vmatpush1.msra.mxu0 0.0
  %3578 = vmatprep.subr.mxu0 0.0
  %3579 = vmatpush1.msra.mxu0 0.0
  %3580 = vmatprep.subr.mxu0 0.0
  %3581 = vmatpush1.msra.mxu0 0.0
  %3582 = vmatprep.subr.mxu0 0.0
  %3583 = vmatpush1.msra.mxu0 0.0
  %3584 = vmatprep.subr.mxu0 0.0
  %3585 = vmatpush1.msra.mxu0 0.0
  %3586 = vmatprep.subr.mxu0 0.0
  %3587 = vmatpush1.msra.mxu0 0.0
  %3588 = vmatprep.subr.mxu0 0.0
  %3589 = vmatpush1.msra.mxu0 0.0
  %3590 = vmatprep.subr.mxu0 0.0
  %3591 = vmatpush1.msra.mxu0 0.0
  %3592 = vmatprep.subr.mxu0 0.0
  %3593 = vmatpush1.msra.mxu0 0.0
  %3594 = vmatprep.subr.mxu0 0.0
  %3595 = vmatpush1.msra.mxu0 0.0
  %3596 = vmatprep.subr.mxu0 0.0
  %3597 = vmatpush1.msra.mxu0 0.0
  %3598 = vmatprep.subr.mxu0 0.0
  %3599 = vmatpush1.msra.mxu0 0.0
  %3600 = vmatprep.subr.mxu0 0.0
  %3601 = vmatpush1.msra.mxu0 0.0
  %3602 = vmatprep.subr.mxu0 0.0
  %3603 = vmatpush1.msra.mxu0 0.0
  %3604 = vmatprep.mubr.f32.mxu0 0.0
  %v3605 = vand.u32 %v3285, 4294901760
  %v3606 = vsub.f32 %v3285, %v3605
  %v3607 = vand.u32 %v3606, 4294901760
  %3608 = vmatmul.mubr.f32.gmra.mrb[0].mxu0 %v3607
  %v3609 = vpop.f32.mrb[0].mxu0
  %v3610 = vadd.f32 %v3529, %v3609
  %v3611 = vpop.f32.mrb[0].mxu0
  %3612 = vmatprep.mubr.f32.mxu0 0.0
  %v3613 = vand.u32 %v3288, 4294901760
  %v3614 = vsub.f32 %v3288, %v3613
  %v3615 = vand.u32 %v3614, 4294901760
  %3616 = vmatmul.mubr.f32.gmra.mrb[0].mxu0 %v3615
  %v3617 = vpop.f32.mrb[0].mxu0
  %v3618 = vadd.f32 %v3536, %v3617
  %v3619 = vpop.f32.mrb[0].mxu0
  %3620 = vdwg.mxu0
  %3621 = vmatprep.subr.mxu0 0.0
  %v3622 = vand.u32 %v11, 4294901760
  %v3623 = vsub.f32 %v11, %v3622
  %v3624 = vand.u32 %v3623, 4294901760
  %3625 = vmatpush1.msra.mxu0 %v3624
  %3626 = vmatprep.subr.mxu0 0.0
  %3627 = vmatpush1.msra.mxu0 0.0
  %3628 = vmatprep.subr.mxu0 0.0
  %3629 = vmatpush1.msra.mxu0 0.0
  %3630 = vmatprep.subr.mxu0 0.0
  %3631 = vmatpush1.msra.mxu0 0.0
  %3632 = vmatprep.subr.mxu0 0.0
  %3633 = vmatpush1.msra.mxu0 0.0
  %3634 = vmatprep.subr.mxu0 0.0
  %3635 = vmatpush1.msra.mxu0 0.0
  %3636 = vmatprep.subr.mxu0 0.0
  %3637 = vmatpush1.msra.mxu0 0.0
  %3638 = vmatprep.subr.mxu0 0.0
  %3639 = vmatpush1.msra.mxu0 0.0
  %3640 = vmatprep.subr.mxu0 0.0
  %3641 = vmatpush1.msra.mxu0 0.0
  %3642 = vmatprep.subr.mxu0 0.0
  %3643 = vmatpush1.msra.mxu0 0.0
  %3644 = vmatprep.subr.mxu0 0.0
  %3645 = vmatpush1.msra.mxu0 0.0
  %3646 = vmatprep.subr.mxu0 0.0
  %3647 = vmatpush1.msra.mxu0 0.0
  %3648 = vmatprep.subr.mxu0 0.0
  %3649 = vmatpush1.msra.mxu0 0.0
  %3650 = vmatprep.subr.mxu0 0.0
  %3651 = vmatpush1.msra.mxu0 0.0
  %3652 = vmatprep.subr.mxu0 0.0
  %3653 = vmatpush1.msra.mxu0 0.0
  %3654 = vmatprep.subr.mxu0 0.0
  %3655 = vmatpush1.msra.mxu0 0.0
  %3656 = vmatprep.subr.mxu0 0.0
  %3657 = vmatpush1.msra.mxu0 0.0
  %3658 = vmatprep.subr.mxu0 0.0
  %3659 = vmatpush1.msra.mxu0 0.0
  %3660 = vmatprep.subr.mxu0 0.0
  %3661 = vmatpush1.msra.mxu0 0.0
  %3662 = vmatprep.subr.mxu0 0.0
  %3663 = vmatpush1.msra.mxu0 0.0
  %3664 = vmatprep.subr.mxu0 0.0
  %3665 = vmatpush1.msra.mxu0 0.0
  %3666 = vmatprep.subr.mxu0 0.0
  %3667 = vmatpush1.msra.mxu0 0.0
  %3668 = vmatprep.subr.mxu0 0.0
  %3669 = vmatpush1.msra.mxu0 0.0
  %3670 = vmatprep.subr.mxu0 0.0
  %3671 = vmatpush1.msra.mxu0 0.0
  %3672 = vmatprep.subr.mxu0 0.0
  %3673 = vmatpush1.msra.mxu0 0.0
  %3674 = vmatprep.subr.mxu0 0.0
  %3675 = vmatpush1.msra.mxu0 0.0
  %3676 = vmatprep.subr.mxu0 0.0
  %3677 = vmatpush1.msra.mxu0 0.0
  %3678 = vmatprep.subr.mxu0 0.0
  %3679 = vmatpush1.msra.mxu0 0.0
  %3680 = vmatprep.subr.mxu0 0.0
  %3681 = vmatpush1.msra.mxu0 0.0
  %3682 = vmatprep.subr.mxu0 0.0
  %3683 = vmatpush1.msra.mxu0 0.0
  %3684 = vmatprep.subr.mxu0 0.0
  %3685 = vmatpush1.msra.mxu0 0.0
  %3686 = vmatprep.subr.mxu0 0.0
  %3687 = vmatpush1.msra.mxu0 0.0
  %3688 = vmatprep.mubr.f32.mxu0 0.0
  %v3689 = vand.u32 %v3285, 4294901760
  %3690 = vmatmul.mubr.f32.gmra.mrb[0].mxu0 %v3689
  %v3691 = vpop.f32.mrb[0].mxu0
  %v3692 = vadd.f32 %v3610, %v3691
  %v3693 = vpop.f32.mrb[0].mxu0
  %3694 = vmatprep.mubr.f32.mxu0 0.0
  %v3695 = vand.u32 %v3288, 4294901760
  %3696 = vmatmul.mubr.f32.gmra.mrb[0].mxu0 %v3695
  %v3697 = vpop.f32.mrb[0].mxu0
  %v3698 = vadd.f32 %v3618, %v3697
  %v3699 = vpop.f32.mrb[0].mxu0
  %3700 = vdwg.mxu0
  %3701 = vmatprep.subr.mxu0 0.0
  %v3702 = vand.u32 %v11, 4294901760
  %3703 = vmatpush1.msra.mxu0 %v3702
  %3704 = vmatprep.subr.mxu0 0.0
  %3705 = vmatpush1.msra.mxu0 0.0
  %3706 = vmatprep.subr.mxu0 0.0
  %3707 = vmatpush1.msra.mxu0 0.0
  %3708 = vmatprep.subr.mxu0 0.0
  %3709 = vmatpush1.msra.mxu0 0.0
  %3710 = vmatprep.subr.mxu0 0.0
  %3711 = vmatpush1.msra.mxu0 0.0
  %3712 = vmatprep.subr.mxu0 0.0
  %3713 = vmatpush1.msra.mxu0 0.0
  %3714 = vmatprep.subr.mxu0 0.0
  %3715 = vmatpush1.msra.mxu0 0.0
  %3716 = vmatprep.subr.mxu0 0.0
  %3717 = vmatpush1.msra.mxu0 0.0
  %3718 = vmatprep.subr.mxu0 0.0
  %3719 = vmatpush1.msra.mxu0 0.0
  %3720 = vmatprep.subr.mxu0 0.0
  %3721 = vmatpush1.msra.mxu0 0.0
  %3722 = vmatprep.subr.mxu0 0.0
  %3723 = vmatpush1.msra.mxu0 0.0
  %3724 = vmatprep.subr.mxu0 0.0
  %3725 = vmatpush1.msra.mxu0 0.0
  %3726 = vmatprep.subr.mxu0 0.0
  %3727 = vmatpush1.msra.mxu0 0.0
  %3728 = vmatprep.subr.mxu0 0.0
  %3729 = vmatpush1.msra.mxu0 0.0
  %3730 = vmatprep.subr.mxu0 0.0
  %3731 = vmatpush1.msra.mxu0 0.0
  %3732 = vmatprep.subr.mxu0 0.0
  %3733 = vmatpush1.msra.mxu0 0.0
  %3734 = vmatprep.subr.mxu0 0.0
  %3735 = vmatpush1.msra.mxu0 0.0
  %3736 = vmatprep.subr.mxu0 0.0
  %3737 = vmatpush1.msra.mxu0 0.0
  %3738 = vmatprep.subr.mxu0 0.0
  %3739 = vmatpush1.msra.mxu0 0.0
  %3740 = vmatprep.subr.mxu0 0.0
  %3741 = vmatpush1.msra.mxu0 0.0
  %3742 = vmatprep.subr.mxu0 0.0
  %3743 = vmatpush1.msra.mxu0 0.0
  %3744 = vmatprep.subr.mxu0 0.0
  %3745 = vmatpush1.msra.mxu0 0.0
  %3746 = vmatprep.subr.mxu0 0.0
  %3747 = vmatpush1.msra.mxu0 0.0
  %3748 = vmatprep.subr.mxu0 0.0
  %3749 = vmatpush1.msra.mxu0 0.0
  %3750 = vmatprep.subr.mxu0 0.0
  %3751 = vmatpush1.msra.mxu0 0.0
  %3752 = vmatprep.subr.mxu0 0.0
  %3753 = vmatpush1.msra.mxu0 0.0
  %3754 = vmatprep.subr.mxu0 0.0
  %3755 = vmatpush1.msra.mxu0 0.0
  %3756 = vmatprep.subr.mxu0 0.0
  %3757 = vmatpush1.msra.mxu0 0.0
  %3758 = vmatprep.subr.mxu0 0.0
  %3759 = vmatpush1.msra.mxu0 0.0
  %3760 = vmatprep.subr.mxu0 0.0
  %3761 = vmatpush1.msra.mxu0 0.0
  %3762 = vmatprep.subr.mxu0 0.0
  %3763 = vmatpush1.msra.mxu0 0.0
  %3764 = vmatprep.subr.mxu0 0.0
  %3765 = vmatpush1.msra.mxu0 0.0
  %3766 = vmatprep.mubr.f32.mxu0 0.0
  %v3767 = vand.u32 %v3285, 4294901760
  %3768 = vmatmul.mubr.f32.gmra.mrb[0].mxu0 %v3767
  %v3769 = vpop.f32.mrb[0].mxu0
  %v3770 = vadd.f32 %v3692, %v3769
  %v3771 = vpop.f32.mrb[0].mxu0
  %3772 = vmatprep.mubr.f32.mxu0 0.0
  %v3773 = vand.u32 %v3288, 4294901760
  %3774 = vmatmul.mubr.f32.gmra.mrb[0].mxu0 %v3773
  %v3775 = vpop.f32.mrb[0].mxu0
  %v3776 = vadd.f32 %v3698, %v3775
  %v3777 = vpop.f32.mrb[0].mxu0
  %3778 = vdwg.mxu0
  %v3779 = vld [vmem:[%s1 + $0x100] sm:$0xff]
  %v3780 = vld [vmem:[%s1 + $0x108] sm:$0xf]
  %vm3781 = vcmask 48128
  %v3783 = vsel %vm3781, %v3779, 0
  %v3786 = vsel %vm3781, %v3780, 0
  %vm3788 = vcmask 1045504
  %v3790 = vsel %vm3788, %v2782, 0
  %3792 = vmatprep.subr.mxu0 0.0
  %v3793 = vand.u32 %v3790, 4294901760
  %3794 = vmatpush1.msra.mxu0 %v3793
  %3795 = vmatprep.subr.mxu0 0.0
  %3796 = vmatpush1.msra.mxu0 0.0
  %3797 = vmatprep.subr.mxu0 0.0
  %3798 = vmatpush1.msra.mxu0 0.0
  %3799 = vmatprep.subr.mxu0 0.0
  %3800 = vmatpush1.msra.mxu0 0.0
  %3801 = vmatprep.subr.mxu0 0.0
  %3802 = vmatpush1.msra.mxu0 0.0
  %3803 = vmatprep.subr.mxu0 0.0
  %3804 = vmatpush1.msra.mxu0 0.0
  %3805 = vmatprep.subr.mxu0 0.0
  %3806 = vmatpush1.msra.mxu0 0.0
  %3807 = vmatprep.subr.mxu0 0.0
  %3808 = vmatpush1.msra.mxu0 0.0
  %3809 = vmatprep.subr.mxu0 0.0
  %3810 = vmatpush1.msra.mxu0 0.0
  %3811 = vmatprep.subr.mxu0 0.0
  %3812 = vmatpush1.msra.mxu0 0.0
  %3813 = vmatprep.subr.mxu0 0.0
  %3814 = vmatpush1.msra.mxu0 0.0
  %3815 = vmatprep.subr.mxu0 0.0
  %3816 = vmatpush1.msra.mxu0 0.0
  %3817 = vmatprep.subr.mxu0 0.0
  %3818 = vmatpush1.msra.mxu0 0.0
  %3819 = vmatprep.subr.mxu0 0.0
  %3820 = vmatpush1.msra.mxu0 0.0
  %3821 = vmatprep.subr.mxu0 0.0
  %3822 = vmatpush1.msra.mxu0 0.0
  %3823 = vmatprep.subr.mxu0 0.0
  %3824 = vmatpush1.msra.mxu0 0.0
  %3825 = vmatprep.subr.mxu0 0.0
  %3826 = vmatpush1.msra.mxu0 0.0
  %3827 = vmatprep.subr.mxu0 0.0
  %3828 = vmatpush1.msra.mxu0 0.0
  %3829 = vmatprep.subr.mxu0 0.0
  %3830 = vmatpush1.msra.mxu0 0.0
  %3831 = vmatprep.subr.mxu0 0.0
  %3832 = vmatpush1.msra.mxu0 0.0
  %3833 = vmatprep.subr.mxu0 0.0
  %3834 = vmatpush1.msra.mxu0 0.0
  %3835 = vmatprep.subr.mxu0 0.0
  %3836 = vmatpush1.msra.mxu0 0.0
  %3837 = vmatprep.subr.mxu0 0.0
  %3838 = vmatpush1.msra.mxu0 0.0
  %3839 = vmatprep.subr.mxu0 0.0
  %3840 = vmatpush1.msra.mxu0 0.0
  %3841 = vmatprep.subr.mxu0 0.0
  %3842 = vmatpush1.msra.mxu0 0.0
  %3843 = vmatprep.subr.mxu0 0.0
  %3844 = vmatpush1.msra.mxu0 0.0
  %3845 = vmatprep.subr.mxu0 0.0
  %3846 = vmatpush1.msra.mxu0 0.0
  %3847 = vmatprep.subr.mxu0 0.0
  %3848 = vmatpush1.msra.mxu0 0.0
  %3849 = vmatprep.subr.mxu0 0.0
  %3850 = vmatpush1.msra.mxu0 0.0
  %3851 = vmatprep.subr.mxu0 0.0
  %3852 = vmatpush1.msra.mxu0 0.0
  %3853 = vmatprep.subr.mxu0 0.0
  %3854 = vmatpush1.msra.mxu0 0.0
  %3855 = vmatprep.subr.mxu0 0.0
  %3856 = vmatpush1.msra.mxu0 0.0
  %3857 = vmatprep.mubr.f32.mxu0 0.0
  %v3858 = vand.u32 %v3783, 4294901760
  %v3859 = vsub.f32 %v3783, %v3858
  %v3860 = vand.u32 %v3859, 4294901760
  %v3861 = vsub.f32 %v3859, %v3860
  %v3862 = vand.u32 %v3861, 4294901760
  %3863 = vmatmul.mubr.f32.gmra.mrb[0].mxu0 %v3862
  %v3864 = vpop.f32.mrb[0].mxu0
  %v3865 = vadd.f32 0.0, %v3864
  %v3866 = vpop.f32.mrb[0].mxu0
  %3867 = vmatprep.mubr.f32.mxu0 0.0
  %v3868 = vand.u32 %v3786, 4294901760
  %v3869 = vsub.f32 %v3786, %v3868
  %v3870 = vand.u32 %v3869, 4294901760
  %v3871 = vsub.f32 %v3869, %v3870
  %v3872 = vand.u32 %v3871, 4294901760
  %3873 = vmatmul.mubr.f32.gmra.mrb[0].mxu0 %v3872
  %v3874 = vpop.f32.mrb[0].mxu0
  %v3875 = vadd.f32 0.0, %v3874
  %v3876 = vpop.f32.mrb[0].mxu0
  %3877 = vdwg.mxu0
  %3878 = vmatprep.subr.mxu0 0.0
  %v3879 = vand.u32 %v3790, 4294901760
  %v3880 = vsub.f32 %v3790, %v3879
  %v3881 = vand.u32 %v3880, 4294901760
  %v3882 = vsub.f32 %v3880, %v3881
  %v3883 = vand.u32 %v3882, 4294901760
  %3884 = vmatpush1.msra.mxu0 %v3883
  %3885 = vmatprep.subr.mxu0 0.0
  %3886 = vmatpush1.msra.mxu0 0.0
  %3887 = vmatprep.subr.mxu0 0.0
  %3888 = vmatpush1.msra.mxu0 0.0
  %3889 = vmatprep.subr.mxu0 0.0
  %3890 = vmatpush1.msra.mxu0 0.0
  %3891 = vmatprep.subr.mxu0 0.0
  %3892 = vmatpush1.msra.mxu0 0.0
  %3893 = vmatprep.subr.mxu0 0.0
  %3894 = vmatpush1.msra.mxu0 0.0
  %3895 = vmatprep.subr.mxu0 0.0
  %3896 = vmatpush1.msra.mxu0 0.0
  %3897 = vmatprep.subr.mxu0 0.0
  %3898 = vmatpush1.msra.mxu0 0.0
  %3899 = vmatprep.subr.mxu0 0.0
  %3900 = vmatpush1.msra.mxu0 0.0
  %3901 = vmatprep.subr.mxu0 0.0
  %3902 = vmatpush1.msra.mxu0 0.0
  %3903 = vmatprep.subr.mxu0 0.0
  %3904 = vmatpush1.msra.mxu0 0.0
  %3905 = vmatprep.subr.mxu0 0.0
  %3906 = vmatpush1.msra.mxu0 0.0
  %3907 = vmatprep.subr.mxu0 0.0
  %3908 = vmatpush1.msra.mxu0 0.0
  %3909 = vmatprep.subr.mxu0 0.0
  %3910 = vmatpush1.msra.mxu0 0.0
  %3911 = vmatprep.subr.mxu0 0.0
  %3912 = vmatpush1.msra.mxu0 0.0
  %3913 = vmatprep.subr.mxu0 0.0
  %3914 = vmatpush1.msra.mxu0 0.0
  %3915 = vmatprep.subr.mxu0 0.0
  %3916 = vmatpush1.msra.mxu0 0.0
  %3917 = vmatprep.subr.mxu0 0.0
  %3918 = vmatpush1.msra.mxu0 0.0
  %3919 = vmatprep.subr.mxu0 0.0
  %3920 = vmatpush1.msra.mxu0 0.0
  %3921 = vmatprep.subr.mxu0 0.0
  %3922 = vmatpush1.msra.mxu0 0.0
  %3923 = vmatprep.subr.mxu0 0.0
  %3924 = vmatpush1.msra.mxu0 0.0
  %3925 = vmatprep.subr.mxu0 0.0
  %3926 = vmatpush1.msra.mxu0 0.0
  %3927 = vmatprep.subr.mxu0 0.0
  %3928 = vmatpush1.msra.mxu0 0.0
  %3929 = vmatprep.subr.mxu0 0.0
  %3930 = vmatpush1.msra.mxu0 0.0
  %3931 = vmatprep.subr.mxu0 0.0
  %3932 = vmatpush1.msra.mxu0 0.0
  %3933 = vmatprep.subr.mxu0 0.0
  %3934 = vmatpush1.msra.mxu0 0.0
  %3935 = vmatprep.subr.mxu0 0.0
  %3936 = vmatpush1.msra.mxu0 0.0
  %3937 = vmatprep.subr.mxu0 0.0
  %3938 = vmatpush1.msra.mxu0 0.0
  %3939 = vmatprep.subr.mxu0 0.0
  %3940 = vmatpush1.msra.mxu0 0.0
  %3941 = vmatprep.subr.mxu0 0.0
  %3942 = vmatpush1.msra.mxu0 0.0
  %3943 = vmatprep.subr.mxu0 0.0
  %3944 = vmatpush1.msra.mxu0 0.0
  %3945 = vmatprep.subr.mxu0 0.0
  %3946 = vmatpush1.msra.mxu0 0.0
  %3947 = vmatprep.mubr.f32.mxu0 0.0
  %v3948 = vand.u32 %v3783, 4294901760
  %3949 = vmatmul.mubr.f32.gmra.mrb[0].mxu0 %v3948
  %v3950 = vpop.f32.mrb[0].mxu0
  %v3951 = vadd.f32 %v3865, %v3950
  %v3952 = vpop.f32.mrb[0].mxu0
  %3953 = vmatprep.mubr.f32.mxu0 0.0
  %v3954 = vand.u32 %v3786, 4294901760
  %3955 = vmatmul.mubr.f32.gmra.mrb[0].mxu0 %v3954
  %v3956 = vpop.f32.mrb[0].mxu0
  %v3957 = vadd.f32 %v3875, %v3956
  %v3958 = vpop.f32.mrb[0].mxu0
  %3959 = vdwg.mxu0
  %3960 = vmatprep.subr.mxu0 0.0
  %v3961 = vand.u32 %v3790, 4294901760
  %v3962 = vsub.f32 %v3790, %v3961
  %3963 = vmatpush1.msra.mxu0 %v3962
  %3964 = vmatprep.subr.mxu0 0.0
  %3965 = vmatpush1.msra.mxu0 0.0
  %3966 = vmatprep.subr.mxu0 0.0
  %3967 = vmatpush1.msra.mxu0 0.0
  %3968 = vmatprep.subr.mxu0 0.0
  %3969 = vmatpush1.msra.mxu0 0.0
  %3970 = vmatprep.subr.mxu0 0.0
  %3971 = vmatpush1.msra.mxu0 0.0
  %3972 = vmatprep.subr.mxu0 0.0
  %3973 = vmatpush1.msra.mxu0 0.0
  %3974 = vmatprep.subr.mxu0 0.0
  %3975 = vmatpush1.msra.mxu0 0.0
  %3976 = vmatprep.subr.mxu0 0.0
  %3977 = vmatpush1.msra.mxu0 0.0
  %3978 = vmatprep.subr.mxu0 0.0
  %3979 = vmatpush1.msra.mxu0 0.0
  %3980 = vmatprep.subr.mxu0 0.0
  %3981 = vmatpush1.msra.mxu0 0.0
  %3982 = vmatprep.subr.mxu0 0.0
  %3983 = vmatpush1.msra.mxu0 0.0
  %3984 = vmatprep.subr.mxu0 0.0
  %3985 = vmatpush1.msra.mxu0 0.0
  %3986 = vmatprep.subr.mxu0 0.0
  %3987 = vmatpush1.msra.mxu0 0.0
  %3988 = vmatprep.subr.mxu0 0.0
  %3989 = vmatpush1.msra.mxu0 0.0
  %3990 = vmatprep.subr.mxu0 0.0
  %3991 = vmatpush1.msra.mxu0 0.0
  %3992 = vmatprep.subr.mxu0 0.0
  %3993 = vmatpush1.msra.mxu0 0.0
  %3994 = vmatprep.subr.mxu0 0.0
  %3995 = vmatpush1.msra.mxu0 0.0
  %3996 = vmatprep.subr.mxu0 0.0
  %3997 = vmatpush1.msra.mxu0 0.0
  %3998 = vmatprep.subr.mxu0 0.0
  %3999 = vmatpush1.msra.mxu0 0.0
  %4000 = vmatprep.subr.mxu0 0.0
  %4001 = vmatpush1.msra.mxu0 0.0
  %4002 = vmatprep.subr.mxu0 0.0
  %4003 = vmatpush1.msra.mxu0 0.0
  %4004 = vmatprep.subr.mxu0 0.0
  %4005 = vmatpush1.msra.mxu0 0.0
  %4006 = vmatprep.subr.mxu0 0.0
  %4007 = vmatpush1.msra.mxu0 0.0
  %4008 = vmatprep.subr.mxu0 0.0
  %4009 = vmatpush1.msra.mxu0 0.0
  %4010 = vmatprep.subr.mxu0 0.0
  %4011 = vmatpush1.msra.mxu0 0.0
  %4012 = vmatprep.subr.mxu0 0.0
  %4013 = vmatpush1.msra.mxu0 0.0
  %4014 = vmatprep.subr.mxu0 0.0
  %4015 = vmatpush1.msra.mxu0 0.0
  %4016 = vmatprep.subr.mxu0 0.0
  %4017 = vmatpush1.msra.mxu0 0.0
  %4018 = vmatprep.subr.mxu0 0.0
  %4019 = vmatpush1.msra.mxu0 0.0
  %4020 = vmatprep.subr.mxu0 0.0
  %4021 = vmatpush1.msra.mxu0 0.0
  %4022 = vmatprep.subr.mxu0 0.0
  %4023 = vmatpush1.msra.mxu0 0.0
  %4024 = vmatprep.subr.mxu0 0.0
  %4025 = vmatpush1.msra.mxu0 0.0
  %4026 = vmatprep.mubr.f32.mxu0 0.0
  %v4027 = vand.u32 %v3783, 4294901760
  %v4028 = vsub.f32 %v3783, %v4027
  %4029 = vmatmul.mubr.f32.gmra.mrb[0].mxu0 %v4028
  %v4030 = vpop.f32.mrb[0].mxu0
  %v4031 = vadd.f32 %v3951, %v4030
  %v4032 = vpop.f32.mrb[0].mxu0
  %4033 = vmatprep.mubr.f32.mxu0 0.0
  %v4034 = vand.u32 %v3786, 4294901760
  %v4035 = vsub.f32 %v3786, %v4034
  %4036 = vmatmul.mubr.f32.gmra.mrb[0].mxu0 %v4035
  %v4037 = vpop.f32.mrb[0].mxu0
  %v4038 = vadd.f32 %v3957, %v4037
  %v4039 = vpop.f32.mrb[0].mxu0
  %4040 = vdwg.mxu0
  %4041 = vmatprep.subr.mxu0 0.0
  %v4042 = vand.u32 %v3790, 4294901760
  %4043 = vmatpush1.msra.mxu0 %v4042
  %4044 = vmatprep.subr.mxu0 0.0
  %4045 = vmatpush1.msra.mxu0 0.0
  %4046 = vmatprep.subr.mxu0 0.0
  %4047 = vmatpush1.msra.mxu0 0.0
  %4048 = vmatprep.subr.mxu0 0.0
  %4049 = vmatpush1.msra.mxu0 0.0
  %4050 = vmatprep.subr.mxu0 0.0
  %4051 = vmatpush1.msra.mxu0 0.0
  %4052 = vmatprep.subr.mxu0 0.0
  %4053 = vmatpush1.msra.mxu0 0.0
  %4054 = vmatprep.subr.mxu0 0.0
  %4055 = vmatpush1.msra.mxu0 0.0
  %4056 = vmatprep.subr.mxu0 0.0
  %4057 = vmatpush1.msra.mxu0 0.0
  %4058 = vmatprep.subr.mxu0 0.0
  %4059 = vmatpush1.msra.mxu0 0.0
  %4060 = vmatprep.subr.mxu0 0.0
  %4061 = vmatpush1.msra.mxu0 0.0
  %4062 = vmatprep.subr.mxu0 0.0
  %4063 = vmatpush1.msra.mxu0 0.0
  %4064 = vmatprep.subr.mxu0 0.0
  %4065 = vmatpush1.msra.mxu0 0.0
  %4066 = vmatprep.subr.mxu0 0.0
  %4067 = vmatpush1.msra.mxu0 0.0
  %4068 = vmatprep.subr.mxu0 0.0
  %4069 = vmatpush1.msra.mxu0 0.0
  %4070 = vmatprep.subr.mxu0 0.0
  %4071 = vmatpush1.msra.mxu0 0.0
  %4072 = vmatprep.subr.mxu0 0.0
  %4073 = vmatpush1.msra.mxu0 0.0
  %4074 = vmatprep.subr.mxu0 0.0
  %4075 = vmatpush1.msra.mxu0 0.0
  %4076 = vmatprep.subr.mxu0 0.0
  %4077 = vmatpush1.msra.mxu0 0.0
  %4078 = vmatprep.subr.mxu0 0.0
  %4079 = vmatpush1.msra.mxu0 0.0
  %4080 = vmatprep.subr.mxu0 0.0
  %4081 = vmatpush1.msra.mxu0 0.0
  %4082 = vmatprep.subr.mxu0 0.0
  %4083 = vmatpush1.msra.mxu0 0.0
  %4084 = vmatprep.subr.mxu0 0.0
  %4085 = vmatpush1.msra.mxu0 0.0
  %4086 = vmatprep.subr.mxu0 0.0
  %4087 = vmatpush1.msra.mxu0 0.0
  %4088 = vmatprep.subr.mxu0 0.0
  %4089 = vmatpush1.msra.mxu0 0.0
  %4090 = vmatprep.subr.mxu0 0.0
  %4091 = vmatpush1.msra.mxu0 0.0
  %4092 = vmatprep.subr.mxu0 0.0
  %4093 = vmatpush1.msra.mxu0 0.0
  %4094 = vmatprep.subr.mxu0 0.0
  %4095 = vmatpush1.msra.mxu0 0.0
  %4096 = vmatprep.subr.mxu0 0.0
  %4097 = vmatpush1.msra.mxu0 0.0
  %4098 = vmatprep.subr.mxu0 0.0
  %4099 = vmatpush1.msra.mxu0 0.0
  %4100 = vmatprep.subr.mxu0 0.0
  %4101 = vmatpush1.msra.mxu0 0.0
  %4102 = vmatprep.subr.mxu0 0.0
  %4103 = vmatpush1.msra.mxu0 0.0
  %4104 = vmatprep.subr.mxu0 0.0
  %4105 = vmatpush1.msra.mxu0 0.0
  %4106 = vmatprep.mubr.f32.mxu0 0.0
  %v4107 = vand.u32 %v3783, 4294901760
  %v4108 = vsub.f32 %v3783, %v4107
  %v4109 = vand.u32 %v4108, 4294901760
  %4110 = vmatmul.mubr.f32.gmra.mrb[0].mxu0 %v4109
  %v4111 = vpop.f32.mrb[0].mxu0
  %v4112 = vadd.f32 %v4031, %v4111
  %v4113 = vpop.f32.mrb[0].mxu0
  %4114 = vmatprep.mubr.f32.mxu0 0.0
  %v4115 = vand.u32 %v3786, 4294901760
  %v4116 = vsub.f32 %v3786, %v4115
  %v4117 = vand.u32 %v4116, 4294901760
  %4118 = vmatmul.mubr.f32.gmra.mrb[0].mxu0 %v4117
  %v4119 = vpop.f32.mrb[0].mxu0
  %v4120 = vadd.f32 %v4038, %v4119
  %v4121 = vpop.f32.mrb[0].mxu0
  %4122 = vdwg.mxu0
  %4123 = vmatprep.subr.mxu0 0.0
  %v4124 = vand.u32 %v3790, 4294901760
  %v4125 = vsub.f32 %v3790, %v4124
  %v4126 = vand.u32 %v4125, 4294901760
  %4127 = vmatpush1.msra.mxu0 %v4126
  %4128 = vmatprep.subr.mxu0 0.0
  %4129 = vmatpush1.msra.mxu0 0.0
  %4130 = vmatprep.subr.mxu0 0.0
  %4131 = vmatpush1.msra.mxu0 0.0
  %4132 = vmatprep.subr.mxu0 0.0
  %4133 = vmatpush1.msra.mxu0 0.0
  %4134 = vmatprep.subr.mxu0 0.0
  %4135 = vmatpush1.msra.mxu0 0.0
  %4136 = vmatprep.subr.mxu0 0.0
  %4137 = vmatpush1.msra.mxu0 0.0
  %4138 = vmatprep.subr.mxu0 0.0
  %4139 = vmatpush1.msra.mxu0 0.0
  %4140 = vmatprep.subr.mxu0 0.0
  %4141 = vmatpush1.msra.mxu0 0.0
  %4142 = vmatprep.subr.mxu0 0.0
  %4143 = vmatpush1.msra.mxu0 0.0
  %4144 = vmatprep.subr.mxu0 0.0
  %4145 = vmatpush1.msra.mxu0 0.0
  %4146 = vmatprep.subr.mxu0 0.0
  %4147 = vmatpush1.msra.mxu0 0.0
  %4148 = vmatprep.subr.mxu0 0.0
  %4149 = vmatpush1.msra.mxu0 0.0
  %4150 = vmatprep.subr.mxu0 0.0
  %4151 = vmatpush1.msra.mxu0 0.0
  %4152 = vmatprep.subr.mxu0 0.0
  %4153 = vmatpush1.msra.mxu0 0.0
  %4154 = vmatprep.subr.mxu0 0.0
  %4155 = vmatpush1.msra.mxu0 0.0
  %4156 = vmatprep.subr.mxu0 0.0
  %4157 = vmatpush1.msra.mxu0 0.0
  %4158 = vmatprep.subr.mxu0 0.0
  %4159 = vmatpush1.msra.mxu0 0.0
  %4160 = vmatprep.subr.mxu0 0.0
  %4161 = vmatpush1.msra.mxu0 0.0
  %4162 = vmatprep.subr.mxu0 0.0
  %4163 = vmatpush1.msra.mxu0 0.0
  %4164 = vmatprep.subr.mxu0 0.0
  %4165 = vmatpush1.msra.mxu0 0.0
  %4166 = vmatprep.subr.mxu0 0.0
  %4167 = vmatpush1.msra.mxu0 0.0
  %4168 = vmatprep.subr.mxu0 0.0
  %4169 = vmatpush1.msra.mxu0 0.0
  %4170 = vmatprep.subr.mxu0 0.0
  %4171 = vmatpush1.msra.mxu0 0.0
  %4172 = vmatprep.subr.mxu0 0.0
  %4173 = vmatpush1.msra.mxu0 0.0
  %4174 = vmatprep.subr.mxu0 0.0
  %4175 = vmatpush1.msra.mxu0 0.0
  %4176 = vmatprep.subr.mxu0 0.0
  %4177 = vmatpush1.msra.mxu0 0.0
  %4178 = vmatprep.subr.mxu0 0.0
  %4179 = vmatpush1.msra.mxu0 0.0
  %4180 = vmatprep.subr.mxu0 0.0
  %4181 = vmatpush1.msra.mxu0 0.0
  %4182 = vmatprep.subr.mxu0 0.0
  %4183 = vmatpush1.msra.mxu0 0.0
  %4184 = vmatprep.subr.mxu0 0.0
  %4185 = vmatpush1.msra.mxu0 0.0
  %4186 = vmatprep.subr.mxu0 0.0
  %4187 = vmatpush1.msra.mxu0 0.0
  %4188 = vmatprep.subr.mxu0 0.0
  %4189 = vmatpush1.msra.mxu0 0.0
  %4190 = vmatprep.mubr.f32.mxu0 0.0
  %v4191 = vand.u32 %v3783, 4294901760
  %4192 = vmatmul.mubr.f32.gmra.mrb[0].mxu0 %v4191
  %v4193 = vpop.f32.mrb[0].mxu0
  %v4194 = vadd.f32 %v4112, %v4193
  %v4195 = vpop.f32.mrb[0].mxu0
  %4196 = vmatprep.mubr.f32.mxu0 0.0
  %v4197 = vand.u32 %v3786, 4294901760
  %4198 = vmatmul.mubr.f32.gmra.mrb[0].mxu0 %v4197
  %v4199 = vpop.f32.mrb[0].mxu0
  %v4200 = vadd.f32 %v4120, %v4199
  %v4201 = vpop.f32.mrb[0].mxu0
  %4202 = vdwg.mxu0
  %4203 = vmatprep.subr.mxu0 0.0
  %v4204 = vand.u32 %v3790, 4294901760
  %4205 = vmatpush1.msra.mxu0 %v4204
  %4206 = vmatprep.subr.mxu0 0.0
  %4207 = vmatpush1.msra.mxu0 0.0
  %4208 = vmatprep.subr.mxu0 0.0
  %4209 = vmatpush1.msra.mxu0 0.0
  %4210 = vmatprep.subr.mxu0 0.0
  %4211 = vmatpush1.msra.mxu0 0.0
  %4212 = vmatprep.subr.mxu0 0.0
  %4213 = vmatpush1.msra.mxu0 0.0
  %4214 = vmatprep.subr.mxu0 0.0
  %4215 = vmatpush1.msra.mxu0 0.0
  %4216 = vmatprep.subr.mxu0 0.0
  %4217 = vmatpush1.msra.mxu0 0.0
  %4218 = vmatprep.subr.mxu0 0.0
  %4219 = vmatpush1.msra.mxu0 0.0
  %4220 = vmatprep.subr.mxu0 0.0
  %4221 = vmatpush1.msra.mxu0 0.0
  %4222 = vmatprep.subr.mxu0 0.0
  %4223 = vmatpush1.msra.mxu0 0.0
  %4224 = vmatprep.subr.mxu0 0.0
  %4225 = vmatpush1.msra.mxu0 0.0
  %4226 = vmatprep.subr.mxu0 0.0
  %4227 = vmatpush1.msra.mxu0 0.0
  %4228 = vmatprep.subr.mxu0 0.0
  %4229 = vmatpush1.msra.mxu0 0.0
  %4230 = vmatprep.subr.mxu0 0.0
  %4231 = vmatpush1.msra.mxu0 0.0
  %4232 = vmatprep.subr.mxu0 0.0
  %4233 = vmatpush1.msra.mxu0 0.0
  %4234 = vmatprep.subr.mxu0 0.0
  %4235 = vmatpush1.msra.mxu0 0.0
  %4236 = vmatprep.subr.mxu0 0.0
  %4237 = vmatpush1.msra.mxu0 0.0
  %4238 = vmatprep.subr.mxu0 0.0
  %4239 = vmatpush1.msra.mxu0 0.0
  %4240 = vmatprep.subr.mxu0 0.0
  %4241 = vmatpush1.msra.mxu0 0.0
  %4242 = vmatprep.subr.mxu0 0.0
  %4243 = vmatpush1.msra.mxu0 0.0
  %4244 = vmatprep.subr.mxu0 0.0
  %4245 = vmatpush1.msra.mxu0 0.0
  %4246 = vmatprep.subr.mxu0 0.0
  %4247 = vmatpush1.msra.mxu0 0.0
  %4248 = vmatprep.subr.mxu0 0.0
  %4249 = vmatpush1.msra.mxu0 0.0
  %4250 = vmatprep.subr.mxu0 0.0
  %4251 = vmatpush1.msra.mxu0 0.0
  %4252 = vmatprep.subr.mxu0 0.0
  %4253 = vmatpush1.msra.mxu0 0.0
  %4254 = vmatprep.subr.mxu0 0.0
  %4255 = vmatpush1.msra.mxu0 0.0
  %4256 = vmatprep.subr.mxu0 0.0
  %4257 = vmatpush1.msra.mxu0 0.0
  %4258 = vmatprep.subr.mxu0 0.0
  %4259 = vmatpush1.msra.mxu0 0.0
  %4260 = vmatprep.subr.mxu0 0.0
  %4261 = vmatpush1.msra.mxu0 0.0
  %4262 = vmatprep.subr.mxu0 0.0
  %4263 = vmatpush1.msra.mxu0 0.0
  %4264 = vmatprep.subr.mxu0 0.0
  %4265 = vmatpush1.msra.mxu0 0.0
  %4266 = vmatprep.subr.mxu0 0.0
  %4267 = vmatpush1.msra.mxu0 0.0
  %4268 = vmatprep.mubr.f32.mxu0 0.0
  %v4269 = vand.u32 %v3783, 4294901760
  %4270 = vmatmul.mubr.f32.gmra.mrb[0].mxu0 %v4269
  %v4271 = vpop.f32.mrb[0].mxu0
  %v4272 = vadd.f32 %v4194, %v4271
  %v4273 = vpop.f32.mrb[0].mxu0
  %4274 = vmatprep.mubr.f32.mxu0 0.0
  %v4275 = vand.u32 %v3786, 4294901760
  %4276 = vmatmul.mubr.f32.gmra.mrb[0].mxu0 %v4275
  %v4277 = vpop.f32.mrb[0].mxu0
  %v4278 = vadd.f32 %v4200, %v4277
  %v4279 = vpop.f32.mrb[0].mxu0
  %4280 = vdwg.mxu0
  %v4281 = vld [vmem:[%s1 + $0x110] sm:$0xff]
  %v4282 = vld [vmem:[%s1 + $0x118] sm:$0xf]
  %v4284 = vsel %vm3781, %v4281, 0
  %v4287 = vsel %vm3781, %v4282, 0
  %4289 = vmatprep.subr.mxu0 0.0
  %v4290 = vand.u32 %v3790, 4294901760
  %4291 = vmatpush1.msra.mxu0 %v4290
  %4292 = vmatprep.subr.mxu0 0.0
  %4293 = vmatpush1.msra.mxu0 0.0
  %4294 = vmatprep.subr.mxu0 0.0
  %4295 = vmatpush1.msra.mxu0 0.0
  %4296 = vmatprep.subr.mxu0 0.0
  %4297 = vmatpush1.msra.mxu0 0.0
  %4298 = vmatprep.subr.mxu0 0.0
  %4299 = vmatpush1.msra.mxu0 0.0
  %4300 = vmatprep.subr.mxu0 0.0
  %4301 = vmatpush1.msra.mxu0 0.0
  %4302 = vmatprep.subr.mxu0 0.0
  %4303 = vmatpush1.msra.mxu0 0.0
  %4304 = vmatprep.subr.mxu0 0.0
  %4305 = vmatpush1.msra.mxu0 0.0
  %4306 = vmatprep.subr.mxu0 0.0
  %4307 = vmatpush1.msra.mxu0 0.0
  %4308 = vmatprep.subr.mxu0 0.0
  %4309 = vmatpush1.msra.mxu0 0.0
  %4310 = vmatprep.subr.mxu0 0.0
  %4311 = vmatpush1.msra.mxu0 0.0
  %4312 = vmatprep.subr.mxu0 0.0
  %4313 = vmatpush1.msra.mxu0 0.0
  %4314 = vmatprep.subr.mxu0 0.0
  %4315 = vmatpush1.msra.mxu0 0.0
  %4316 = vmatprep.subr.mxu0 0.0
  %4317 = vmatpush1.msra.mxu0 0.0
  %4318 = vmatprep.subr.mxu0 0.0
  %4319 = vmatpush1.msra.mxu0 0.0
  %4320 = vmatprep.subr.mxu0 0.0
  %4321 = vmatpush1.msra.mxu0 0.0
  %4322 = vmatprep.subr.mxu0 0.0
  %4323 = vmatpush1.msra.mxu0 0.0
  %4324 = vmatprep.subr.mxu0 0.0
  %4325 = vmatpush1.msra.mxu0 0.0
  %4326 = vmatprep.subr.mxu0 0.0
  %4327 = vmatpush1.msra.mxu0 0.0
  %4328 = vmatprep.subr.mxu0 0.0
  %4329 = vmatpush1.msra.mxu0 0.0
  %4330 = vmatprep.subr.mxu0 0.0
  %4331 = vmatpush1.msra.mxu0 0.0
  %4332 = vmatprep.subr.mxu0 0.0
  %4333 = vmatpush1.msra.mxu0 0.0
  %4334 = vmatprep.subr.mxu0 0.0
  %4335 = vmatpush1.msra.mxu0 0.0
  %4336 = vmatprep.subr.mxu0 0.0
  %4337 = vmatpush1.msra.mxu0 0.0
  %4338 = vmatprep.subr.mxu0 0.0
  %4339 = vmatpush1.msra.mxu0 0.0
  %4340 = vmatprep.subr.mxu0 0.0
  %4341 = vmatpush1.msra.mxu0 0.0
  %4342 = vmatprep.subr.mxu0 0.0
  %4343 = vmatpush1.msra.mxu0 0.0
  %4344 = vmatprep.subr.mxu0 0.0
  %4345 = vmatpush1.msra.mxu0 0.0
  %4346 = vmatprep.subr.mxu0 0.0
  %4347 = vmatpush1.msra.mxu0 0.0
  %4348 = vmatprep.subr.mxu0 0.0
  %4349 = vmatpush1.msra.mxu0 0.0
  %4350 = vmatprep.subr.mxu0 0.0
  %4351 = vmatpush1.msra.mxu0 0.0
  %4352 = vmatprep.subr.mxu0 0.0
  %4353 = vmatpush1.msra.mxu0 0.0
  %4354 = vmatprep.mubr.f32.mxu0 0.0
  %v4355 = vand.u32 %v4284, 4294901760
  %v4356 = vsub.f32 %v4284, %v4355
  %v4357 = vand.u32 %v4356, 4294901760
  %v4358 = vsub.f32 %v4356, %v4357
  %v4359 = vand.u32 %v4358, 4294901760
  %4360 = vmatmul.mubr.f32.gmra.mrb[0].mxu0 %v4359
  %v4361 = vpop.f32.mrb[0].mxu0
  %v4362 = vadd.f32 0.0, %v4361
  %v4363 = vpop.f32.mrb[0].mxu0
  %4364 = vmatprep.mubr.f32.mxu0 0.0
  %v4365 = vand.u32 %v4287, 4294901760
  %v4366 = vsub.f32 %v4287, %v4365
  %v4367 = vand.u32 %v4366, 4294901760
  %v4368 = vsub.f32 %v4366, %v4367
  %v4369 = vand.u32 %v4368, 4294901760
  %4370 = vmatmul.mubr.f32.gmra.mrb[0].mxu0 %v4369
  %v4371 = vpop.f32.mrb[0].mxu0
  %v4372 = vadd.f32 0.0, %v4371
  %v4373 = vpop.f32.mrb[0].mxu0
  %4374 = vdwg.mxu0
  %4375 = vmatprep.subr.mxu0 0.0
  %v4376 = vand.u32 %v3790, 4294901760
  %v4377 = vsub.f32 %v3790, %v4376
  %v4378 = vand.u32 %v4377, 4294901760
  %v4379 = vsub.f32 %v4377, %v4378
  %v4380 = vand.u32 %v4379, 4294901760
  %4381 = vmatpush1.msra.mxu0 %v4380
  %4382 = vmatprep.subr.mxu0 0.0
  %4383 = vmatpush1.msra.mxu0 0.0
  %4384 = vmatprep.subr.mxu0 0.0
  %4385 = vmatpush1.msra.mxu0 0.0
  %4386 = vmatprep.subr.mxu0 0.0
  %4387 = vmatpush1.msra.mxu0 0.0
  %4388 = vmatprep.subr.mxu0 0.0
  %4389 = vmatpush1.msra.mxu0 0.0
  %4390 = vmatprep.subr.mxu0 0.0
  %4391 = vmatpush1.msra.mxu0 0.0
  %4392 = vmatprep.subr.mxu0 0.0
  %4393 = vmatpush1.msra.mxu0 0.0
  %4394 = vmatprep.subr.mxu0 0.0
  %4395 = vmatpush1.msra.mxu0 0.0
  %4396 = vmatprep.subr.mxu0 0.0
  %4397 = vmatpush1.msra.mxu0 0.0
  %4398 = vmatprep.subr.mxu0 0.0
  %4399 = vmatpush1.msra.mxu0 0.0
  %4400 = vmatprep.subr.mxu0 0.0
  %4401 = vmatpush1.msra.mxu0 0.0
  %4402 = vmatprep.subr.mxu0 0.0
  %4403 = vmatpush1.msra.mxu0 0.0
  %4404 = vmatprep.subr.mxu0 0.0
  %4405 = vmatpush1.msra.mxu0 0.0
  %4406 = vmatprep.subr.mxu0 0.0
  %4407 = vmatpush1.msra.mxu0 0.0
  %4408 = vmatprep.subr.mxu0 0.0
  %4409 = vmatpush1.msra.mxu0 0.0
  %4410 = vmatprep.subr.mxu0 0.0
  %4411 = vmatpush1.msra.mxu0 0.0
  %4412 = vmatprep.subr.mxu0 0.0
  %4413 = vmatpush1.msra.mxu0 0.0
  %4414 = vmatprep.subr.mxu0 0.0
  %4415 = vmatpush1.msra.mxu0 0.0
  %4416 = vmatprep.subr.mxu0 0.0
  %4417 = vmatpush1.msra.mxu0 0.0
  %4418 = vmatprep.subr.mxu0 0.0
  %4419 = vmatpush1.msra.mxu0 0.0
  %4420 = vmatprep.subr.mxu0 0.0
  %4421 = vmatpush1.msra.mxu0 0.0
  %4422 = vmatprep.subr.mxu0 0.0
  %4423 = vmatpush1.msra.mxu0 0.0
  %4424 = vmatprep.subr.mxu0 0.0
  %4425 = vmatpush1.msra.mxu0 0.0
  %4426 = vmatprep.subr.mxu0 0.0
  %4427 = vmatpush1.msra.mxu0 0.0
  %4428 = vmatprep.subr.mxu0 0.0
  %4429 = vmatpush1.msra.mxu0 0.0
  %4430 = vmatprep.subr.mxu0 0.0
  %4431 = vmatpush1.msra.mxu0 0.0
  %4432 = vmatprep.subr.mxu0 0.0
  %4433 = vmatpush1.msra.mxu0 0.0
  %4434 = vmatprep.subr.mxu0 0.0
  %4435 = vmatpush1.msra.mxu0 0.0
  %4436 = vmatprep.subr.mxu0 0.0
  %4437 = vmatpush1.msra.mxu0 0.0
  %4438 = vmatprep.subr.mxu0 0.0
  %4439 = vmatpush1.msra.mxu0 0.0
  %4440 = vmatprep.subr.mxu0 0.0
  %4441 = vmatpush1.msra.mxu0 0.0
  %4442 = vmatprep.subr.mxu0 0.0
  %4443 = vmatpush1.msra.mxu0 0.0
  %4444 = vmatprep.mubr.f32.mxu0 0.0
  %v4445 = vand.u32 %v4284, 4294901760
  %4446 = vmatmul.mubr.f32.gmra.mrb[0].mxu0 %v4445
  %v4447 = vpop.f32.mrb[0].mxu0
  %v4448 = vadd.f32 %v4362, %v4447
  %v4449 = vpop.f32.mrb[0].mxu0
  %4450 = vmatprep.mubr.f32.mxu0 0.0
  %v4451 = vand.u32 %v4287, 4294901760
  %4452 = vmatmul.mubr.f32.gmra.mrb[0].mxu0 %v4451
  %v4453 = vpop.f32.mrb[0].mxu0
  %v4454 = vadd.f32 %v4372, %v4453
  %v4455 = vpop.f32.mrb[0].mxu0
  %4456 = vdwg.mxu0
  %4457 = vmatprep.subr.mxu0 0.0
  %v4458 = vand.u32 %v3790, 4294901760
  %v4459 = vsub.f32 %v3790, %v4458
  %4460 = vmatpush1.msra.mxu0 %v4459
  %4461 = vmatprep.subr.mxu0 0.0
  %4462 = vmatpush1.msra.mxu0 0.0
  %4463 = vmatprep.subr.mxu0 0.0
  %4464 = vmatpush1.msra.mxu0 0.0
  %4465 = vmatprep.subr.mxu0 0.0
  %4466 = vmatpush1.msra.mxu0 0.0
  %4467 = vmatprep.subr.mxu0 0.0
  %4468 = vmatpush1.msra.mxu0 0.0
  %4469 = vmatprep.subr.mxu0 0.0
  %4470 = vmatpush1.msra.mxu0 0.0
  %4471 = vmatprep.subr.mxu0 0.0
  %4472 = vmatpush1.msra.mxu0 0.0
  %4473 = vmatprep.subr.mxu0 0.0
  %4474 = vmatpush1.msra.mxu0 0.0
  %4475 = vmatprep.subr.mxu0 0.0
  %4476 = vmatpush1.msra.mxu0 0.0
  %4477 = vmatprep.subr.mxu0 0.0
  %4478 = vmatpush1.msra.mxu0 0.0
  %4479 = vmatprep.subr.mxu0 0.0
  %4480 = vmatpush1.msra.mxu0 0.0
  %4481 = vmatprep.subr.mxu0 0.0
  %4482 = vmatpush1.msra.mxu0 0.0
  %4483 = vmatprep.subr.mxu0 0.0
  %4484 = vmatpush1.msra.mxu0 0.0
  %4485 = vmatprep.subr.mxu0 0.0
  %4486 = vmatpush1.msra.mxu0 0.0
  %4487 = vmatprep.subr.mxu0 0.0
  %4488 = vmatpush1.msra.mxu0 0.0
  %4489 = vmatprep.subr.mxu0 0.0
  %4490 = vmatpush1.msra.mxu0 0.0
  %4491 = vmatprep.subr.mxu0 0.0
  %4492 = vmatpush1.msra.mxu0 0.0
  %4493 = vmatprep.subr.mxu0 0.0
  %4494 = vmatpush1.msra.mxu0 0.0
  %4495 = vmatprep.subr.mxu0 0.0
  %4496 = vmatpush1.msra.mxu0 0.0
  %4497 = vmatprep.subr.mxu0 0.0
  %4498 = vmatpush1.msra.mxu0 0.0
  %4499 = vmatprep.subr.mxu0 0.0
  %4500 = vmatpush1.msra.mxu0 0.0
  %4501 = vmatprep.subr.mxu0 0.0
  %4502 = vmatpush1.msra.mxu0 0.0
  %4503 = vmatprep.subr.mxu0 0.0
  %4504 = vmatpush1.msra.mxu0 0.0
  %4505 = vmatprep.subr.mxu0 0.0
  %4506 = vmatpush1.msra.mxu0 0.0
  %4507 = vmatprep.subr.mxu0 0.0
  %4508 = vmatpush1.msra.mxu0 0.0
  %4509 = vmatprep.subr.mxu0 0.0
  %4510 = vmatpush1.msra.mxu0 0.0
  %4511 = vmatprep.subr.mxu0 0.0
  %4512 = vmatpush1.msra.mxu0 0.0
  %4513 = vmatprep.subr.mxu0 0.0
  %4514 = vmatpush1.msra.mxu0 0.0
  %4515 = vmatprep.subr.mxu0 0.0
  %4516 = vmatpush1.msra.mxu0 0.0
  %4517 = vmatprep.subr.mxu0 0.0
  %4518 = vmatpush1.msra.mxu0 0.0
  %4519 = vmatprep.subr.mxu0 0.0
  %4520 = vmatpush1.msra.mxu0 0.0
  %4521 = vmatprep.subr.mxu0 0.0
  %4522 = vmatpush1.msra.mxu0 0.0
  %4523 = vmatprep.mubr.f32.mxu0 0.0
  %v4524 = vand.u32 %v4284, 4294901760
  %v4525 = vsub.f32 %v4284, %v4524
  %4526 = vmatmul.mubr.f32.gmra.mrb[0].mxu0 %v4525
  %v4527 = vpop.f32.mrb[0].mxu0
  %v4528 = vadd.f32 %v4448, %v4527
  %v4529 = vpop.f32.mrb[0].mxu0
  %4530 = vmatprep.mubr.f32.mxu0 0.0
  %v4531 = vand.u32 %v4287, 4294901760
  %v4532 = vsub.f32 %v4287, %v4531
  %4533 = vmatmul.mubr.f32.gmra.mrb[0].mxu0 %v4532
  %v4534 = vpop.f32.mrb[0].mxu0
  %v4535 = vadd.f32 %v4454, %v4534
  %v4536 = vpop.f32.mrb[0].mxu0
  %4537 = vdwg.mxu0
  %4538 = vmatprep.subr.mxu0 0.0
  %v4539 = vand.u32 %v3790, 4294901760
  %4540 = vmatpush1.msra.mxu0 %v4539
  %4541 = vmatprep.subr.mxu0 0.0
  %4542 = vmatpush1.msra.mxu0 0.0
  %4543 = vmatprep.subr.mxu0 0.0
  %4544 = vmatpush1.msra.mxu0 0.0
  %4545 = vmatprep.subr.mxu0 0.0
  %4546 = vmatpush1.msra.mxu0 0.0
  %4547 = vmatprep.subr.mxu0 0.0
  %4548 = vmatpush1.msra.mxu0 0.0
  %4549 = vmatprep.subr.mxu0 0.0
  %4550 = vmatpush1.msra.mxu0 0.0
  %4551 = vmatprep.subr.mxu0 0.0
  %4552 = vmatpush1.msra.mxu0 0.0
  %4553 = vmatprep.subr.mxu0 0.0
  %4554 = vmatpush1.msra.mxu0 0.0
  %4555 = vmatprep.subr.mxu0 0.0
  %4556 = vmatpush1.msra.mxu0 0.0
  %4557 = vmatprep.subr.mxu0 0.0
  %4558 = vmatpush1.msra.mxu0 0.0
  %4559 = vmatprep.subr.mxu0 0.0
  %4560 = vmatpush1.msra.mxu0 0.0
  %4561 = vmatprep.subr.mxu0 0.0
  %4562 = vmatpush1.msra.mxu0 0.0
  %4563 = vmatprep.subr.mxu0 0.0
  %4564 = vmatpush1.msra.mxu0 0.0
  %4565 = vmatprep.subr.mxu0 0.0
  %4566 = vmatpush1.msra.mxu0 0.0
  %4567 = vmatprep.subr.mxu0 0.0
  %4568 = vmatpush1.msra.mxu0 0.0
  %4569 = vmatprep.subr.mxu0 0.0
  %4570 = vmatpush1.msra.mxu0 0.0
  %4571 = vmatprep.subr.mxu0 0.0
  %4572 = vmatpush1.msra.mxu0 0.0
  %4573 = vmatprep.subr.mxu0 0.0
  %4574 = vmatpush1.msra.mxu0 0.0
  %4575 = vmatprep.subr.mxu0 0.0
  %4576 = vmatpush1.msra.mxu0 0.0
  %4577 = vmatprep.subr.mxu0 0.0
  %4578 = vmatpush1.msra.mxu0 0.0
  %4579 = vmatprep.subr.mxu0 0.0
  %4580 = vmatpush1.msra.mxu0 0.0
  %4581 = vmatprep.subr.mxu0 0.0
  %4582 = vmatpush1.msra.mxu0 0.0
  %4583 = vmatprep.subr.mxu0 0.0
  %4584 = vmatpush1.msra.mxu0 0.0
  %4585 = vmatprep.subr.mxu0 0.0
  %4586 = vmatpush1.msra.mxu0 0.0
  %4587 = vmatprep.subr.mxu0 0.0
  %4588 = vmatpush1.msra.mxu0 0.0
  %4589 = vmatprep.subr.mxu0 0.0
  %4590 = vmatpush1.msra.mxu0 0.0
  %4591 = vmatprep.subr.mxu0 0.0
  %4592 = vmatpush1.msra.mxu0 0.0
  %4593 = vmatprep.subr.mxu0 0.0
  %4594 = vmatpush1.msra.mxu0 0.0
  %4595 = vmatprep.subr.mxu0 0.0
  %4596 = vmatpush1.msra.mxu0 0.0
  %4597 = vmatprep.subr.mxu0 0.0
  %4598 = vmatpush1.msra.mxu0 0.0
  %4599 = vmatprep.subr.mxu0 0.0
  %4600 = vmatpush1.msra.mxu0 0.0
  %4601 = vmatprep.subr.mxu0 0.0
  %4602 = vmatpush1.msra.mxu0 0.0
  %4603 = vmatprep.mubr.f32.mxu0 0.0
  %v4604 = vand.u32 %v4284, 4294901760
  %v4605 = vsub.f32 %v4284, %v4604
  %v4606 = vand.u32 %v4605, 4294901760
  %4607 = vmatmul.mubr.f32.gmra.mrb[0].mxu0 %v4606
  %v4608 = vpop.f32.mrb[0].mxu0
  %v4609 = vadd.f32 %v4528, %v4608
  %v4610 = vpop.f32.mrb[0].mxu0
  %4611 = vmatprep.mubr.f32.mxu0 0.0
  %v4612 = vand.u32 %v4287, 4294901760
  %v4613 = vsub.f32 %v4287, %v4612
  %v4614 = vand.u32 %v4613, 4294901760
  %4615 = vmatmul.mubr.f32.gmra.mrb[0].mxu0 %v4614
  %v4616 = vpop.f32.mrb[0].mxu0
  %v4617 = vadd.f32 %v4535, %v4616
  %v4618 = vpop.f32.mrb[0].mxu0
  %4619 = vdwg.mxu0
  %4620 = vmatprep.subr.mxu0 0.0
  %v4621 = vand.u32 %v3790, 4294901760
  %v4622 = vsub.f32 %v3790, %v4621
  %v4623 = vand.u32 %v4622, 4294901760
  %4624 = vmatpush1.msra.mxu0 %v4623
  %4625 = vmatprep.subr.mxu0 0.0
  %4626 = vmatpush1.msra.mxu0 0.0
  %4627 = vmatprep.subr.mxu0 0.0
  %4628 = vmatpush1.msra.mxu0 0.0
  %4629 = vmatprep.subr.mxu0 0.0
  %4630 = vmatpush1.msra.mxu0 0.0
  %4631 = vmatprep.subr.mxu0 0.0
  %4632 = vmatpush1.msra.mxu0 0.0
  %4633 = vmatprep.subr.mxu0 0.0
  %4634 = vmatpush1.msra.mxu0 0.0
  %4635 = vmatprep.subr.mxu0 0.0
  %4636 = vmatpush1.msra.mxu0 0.0
  %4637 = vmatprep.subr.mxu0 0.0
  %4638 = vmatpush1.msra.mxu0 0.0
  %4639 = vmatprep.subr.mxu0 0.0
  %4640 = vmatpush1.msra.mxu0 0.0
  %4641 = vmatprep.subr.mxu0 0.0
  %4642 = vmatpush1.msra.mxu0 0.0
  %4643 = vmatprep.subr.mxu0 0.0
  %4644 = vmatpush1.msra.mxu0 0.0
  %4645 = vmatprep.subr.mxu0 0.0
  %4646 = vmatpush1.msra.mxu0 0.0
  %4647 = vmatprep.subr.mxu0 0.0
  %4648 = vmatpush1.msra.mxu0 0.0
  %4649 = vmatprep.subr.mxu0 0.0
  %4650 = vmatpush1.msra.mxu0 0.0
  %4651 = vmatprep.subr.mxu0 0.0
  %4652 = vmatpush1.msra.mxu0 0.0
  %4653 = vmatprep.subr.mxu0 0.0
  %4654 = vmatpush1.msra.mxu0 0.0
  %4655 = vmatprep.subr.mxu0 0.0
  %4656 = vmatpush1.msra.mxu0 0.0
  %4657 = vmatprep.subr.mxu0 0.0
  %4658 = vmatpush1.msra.mxu0 0.0
  %4659 = vmatprep.subr.mxu0 0.0
  %4660 = vmatpush1.msra.mxu0 0.0
  %4661 = vmatprep.subr.mxu0 0.0
  %4662 = vmatpush1.msra.mxu0 0.0
  %4663 = vmatprep.subr.mxu0 0.0
  %4664 = vmatpush1.msra.mxu0 0.0
  %4665 = vmatprep.subr.mxu0 0.0
  %4666 = vmatpush1.msra.mxu0 0.0
  %4667 = vmatprep.subr.mxu0 0.0
  %4668 = vmatpush1.msra.mxu0 0.0
  %4669 = vmatprep.subr.mxu0 0.0
  %4670 = vmatpush1.msra.mxu0 0.0
  %4671 = vmatprep.subr.mxu0 0.0
  %4672 = vmatpush1.msra.mxu0 0.0
  %4673 = vmatprep.subr.mxu0 0.0
  %4674 = vmatpush1.msra.mxu0 0.0
  %4675 = vmatprep.subr.mxu0 0.0
  %4676 = vmatpush1.msra.mxu0 0.0
  %4677 = vmatprep.subr.mxu0 0.0
  %4678 = vmatpush1.msra.mxu0 0.0
  %4679 = vmatprep.subr.mxu0 0.0
  %4680 = vmatpush1.msra.mxu0 0.0
  %4681 = vmatprep.subr.mxu0 0.0
  %4682 = vmatpush1.msra.mxu0 0.0
  %4683 = vmatprep.subr.mxu0 0.0
  %4684 = vmatpush1.msra.mxu0 0.0
  %4685 = vmatprep.subr.mxu0 0.0
  %4686 = vmatpush1.msra.mxu0 0.0
  %4687 = vmatprep.mubr.f32.mxu0 0.0
  %v4688 = vand.u32 %v4284, 4294901760
  %4689 = vmatmul.mubr.f32.gmra.mrb[0].mxu0 %v4688
  %v4690 = vpop.f32.mrb[0].mxu0
  %v4691 = vadd.f32 %v4609, %v4690
  %v4692 = vpop.f32.mrb[0].mxu0
  %4693 = vmatprep.mubr.f32.mxu0 0.0
  %v4694 = vand.u32 %v4287, 4294901760
  %4695 = vmatmul.mubr.f32.gmra.mrb[0].mxu0 %v4694
  %v4696 = vpop.f32.mrb[0].mxu0
  %v4697 = vadd.f32 %v4617, %v4696
  %v4698 = vpop.f32.mrb[0].mxu0
  %4699 = vdwg.mxu0
  %4700 = vmatprep.subr.mxu0 0.0
  %v4701 = vand.u32 %v3790, 4294901760
  %4702 = vmatpush1.msra.mxu0 %v4701
  %4703 = vmatprep.subr.mxu0 0.0
  %4704 = vmatpush1.msra.mxu0 0.0
  %4705 = vmatprep.subr.mxu0 0.0
  %4706 = vmatpush1.msra.mxu0 0.0
  %4707 = vmatprep.subr.mxu0 0.0
  %4708 = vmatpush1.msra.mxu0 0.0
  %4709 = vmatprep.subr.mxu0 0.0
  %4710 = vmatpush1.msra.mxu0 0.0
  %4711 = vmatprep.subr.mxu0 0.0
  %4712 = vmatpush1.msra.mxu0 0.0
  %4713 = vmatprep.subr.mxu0 0.0
  %4714 = vmatpush1.msra.mxu0 0.0
  %4715 = vmatprep.subr.mxu0 0.0
  %4716 = vmatpush1.msra.mxu0 0.0
  %4717 = vmatprep.subr.mxu0 0.0
  %4718 = vmatpush1.msra.mxu0 0.0
  %4719 = vmatprep.subr.mxu0 0.0
  %4720 = vmatpush1.msra.mxu0 0.0
  %4721 = vmatprep.subr.mxu0 0.0
  %4722 = vmatpush1.msra.mxu0 0.0
  %4723 = vmatprep.subr.mxu0 0.0
  %4724 = vmatpush1.msra.mxu0 0.0
  %4725 = vmatprep.subr.mxu0 0.0
  %4726 = vmatpush1.msra.mxu0 0.0
  %4727 = vmatprep.subr.mxu0 0.0
  %4728 = vmatpush1.msra.mxu0 0.0
  %4729 = vmatprep.subr.mxu0 0.0
  %4730 = vmatpush1.msra.mxu0 0.0
  %4731 = vmatprep.subr.mxu0 0.0
  %4732 = vmatpush1.msra.mxu0 0.0
  %4733 = vmatprep.subr.mxu0 0.0
  %4734 = vmatpush1.msra.mxu0 0.0
  %4735 = vmatprep.subr.mxu0 0.0
  %4736 = vmatpush1.msra.mxu0 0.0
  %4737 = vmatprep.subr.mxu0 0.0
  %4738 = vmatpush1.msra.mxu0 0.0
  %4739 = vmatprep.subr.mxu0 0.0
  %4740 = vmatpush1.msra.mxu0 0.0
  %4741 = vmatprep.subr.mxu0 0.0
  %4742 = vmatpush1.msra.mxu0 0.0
  %4743 = vmatprep.subr.mxu0 0.0
  %4744 = vmatpush1.msra.mxu0 0.0
  %4745 = vmatprep.subr.mxu0 0.0
  %4746 = vmatpush1.msra.mxu0 0.0
  %4747 = vmatprep.subr.mxu0 0.0
  %4748 = vmatpush1.msra.mxu0 0.0
  %4749 = vmatprep.subr.mxu0 0.0
  %4750 = vmatpush1.msra.mxu0 0.0
  %4751 = vmatprep.subr.mxu0 0.0
  %4752 = vmatpush1.msra.mxu0 0.0
  %4753 = vmatprep.subr.mxu0 0.0
  %4754 = vmatpush1.msra.mxu0 0.0
  %4755 = vmatprep.subr.mxu0 0.0
  %4756 = vmatpush1.msra.mxu0 0.0
  %4757 = vmatprep.subr.mxu0 0.0
  %4758 = vmatpush1.msra.mxu0 0.0
  %4759 = vmatprep.subr.mxu0 0.0
  %4760 = vmatpush1.msra.mxu0 0.0
  %4761 = vmatprep.subr.mxu0 0.0
  %4762 = vmatpush1.msra.mxu0 0.0
  %4763 = vmatprep.subr.mxu0 0.0
  %4764 = vmatpush1.msra.mxu0 0.0
  %4765 = vmatprep.mubr.f32.mxu0 0.0
  %v4766 = vand.u32 %v4284, 4294901760
  %4767 = vmatmul.mubr.f32.gmra.mrb[0].mxu0 %v4766
  %v4768 = vpop.f32.mrb[0].mxu0
  %v4769 = vadd.f32 %v4691, %v4768
  %v4770 = vpop.f32.mrb[0].mxu0
  %4771 = vmatprep.mubr.f32.mxu0 0.0
  %v4772 = vand.u32 %v4287, 4294901760
  %4773 = vmatmul.mubr.f32.gmra.mrb[0].mxu0 %v4772
  %v4774 = vpop.f32.mrb[0].mxu0
  %v4775 = vadd.f32 %v4697, %v4774
  %v4776 = vpop.f32.mrb[0].mxu0
  %4777 = vdwg.mxu0
  %v4778 = vld [vmem:[%s1 + $0x48] sm:$0xf]
  %v4779 = vld [vmem:[%s1 + $0x50] sm:$0xff]
  %v4780 = vld [vmem:[%s1 + $0x58] sm:$0xff]
  %v4781 = vld [vmem:[%s1 + $0x60] sm:$0xff]
  %v4782 = vld [vmem:[%s1 + $0x68] sm:$0xff]
  %v4784 = vsel %vm2296, %v4272, 0
  %v4787 = vsel %vm2296, %v4278, 0
  %4789 = vmatprep.subr.mxu0 0.0
  %v4790 = vand.u32 %v4779, 4294901760
  %4791 = vmatpush1.msra.mxu0 %v4790
  %4792 = vmatprep.subr.mxu0 0.0
  %v4793 = vand.u32 %v4780, 4294901760
  %4794 = vmatpush1.msra.mxu0 %v4793
  %4795 = vmatprep.subr.mxu0 0.0
  %v4796 = vand.u32 %v4781, 4294901760
  %4797 = vmatpush1.msra.mxu0 %v4796
  %4798 = vmatprep.subr.mxu0 0.0
  %v4799 = vand.u32 %v4782, 4294901760
  %4800 = vmatpush1.msra.mxu0 %v4799
  %4801 = vmatprep.subr.mxu0 0.0
  %4802 = vmatpush1.msra.mxu0 0.0
  %4803 = vmatprep.subr.mxu0 0.0
  %4804 = vmatpush1.msra.mxu0 0.0
  %4805 = vmatprep.subr.mxu0 0.0
  %4806 = vmatpush1.msra.mxu0 0.0
  %4807 = vmatprep.subr.mxu0 0.0
  %4808 = vmatpush1.msra.mxu0 0.0
  %4809 = vmatprep.subr.mxu0 0.0
  %4810 = vmatpush1.msra.mxu0 0.0
  %4811 = vmatprep.subr.mxu0 0.0
  %4812 = vmatpush1.msra.mxu0 0.0
  %4813 = vmatprep.subr.mxu0 0.0
  %4814 = vmatpush1.msra.mxu0 0.0
  %4815 = vmatprep.subr.mxu0 0.0
  %4816 = vmatpush1.msra.mxu0 0.0
  %4817 = vmatprep.subr.mxu0 0.0
  %4818 = vmatpush1.msra.mxu0 0.0
  %4819 = vmatprep.subr.mxu0 0.0
  %4820 = vmatpush1.msra.mxu0 0.0
  %4821 = vmatprep.subr.mxu0 0.0
  %4822 = vmatpush1.msra.mxu0 0.0
  %4823 = vmatprep.subr.mxu0 0.0
  %4824 = vmatpush1.msra.mxu0 0.0
  %4825 = vmatprep.subr.mxu0 0.0
  %4826 = vmatpush1.msra.mxu0 0.0
  %4827 = vmatprep.subr.mxu0 0.0
  %4828 = vmatpush1.msra.mxu0 0.0
  %4829 = vmatprep.subr.mxu0 0.0
  %4830 = vmatpush1.msra.mxu0 0.0
  %4831 = vmatprep.subr.mxu0 0.0
  %4832 = vmatpush1.msra.mxu0 0.0
  %4833 = vmatprep.subr.mxu0 0.0
  %4834 = vmatpush1.msra.mxu0 0.0
  %4835 = vmatprep.subr.mxu0 0.0
  %4836 = vmatpush1.msra.mxu0 0.0
  %4837 = vmatprep.subr.mxu0 0.0
  %4838 = vmatpush1.msra.mxu0 0.0
  %4839 = vmatprep.subr.mxu0 0.0
  %4840 = vmatpush1.msra.mxu0 0.0
  %4841 = vmatprep.subr.mxu0 0.0
  %4842 = vmatpush1.msra.mxu0 0.0
  %4843 = vmatprep.subr.mxu0 0.0
  %4844 = vmatpush1.msra.mxu0 0.0
  %4845 = vmatprep.subr.mxu0 0.0
  %4846 = vmatpush1.msra.mxu0 0.0
  %4847 = vmatprep.subr.mxu0 0.0
  %4848 = vmatpush1.msra.mxu0 0.0
  %4849 = vmatprep.subr.mxu0 0.0
  %4850 = vmatpush1.msra.mxu0 0.0
  %4851 = vmatprep.subr.mxu0 0.0
  %4852 = vmatpush1.msra.mxu0 0.0
  %4853 = vmatprep.subr.mxu0 0.0
  %4854 = vmatpush1.msra.mxu0 0.0
  %4855 = vmatprep.subr.mxu0 0.0
  %4856 = vmatpush1.msra.mxu0 0.0
  %4857 = vmatprep.mubr.f32.mxu0 0.0
  %v4858 = vand.u32 %v4784, 4294901760
  %v4859 = vsub.f32 %v4784, %v4858
  %v4860 = vand.u32 %v4859, 4294901760
  %v4861 = vsub.f32 %v4859, %v4860
  %v4862 = vand.u32 %v4861, 4294901760
  %4863 = vmatmul.mubr.f32.gmra.mrb[0].mxu0 %v4862
  %v4864 = vpop.f32.mrb[0].mxu0
  %v4865 = vadd.f32 0.0, %v4864
  %v4866 = vpop.f32.mrb[0].mxu0
  %4867 = vmatprep.mubr.f32.mxu0 0.0
  %v4868 = vand.u32 %v4787, 4294901760
  %v4869 = vsub.f32 %v4787, %v4868
  %v4870 = vand.u32 %v4869, 4294901760
  %v4871 = vsub.f32 %v4869, %v4870
  %v4872 = vand.u32 %v4871, 4294901760
  %4873 = vmatmul.mubr.f32.gmra.mrb[0].mxu0 %v4872
  %v4874 = vpop.f32.mrb[0].mxu0
  %v4875 = vadd.f32 0.0, %v4874
  %v4876 = vpop.f32.mrb[0].mxu0
  %4877 = vdwg.mxu0
  %4878 = vmatprep.subr.mxu0 0.0
  %v4879 = vand.u32 %v4779, 4294901760
  %v4880 = vsub.f32 %v4779, %v4879
  %v4881 = vand.u32 %v4880, 4294901760
  %v4882 = vsub.f32 %v4880, %v4881
  %v4883 = vand.u32 %v4882, 4294901760
  %4884 = vmatpush1.msra.mxu0 %v4883
  %4885 = vmatprep.subr.mxu0 0.0
  %v4886 = vand.u32 %v4780, 4294901760
  %v4887 = vsub.f32 %v4780, %v4886
  %v4888 = vand.u32 %v4887, 4294901760
  %v4889 = vsub.f32 %v4887, %v4888
  %v4890 = vand.u32 %v4889, 4294901760
  %4891 = vmatpush1.msra.mxu0 %v4890
  %4892 = vmatprep.subr.mxu0 0.0
  %v4893 = vand.u32 %v4781, 4294901760
  %v4894 = vsub.f32 %v4781, %v4893
  %v4895 = vand.u32 %v4894, 4294901760
  %v4896 = vsub.f32 %v4894, %v4895
  %v4897 = vand.u32 %v4896, 4294901760
  %4898 = vmatpush1.msra.mxu0 %v4897
  %4899 = vmatprep.subr.mxu0 0.0
  %v4900 = vand.u32 %v4782, 4294901760
  %v4901 = vsub.f32 %v4782, %v4900
  %v4902 = vand.u32 %v4901, 4294901760
  %v4903 = vsub.f32 %v4901, %v4902
  %v4904 = vand.u32 %v4903, 4294901760
  %4905 = vmatpush1.msra.mxu0 %v4904
  %4906 = vmatprep.subr.mxu0 0.0
  %4907 = vmatpush1.msra.mxu0 0.0
  %4908 = vmatprep.subr.mxu0 0.0
  %4909 = vmatpush1.msra.mxu0 0.0
  %4910 = vmatprep.subr.mxu0 0.0
  %4911 = vmatpush1.msra.mxu0 0.0
  %4912 = vmatprep.subr.mxu0 0.0
  %4913 = vmatpush1.msra.mxu0 0.0
  %4914 = vmatprep.subr.mxu0 0.0
  %4915 = vmatpush1.msra.mxu0 0.0
  %4916 = vmatprep.subr.mxu0 0.0
  %4917 = vmatpush1.msra.mxu0 0.0
  %4918 = vmatprep.subr.mxu0 0.0
  %4919 = vmatpush1.msra.mxu0 0.0
  %4920 = vmatprep.subr.mxu0 0.0
  %4921 = vmatpush1.msra.mxu0 0.0
  %4922 = vmatprep.subr.mxu0 0.0
  %4923 = vmatpush1.msra.mxu0 0.0
  %4924 = vmatprep.subr.mxu0 0.0
  %4925 = vmatpush1.msra.mxu0 0.0
  %4926 = vmatprep.subr.mxu0 0.0
  %4927 = vmatpush1.msra.mxu0 0.0
  %4928 = vmatprep.subr.mxu0 0.0
  %4929 = vmatpush1.msra.mxu0 0.0
  %4930 = vmatprep.subr.mxu0 0.0
  %4931 = vmatpush1.msra.mxu0 0.0
  %4932 = vmatprep.subr.mxu0 0.0
  %4933 = vmatpush1.msra.mxu0 0.0
  %4934 = vmatprep.subr.mxu0 0.0
  %4935 = vmatpush1.msra.mxu0 0.0
  %4936 = vmatprep.subr.mxu0 0.0
  %4937 = vmatpush1.msra.mxu0 0.0
  %4938 = vmatprep.subr.mxu0 0.0
  %4939 = vmatpush1.msra.mxu0 0.0
  %4940 = vmatprep.subr.mxu0 0.0
  %4941 = vmatpush1.msra.mxu0 0.0
  %4942 = vmatprep.subr.mxu0 0.0
  %4943 = vmatpush1.msra.mxu0 0.0
  %4944 = vmatprep.subr.mxu0 0.0
  %4945 = vmatpush1.msra.mxu0 0.0
  %4946 = vmatprep.subr.mxu0 0.0
  %4947 = vmatpush1.msra.mxu0 0.0
  %4948 = vmatprep.subr.mxu0 0.0
  %4949 = vmatpush1.msra.mxu0 0.0
  %4950 = vmatprep.subr.mxu0 0.0
  %4951 = vmatpush1.msra.mxu0 0.0
  %4952 = vmatprep.subr.mxu0 0.0
  %4953 = vmatpush1.msra.mxu0 0.0
  %4954 = vmatprep.subr.mxu0 0.0
  %4955 = vmatpush1.msra.mxu0 0.0
  %4956 = vmatprep.subr.mxu0 0.0
  %4957 = vmatpush1.msra.mxu0 0.0
  %4958 = vmatprep.subr.mxu0 0.0
  %4959 = vmatpush1.msra.mxu0 0.0
  %4960 = vmatprep.subr.mxu0 0.0
  %4961 = vmatpush1.msra.mxu0 0.0
  %4962 = vmatprep.mubr.f32.mxu0 0.0
  %v4963 = vand.u32 %v4784, 4294901760
  %4964 = vmatmul.mubr.f32.gmra.mrb[0].mxu0 %v4963
  %v4965 = vpop.f32.mrb[0].mxu0
  %v4966 = vadd.f32 %v4865, %v4965
  %v4967 = vpop.f32.mrb[0].mxu0
  %4968 = vmatprep.mubr.f32.mxu0 0.0
  %v4969 = vand.u32 %v4787, 4294901760
  %4970 = vmatmul.mubr.f32.gmra.mrb[0].mxu0 %v4969
  %v4971 = vpop.f32.mrb[0].mxu0
  %v4972 = vadd.f32 %v4875, %v4971
  %v4973 = vpop.f32.mrb[0].mxu0
  %4974 = vdwg.mxu0
  %4975 = vmatprep.subr.mxu0 0.0
  %v4976 = vand.u32 %v4779, 4294901760
  %v4977 = vsub.f32 %v4779, %v4976
  %4978 = vmatpush1.msra.mxu0 %v4977
  %4979 = vmatprep.subr.mxu0 0.0
  %v4980 = vand.u32 %v4780, 4294901760
  %v4981 = vsub.f32 %v4780, %v4980
  %4982 = vmatpush1.msra.mxu0 %v4981
  %4983 = vmatprep.subr.mxu0 0.0
  %v4984 = vand.u32 %v4781, 4294901760
  %v4985 = vsub.f32 %v4781, %v4984
  %4986 = vmatpush1.msra.mxu0 %v4985
  %4987 = vmatprep.subr.mxu0 0.0
  %v4988 = vand.u32 %v4782, 4294901760
  %v4989 = vsub.f32 %v4782, %v4988
  %4990 = vmatpush1.msra.mxu0 %v4989
  %4991 = vmatprep.subr.mxu0 0.0
  %4992 = vmatpush1.msra.mxu0 0.0
  %4993 = vmatprep.subr.mxu0 0.0
  %4994 = vmatpush1.msra.mxu0 0.0
  %4995 = vmatprep.subr.mxu0 0.0
  %4996 = vmatpush1.msra.mxu0 0.0
  %4997 = vmatprep.subr.mxu0 0.0
  %4998 = vmatpush1.msra.mxu0 0.0
  %4999 = vmatprep.subr.mxu0 0.0
  %5000 = vmatpush1.msra.mxu0 0.0
  %5001 = vmatprep.subr.mxu0 0.0
  %5002 = vmatpush1.msra.mxu0 0.0
  %5003 = vmatprep.subr.mxu0 0.0
  %5004 = vmatpush1.msra.mxu0 0.0
  %5005 = vmatprep.subr.mxu0 0.0
  %5006 = vmatpush1.msra.mxu0 0.0
  %5007 = vmatprep.subr.mxu0 0.0
  %5008 = vmatpush1.msra.mxu0 0.0
  %5009 = vmatprep.subr.mxu0 0.0
  %5010 = vmatpush1.msra.mxu0 0.0
  %5011 = vmatprep.subr.mxu0 0.0
  %5012 = vmatpush1.msra.mxu0 0.0
  %5013 = vmatprep.subr.mxu0 0.0
  %5014 = vmatpush1.msra.mxu0 0.0
  %5015 = vmatprep.subr.mxu0 0.0
  %5016 = vmatpush1.msra.mxu0 0.0
  %5017 = vmatprep.subr.mxu0 0.0
  %5018 = vmatpush1.msra.mxu0 0.0
  %5019 = vmatprep.subr.mxu0 0.0
  %5020 = vmatpush1.msra.mxu0 0.0
  %5021 = vmatprep.subr.mxu0 0.0
  %5022 = vmatpush1.msra.mxu0 0.0
  %5023 = vmatprep.subr.mxu0 0.0
  %5024 = vmatpush1.msra.mxu0 0.0
  %5025 = vmatprep.subr.mxu0 0.0
  %5026 = vmatpush1.msra.mxu0 0.0
  %5027 = vmatprep.subr.mxu0 0.0
  %5028 = vmatpush1.msra.mxu0 0.0
  %5029 = vmatprep.subr.mxu0 0.0
  %5030 = vmatpush1.msra.mxu0 0.0
  %5031 = vmatprep.subr.mxu0 0.0
  %5032 = vmatpush1.msra.mxu0 0.0
  %5033 = vmatprep.subr.mxu0 0.0
  %5034 = vmatpush1.msra.mxu0 0.0
  %5035 = vmatprep.subr.mxu0 0.0
  %5036 = vmatpush1.msra.mxu0 0.0
  %5037 = vmatprep.subr.mxu0 0.0
  %5038 = vmatpush1.msra.mxu0 0.0
  %5039 = vmatprep.subr.mxu0 0.0
  %5040 = vmatpush1.msra.mxu0 0.0
  %5041 = vmatprep.subr.mxu0 0.0
  %5042 = vmatpush1.msra.mxu0 0.0
  %5043 = vmatprep.subr.mxu0 0.0
  %5044 = vmatpush1.msra.mxu0 0.0
  %5045 = vmatprep.subr.mxu0 0.0
  %5046 = vmatpush1.msra.mxu0 0.0
  %5047 = vmatprep.mubr.f32.mxu0 0.0
  %v5048 = vand.u32 %v4784, 4294901760
  %v5049 = vsub.f32 %v4784, %v5048
  %5050 = vmatmul.mubr.f32.gmra.mrb[0].mxu0 %v5049
  %v5051 = vpop.f32.mrb[0].mxu0
  %v5052 = vadd.f32 %v4966, %v5051
  %v5053 = vpop.f32.mrb[0].mxu0
  %5054 = vmatprep.mubr.f32.mxu0 0.0
  %v5055 = vand.u32 %v4787, 4294901760
  %v5056 = vsub.f32 %v4787, %v5055
  %5057 = vmatmul.mubr.f32.gmra.mrb[0].mxu0 %v5056
  %v5058 = vpop.f32.mrb[0].mxu0
  %v5059 = vadd.f32 %v4972, %v5058
  %v5060 = vpop.f32.mrb[0].mxu0
  %5061 = vdwg.mxu0
  %5062 = vmatprep.subr.mxu0 0.0
  %v5063 = vand.u32 %v4779, 4294901760
  %5064 = vmatpush1.msra.mxu0 %v5063
  %5065 = vmatprep.subr.mxu0 0.0
  %v5066 = vand.u32 %v4780, 4294901760
  %5067 = vmatpush1.msra.mxu0 %v5066
  %5068 = vmatprep.subr.mxu0 0.0
  %v5069 = vand.u32 %v4781, 4294901760
  %5070 = vmatpush1.msra.mxu0 %v5069
  %5071 = vmatprep.subr.mxu0 0.0
  %v5072 = vand.u32 %v4782, 4294901760
  %5073 = vmatpush1.msra.mxu0 %v5072
  %5074 = vmatprep.subr.mxu0 0.0
  %5075 = vmatpush1.msra.mxu0 0.0
  %5076 = vmatprep.subr.mxu0 0.0
  %5077 = vmatpush1.msra.mxu0 0.0
  %5078 = vmatprep.subr.mxu0 0.0
  %5079 = vmatpush1.msra.mxu0 0.0
  %5080 = vmatprep.subr.mxu0 0.0
  %5081 = vmatpush1.msra.mxu0 0.0
  %5082 = vmatprep.subr.mxu0 0.0
  %5083 = vmatpush1.msra.mxu0 0.0
  %5084 = vmatprep.subr.mxu0 0.0
  %5085 = vmatpush1.msra.mxu0 0.0
  %5086 = vmatprep.subr.mxu0 0.0
  %5087 = vmatpush1.msra.mxu0 0.0
  %5088 = vmatprep.subr.mxu0 0.0
  %5089 = vmatpush1.msra.mxu0 0.0
  %5090 = vmatprep.subr.mxu0 0.0
  %5091 = vmatpush1.msra.mxu0 0.0
  %5092 = vmatprep.subr.mxu0 0.0
  %5093 = vmatpush1.msra.mxu0 0.0
  %5094 = vmatprep.subr.mxu0 0.0
  %5095 = vmatpush1.msra.mxu0 0.0
  %5096 = vmatprep.subr.mxu0 0.0
  %5097 = vmatpush1.msra.mxu0 0.0
  %5098 = vmatprep.subr.mxu0 0.0
  %5099 = vmatpush1.msra.mxu0 0.0
  %5100 = vmatprep.subr.mxu0 0.0
  %5101 = vmatpush1.msra.mxu0 0.0
  %5102 = vmatprep.subr.mxu0 0.0
  %5103 = vmatpush1.msra.mxu0 0.0
  %5104 = vmatprep.subr.mxu0 0.0
  %5105 = vmatpush1.msra.mxu0 0.0
  %5106 = vmatprep.subr.mxu0 0.0
  %5107 = vmatpush1.msra.mxu0 0.0
  %5108 = vmatprep.subr.mxu0 0.0
  %5109 = vmatpush1.msra.mxu0 0.0
  %5110 = vmatprep.subr.mxu0 0.0
  %5111 = vmatpush1.msra.mxu0 0.0
  %5112 = vmatprep.subr.mxu0 0.0
  %5113 = vmatpush1.msra.mxu0 0.0
  %5114 = vmatprep.subr.mxu0 0.0
  %5115 = vmatpush1.msra.mxu0 0.0
  %5116 = vmatprep.subr.mxu0 0.0
  %5117 = vmatpush1.msra.mxu0 0.0
  %5118 = vmatprep.subr.mxu0 0.0
  %5119 = vmatpush1.msra.mxu0 0.0
  %5120 = vmatprep.subr.mxu0 0.0
  %5121 = vmatpush1.msra.mxu0 0.0
  %5122 = vmatprep.subr.mxu0 0.0
  %5123 = vmatpush1.msra.mxu0 0.0
  %5124 = vmatprep.subr.mxu0 0.0
  %5125 = vmatpush1.msra.mxu0 0.0
  %5126 = vmatprep.subr.mxu0 0.0
  %5127 = vmatpush1.msra.mxu0 0.0
  %5128 = vmatprep.subr.mxu0 0.0
  %5129 = vmatpush1.msra.mxu0 0.0
  %5130 = vmatprep.mubr.f32.mxu0 0.0
  %v5131 = vand.u32 %v4784, 4294901760
  %v5132 = vsub.f32 %v4784, %v5131
  %v5133 = vand.u32 %v5132, 4294901760
  %5134 = vmatmul.mubr.f32.gmra.mrb[0].mxu0 %v5133
  %v5135 = vpop.f32.mrb[0].mxu0
  %v5136 = vadd.f32 %v5052, %v5135
  %v5137 = vpop.f32.mrb[0].mxu0
  %5138 = vmatprep.mubr.f32.mxu0 0.0
  %v5139 = vand.u32 %v4787, 4294901760
  %v5140 = vsub.f32 %v4787, %v5139
  %v5141 = vand.u32 %v5140, 4294901760
  %5142 = vmatmul.mubr.f32.gmra.mrb[0].mxu0 %v5141
  %v5143 = vpop.f32.mrb[0].mxu0
  %v5144 = vadd.f32 %v5059, %v5143
  %v5145 = vpop.f32.mrb[0].mxu0
  %5146 = vdwg.mxu0
  %5147 = vmatprep.subr.mxu0 0.0
  %v5148 = vand.u32 %v4779, 4294901760
  %v5149 = vsub.f32 %v4779, %v5148
  %v5150 = vand.u32 %v5149, 4294901760
  %5151 = vmatpush1.msra.mxu0 %v5150
  %5152 = vmatprep.subr.mxu0 0.0
  %v5153 = vand.u32 %v4780, 4294901760
  %v5154 = vsub.f32 %v4780, %v5153
  %v5155 = vand.u32 %v5154, 4294901760
  %5156 = vmatpush1.msra.mxu0 %v5155
  %5157 = vmatprep.subr.mxu0 0.0
  %v5158 = vand.u32 %v4781, 4294901760
  %v5159 = vsub.f32 %v4781, %v5158
  %v5160 = vand.u32 %v5159, 4294901760
  %5161 = vmatpush1.msra.mxu0 %v5160
  %5162 = vmatprep.subr.mxu0 0.0
  %v5163 = vand.u32 %v4782, 4294901760
  %v5164 = vsub.f32 %v4782, %v5163
  %v5165 = vand.u32 %v5164, 4294901760
  %5166 = vmatpush1.msra.mxu0 %v5165
  %5167 = vmatprep.subr.mxu0 0.0
  %5168 = vmatpush1.msra.mxu0 0.0
  %5169 = vmatprep.subr.mxu0 0.0
  %5170 = vmatpush1.msra.mxu0 0.0
  %5171 = vmatprep.subr.mxu0 0.0
  %5172 = vmatpush1.msra.mxu0 0.0
  %5173 = vmatprep.subr.mxu0 0.0
  %5174 = vmatpush1.msra.mxu0 0.0
  %5175 = vmatprep.subr.mxu0 0.0
  %5176 = vmatpush1.msra.mxu0 0.0
  %5177 = vmatprep.subr.mxu0 0.0
  %5178 = vmatpush1.msra.mxu0 0.0
  %5179 = vmatprep.subr.mxu0 0.0
  %5180 = vmatpush1.msra.mxu0 0.0
  %5181 = vmatprep.subr.mxu0 0.0
  %5182 = vmatpush1.msra.mxu0 0.0
  %5183 = vmatprep.subr.mxu0 0.0
  %5184 = vmatpush1.msra.mxu0 0.0
  %5185 = vmatprep.subr.mxu0 0.0
  %5186 = vmatpush1.msra.mxu0 0.0
  %5187 = vmatprep.subr.mxu0 0.0
  %5188 = vmatpush1.msra.mxu0 0.0
  %5189 = vmatprep.subr.mxu0 0.0
  %5190 = vmatpush1.msra.mxu0 0.0
  %5191 = vmatprep.subr.mxu0 0.0
  %5192 = vmatpush1.msra.mxu0 0.0
  %5193 = vmatprep.subr.mxu0 0.0
  %5194 = vmatpush1.msra.mxu0 0.0
  %5195 = vmatprep.subr.mxu0 0.0
  %5196 = vmatpush1.msra.mxu0 0.0
  %5197 = vmatprep.subr.mxu0 0.0
  %5198 = vmatpush1.msra.mxu0 0.0
  %5199 = vmatprep.subr.mxu0 0.0
  %5200 = vmatpush1.msra.mxu0 0.0
  %5201 = vmatprep.subr.mxu0 0.0
  %5202 = vmatpush1.msra.mxu0 0.0
  %5203 = vmatprep.subr.mxu0 0.0
  %5204 = vmatpush1.msra.mxu0 0.0
  %5205 = vmatprep.subr.mxu0 0.0
  %5206 = vmatpush1.msra.mxu0 0.0
  %5207 = vmatprep.subr.mxu0 0.0
  %5208 = vmatpush1.msra.mxu0 0.0
  %5209 = vmatprep.subr.mxu0 0.0
  %5210 = vmatpush1.msra.mxu0 0.0
  %5211 = vmatprep.subr.mxu0 0.0
  %5212 = vmatpush1.msra.mxu0 0.0
  %5213 = vmatprep.subr.mxu0 0.0
  %5214 = vmatpush1.msra.mxu0 0.0
  %5215 = vmatprep.subr.mxu0 0.0
  %5216 = vmatpush1.msra.mxu0 0.0
  %5217 = vmatprep.subr.mxu0 0.0
  %5218 = vmatpush1.msra.mxu0 0.0
  %5219 = vmatprep.subr.mxu0 0.0
  %5220 = vmatpush1.msra.mxu0 0.0
  %5221 = vmatprep.subr.mxu0 0.0
  %5222 = vmatpush1.msra.mxu0 0.0
  %5223 = vmatprep.mubr.f32.mxu0 0.0
  %v5224 = vand.u32 %v4784, 4294901760
  %5225 = vmatmul.mubr.f32.gmra.mrb[0].mxu0 %v5224
  %v5226 = vpop.f32.mrb[0].mxu0
  %v5227 = vadd.f32 %v5136, %v5226
  %v5228 = vpop.f32.mrb[0].mxu0
  %5229 = vmatprep.mubr.f32.mxu0 0.0
  %v5230 = vand.u32 %v4787, 4294901760
  %5231 = vmatmul.mubr.f32.gmra.mrb[0].mxu0 %v5230
  %v5232 = vpop.f32.mrb[0].mxu0
  %v5233 = vadd.f32 %v5144, %v5232
  %v5234 = vpop.f32.mrb[0].mxu0
  %5235 = vdwg.mxu0
  %5236 = vmatprep.subr.mxu0 0.0
  %v5237 = vand.u32 %v4779, 4294901760
  %5238 = vmatpush1.msra.mxu0 %v5237
  %5239 = vmatprep.subr.mxu0 0.0
  %v5240 = vand.u32 %v4780, 4294901760
  %5241 = vmatpush1.msra.mxu0 %v5240
  %5242 = vmatprep.subr.mxu0 0.0
  %v5243 = vand.u32 %v4781, 4294901760
  %5244 = vmatpush1.msra.mxu0 %v5243
  %5245 = vmatprep.subr.mxu0 0.0
  %v5246 = vand.u32 %v4782, 4294901760
  %5247 = vmatpush1.msra.mxu0 %v5246
  %5248 = vmatprep.subr.mxu0 0.0
  %5249 = vmatpush1.msra.mxu0 0.0
  %5250 = vmatprep.subr.mxu0 0.0
  %5251 = vmatpush1.msra.mxu0 0.0
  %5252 = vmatprep.subr.mxu0 0.0
  %5253 = vmatpush1.msra.mxu0 0.0
  %5254 = vmatprep.subr.mxu0 0.0
  %5255 = vmatpush1.msra.mxu0 0.0
  %5256 = vmatprep.subr.mxu0 0.0
  %5257 = vmatpush1.msra.mxu0 0.0
  %5258 = vmatprep.subr.mxu0 0.0
  %5259 = vmatpush1.msra.mxu0 0.0
  %5260 = vmatprep.subr.mxu0 0.0
  %5261 = vmatpush1.msra.mxu0 0.0
  %5262 = vmatprep.subr.mxu0 0.0
  %5263 = vmatpush1.msra.mxu0 0.0
  %5264 = vmatprep.subr.mxu0 0.0
  %5265 = vmatpush1.msra.mxu0 0.0
  %5266 = vmatprep.subr.mxu0 0.0
  %5267 = vmatpush1.msra.mxu0 0.0
  %5268 = vmatprep.subr.mxu0 0.0
  %5269 = vmatpush1.msra.mxu0 0.0
  %5270 = vmatprep.subr.mxu0 0.0
  %5271 = vmatpush1.msra.mxu0 0.0
  %5272 = vmatprep.subr.mxu0 0.0
  %5273 = vmatpush1.msra.mxu0 0.0
  %5274 = vmatprep.subr.mxu0 0.0
  %5275 = vmatpush1.msra.mxu0 0.0
  %5276 = vmatprep.subr.mxu0 0.0
  %5277 = vmatpush1.msra.mxu0 0.0
  %5278 = vmatprep.subr.mxu0 0.0
  %5279 = vmatpush1.msra.mxu0 0.0
  %5280 = vmatprep.subr.mxu0 0.0
  %5281 = vmatpush1.msra.mxu0 0.0
  %5282 = vmatprep.subr.mxu0 0.0
  %5283 = vmatpush1.msra.mxu0 0.0
  %5284 = vmatprep.subr.mxu0 0.0
  %5285 = vmatpush1.msra.mxu0 0.0
  %5286 = vmatprep.subr.mxu0 0.0
  %5287 = vmatpush1.msra.mxu0 0.0
  %5288 = vmatprep.subr.mxu0 0.0
  %5289 = vmatpush1.msra.mxu0 0.0
  %5290 = vmatprep.subr.mxu0 0.0
  %5291 = vmatpush1.msra.mxu0 0.0
  %5292 = vmatprep.subr.mxu0 0.0
  %5293 = vmatpush1.msra.mxu0 0.0
  %5294 = vmatprep.subr.mxu0 0.0
  %5295 = vmatpush1.msra.mxu0 0.0
  %5296 = vmatprep.subr.mxu0 0.0
  %5297 = vmatpush1.msra.mxu0 0.0
  %5298 = vmatprep.subr.mxu0 0.0
  %5299 = vmatpush1.msra.mxu0 0.0
  %5300 = vmatprep.subr.mxu0 0.0
  %5301 = vmatpush1.msra.mxu0 0.0
  %5302 = vmatprep.subr.mxu0 0.0
  %5303 = vmatpush1.msra.mxu0 0.0
  %5304 = vmatprep.mubr.f32.mxu0 0.0
  %v5305 = vand.u32 %v4784, 4294901760
  %5306 = vmatmul.mubr.f32.gmra.mrb[0].mxu0 %v5305
  %v5307 = vpop.f32.mrb[0].mxu0
  %v5308 = vadd.f32 %v5227, %v5307
  %v5309 = vpop.f32.mrb[0].mxu0
  %5310 = vmatprep.mubr.f32.mxu0 0.0
  %v5311 = vand.u32 %v4787, 4294901760
  %5312 = vmatmul.mubr.f32.gmra.mrb[0].mxu0 %v5311
  %v5313 = vpop.f32.mrb[0].mxu0
  %v5314 = vadd.f32 %v5233, %v5313
  %v5315 = vpop.f32.mrb[0].mxu0
  %5316 = vdwg.mxu0
  %v5318 = vsel %vm918, %v3273, 0
  %v5321 = vsel %vm918, %v3279, 0
  %v5324 = vsel %vm922, %v4778, 0
  %5326 = vmatprep.subr.mxu0 0.0
  %v5327 = vand.u32 %v5324, 4294901760
  %5328 = vmatpush1.msra.mxu0 %v5327
  %5329 = vmatprep.subr.mxu0 0.0
  %5330 = vmatpush1.msra.mxu0 0.0
  %5331 = vmatprep.subr.mxu0 0.0
  %5332 = vmatpush1.msra.mxu0 0.0
  %5333 = vmatprep.subr.mxu0 0.0
  %5334 = vmatpush1.msra.mxu0 0.0
  %5335 = vmatprep.subr.mxu0 0.0
  %5336 = vmatpush1.msra.mxu0 0.0
  %5337 = vmatprep.subr.mxu0 0.0
  %5338 = vmatpush1.msra.mxu0 0.0
  %5339 = vmatprep.subr.mxu0 0.0
  %5340 = vmatpush1.msra.mxu0 0.0
  %5341 = vmatprep.subr.mxu0 0.0
  %5342 = vmatpush1.msra.mxu0 0.0
  %5343 = vmatprep.subr.mxu0 0.0
  %5344 = vmatpush1.msra.mxu0 0.0
  %5345 = vmatprep.subr.mxu0 0.0
  %5346 = vmatpush1.msra.mxu0 0.0
  %5347 = vmatprep.subr.mxu0 0.0
  %5348 = vmatpush1.msra.mxu0 0.0
  %5349 = vmatprep.subr.mxu0 0.0
  %5350 = vmatpush1.msra.mxu0 0.0
  %5351 = vmatprep.subr.mxu0 0.0
  %5352 = vmatpush1.msra.mxu0 0.0
  %5353 = vmatprep.subr.mxu0 0.0
  %5354 = vmatpush1.msra.mxu0 0.0
  %5355 = vmatprep.subr.mxu0 0.0
  %5356 = vmatpush1.msra.mxu0 0.0
  %5357 = vmatprep.subr.mxu0 0.0
  %5358 = vmatpush1.msra.mxu0 0.0
  %5359 = vmatprep.subr.mxu0 0.0
  %5360 = vmatpush1.msra.mxu0 0.0
  %5361 = vmatprep.subr.mxu0 0.0
  %5362 = vmatpush1.msra.mxu0 0.0
  %5363 = vmatprep.subr.mxu0 0.0
  %5364 = vmatpush1.msra.mxu0 0.0
  %5365 = vmatprep.subr.mxu0 0.0
  %5366 = vmatpush1.msra.mxu0 0.0
  %5367 = vmatprep.subr.mxu0 0.0
  %5368 = vmatpush1.msra.mxu0 0.0
  %5369 = vmatprep.subr.mxu0 0.0
  %5370 = vmatpush1.msra.mxu0 0.0
  %5371 = vmatprep.subr.mxu0 0.0
  %5372 = vmatpush1.msra.mxu0 0.0
  %5373 = vmatprep.subr.mxu0 0.0
  %5374 = vmatpush1.msra.mxu0 0.0
  %5375 = vmatprep.subr.mxu0 0.0
  %5376 = vmatpush1.msra.mxu0 0.0
  %5377 = vmatprep.subr.mxu0 0.0
  %5378 = vmatpush1.msra.mxu0 0.0
  %5379 = vmatprep.subr.mxu0 0.0
  %5380 = vmatpush1.msra.mxu0 0.0
  %5381 = vmatprep.subr.mxu0 0.0
  %5382 = vmatpush1.msra.mxu0 0.0
  %5383 = vmatprep.subr.mxu0 0.0
  %5384 = vmatpush1.msra.mxu0 0.0
  %5385 = vmatprep.subr.mxu0 0.0
  %5386 = vmatpush1.msra.mxu0 0.0
  %5387 = vmatprep.subr.mxu0 0.0
  %5388 = vmatpush1.msra.mxu0 0.0
  %5389 = vmatprep.subr.mxu0 0.0
  %5390 = vmatpush1.msra.mxu0 0.0
  %5391 = vmatprep.mubr.f32.mxu0 0.0
  %v5392 = vand.u32 %v5318, 4294901760
  %v5393 = vsub.f32 %v5318, %v5392
  %v5394 = vand.u32 %v5393, 4294901760
  %v5395 = vsub.f32 %v5393, %v5394
  %v5396 = vand.u32 %v5395, 4294901760
  %5397 = vmatmul.mubr.f32.gmra.mrb[0].mxu0 %v5396
  %v5398 = vpop.f32.mrb[0].mxu0
  %v5399 = vadd.f32 %v5308, %v5398
  %v5400 = vpop.f32.mrb[0].mxu0
  %5401 = vmatprep.mubr.f32.mxu0 0.0
  %v5402 = vand.u32 %v5321, 4294901760
  %v5403 = vsub.f32 %v5321, %v5402
  %v5404 = vand.u32 %v5403, 4294901760
  %v5405 = vsub.f32 %v5403, %v5404
  %v5406 = vand.u32 %v5405, 4294901760
  %5407 = vmatmul.mubr.f32.gmra.mrb[0].mxu0 %v5406
  %v5408 = vpop.f32.mrb[0].mxu0
  %v5409 = vadd.f32 %v5314, %v5408
  %v5410 = vpop.f32.mrb[0].mxu0
  %5411 = vdwg.mxu0
  %5412 = vmatprep.subr.mxu0 0.0
  %v5413 = vand.u32 %v5324, 4294901760
  %v5414 = vsub.f32 %v5324, %v5413
  %v5415 = vand.u32 %v5414, 4294901760
  %v5416 = vsub.f32 %v5414, %v5415
  %v5417 = vand.u32 %v5416, 4294901760
  %5418 = vmatpush1.msra.mxu0 %v5417
  %5419 = vmatprep.subr.mxu0 0.0
  %5420 = vmatpush1.msra.mxu0 0.0
  %5421 = vmatprep.subr.mxu0 0.0
  %5422 = vmatpush1.msra.mxu0 0.0
  %5423 = vmatprep.subr.mxu0 0.0
  %5424 = vmatpush1.msra.mxu0 0.0
  %5425 = vmatprep.subr.mxu0 0.0
  %5426 = vmatpush1.msra.mxu0 0.0
  %5427 = vmatprep.subr.mxu0 0.0
  %5428 = vmatpush1.msra.mxu0 0.0
  %5429 = vmatprep.subr.mxu0 0.0
  %5430 = vmatpush1.msra.mxu0 0.0
  %5431 = vmatprep.subr.mxu0 0.0
  %5432 = vmatpush1.msra.mxu0 0.0
  %5433 = vmatprep.subr.mxu0 0.0
  %5434 = vmatpush1.msra.mxu0 0.0
  %5435 = vmatprep.subr.mxu0 0.0
  %5436 = vmatpush1.msra.mxu0 0.0
  %5437 = vmatprep.subr.mxu0 0.0
  %5438 = vmatpush1.msra.mxu0 0.0
  %5439 = vmatprep.subr.mxu0 0.0
  %5440 = vmatpush1.msra.mxu0 0.0
  %5441 = vmatprep.subr.mxu0 0.0
  %5442 = vmatpush1.msra.mxu0 0.0
  %5443 = vmatprep.subr.mxu0 0.0
  %5444 = vmatpush1.msra.mxu0 0.0
  %5445 = vmatprep.subr.mxu0 0.0
  %5446 = vmatpush1.msra.mxu0 0.0
  %5447 = vmatprep.subr.mxu0 0.0
  %5448 = vmatpush1.msra.mxu0 0.0
  %5449 = vmatprep.subr.mxu0 0.0
  %5450 = vmatpush1.msra.mxu0 0.0
  %5451 = vmatprep.subr.mxu0 0.0
  %5452 = vmatpush1.msra.mxu0 0.0
  %5453 = vmatprep.subr.mxu0 0.0
  %5454 = vmatpush1.msra.mxu0 0.0
  %5455 = vmatprep.subr.mxu0 0.0
  %5456 = vmatpush1.msra.mxu0 0.0
  %5457 = vmatprep.subr.mxu0 0.0
  %5458 = vmatpush1.msra.mxu0 0.0
  %5459 = vmatprep.subr.mxu0 0.0
  %5460 = vmatpush1.msra.mxu0 0.0
  %5461 = vmatprep.subr.mxu0 0.0
  %5462 = vmatpush1.msra.mxu0 0.0
  %5463 = vmatprep.subr.mxu0 0.0
  %5464 = vmatpush1.msra.mxu0 0.0
  %5465 = vmatprep.subr.mxu0 0.0
  %5466 = vmatpush1.msra.mxu0 0.0
  %5467 = vmatprep.subr.mxu0 0.0
  %5468 = vmatpush1.msra.mxu0 0.0
  %5469 = vmatprep.subr.mxu0 0.0
  %5470 = vmatpush1.msra.mxu0 0.0
  %5471 = vmatprep.subr.mxu0 0.0
  %5472 = vmatpush1.msra.mxu0 0.0
  %5473 = vmatprep.subr.mxu0 0.0
  %5474 = vmatpush1.msra.mxu0 0.0
  %5475 = vmatprep.subr.mxu0 0.0
  %5476 = vmatpush1.msra.mxu0 0.0
  %5477 = vmatprep.subr.mxu0 0.0
  %5478 = vmatpush1.msra.mxu0 0.0
  %5479 = vmatprep.subr.mxu0 0.0
  %5480 = vmatpush1.msra.mxu0 0.0
  %5481 = vmatprep.mubr.f32.mxu0 0.0
  %v5482 = vand.u32 %v5318, 4294901760
  %5483 = vmatmul.mubr.f32.gmra.mrb[0].mxu0 %v5482
  %v5484 = vpop.f32.mrb[0].mxu0
  %v5485 = vadd.f32 %v5399, %v5484
  %v5486 = vpop.f32.mrb[0].mxu0
  %5487 = vmatprep.mubr.f32.mxu0 0.0
  %v5488 = vand.u32 %v5321, 4294901760
  %5489 = vmatmul.mubr.f32.gmra.mrb[0].mxu0 %v5488
  %v5490 = vpop.f32.mrb[0].mxu0
  %v5491 = vadd.f32 %v5409, %v5490
  %v5492 = vpop.f32.mrb[0].mxu0
  %5493 = vdwg.mxu0
  %5494 = vmatprep.subr.mxu0 0.0
  %v5495 = vand.u32 %v5324, 4294901760
  %v5496 = vsub.f32 %v5324, %v5495
  %5497 = vmatpush1.msra.mxu0 %v5496
  %5498 = vmatprep.subr.mxu0 0.0
  %5499 = vmatpush1.msra.mxu0 0.0
  %5500 = vmatprep.subr.mxu0 0.0
  %5501 = vmatpush1.msra.mxu0 0.0
  %5502 = vmatprep.subr.mxu0 0.0
  %5503 = vmatpush1.msra.mxu0 0.0
  %5504 = vmatprep.subr.mxu0 0.0
  %5505 = vmatpush1.msra.mxu0 0.0
  %5506 = vmatprep.subr.mxu0 0.0
  %5507 = vmatpush1.msra.mxu0 0.0
  %5508 = vmatprep.subr.mxu0 0.0
  %5509 = vmatpush1.msra.mxu0 0.0
  %5510 = vmatprep.subr.mxu0 0.0
  %5511 = vmatpush1.msra.mxu0 0.0
  %5512 = vmatprep.subr.mxu0 0.0
  %5513 = vmatpush1.msra.mxu0 0.0
  %5514 = vmatprep.subr.mxu0 0.0
  %5515 = vmatpush1.msra.mxu0 0.0
  %5516 = vmatprep.subr.mxu0 0.0
  %5517 = vmatpush1.msra.mxu0 0.0
  %5518 = vmatprep.subr.mxu0 0.0
  %5519 = vmatpush1.msra.mxu0 0.0
  %5520 = vmatprep.subr.mxu0 0.0
  %5521 = vmatpush1.msra.mxu0 0.0
  %5522 = vmatprep.subr.mxu0 0.0
  %5523 = vmatpush1.msra.mxu0 0.0
  %5524 = vmatprep.subr.mxu0 0.0
  %5525 = vmatpush1.msra.mxu0 0.0
  %5526 = vmatprep.subr.mxu0 0.0
  %5527 = vmatpush1.msra.mxu0 0.0
  %5528 = vmatprep.subr.mxu0 0.0
  %5529 = vmatpush1.msra.mxu0 0.0
  %5530 = vmatprep.subr.mxu0 0.0
  %5531 = vmatpush1.msra.mxu0 0.0
  %5532 = vmatprep.subr.mxu0 0.0
  %5533 = vmatpush1.msra.mxu0 0.0
  %5534 = vmatprep.subr.mxu0 0.0
  %5535 = vmatpush1.msra.mxu0 0.0
  %5536 = vmatprep.subr.mxu0 0.0
  %5537 = vmatpush1.msra.mxu0 0.0
  %5538 = vmatprep.subr.mxu0 0.0
  %5539 = vmatpush1.msra.mxu0 0.0
  %5540 = vmatprep.subr.mxu0 0.0
  %5541 = vmatpush1.msra.mxu0 0.0
  %5542 = vmatprep.subr.mxu0 0.0
  %5543 = vmatpush1.msra.mxu0 0.0
  %5544 = vmatprep.subr.mxu0 0.0
  %5545 = vmatpush1.msra.mxu0 0.0
  %5546 = vmatprep.subr.mxu0 0.0
  %5547 = vmatpush1.msra.mxu0 0.0
  %5548 = vmatprep.subr.mxu0 0.0
  %5549 = vmatpush1.msra.mxu0 0.0
  %5550 = vmatprep.subr.mxu0 0.0
  %5551 = vmatpush1.msra.mxu0 0.0
  %5552 = vmatprep.subr.mxu0 0.0
  %5553 = vmatpush1.msra.mxu0 0.0
  %5554 = vmatprep.subr.mxu0 0.0
  %5555 = vmatpush1.msra.mxu0 0.0
  %5556 = vmatprep.subr.mxu0 0.0
  %5557 = vmatpush1.msra.mxu0 0.0
  %5558 = vmatprep.subr.mxu0 0.0
  %5559 = vmatpush1.msra.mxu0 0.0
  %5560 = vmatprep.mubr.f32.mxu0 0.0
  %v5561 = vand.u32 %v5318, 4294901760
  %v5562 = vsub.f32 %v5318, %v5561
  %5563 = vmatmul.mubr.f32.gmra.mrb[0].mxu0 %v5562
  %v5564 = vpop.f32.mrb[0].mxu0
  %v5565 = vadd.f32 %v5485, %v5564
  %v5566 = vpop.f32.mrb[0].mxu0
  %5567 = vmatprep.mubr.f32.mxu0 0.0
  %v5568 = vand.u32 %v5321, 4294901760
  %v5569 = vsub.f32 %v5321, %v5568
  %5570 = vmatmul.mubr.f32.gmra.mrb[0].mxu0 %v5569
  %v5571 = vpop.f32.mrb[0].mxu0
  %v5572 = vadd.f32 %v5491, %v5571
  %v5573 = vpop.f32.mrb[0].mxu0
  %5574 = vdwg.mxu0
  %5575 = vmatprep.subr.mxu0 0.0
  %v5576 = vand.u32 %v5324, 4294901760
  %5577 = vmatpush1.msra.mxu0 %v5576
  %5578 = vmatprep.subr.mxu0 0.0
  %5579 = vmatpush1.msra.mxu0 0.0
  %5580 = vmatprep.subr.mxu0 0.0
  %5581 = vmatpush1.msra.mxu0 0.0
  %5582 = vmatprep.subr.mxu0 0.0
  %5583 = vmatpush1.msra.mxu0 0.0
  %5584 = vmatprep.subr.mxu0 0.0
  %5585 = vmatpush1.msra.mxu0 0.0
  %5586 = vmatprep.subr.mxu0 0.0
  %5587 = vmatpush1.msra.mxu0 0.0
  %5588 = vmatprep.subr.mxu0 0.0
  %5589 = vmatpush1.msra.mxu0 0.0
  %5590 = vmatprep.subr.mxu0 0.0
  %5591 = vmatpush1.msra.mxu0 0.0
  %5592 = vmatprep.subr.mxu0 0.0
  %5593 = vmatpush1.msra.mxu0 0.0
  %5594 = vmatprep.subr.mxu0 0.0
  %5595 = vmatpush1.msra.mxu0 0.0
  %5596 = vmatprep.subr.mxu0 0.0
  %5597 = vmatpush1.msra.mxu0 0.0
  %5598 = vmatprep.subr.mxu0 0.0
  %5599 = vmatpush1.msra.mxu0 0.0
  %5600 = vmatprep.subr.mxu0 0.0
  %5601 = vmatpush1.msra.mxu0 0.0
  %5602 = vmatprep.subr.mxu0 0.0
  %5603 = vmatpush1.msra.mxu0 0.0
  %5604 = vmatprep.subr.mxu0 0.0
  %5605 = vmatpush1.msra.mxu0 0.0
  %5606 = vmatprep.subr.mxu0 0.0
  %5607 = vmatpush1.msra.mxu0 0.0
  %5608 = vmatprep.subr.mxu0 0.0
  %5609 = vmatpush1.msra.mxu0 0.0
  %5610 = vmatprep.subr.mxu0 0.0
  %5611 = vmatpush1.msra.mxu0 0.0
  %5612 = vmatprep.subr.mxu0 0.0
  %5613 = vmatpush1.msra.mxu0 0.0
  %5614 = vmatprep.subr.mxu0 0.0
  %5615 = vmatpush1.msra.mxu0 0.0
  %5616 = vmatprep.subr.mxu0 0.0
  %5617 = vmatpush1.msra.mxu0 0.0
  %5618 = vmatprep.subr.mxu0 0.0
  %5619 = vmatpush1.msra.mxu0 0.0
  %5620 = vmatprep.subr.mxu0 0.0
  %5621 = vmatpush1.msra.mxu0 0.0
  %5622 = vmatprep.subr.mxu0 0.0
  %5623 = vmatpush1.msra.mxu0 0.0
  %5624 = vmatprep.subr.mxu0 0.0
  %5625 = vmatpush1.msra.mxu0 0.0
  %5626 = vmatprep.subr.mxu0 0.0
  %5627 = vmatpush1.msra.mxu0 0.0
  %5628 = vmatprep.subr.mxu0 0.0
  %5629 = vmatpush1.msra.mxu0 0.0
  %5630 = vmatprep.subr.mxu0 0.0
  %5631 = vmatpush1.msra.mxu0 0.0
  %5632 = vmatprep.subr.mxu0 0.0
  %5633 = vmatpush1.msra.mxu0 0.0
  %5634 = vmatprep.subr.mxu0 0.0
  %5635 = vmatpush1.msra.mxu0 0.0
  %5636 = vmatprep.subr.mxu0 0.0
  %5637 = vmatpush1.msra.mxu0 0.0
  %5638 = vmatprep.subr.mxu0 0.0
  %5639 = vmatpush1.msra.mxu0 0.0
  %5640 = vmatprep.mubr.f32.mxu0 0.0
  %v5641 = vand.u32 %v5318, 4294901760
  %v5642 = vsub.f32 %v5318, %v5641
  %v5643 = vand.u32 %v5642, 4294901760
  %5644 = vmatmul.mubr.f32.gmra.mrb[0].mxu0 %v5643
  %v5645 = vpop.f32.mrb[0].mxu0
  %v5646 = vadd.f32 %v5565, %v5645
  %v5647 = vpop.f32.mrb[0].mxu0
  %5648 = vmatprep.mubr.f32.mxu0 0.0
  %v5649 = vand.u32 %v5321, 4294901760
  %v5650 = vsub.f32 %v5321, %v5649
  %v5651 = vand.u32 %v5650, 4294901760
  %5652 = vmatmul.mubr.f32.gmra.mrb[0].mxu0 %v5651
  %v5653 = vpop.f32.mrb[0].mxu0
  %v5654 = vadd.f32 %v5572, %v5653
  %v5655 = vpop.f32.mrb[0].mxu0
  %5656 = vdwg.mxu0
  %5657 = vmatprep.subr.mxu0 0.0
  %v5658 = vand.u32 %v5324, 4294901760
  %v5659 = vsub.f32 %v5324, %v5658
  %v5660 = vand.u32 %v5659, 4294901760
  %5661 = vmatpush1.msra.mxu0 %v5660
  %5662 = vmatprep.subr.mxu0 0.0
  %5663 = vmatpush1.msra.mxu0 0.0
  %5664 = vmatprep.subr.mxu0 0.0
  %5665 = vmatpush1.msra.mxu0 0.0
  %5666 = vmatprep.subr.mxu0 0.0
  %5667 = vmatpush1.msra.mxu0 0.0
  %5668 = vmatprep.subr.mxu0 0.0
  %5669 = vmatpush1.msra.mxu0 0.0
  %5670 = vmatprep.subr.mxu0 0.0
  %5671 = vmatpush1.msra.mxu0 0.0
  %5672 = vmatprep.subr.mxu0 0.0
  %5673 = vmatpush1.msra.mxu0 0.0
  %5674 = vmatprep.subr.mxu0 0.0
  %5675 = vmatpush1.msra.mxu0 0.0
  %5676 = vmatprep.subr.mxu0 0.0
  %5677 = vmatpush1.msra.mxu0 0.0
  %5678 = vmatprep.subr.mxu0 0.0
  %5679 = vmatpush1.msra.mxu0 0.0
  %5680 = vmatprep.subr.mxu0 0.0
  %5681 = vmatpush1.msra.mxu0 0.0
  %5682 = vmatprep.subr.mxu0 0.0
  %5683 = vmatpush1.msra.mxu0 0.0
  %5684 = vmatprep.subr.mxu0 0.0
  %5685 = vmatpush1.msra.mxu0 0.0
  %5686 = vmatprep.subr.mxu0 0.0
  %5687 = vmatpush1.msra.mxu0 0.0
  %5688 = vmatprep.subr.mxu0 0.0
  %5689 = vmatpush1.msra.mxu0 0.0
  %5690 = vmatprep.subr.mxu0 0.0
  %5691 = vmatpush1.msra.mxu0 0.0
  %5692 = vmatprep.subr.mxu0 0.0
  %5693 = vmatpush1.msra.mxu0 0.0
  %5694 = vmatprep.subr.mxu0 0.0
  %5695 = vmatpush1.msra.mxu0 0.0
  %5696 = vmatprep.subr.mxu0 0.0
  %5697 = vmatpush1.msra.mxu0 0.0
  %5698 = vmatprep.subr.mxu0 0.0
  %5699 = vmatpush1.msra.mxu0 0.0
  %5700 = vmatprep.subr.mxu0 0.0
  %5701 = vmatpush1.msra.mxu0 0.0
  %5702 = vmatprep.subr.mxu0 0.0
  %5703 = vmatpush1.msra.mxu0 0.0
  %5704 = vmatprep.subr.mxu0 0.0
  %5705 = vmatpush1.msra.mxu0 0.0
  %5706 = vmatprep.subr.mxu0 0.0
  %5707 = vmatpush1.msra.mxu0 0.0
  %5708 = vmatprep.subr.mxu0 0.0
  %5709 = vmatpush1.msra.mxu0 0.0
  %5710 = vmatprep.subr.mxu0 0.0
  %5711 = vmatpush1.msra.mxu0 0.0
  %5712 = vmatprep.subr.mxu0 0.0
  %5713 = vmatpush1.msra.mxu0 0.0
  %5714 = vmatprep.subr.mxu0 0.0
  %5715 = vmatpush1.msra.mxu0 0.0
  %5716 = vmatprep.subr.mxu0 0.0
  %5717 = vmatpush1.msra.mxu0 0.0
  %5718 = vmatprep.subr.mxu0 0.0
  %5719 = vmatpush1.msra.mxu0 0.0
  %5720 = vmatprep.subr.mxu0 0.0
  %5721 = vmatpush1.msra.mxu0 0.0
  %5722 = vmatprep.subr.mxu0 0.0
  %5723 = vmatpush1.msra.mxu0 0.0
  %5724 = vmatprep.mubr.f32.mxu0 0.0
  %v5725 = vand.u32 %v5318, 4294901760
  %5726 = vmatmul.mubr.f32.gmra.mrb[0].mxu0 %v5725
  %v5727 = vpop.f32.mrb[0].mxu0
  %v5728 = vadd.f32 %v5646, %v5727
  %v5729 = vpop.f32.mrb[0].mxu0
  %5730 = vmatprep.mubr.f32.mxu0 0.0
  %v5731 = vand.u32 %v5321, 4294901760
  %5732 = vmatmul.mubr.f32.gmra.mrb[0].mxu0 %v5731
  %v5733 = vpop.f32.mrb[0].mxu0
  %v5734 = vadd.f32 %v5654, %v5733
  %v5735 = vpop.f32.mrb[0].mxu0
  %5736 = vdwg.mxu0
  %5737 = vmatprep.subr.mxu0 0.0
  %v5738 = vand.u32 %v5324, 4294901760
  %5739 = vmatpush1.msra.mxu0 %v5738
  %5740 = vmatprep.subr.mxu0 0.0
  %5741 = vmatpush1.msra.mxu0 0.0
  %5742 = vmatprep.subr.mxu0 0.0
  %5743 = vmatpush1.msra.mxu0 0.0
  %5744 = vmatprep.subr.mxu0 0.0
  %5745 = vmatpush1.msra.mxu0 0.0
  %5746 = vmatprep.subr.mxu0 0.0
  %5747 = vmatpush1.msra.mxu0 0.0
  %5748 = vmatprep.subr.mxu0 0.0
  %5749 = vmatpush1.msra.mxu0 0.0
  %5750 = vmatprep.subr.mxu0 0.0
  %5751 = vmatpush1.msra.mxu0 0.0
  %5752 = vmatprep.subr.mxu0 0.0
  %5753 = vmatpush1.msra.mxu0 0.0
  %5754 = vmatprep.subr.mxu0 0.0
  %5755 = vmatpush1.msra.mxu0 0.0
  %5756 = vmatprep.subr.mxu0 0.0
  %5757 = vmatpush1.msra.mxu0 0.0
  %5758 = vmatprep.subr.mxu0 0.0
  %5759 = vmatpush1.msra.mxu0 0.0
  %5760 = vmatprep.subr.mxu0 0.0
  %5761 = vmatpush1.msra.mxu0 0.0
  %5762 = vmatprep.subr.mxu0 0.0
  %5763 = vmatpush1.msra.mxu0 0.0
  %5764 = vmatprep.subr.mxu0 0.0
  %5765 = vmatpush1.msra.mxu0 0.0
  %5766 = vmatprep.subr.mxu0 0.0
  %5767 = vmatpush1.msra.mxu0 0.0
  %5768 = vmatprep.subr.mxu0 0.0
  %5769 = vmatpush1.msra.mxu0 0.0
  %5770 = vmatprep.subr.mxu0 0.0
  %5771 = vmatpush1.msra.mxu0 0.0
  %5772 = vmatprep.subr.mxu0 0.0
  %5773 = vmatpush1.msra.mxu0 0.0
  %5774 = vmatprep.subr.mxu0 0.0
  %5775 = vmatpush1.msra.mxu0 0.0
  %5776 = vmatprep.subr.mxu0 0.0
  %5777 = vmatpush1.msra.mxu0 0.0
  %5778 = vmatprep.subr.mxu0 0.0
  %5779 = vmatpush1.msra.mxu0 0.0
  %5780 = vmatprep.subr.mxu0 0.0
  %5781 = vmatpush1.msra.mxu0 0.0
  %5782 = vmatprep.subr.mxu0 0.0
  %5783 = vmatpush1.msra.mxu0 0.0
  %5784 = vmatprep.subr.mxu0 0.0
  %5785 = vmatpush1.msra.mxu0 0.0
  %5786 = vmatprep.subr.mxu0 0.0
  %5787 = vmatpush1.msra.mxu0 0.0
  %5788 = vmatprep.subr.mxu0 0.0
  %5789 = vmatpush1.msra.mxu0 0.0
  %5790 = vmatprep.subr.mxu0 0.0
  %5791 = vmatpush1.msra.mxu0 0.0
  %5792 = vmatprep.subr.mxu0 0.0
  %5793 = vmatpush1.msra.mxu0 0.0
  %5794 = vmatprep.subr.mxu0 0.0
  %5795 = vmatpush1.msra.mxu0 0.0
  %5796 = vmatprep.subr.mxu0 0.0
  %5797 = vmatpush1.msra.mxu0 0.0
  %5798 = vmatprep.subr.mxu0 0.0
  %5799 = vmatpush1.msra.mxu0 0.0
  %5800 = vmatprep.subr.mxu0 0.0
  %5801 = vmatpush1.msra.mxu0 0.0
  %5802 = vmatprep.mubr.f32.mxu0 0.0
  %v5803 = vand.u32 %v5318, 4294901760
  %5804 = vmatmul.mubr.f32.gmra.mrb[0].mxu0 %v5803
  %v5805 = vpop.f32.mrb[0].mxu0
  %v5806 = vadd.f32 %v5728, %v5805
  %v5807 = vpop.f32.mrb[0].mxu0
  %5808 = vmatprep.mubr.f32.mxu0 0.0
  %v5809 = vand.u32 %v5321, 4294901760
  %5810 = vmatmul.mubr.f32.gmra.mrb[0].mxu0 %v5809
  %v5811 = vpop.f32.mrb[0].mxu0
  %v5812 = vadd.f32 %v5734, %v5811
  %v5813 = vpop.f32.mrb[0].mxu0
  %5814 = vdwg.mxu0
  %v5815 = vld [vmem:[%s1 + $0x70] sm:$0xf]
  %v5817 = vsel %vm918, %v3770, 0
  %v5820 = vsel %vm918, %v3776, 0
  %v5823 = vsel %vm922, %v5815, 0
  %5825 = vmatprep.subr.mxu0 0.0
  %v5826 = vand.u32 %v5823, 4294901760
  %5827 = vmatpush1.msra.mxu0 %v5826
  %5828 = vmatprep.subr.mxu0 0.0
  %5829 = vmatpush1.msra.mxu0 0.0
  %5830 = vmatprep.subr.mxu0 0.0
  %5831 = vmatpush1.msra.mxu0 0.0
  %5832 = vmatprep.subr.mxu0 0.0
  %5833 = vmatpush1.msra.mxu0 0.0
  %5834 = vmatprep.subr.mxu0 0.0
  %5835 = vmatpush1.msra.mxu0 0.0
  %5836 = vmatprep.subr.mxu0 0.0
  %5837 = vmatpush1.msra.mxu0 0.0
  %5838 = vmatprep.subr.mxu0 0.0
  %5839 = vmatpush1.msra.mxu0 0.0
  %5840 = vmatprep.subr.mxu0 0.0
  %5841 = vmatpush1.msra.mxu0 0.0
  %5842 = vmatprep.subr.mxu0 0.0
  %5843 = vmatpush1.msra.mxu0 0.0
  %5844 = vmatprep.subr.mxu0 0.0
  %5845 = vmatpush1.msra.mxu0 0.0
  %5846 = vmatprep.subr.mxu0 0.0
  %5847 = vmatpush1.msra.mxu0 0.0
  %5848 = vmatprep.subr.mxu0 0.0
  %5849 = vmatpush1.msra.mxu0 0.0
  %5850 = vmatprep.subr.mxu0 0.0
  %5851 = vmatpush1.msra.mxu0 0.0
  %5852 = vmatprep.subr.mxu0 0.0
  %5853 = vmatpush1.msra.mxu0 0.0
  %5854 = vmatprep.subr.mxu0 0.0
  %5855 = vmatpush1.msra.mxu0 0.0
  %5856 = vmatprep.subr.mxu0 0.0
  %5857 = vmatpush1.msra.mxu0 0.0
  %5858 = vmatprep.subr.mxu0 0.0
  %5859 = vmatpush1.msra.mxu0 0.0
  %5860 = vmatprep.subr.mxu0 0.0
  %5861 = vmatpush1.msra.mxu0 0.0
  %5862 = vmatprep.subr.mxu0 0.0
  %5863 = vmatpush1.msra.mxu0 0.0
  %5864 = vmatprep.subr.mxu0 0.0
  %5865 = vmatpush1.msra.mxu0 0.0
  %5866 = vmatprep.subr.mxu0 0.0
  %5867 = vmatpush1.msra.mxu0 0.0
  %5868 = vmatprep.subr.mxu0 0.0
  %5869 = vmatpush1.msra.mxu0 0.0
  %5870 = vmatprep.subr.mxu0 0.0
  %5871 = vmatpush1.msra.mxu0 0.0
  %5872 = vmatprep.subr.mxu0 0.0
  %5873 = vmatpush1.msra.mxu0 0.0
  %5874 = vmatprep.subr.mxu0 0.0
  %5875 = vmatpush1.msra.mxu0 0.0
  %5876 = vmatprep.subr.mxu0 0.0
  %5877 = vmatpush1.msra.mxu0 0.0
  %5878 = vmatprep.subr.mxu0 0.0
  %5879 = vmatpush1.msra.mxu0 0.0
  %5880 = vmatprep.subr.mxu0 0.0
  %5881 = vmatpush1.msra.mxu0 0.0
  %5882 = vmatprep.subr.mxu0 0.0
  %5883 = vmatpush1.msra.mxu0 0.0
  %5884 = vmatprep.subr.mxu0 0.0
  %5885 = vmatpush1.msra.mxu0 0.0
  %5886 = vmatprep.subr.mxu0 0.0
  %5887 = vmatpush1.msra.mxu0 0.0
  %5888 = vmatprep.subr.mxu0 0.0
  %5889 = vmatpush1.msra.mxu0 0.0
  %5890 = vmatprep.mubr.f32.mxu0 0.0
  %v5891 = vand.u32 %v5817, 4294901760
  %v5892 = vsub.f32 %v5817, %v5891
  %v5893 = vand.u32 %v5892, 4294901760
  %v5894 = vsub.f32 %v5892, %v5893
  %v5895 = vand.u32 %v5894, 4294901760
  %5896 = vmatmul.mubr.f32.gmra.mrb[0].mxu0 %v5895
  %v5897 = vpop.f32.mrb[0].mxu0
  %v5898 = vadd.f32 0.0, %v5897
  %v5899 = vpop.f32.mrb[0].mxu0
  %5900 = vmatprep.mubr.f32.mxu0 0.0
  %v5901 = vand.u32 %v5820, 4294901760
  %v5902 = vsub.f32 %v5820, %v5901
  %v5903 = vand.u32 %v5902, 4294901760
  %v5904 = vsub.f32 %v5902, %v5903
  %v5905 = vand.u32 %v5904, 4294901760
  %5906 = vmatmul.mubr.f32.gmra.mrb[0].mxu0 %v5905
  %v5907 = vpop.f32.mrb[0].mxu0
  %v5908 = vadd.f32 0.0, %v5907
  %v5909 = vpop.f32.mrb[0].mxu0
  %5910 = vdwg.mxu0
  %5911 = vmatprep.subr.mxu0 0.0
  %v5912 = vand.u32 %v5823, 4294901760
  %v5913 = vsub.f32 %v5823, %v5912
  %v5914 = vand.u32 %v5913, 4294901760
  %v5915 = vsub.f32 %v5913, %v5914
  %v5916 = vand.u32 %v5915, 4294901760
  %5917 = vmatpush1.msra.mxu0 %v5916
  %5918 = vmatprep.subr.mxu0 0.0
  %5919 = vmatpush1.msra.mxu0 0.0
  %5920 = vmatprep.subr.mxu0 0.0
  %5921 = vmatpush1.msra.mxu0 0.0
  %5922 = vmatprep.subr.mxu0 0.0
  %5923 = vmatpush1.msra.mxu0 0.0
  %5924 = vmatprep.subr.mxu0 0.0
  %5925 = vmatpush1.msra.mxu0 0.0
  %5926 = vmatprep.subr.mxu0 0.0
  %5927 = vmatpush1.msra.mxu0 0.0
  %5928 = vmatprep.subr.mxu0 0.0
  %5929 = vmatpush1.msra.mxu0 0.0
  %5930 = vmatprep.subr.mxu0 0.0
  %5931 = vmatpush1.msra.mxu0 0.0
  %5932 = vmatprep.subr.mxu0 0.0
  %5933 = vmatpush1.msra.mxu0 0.0
  %5934 = vmatprep.subr.mxu0 0.0
  %5935 = vmatpush1.msra.mxu0 0.0
  %5936 = vmatprep.subr.mxu0 0.0
  %5937 = vmatpush1.msra.mxu0 0.0
  %5938 = vmatprep.subr.mxu0 0.0
  %5939 = vmatpush1.msra.mxu0 0.0
  %5940 = vmatprep.subr.mxu0 0.0
  %5941 = vmatpush1.msra.mxu0 0.0
  %5942 = vmatprep.subr.mxu0 0.0
  %5943 = vmatpush1.msra.mxu0 0.0
  %5944 = vmatprep.subr.mxu0 0.0
  %5945 = vmatpush1.msra.mxu0 0.0
  %5946 = vmatprep.subr.mxu0 0.0
  %5947 = vmatpush1.msra.mxu0 0.0
  %5948 = vmatprep.subr.mxu0 0.0
  %5949 = vmatpush1.msra.mxu0 0.0
  %5950 = vmatprep.subr.mxu0 0.0
  %5951 = vmatpush1.msra.mxu0 0.0
  %5952 = vmatprep.subr.mxu0 0.0
  %5953 = vmatpush1.msra.mxu0 0.0
  %5954 = vmatprep.subr.mxu0 0.0
  %5955 = vmatpush1.msra.mxu0 0.0
  %5956 = vmatprep.subr.mxu0 0.0
  %5957 = vmatpush1.msra.mxu0 0.0
  %5958 = vmatprep.subr.mxu0 0.0
  %5959 = vmatpush1.msra.mxu0 0.0
  %5960 = vmatprep.subr.mxu0 0.0
  %5961 = vmatpush1.msra.mxu0 0.0
  %5962 = vmatprep.subr.mxu0 0.0
  %5963 = vmatpush1.msra.mxu0 0.0
  %5964 = vmatprep.subr.mxu0 0.0
  %5965 = vmatpush1.msra.mxu0 0.0
  %5966 = vmatprep.subr.mxu0 0.0
  %5967 = vmatpush1.msra.mxu0 0.0
  %5968 = vmatprep.subr.mxu0 0.0
  %5969 = vmatpush1.msra.mxu0 0.0
  %5970 = vmatprep.subr.mxu0 0.0
  %5971 = vmatpush1.msra.mxu0 0.0
  %5972 = vmatprep.subr.mxu0 0.0
  %5973 = vmatpush1.msra.mxu0 0.0
  %5974 = vmatprep.subr.mxu0 0.0
  %5975 = vmatpush1.msra.mxu0 0.0
  %5976 = vmatprep.subr.mxu0 0.0
  %5977 = vmatpush1.msra.mxu0 0.0
  %5978 = vmatprep.subr.mxu0 0.0
  %5979 = vmatpush1.msra.mxu0 0.0
  %5980 = vmatprep.mubr.f32.mxu0 0.0
  %v5981 = vand.u32 %v5817, 4294901760
  %5982 = vmatmul.mubr.f32.gmra.mrb[0].mxu0 %v5981
  %v5983 = vpop.f32.mrb[0].mxu0
  %v5984 = vadd.f32 %v5898, %v5983
  %v5985 = vpop.f32.mrb[0].mxu0
  %5986 = vmatprep.mubr.f32.mxu0 0.0
  %v5987 = vand.u32 %v5820, 4294901760
  %5988 = vmatmul.mubr.f32.gmra.mrb[0].mxu0 %v5987
  %v5989 = vpop.f32.mrb[0].mxu0
  %v5990 = vadd.f32 %v5908, %v5989
  %v5991 = vpop.f32.mrb[0].mxu0
  %5992 = vdwg.mxu0
  %5993 = vmatprep.subr.mxu0 0.0
  %v5994 = vand.u32 %v5823, 4294901760
  %v5995 = vsub.f32 %v5823, %v5994
  %5996 = vmatpush1.msra.mxu0 %v5995
  %5997 = vmatprep.subr.mxu0 0.0
  %5998 = vmatpush1.msra.mxu0 0.0
  %5999 = vmatprep.subr.mxu0 0.0
  %6000 = vmatpush1.msra.mxu0 0.0
  %6001 = vmatprep.subr.mxu0 0.0
  %6002 = vmatpush1.msra.mxu0 0.0
  %6003 = vmatprep.subr.mxu0 0.0
  %6004 = vmatpush1.msra.mxu0 0.0
  %6005 = vmatprep.subr.mxu0 0.0
  %6006 = vmatpush1.msra.mxu0 0.0
  %6007 = vmatprep.subr.mxu0 0.0
  %6008 = vmatpush1.msra.mxu0 0.0
  %6009 = vmatprep.subr.mxu0 0.0
  %6010 = vmatpush1.msra.mxu0 0.0
  %6011 = vmatprep.subr.mxu0 0.0
  %6012 = vmatpush1.msra.mxu0 0.0
  %6013 = vmatprep.subr.mxu0 0.0
  %6014 = vmatpush1.msra.mxu0 0.0
  %6015 = vmatprep.subr.mxu0 0.0
  %6016 = vmatpush1.msra.mxu0 0.0
  %6017 = vmatprep.subr.mxu0 0.0
  %6018 = vmatpush1.msra.mxu0 0.0
  %6019 = vmatprep.subr.mxu0 0.0
  %6020 = vmatpush1.msra.mxu0 0.0
  %6021 = vmatprep.subr.mxu0 0.0
  %6022 = vmatpush1.msra.mxu0 0.0
  %6023 = vmatprep.subr.mxu0 0.0
  %6024 = vmatpush1.msra.mxu0 0.0
  %6025 = vmatprep.subr.mxu0 0.0
  %6026 = vmatpush1.msra.mxu0 0.0
  %6027 = vmatprep.subr.mxu0 0.0
  %6028 = vmatpush1.msra.mxu0 0.0
  %6029 = vmatprep.subr.mxu0 0.0
  %6030 = vmatpush1.msra.mxu0 0.0
  %6031 = vmatprep.subr.mxu0 0.0
  %6032 = vmatpush1.msra.mxu0 0.0
  %6033 = vmatprep.subr.mxu0 0.0
  %6034 = vmatpush1.msra.mxu0 0.0
  %6035 = vmatprep.subr.mxu0 0.0
  %6036 = vmatpush1.msra.mxu0 0.0
  %6037 = vmatprep.subr.mxu0 0.0
  %6038 = vmatpush1.msra.mxu0 0.0
  %6039 = vmatprep.subr.mxu0 0.0
  %6040 = vmatpush1.msra.mxu0 0.0
  %6041 = vmatprep.subr.mxu0 0.0
  %6042 = vmatpush1.msra.mxu0 0.0
  %6043 = vmatprep.subr.mxu0 0.0
  %6044 = vmatpush1.msra.mxu0 0.0
  %6045 = vmatprep.subr.mxu0 0.0
  %6046 = vmatpush1.msra.mxu0 0.0
  %6047 = vmatprep.subr.mxu0 0.0
  %6048 = vmatpush1.msra.mxu0 0.0
  %6049 = vmatprep.subr.mxu0 0.0
  %6050 = vmatpush1.msra.mxu0 0.0
  %6051 = vmatprep.subr.mxu0 0.0
  %6052 = vmatpush1.msra.mxu0 0.0
  %6053 = vmatprep.subr.mxu0 0.0
  %6054 = vmatpush1.msra.mxu0 0.0
  %6055 = vmatprep.subr.mxu0 0.0
  %6056 = vmatpush1.msra.mxu0 0.0
  %6057 = vmatprep.subr.mxu0 0.0
  %6058 = vmatpush1.msra.mxu0 0.0
  %6059 = vmatprep.mubr.f32.mxu0 0.0
  %v6060 = vand.u32 %v5817, 4294901760
  %v6061 = vsub.f32 %v5817, %v6060
  %6062 = vmatmul.mubr.f32.gmra.mrb[0].mxu0 %v6061
  %v6063 = vpop.f32.mrb[0].mxu0
  %v6064 = vadd.f32 %v5984, %v6063
  %v6065 = vpop.f32.mrb[0].mxu0
  %6066 = vmatprep.mubr.f32.mxu0 0.0
  %v6067 = vand.u32 %v5820, 4294901760
  %v6068 = vsub.f32 %v5820, %v6067
  %6069 = vmatmul.mubr.f32.gmra.mrb[0].mxu0 %v6068
  %v6070 = vpop.f32.mrb[0].mxu0
  %v6071 = vadd.f32 %v5990, %v6070
  %v6072 = vpop.f32.mrb[0].mxu0
  %6073 = vdwg.mxu0
  %6074 = vmatprep.subr.mxu0 0.0
  %v6075 = vand.u32 %v5823, 4294901760
  %6076 = vmatpush1.msra.mxu0 %v6075
  %6077 = vmatprep.subr.mxu0 0.0
  %6078 = vmatpush1.msra.mxu0 0.0
  %6079 = vmatprep.subr.mxu0 0.0
  %6080 = vmatpush1.msra.mxu0 0.0
  %6081 = vmatprep.subr.mxu0 0.0
  %6082 = vmatpush1.msra.mxu0 0.0
  %6083 = vmatprep.subr.mxu0 0.0
  %6084 = vmatpush1.msra.mxu0 0.0
  %6085 = vmatprep.subr.mxu0 0.0
  %6086 = vmatpush1.msra.mxu0 0.0
  %6087 = vmatprep.subr.mxu0 0.0
  %6088 = vmatpush1.msra.mxu0 0.0
  %6089 = vmatprep.subr.mxu0 0.0
  %6090 = vmatpush1.msra.mxu0 0.0
  %6091 = vmatprep.subr.mxu0 0.0
  %6092 = vmatpush1.msra.mxu0 0.0
  %6093 = vmatprep.subr.mxu0 0.0
  %6094 = vmatpush1.msra.mxu0 0.0
  %6095 = vmatprep.subr.mxu0 0.0
  %6096 = vmatpush1.msra.mxu0 0.0
  %6097 = vmatprep.subr.mxu0 0.0
  %6098 = vmatpush1.msra.mxu0 0.0
  %6099 = vmatprep.subr.mxu0 0.0
  %6100 = vmatpush1.msra.mxu0 0.0
  %6101 = vmatprep.subr.mxu0 0.0
  %6102 = vmatpush1.msra.mxu0 0.0
  %6103 = vmatprep.subr.mxu0 0.0
  %6104 = vmatpush1.msra.mxu0 0.0
  %6105 = vmatprep.subr.mxu0 0.0
  %6106 = vmatpush1.msra.mxu0 0.0
  %6107 = vmatprep.subr.mxu0 0.0
  %6108 = vmatpush1.msra.mxu0 0.0
  %6109 = vmatprep.subr.mxu0 0.0
  %6110 = vmatpush1.msra.mxu0 0.0
  %6111 = vmatprep.subr.mxu0 0.0
  %6112 = vmatpush1.msra.mxu0 0.0
  %6113 = vmatprep.subr.mxu0 0.0
  %6114 = vmatpush1.msra.mxu0 0.0
  %6115 = vmatprep.subr.mxu0 0.0
  %6116 = vmatpush1.msra.mxu0 0.0
  %6117 = vmatprep.subr.mxu0 0.0
  %6118 = vmatpush1.msra.mxu0 0.0
  %6119 = vmatprep.subr.mxu0 0.0
  %6120 = vmatpush1.msra.mxu0 0.0
  %6121 = vmatprep.subr.mxu0 0.0
  %6122 = vmatpush1.msra.mxu0 0.0
  %6123 = vmatprep.subr.mxu0 0.0
  %6124 = vmatpush1.msra.mxu0 0.0
  %6125 = vmatprep.subr.mxu0 0.0
  %6126 = vmatpush1.msra.mxu0 0.0
  %6127 = vmatprep.subr.mxu0 0.0
  %6128 = vmatpush1.msra.mxu0 0.0
  %6129 = vmatprep.subr.mxu0 0.0
  %6130 = vmatpush1.msra.mxu0 0.0
  %6131 = vmatprep.subr.mxu0 0.0
  %6132 = vmatpush1.msra.mxu0 0.0
  %6133 = vmatprep.subr.mxu0 0.0
  %6134 = vmatpush1.msra.mxu0 0.0
  %6135 = vmatprep.subr.mxu0 0.0
  %6136 = vmatpush1.msra.mxu0 0.0
  %6137 = vmatprep.subr.mxu0 0.0
  %6138 = vmatpush1.msra.mxu0 0.0
  %6139 = vmatprep.mubr.f32.mxu0 0.0
  %v6140 = vand.u32 %v5817, 4294901760
  %v6141 = vsub.f32 %v5817, %v6140
  %v6142 = vand.u32 %v6141, 4294901760
  %6143 = vmatmul.mubr.f32.gmra.mrb[0].mxu0 %v6142
  %v6144 = vpop.f32.mrb[0].mxu0
  %v6145 = vadd.f32 %v6064, %v6144
  %v6146 = vpop.f32.mrb[0].mxu0
  %6147 = vmatprep.mubr.f32.mxu0 0.0
  %v6148 = vand.u32 %v5820, 4294901760
  %v6149 = vsub.f32 %v5820, %v6148
  %v6150 = vand.u32 %v6149, 4294901760
  %6151 = vmatmul.mubr.f32.gmra.mrb[0].mxu0 %v6150
  %v6152 = vpop.f32.mrb[0].mxu0
  %v6153 = vadd.f32 %v6071, %v6152
  %v6154 = vpop.f32.mrb[0].mxu0
  %6155 = vdwg.mxu0
  %6156 = vmatprep.subr.mxu0 0.0
  %v6157 = vand.u32 %v5823, 4294901760
  %v6158 = vsub.f32 %v5823, %v6157
  %v6159 = vand.u32 %v6158, 4294901760
  %6160 = vmatpush1.msra.mxu0 %v6159
  %6161 = vmatprep.subr.mxu0 0.0
  %6162 = vmatpush1.msra.mxu0 0.0
  %6163 = vmatprep.subr.mxu0 0.0
  %6164 = vmatpush1.msra.mxu0 0.0
  %6165 = vmatprep.subr.mxu0 0.0
  %6166 = vmatpush1.msra.mxu0 0.0
  %6167 = vmatprep.subr.mxu0 0.0
  %6168 = vmatpush1.msra.mxu0 0.0
  %6169 = vmatprep.subr.mxu0 0.0
  %6170 = vmatpush1.msra.mxu0 0.0
  %6171 = vmatprep.subr.mxu0 0.0
  %6172 = vmatpush1.msra.mxu0 0.0
  %6173 = vmatprep.subr.mxu0 0.0
  %6174 = vmatpush1.msra.mxu0 0.0
  %6175 = vmatprep.subr.mxu0 0.0
  %6176 = vmatpush1.msra.mxu0 0.0
  %6177 = vmatprep.subr.mxu0 0.0
  %6178 = vmatpush1.msra.mxu0 0.0
  %6179 = vmatprep.subr.mxu0 0.0
  %6180 = vmatpush1.msra.mxu0 0.0
  %6181 = vmatprep.subr.mxu0 0.0
  %6182 = vmatpush1.msra.mxu0 0.0
  %6183 = vmatprep.subr.mxu0 0.0
  %6184 = vmatpush1.msra.mxu0 0.0
  %6185 = vmatprep.subr.mxu0 0.0
  %6186 = vmatpush1.msra.mxu0 0.0
  %6187 = vmatprep.subr.mxu0 0.0
  %6188 = vmatpush1.msra.mxu0 0.0
  %6189 = vmatprep.subr.mxu0 0.0
  %6190 = vmatpush1.msra.mxu0 0.0
  %6191 = vmatprep.subr.mxu0 0.0
  %6192 = vmatpush1.msra.mxu0 0.0
  %6193 = vmatprep.subr.mxu0 0.0
  %6194 = vmatpush1.msra.mxu0 0.0
  %6195 = vmatprep.subr.mxu0 0.0
  %6196 = vmatpush1.msra.mxu0 0.0
  %6197 = vmatprep.subr.mxu0 0.0
  %6198 = vmatpush1.msra.mxu0 0.0
  %6199 = vmatprep.subr.mxu0 0.0
  %6200 = vmatpush1.msra.mxu0 0.0
  %6201 = vmatprep.subr.mxu0 0.0
  %6202 = vmatpush1.msra.mxu0 0.0
  %6203 = vmatprep.subr.mxu0 0.0
  %6204 = vmatpush1.msra.mxu0 0.0
  %6205 = vmatprep.subr.mxu0 0.0
  %6206 = vmatpush1.msra.mxu0 0.0
  %6207 = vmatprep.subr.mxu0 0.0
  %6208 = vmatpush1.msra.mxu0 0.0
  %6209 = vmatprep.subr.mxu0 0.0
  %6210 = vmatpush1.msra.mxu0 0.0
  %6211 = vmatprep.subr.mxu0 0.0
  %6212 = vmatpush1.msra.mxu0 0.0
  %6213 = vmatprep.subr.mxu0 0.0
  %6214 = vmatpush1.msra.mxu0 0.0
  %6215 = vmatprep.subr.mxu0 0.0
  %6216 = vmatpush1.msra.mxu0 0.0
  %6217 = vmatprep.subr.mxu0 0.0
  %6218 = vmatpush1.msra.mxu0 0.0
  %6219 = vmatprep.subr.mxu0 0.0
  %6220 = vmatpush1.msra.mxu0 0.0
  %6221 = vmatprep.subr.mxu0 0.0
  %6222 = vmatpush1.msra.mxu0 0.0
  %6223 = vmatprep.mubr.f32.mxu0 0.0
  %v6224 = vand.u32 %v5817, 4294901760
  %6225 = vmatmul.mubr.f32.gmra.mrb[0].mxu0 %v6224
  %v6226 = vpop.f32.mrb[0].mxu0
  %v6227 = vadd.f32 %v6145, %v6226
  %v6228 = vpop.f32.mrb[0].mxu0
  %6229 = vmatprep.mubr.f32.mxu0 0.0
  %v6230 = vand.u32 %v5820, 4294901760
  %6231 = vmatmul.mubr.f32.gmra.mrb[0].mxu0 %v6230
  %v6232 = vpop.f32.mrb[0].mxu0
  %v6233 = vadd.f32 %v6153, %v6232
  %v6234 = vpop.f32.mrb[0].mxu0
  %6235 = vdwg.mxu0
  %6236 = vmatprep.subr.mxu0 0.0
  %v6237 = vand.u32 %v5823, 4294901760
  %6238 = vmatpush1.msra.mxu0 %v6237
  %6239 = vmatprep.subr.mxu0 0.0
  %6240 = vmatpush1.msra.mxu0 0.0
  %6241 = vmatprep.subr.mxu0 0.0
  %6242 = vmatpush1.msra.mxu0 0.0
  %6243 = vmatprep.subr.mxu0 0.0
  %6244 = vmatpush1.msra.mxu0 0.0
  %6245 = vmatprep.subr.mxu0 0.0
  %6246 = vmatpush1.msra.mxu0 0.0
  %6247 = vmatprep.subr.mxu0 0.0
  %6248 = vmatpush1.msra.mxu0 0.0
  %6249 = vmatprep.subr.mxu0 0.0
  %6250 = vmatpush1.msra.mxu0 0.0
  %6251 = vmatprep.subr.mxu0 0.0
  %6252 = vmatpush1.msra.mxu0 0.0
  %6253 = vmatprep.subr.mxu0 0.0
  %6254 = vmatpush1.msra.mxu0 0.0
  %6255 = vmatprep.subr.mxu0 0.0
  %6256 = vmatpush1.msra.mxu0 0.0
  %6257 = vmatprep.subr.mxu0 0.0
  %6258 = vmatpush1.msra.mxu0 0.0
  %6259 = vmatprep.subr.mxu0 0.0
  %6260 = vmatpush1.msra.mxu0 0.0
  %6261 = vmatprep.subr.mxu0 0.0
  %6262 = vmatpush1.msra.mxu0 0.0
  %6263 = vmatprep.subr.mxu0 0.0
  %6264 = vmatpush1.msra.mxu0 0.0
  %6265 = vmatprep.subr.mxu0 0.0
  %6266 = vmatpush1.msra.mxu0 0.0
  %6267 = vmatprep.subr.mxu0 0.0
  %6268 = vmatpush1.msra.mxu0 0.0
  %6269 = vmatprep.subr.mxu0 0.0
  %6270 = vmatpush1.msra.mxu0 0.0
  %6271 = vmatprep.subr.mxu0 0.0
  %6272 = vmatpush1.msra.mxu0 0.0
  %6273 = vmatprep.subr.mxu0 0.0
  %6274 = vmatpush1.msra.mxu0 0.0
  %6275 = vmatprep.subr.mxu0 0.0
  %6276 = vmatpush1.msra.mxu0 0.0
  %6277 = vmatprep.subr.mxu0 0.0
  %6278 = vmatpush1.msra.mxu0 0.0
  %6279 = vmatprep.subr.mxu0 0.0
  %6280 = vmatpush1.msra.mxu0 0.0
  %6281 = vmatprep.subr.mxu0 0.0
  %6282 = vmatpush1.msra.mxu0 0.0
  %6283 = vmatprep.subr.mxu0 0.0
  %6284 = vmatpush1.msra.mxu0 0.0
  %6285 = vmatprep.subr.mxu0 0.0
  %6286 = vmatpush1.msra.mxu0 0.0
  %6287 = vmatprep.subr.mxu0 0.0
  %6288 = vmatpush1.msra.mxu0 0.0
  %6289 = vmatprep.subr.mxu0 0.0
  %6290 = vmatpush1.msra.mxu0 0.0
  %6291 = vmatprep.subr.mxu0 0.0
  %6292 = vmatpush1.msra.mxu0 0.0
  %6293 = vmatprep.subr.mxu0 0.0
  %6294 = vmatpush1.msra.mxu0 0.0
  %6295 = vmatprep.subr.mxu0 0.0
  %6296 = vmatpush1.msra.mxu0 0.0
  %6297 = vmatprep.subr.mxu0 0.0
  %6298 = vmatpush1.msra.mxu0 0.0
  %6299 = vmatprep.subr.mxu0 0.0
  %6300 = vmatpush1.msra.mxu0 0.0
  %6301 = vmatprep.mubr.f32.mxu0 0.0
  %v6302 = vand.u32 %v5817, 4294901760
  %6303 = vmatmul.mubr.f32.gmra.mrb[0].mxu0 %v6302
  %v6304 = vpop.f32.mrb[0].mxu0
  %v6305 = vadd.f32 %v6227, %v6304
  %v6306 = vpop.f32.mrb[0].mxu0
  %6307 = vmatprep.mubr.f32.mxu0 0.0
  %v6308 = vand.u32 %v5820, 4294901760
  %6309 = vmatmul.mubr.f32.gmra.mrb[0].mxu0 %v6308
  %v6310 = vpop.f32.mrb[0].mxu0
  %v6311 = vadd.f32 %v6233, %v6310
  %v6312 = vpop.f32.mrb[0].mxu0
  %6313 = vdwg.mxu0
  %v6314 = vadd.f32 %v5806, %v6305
  %v6315 = vadd.f32 %v5812, %v6311
  %v6316 = vld [vmem:[%s1 + $0x78] sm:$0xff]
  %v6317 = vld [vmem:[%s1 + $0x80] sm:$0xff]
  %v6318 = vld [vmem:[%s1 + $0x88] sm:$0xff]
  %v6319 = vld [vmem:[%s1 + $0x90] sm:$0xff]
  %v6321 = vsel %vm2296, %v4769, 0
  %v6324 = vsel %vm2296, %v4775, 0
  %6326 = vmatprep.subr.mxu0 0.0
  %v6327 = vand.u32 %v6316, 4294901760
  %6328 = vmatpush1.msra.mxu0 %v6327
  %6329 = vmatprep.subr.mxu0 0.0
  %v6330 = vand.u32 %v6317, 4294901760
  %6331 = vmatpush1.msra.mxu0 %v6330
  %6332 = vmatprep.subr.mxu0 0.0
  %v6333 = vand.u32 %v6318, 4294901760
  %6334 = vmatpush1.msra.mxu0 %v6333
  %6335 = vmatprep.subr.mxu0 0.0
  %v6336 = vand.u32 %v6319, 4294901760
  %6337 = vmatpush1.msra.mxu0 %v6336
  %6338 = vmatprep.subr.mxu0 0.0
  %6339 = vmatpush1.msra.mxu0 0.0
  %6340 = vmatprep.subr.mxu0 0.0
  %6341 = vmatpush1.msra.mxu0 0.0
  %6342 = vmatprep.subr.mxu0 0.0
  %6343 = vmatpush1.msra.mxu0 0.0
  %6344 = vmatprep.subr.mxu0 0.0
  %6345 = vmatpush1.msra.mxu0 0.0
  %6346 = vmatprep.subr.mxu0 0.0
  %6347 = vmatpush1.msra.mxu0 0.0
  %6348 = vmatprep.subr.mxu0 0.0
  %6349 = vmatpush1.msra.mxu0 0.0
  %6350 = vmatprep.subr.mxu0 0.0
  %6351 = vmatpush1.msra.mxu0 0.0
  %6352 = vmatprep.subr.mxu0 0.0
  %6353 = vmatpush1.msra.mxu0 0.0
  %6354 = vmatprep.subr.mxu0 0.0
  %6355 = vmatpush1.msra.mxu0 0.0
  %6356 = vmatprep.subr.mxu0 0.0
  %6357 = vmatpush1.msra.mxu0 0.0
  %6358 = vmatprep.subr.mxu0 0.0
  %6359 = vmatpush1.msra.mxu0 0.0
  %6360 = vmatprep.subr.mxu0 0.0
  %6361 = vmatpush1.msra.mxu0 0.0
  %6362 = vmatprep.subr.mxu0 0.0
  %6363 = vmatpush1.msra.mxu0 0.0
  %6364 = vmatprep.subr.mxu0 0.0
  %6365 = vmatpush1.msra.mxu0 0.0
  %6366 = vmatprep.subr.mxu0 0.0
  %6367 = vmatpush1.msra.mxu0 0.0
  %6368 = vmatprep.subr.mxu0 0.0
  %6369 = vmatpush1.msra.mxu0 0.0
  %6370 = vmatprep.subr.mxu0 0.0
  %6371 = vmatpush1.msra.mxu0 0.0
  %6372 = vmatprep.subr.mxu0 0.0
  %6373 = vmatpush1.msra.mxu0 0.0
  %6374 = vmatprep.subr.mxu0 0.0
  %6375 = vmatpush1.msra.mxu0 0.0
  %6376 = vmatprep.subr.mxu0 0.0
  %6377 = vmatpush1.msra.mxu0 0.0
  %6378 = vmatprep.subr.mxu0 0.0
  %6379 = vmatpush1.msra.mxu0 0.0
  %6380 = vmatprep.subr.mxu0 0.0
  %6381 = vmatpush1.msra.mxu0 0.0
  %6382 = vmatprep.subr.mxu0 0.0
  %6383 = vmatpush1.msra.mxu0 0.0
  %6384 = vmatprep.subr.mxu0 0.0
  %6385 = vmatpush1.msra.mxu0 0.0
  %6386 = vmatprep.subr.mxu0 0.0
  %6387 = vmatpush1.msra.mxu0 0.0
  %6388 = vmatprep.subr.mxu0 0.0
  %6389 = vmatpush1.msra.mxu0 0.0
  %6390 = vmatprep.subr.mxu0 0.0
  %6391 = vmatpush1.msra.mxu0 0.0
  %6392 = vmatprep.subr.mxu0 0.0
  %6393 = vmatpush1.msra.mxu0 0.0
  %6394 = vmatprep.mubr.f32.mxu0 0.0
  %v6395 = vand.u32 %v6321, 4294901760
  %v6396 = vsub.f32 %v6321, %v6395
  %v6397 = vand.u32 %v6396, 4294901760
  %v6398 = vsub.f32 %v6396, %v6397
  %v6399 = vand.u32 %v6398, 4294901760
  %6400 = vmatmul.mubr.f32.gmra.mrb[0].mxu0 %v6399
  %v6401 = vpop.f32.mrb[0].mxu0
  %v6402 = vadd.f32 0.0, %v6401
  %v6403 = vpop.f32.mrb[0].mxu0
  %6404 = vmatprep.mubr.f32.mxu0 0.0
  %v6405 = vand.u32 %v6324, 4294901760
  %v6406 = vsub.f32 %v6324, %v6405
  %v6407 = vand.u32 %v6406, 4294901760
  %v6408 = vsub.f32 %v6406, %v6407
  %v6409 = vand.u32 %v6408, 4294901760
  %6410 = vmatmul.mubr.f32.gmra.mrb[0].mxu0 %v6409
  %v6411 = vpop.f32.mrb[0].mxu0
  %v6412 = vadd.f32 0.0, %v6411
  %v6413 = vpop.f32.mrb[0].mxu0
  %6414 = vdwg.mxu0
  %6415 = vmatprep.subr.mxu0 0.0
  %v6416 = vand.u32 %v6316, 4294901760
  %v6417 = vsub.f32 %v6316, %v6416
  %v6418 = vand.u32 %v6417, 4294901760
  %v6419 = vsub.f32 %v6417, %v6418
  %v6420 = vand.u32 %v6419, 4294901760
  %6421 = vmatpush1.msra.mxu0 %v6420
  %6422 = vmatprep.subr.mxu0 0.0
  %v6423 = vand.u32 %v6317, 4294901760
  %v6424 = vsub.f32 %v6317, %v6423
  %v6425 = vand.u32 %v6424, 4294901760
  %v6426 = vsub.f32 %v6424, %v6425
  %v6427 = vand.u32 %v6426, 4294901760
  %6428 = vmatpush1.msra.mxu0 %v6427
  %6429 = vmatprep.subr.mxu0 0.0
  %v6430 = vand.u32 %v6318, 4294901760
  %v6431 = vsub.f32 %v6318, %v6430
  %v6432 = vand.u32 %v6431, 4294901760
  %v6433 = vsub.f32 %v6431, %v6432
  %v6434 = vand.u32 %v6433, 4294901760
  %6435 = vmatpush1.msra.mxu0 %v6434
  %6436 = vmatprep.subr.mxu0 0.0
  %v6437 = vand.u32 %v6319, 4294901760
  %v6438 = vsub.f32 %v6319, %v6437
  %v6439 = vand.u32 %v6438, 4294901760
  %v6440 = vsub.f32 %v6438, %v6439
  %v6441 = vand.u32 %v6440, 4294901760
  %6442 = vmatpush1.msra.mxu0 %v6441
  %6443 = vmatprep.subr.mxu0 0.0
  %6444 = vmatpush1.msra.mxu0 0.0
  %6445 = vmatprep.subr.mxu0 0.0
  %6446 = vmatpush1.msra.mxu0 0.0
  %6447 = vmatprep.subr.mxu0 0.0
  %6448 = vmatpush1.msra.mxu0 0.0
  %6449 = vmatprep.subr.mxu0 0.0
  %6450 = vmatpush1.msra.mxu0 0.0
  %6451 = vmatprep.subr.mxu0 0.0
  %6452 = vmatpush1.msra.mxu0 0.0
  %6453 = vmatprep.subr.mxu0 0.0
  %6454 = vmatpush1.msra.mxu0 0.0
  %6455 = vmatprep.subr.mxu0 0.0
  %6456 = vmatpush1.msra.mxu0 0.0
  %6457 = vmatprep.subr.mxu0 0.0
  %6458 = vmatpush1.msra.mxu0 0.0
  %6459 = vmatprep.subr.mxu0 0.0
  %6460 = vmatpush1.msra.mxu0 0.0
  %6461 = vmatprep.subr.mxu0 0.0
  %6462 = vmatpush1.msra.mxu0 0.0
  %6463 = vmatprep.subr.mxu0 0.0
  %6464 = vmatpush1.msra.mxu0 0.0
  %6465 = vmatprep.subr.mxu0 0.0
  %6466 = vmatpush1.msra.mxu0 0.0
  %6467 = vmatprep.subr.mxu0 0.0
  %6468 = vmatpush1.msra.mxu0 0.0
  %6469 = vmatprep.subr.mxu0 0.0
  %6470 = vmatpush1.msra.mxu0 0.0
  %6471 = vmatprep.subr.mxu0 0.0
  %6472 = vmatpush1.msra.mxu0 0.0
  %6473 = vmatprep.subr.mxu0 0.0
  %6474 = vmatpush1.msra.mxu0 0.0
  %6475 = vmatprep.subr.mxu0 0.0
  %6476 = vmatpush1.msra.mxu0 0.0
  %6477 = vmatprep.subr.mxu0 0.0
  %6478 = vmatpush1.msra.mxu0 0.0
  %6479 = vmatprep.subr.mxu0 0.0
  %6480 = vmatpush1.msra.mxu0 0.0
  %6481 = vmatprep.subr.mxu0 0.0
  %6482 = vmatpush1.msra.mxu0 0.0
  %6483 = vmatprep.subr.mxu0 0.0
  %6484 = vmatpush1.msra.mxu0 0.0
  %6485 = vmatprep.subr.mxu0 0.0
  %6486 = vmatpush1.msra.mxu0 0.0
  %6487 = vmatprep.subr.mxu0 0.0
  %6488 = vmatpush1.msra.mxu0 0.0
  %6489 = vmatprep.subr.mxu0 0.0
  %6490 = vmatpush1.msra.mxu0 0.0
  %6491 = vmatprep.subr.mxu0 0.0
  %6492 = vmatpush1.msra.mxu0 0.0
  %6493 = vmatprep.subr.mxu0 0.0
  %6494 = vmatpush1.msra.mxu0 0.0
  %6495 = vmatprep.subr.mxu0 0.0
  %6496 = vmatpush1.msra.mxu0 0.0
  %6497 = vmatprep.subr.mxu0 0.0
  %6498 = vmatpush1.msra.mxu0 0.0
  %6499 = vmatprep.mubr.f32.mxu0 0.0
  %v6500 = vand.u32 %v6321, 4294901760
  %6501 = vmatmul.mubr.f32.gmra.mrb[0].mxu0 %v6500
  %v6502 = vpop.f32.mrb[0].mxu0
  %v6503 = vadd.f32 %v6402, %v6502
  %v6504 = vpop.f32.mrb[0].mxu0
  %6505 = vmatprep.mubr.f32.mxu0 0.0
  %v6506 = vand.u32 %v6324, 4294901760
  %6507 = vmatmul.mubr.f32.gmra.mrb[0].mxu0 %v6506
  %v6508 = vpop.f32.mrb[0].mxu0
  %v6509 = vadd.f32 %v6412, %v6508
  %v6510 = vpop.f32.mrb[0].mxu0
  %6511 = vdwg.mxu0
  %6512 = vmatprep.subr.mxu0 0.0
  %v6513 = vand.u32 %v6316, 4294901760
  %v6514 = vsub.f32 %v6316, %v6513
  %6515 = vmatpush1.msra.mxu0 %v6514
  %6516 = vmatprep.subr.mxu0 0.0
  %v6517 = vand.u32 %v6317, 4294901760
  %v6518 = vsub.f32 %v6317, %v6517
  %6519 = vmatpush1.msra.mxu0 %v6518
  %6520 = vmatprep.subr.mxu0 0.0
  %v6521 = vand.u32 %v6318, 4294901760
  %v6522 = vsub.f32 %v6318, %v6521
  %6523 = vmatpush1.msra.mxu0 %v6522
  %6524 = vmatprep.subr.mxu0 0.0
  %v6525 = vand.u32 %v6319, 4294901760
  %v6526 = vsub.f32 %v6319, %v6525
  %6527 = vmatpush1.msra.mxu0 %v6526
  %6528 = vmatprep.subr.mxu0 0.0
  %6529 = vmatpush1.msra.mxu0 0.0
  %6530 = vmatprep.subr.mxu0 0.0
  %6531 = vmatpush1.msra.mxu0 0.0
  %6532 = vmatprep.subr.mxu0 0.0
  %6533 = vmatpush1.msra.mxu0 0.0
  %6534 = vmatprep.subr.mxu0 0.0
  %6535 = vmatpush1.msra.mxu0 0.0
  %6536 = vmatprep.subr.mxu0 0.0
  %6537 = vmatpush1.msra.mxu0 0.0
  %6538 = vmatprep.subr.mxu0 0.0
  %6539 = vmatpush1.msra.mxu0 0.0
  %6540 = vmatprep.subr.mxu0 0.0
  %6541 = vmatpush1.msra.mxu0 0.0
  %6542 = vmatprep.subr.mxu0 0.0
  %6543 = vmatpush1.msra.mxu0 0.0
  %6544 = vmatprep.subr.mxu0 0.0
  %6545 = vmatpush1.msra.mxu0 0.0
  %6546 = vmatprep.subr.mxu0 0.0
  %6547 = vmatpush1.msra.mxu0 0.0
  %6548 = vmatprep.subr.mxu0 0.0
  %6549 = vmatpush1.msra.mxu0 0.0
  %6550 = vmatprep.subr.mxu0 0.0
  %6551 = vmatpush1.msra.mxu0 0.0
  %6552 = vmatprep.subr.mxu0 0.0
  %6553 = vmatpush1.msra.mxu0 0.0
  %6554 = vmatprep.subr.mxu0 0.0
  %6555 = vmatpush1.msra.mxu0 0.0
  %6556 = vmatprep.subr.mxu0 0.0
  %6557 = vmatpush1.msra.mxu0 0.0
  %6558 = vmatprep.subr.mxu0 0.0
  %6559 = vmatpush1.msra.mxu0 0.0
  %6560 = vmatprep.subr.mxu0 0.0
  %6561 = vmatpush1.msra.mxu0 0.0
  %6562 = vmatprep.subr.mxu0 0.0
  %6563 = vmatpush1.msra.mxu0 0.0
  %6564 = vmatprep.subr.mxu0 0.0
  %6565 = vmatpush1.msra.mxu0 0.0
  %6566 = vmatprep.subr.mxu0 0.0
  %6567 = vmatpush1.msra.mxu0 0.0
  %6568 = vmatprep.subr.mxu0 0.0
  %6569 = vmatpush1.msra.mxu0 0.0
  %6570 = vmatprep.subr.mxu0 0.0
  %6571 = vmatpush1.msra.mxu0 0.0
  %6572 = vmatprep.subr.mxu0 0.0
  %6573 = vmatpush1.msra.mxu0 0.0
  %6574 = vmatprep.subr.mxu0 0.0
  %6575 = vmatpush1.msra.mxu0 0.0
  %6576 = vmatprep.subr.mxu0 0.0
  %6577 = vmatpush1.msra.mxu0 0.0
  %6578 = vmatprep.subr.mxu0 0.0
  %6579 = vmatpush1.msra.mxu0 0.0
  %6580 = vmatprep.subr.mxu0 0.0
  %6581 = vmatpush1.msra.mxu0 0.0
  %6582 = vmatprep.subr.mxu0 0.0
  %6583 = vmatpush1.msra.mxu0 0.0
  %6584 = vmatprep.mubr.f32.mxu0 0.0
  %v6585 = vand.u32 %v6321, 4294901760
  %v6586 = vsub.f32 %v6321, %v6585
  %6587 = vmatmul.mubr.f32.gmra.mrb[0].mxu0 %v6586
  %v6588 = vpop.f32.mrb[0].mxu0
  %v6589 = vadd.f32 %v6503, %v6588
  %v6590 = vpop.f32.mrb[0].mxu0
  %6591 = vmatprep.mubr.f32.mxu0 0.0
  %v6592 = vand.u32 %v6324, 4294901760
  %v6593 = vsub.f32 %v6324, %v6592
  %6594 = vmatmul.mubr.f32.gmra.mrb[0].mxu0 %v6593
  %v6595 = vpop.f32.mrb[0].mxu0
  %v6596 = vadd.f32 %v6509, %v6595
  %v6597 = vpop.f32.mrb[0].mxu0
  %6598 = vdwg.mxu0
  %6599 = vmatprep.subr.mxu0 0.0
  %v6600 = vand.u32 %v6316, 4294901760
  %6601 = vmatpush1.msra.mxu0 %v6600
  %6602 = vmatprep.subr.mxu0 0.0
  %v6603 = vand.u32 %v6317, 4294901760
  %6604 = vmatpush1.msra.mxu0 %v6603
  %6605 = vmatprep.subr.mxu0 0.0
  %v6606 = vand.u32 %v6318, 4294901760
  %6607 = vmatpush1.msra.mxu0 %v6606
  %6608 = vmatprep.subr.mxu0 0.0
  %v6609 = vand.u32 %v6319, 4294901760
  %6610 = vmatpush1.msra.mxu0 %v6609
  %6611 = vmatprep.subr.mxu0 0.0
  %6612 = vmatpush1.msra.mxu0 0.0
  %6613 = vmatprep.subr.mxu0 0.0
  %6614 = vmatpush1.msra.mxu0 0.0
  %6615 = vmatprep.subr.mxu0 0.0
  %6616 = vmatpush1.msra.mxu0 0.0
  %6617 = vmatprep.subr.mxu0 0.0
  %6618 = vmatpush1.msra.mxu0 0.0
  %6619 = vmatprep.subr.mxu0 0.0
  %6620 = vmatpush1.msra.mxu0 0.0
  %6621 = vmatprep.subr.mxu0 0.0
  %6622 = vmatpush1.msra.mxu0 0.0
  %6623 = vmatprep.subr.mxu0 0.0
  %6624 = vmatpush1.msra.mxu0 0.0
  %6625 = vmatprep.subr.mxu0 0.0
  %6626 = vmatpush1.msra.mxu0 0.0
  %6627 = vmatprep.subr.mxu0 0.0
  %6628 = vmatpush1.msra.mxu0 0.0
  %6629 = vmatprep.subr.mxu0 0.0
  %6630 = vmatpush1.msra.mxu0 0.0
  %6631 = vmatprep.subr.mxu0 0.0
  %6632 = vmatpush1.msra.mxu0 0.0
  %6633 = vmatprep.subr.mxu0 0.0
  %6634 = vmatpush1.msra.mxu0 0.0
  %6635 = vmatprep.subr.mxu0 0.0
  %6636 = vmatpush1.msra.mxu0 0.0
  %6637 = vmatprep.subr.mxu0 0.0
  %6638 = vmatpush1.msra.mxu0 0.0
  %6639 = vmatprep.subr.mxu0 0.0
  %6640 = vmatpush1.msra.mxu0 0.0
  %6641 = vmatprep.subr.mxu0 0.0
  %6642 = vmatpush1.msra.mxu0 0.0
  %6643 = vmatprep.subr.mxu0 0.0
  %6644 = vmatpush1.msra.mxu0 0.0
  %6645 = vmatprep.subr.mxu0 0.0
  %6646 = vmatpush1.msra.mxu0 0.0
  %6647 = vmatprep.subr.mxu0 0.0
  %6648 = vmatpush1.msra.mxu0 0.0
  %6649 = vmatprep.subr.mxu0 0.0
  %6650 = vmatpush1.msra.mxu0 0.0
  %6651 = vmatprep.subr.mxu0 0.0
  %6652 = vmatpush1.msra.mxu0 0.0
  %6653 = vmatprep.subr.mxu0 0.0
  %6654 = vmatpush1.msra.mxu0 0.0
  %6655 = vmatprep.subr.mxu0 0.0
  %6656 = vmatpush1.msra.mxu0 0.0
  %6657 = vmatprep.subr.mxu0 0.0
  %6658 = vmatpush1.msra.mxu0 0.0
  %6659 = vmatprep.subr.mxu0 0.0
  %6660 = vmatpush1.msra.mxu0 0.0
  %6661 = vmatprep.subr.mxu0 0.0
  %6662 = vmatpush1.msra.mxu0 0.0
  %6663 = vmatprep.subr.mxu0 0.0
  %6664 = vmatpush1.msra.mxu0 0.0
  %6665 = vmatprep.subr.mxu0 0.0
  %6666 = vmatpush1.msra.mxu0 0.0
  %6667 = vmatprep.mubr.f32.mxu0 0.0
  %v6668 = vand.u32 %v6321, 4294901760
  %v6669 = vsub.f32 %v6321, %v6668
  %v6670 = vand.u32 %v6669, 4294901760
  %6671 = vmatmul.mubr.f32.gmra.mrb[0].mxu0 %v6670
  %v6672 = vpop.f32.mrb[0].mxu0
  %v6673 = vadd.f32 %v6589, %v6672
  %v6674 = vpop.f32.mrb[0].mxu0
  %6675 = vmatprep.mubr.f32.mxu0 0.0
  %v6676 = vand.u32 %v6324, 4294901760
  %v6677 = vsub.f32 %v6324, %v6676
  %v6678 = vand.u32 %v6677, 4294901760
  %6679 = vmatmul.mubr.f32.gmra.mrb[0].mxu0 %v6678
  %v6680 = vpop.f32.mrb[0].mxu0
  %v6681 = vadd.f32 %v6596, %v6680
  %v6682 = vpop.f32.mrb[0].mxu0
  %6683 = vdwg.mxu0
  %6684 = vmatprep.subr.mxu0 0.0
  %v6685 = vand.u32 %v6316, 4294901760
  %v6686 = vsub.f32 %v6316, %v6685
  %v6687 = vand.u32 %v6686, 4294901760
  %6688 = vmatpush1.msra.mxu0 %v6687
  %6689 = vmatprep.subr.mxu0 0.0
  %v6690 = vand.u32 %v6317, 4294901760
  %v6691 = vsub.f32 %v6317, %v6690
  %v6692 = vand.u32 %v6691, 4294901760
  %6693 = vmatpush1.msra.mxu0 %v6692
  %6694 = vmatprep.subr.mxu0 0.0
  %v6695 = vand.u32 %v6318, 4294901760
  %v6696 = vsub.f32 %v6318, %v6695
  %v6697 = vand.u32 %v6696, 4294901760
  %6698 = vmatpush1.msra.mxu0 %v6697
  %6699 = vmatprep.subr.mxu0 0.0
  %v6700 = vand.u32 %v6319, 4294901760
  %v6701 = vsub.f32 %v6319, %v6700
  %v6702 = vand.u32 %v6701, 4294901760
  %6703 = vmatpush1.msra.mxu0 %v6702
  %6704 = vmatprep.subr.mxu0 0.0
  %6705 = vmatpush1.msra.mxu0 0.0
  %6706 = vmatprep.subr.mxu0 0.0
  %6707 = vmatpush1.msra.mxu0 0.0
  %6708 = vmatprep.subr.mxu0 0.0
  %6709 = vmatpush1.msra.mxu0 0.0
  %6710 = vmatprep.subr.mxu0 0.0
  %6711 = vmatpush1.msra.mxu0 0.0
  %6712 = vmatprep.subr.mxu0 0.0
  %6713 = vmatpush1.msra.mxu0 0.0
  %6714 = vmatprep.subr.mxu0 0.0
  %6715 = vmatpush1.msra.mxu0 0.0
  %6716 = vmatprep.subr.mxu0 0.0
  %6717 = vmatpush1.msra.mxu0 0.0
  %6718 = vmatprep.subr.mxu0 0.0
  %6719 = vmatpush1.msra.mxu0 0.0
  %6720 = vmatprep.subr.mxu0 0.0
  %6721 = vmatpush1.msra.mxu0 0.0
  %6722 = vmatprep.subr.mxu0 0.0
  %6723 = vmatpush1.msra.mxu0 0.0
  %6724 = vmatprep.subr.mxu0 0.0
  %6725 = vmatpush1.msra.mxu0 0.0
  %6726 = vmatprep.subr.mxu0 0.0
  %6727 = vmatpush1.msra.mxu0 0.0
  %6728 = vmatprep.subr.mxu0 0.0
  %6729 = vmatpush1.msra.mxu0 0.0
  %6730 = vmatprep.subr.mxu0 0.0
  %6731 = vmatpush1.msra.mxu0 0.0
  %6732 = vmatprep.subr.mxu0 0.0
  %6733 = vmatpush1.msra.mxu0 0.0
  %6734 = vmatprep.subr.mxu0 0.0
  %6735 = vmatpush1.msra.mxu0 0.0
  %6736 = vmatprep.subr.mxu0 0.0
  %6737 = vmatpush1.msra.mxu0 0.0
  %6738 = vmatprep.subr.mxu0 0.0
  %6739 = vmatpush1.msra.mxu0 0.0
  %6740 = vmatprep.subr.mxu0 0.0
  %6741 = vmatpush1.msra.mxu0 0.0
  %6742 = vmatprep.subr.mxu0 0.0
  %6743 = vmatpush1.msra.mxu0 0.0
  %6744 = vmatprep.subr.mxu0 0.0
  %6745 = vmatpush1.msra.mxu0 0.0
  %6746 = vmatprep.subr.mxu0 0.0
  %6747 = vmatpush1.msra.mxu0 0.0
  %6748 = vmatprep.subr.mxu0 0.0
  %6749 = vmatpush1.msra.mxu0 0.0
  %6750 = vmatprep.subr.mxu0 0.0
  %6751 = vmatpush1.msra.mxu0 0.0
  %6752 = vmatprep.subr.mxu0 0.0
  %6753 = vmatpush1.msra.mxu0 0.0
  %6754 = vmatprep.subr.mxu0 0.0
  %6755 = vmatpush1.msra.mxu0 0.0
  %6756 = vmatprep.subr.mxu0 0.0
  %6757 = vmatpush1.msra.mxu0 0.0
  %6758 = vmatprep.subr.mxu0 0.0
  %6759 = vmatpush1.msra.mxu0 0.0
  %6760 = vmatprep.mubr.f32.mxu0 0.0
  %v6761 = vand.u32 %v6321, 4294901760
  %6762 = vmatmul.mubr.f32.gmra.mrb[0].mxu0 %v6761
  %v6763 = vpop.f32.mrb[0].mxu0
  %v6764 = vadd.f32 %v6673, %v6763
  %v6765 = vpop.f32.mrb[0].mxu0
  %6766 = vmatprep.mubr.f32.mxu0 0.0
  %v6767 = vand.u32 %v6324, 4294901760
  %6768 = vmatmul.mubr.f32.gmra.mrb[0].mxu0 %v6767
  %v6769 = vpop.f32.mrb[0].mxu0
  %v6770 = vadd.f32 %v6681, %v6769
  %v6771 = vpop.f32.mrb[0].mxu0
  %6772 = vdwg.mxu0
  %6773 = vmatprep.subr.mxu0 0.0
  %v6774 = vand.u32 %v6316, 4294901760
  %6775 = vmatpush1.msra.mxu0 %v6774
  %6776 = vmatprep.subr.mxu0 0.0
  %v6777 = vand.u32 %v6317, 4294901760
  %6778 = vmatpush1.msra.mxu0 %v6777
  %6779 = vmatprep.subr.mxu0 0.0
  %v6780 = vand.u32 %v6318, 4294901760
  %6781 = vmatpush1.msra.mxu0 %v6780
  %6782 = vmatprep.subr.mxu0 0.0
  %v6783 = vand.u32 %v6319, 4294901760
  %6784 = vmatpush1.msra.mxu0 %v6783
  %6785 = vmatprep.subr.mxu0 0.0
  %6786 = vmatpush1.msra.mxu0 0.0
  %6787 = vmatprep.subr.mxu0 0.0
  %6788 = vmatpush1.msra.mxu0 0.0
  %6789 = vmatprep.subr.mxu0 0.0
  %6790 = vmatpush1.msra.mxu0 0.0
  %6791 = vmatprep.subr.mxu0 0.0
  %6792 = vmatpush1.msra.mxu0 0.0
  %6793 = vmatprep.subr.mxu0 0.0
  %6794 = vmatpush1.msra.mxu0 0.0
  %6795 = vmatprep.subr.mxu0 0.0
  %6796 = vmatpush1.msra.mxu0 0.0
  %6797 = vmatprep.subr.mxu0 0.0
  %6798 = vmatpush1.msra.mxu0 0.0
  %6799 = vmatprep.subr.mxu0 0.0
  %6800 = vmatpush1.msra.mxu0 0.0
  %6801 = vmatprep.subr.mxu0 0.0
  %6802 = vmatpush1.msra.mxu0 0.0
  %6803 = vmatprep.subr.mxu0 0.0
  %6804 = vmatpush1.msra.mxu0 0.0
  %6805 = vmatprep.subr.mxu0 0.0
  %6806 = vmatpush1.msra.mxu0 0.0
  %6807 = vmatprep.subr.mxu0 0.0
  %6808 = vmatpush1.msra.mxu0 0.0
  %6809 = vmatprep.subr.mxu0 0.0
  %6810 = vmatpush1.msra.mxu0 0.0
  %6811 = vmatprep.subr.mxu0 0.0
  %6812 = vmatpush1.msra.mxu0 0.0
  %6813 = vmatprep.subr.mxu0 0.0
  %6814 = vmatpush1.msra.mxu0 0.0
  %6815 = vmatprep.subr.mxu0 0.0
  %6816 = vmatpush1.msra.mxu0 0.0
  %6817 = vmatprep.subr.mxu0 0.0
  %6818 = vmatpush1.msra.mxu0 0.0
  %6819 = vmatprep.subr.mxu0 0.0
  %6820 = vmatpush1.msra.mxu0 0.0
  %6821 = vmatprep.subr.mxu0 0.0
  %6822 = vmatpush1.msra.mxu0 0.0
  %6823 = vmatprep.subr.mxu0 0.0
  %6824 = vmatpush1.msra.mxu0 0.0
  %6825 = vmatprep.subr.mxu0 0.0
  %6826 = vmatpush1.msra.mxu0 0.0
  %6827 = vmatprep.subr.mxu0 0.0
  %6828 = vmatpush1.msra.mxu0 0.0
  %6829 = vmatprep.subr.mxu0 0.0
  %6830 = vmatpush1.msra.mxu0 0.0
  %6831 = vmatprep.subr.mxu0 0.0
  %6832 = vmatpush1.msra.mxu0 0.0
  %6833 = vmatprep.subr.mxu0 0.0
  %6834 = vmatpush1.msra.mxu0 0.0
  %6835 = vmatprep.subr.mxu0 0.0
  %6836 = vmatpush1.msra.mxu0 0.0
  %6837 = vmatprep.subr.mxu0 0.0
  %6838 = vmatpush1.msra.mxu0 0.0
  %6839 = vmatprep.subr.mxu0 0.0
  %6840 = vmatpush1.msra.mxu0 0.0
  %6841 = vmatprep.mubr.f32.mxu0 0.0
  %v6842 = vand.u32 %v6321, 4294901760
  %6843 = vmatmul.mubr.f32.gmra.mrb[0].mxu0 %v6842
  %v6844 = vpop.f32.mrb[0].mxu0
  %v6845 = vadd.f32 %v6764, %v6844
  %v6846 = vpop.f32.mrb[0].mxu0
  %6847 = vmatprep.mubr.f32.mxu0 0.0
  %v6848 = vand.u32 %v6324, 4294901760
  %6849 = vmatmul.mubr.f32.gmra.mrb[0].mxu0 %v6848
  %v6850 = vpop.f32.mrb[0].mxu0
  %v6851 = vadd.f32 %v6770, %v6850
  %v6852 = vpop.f32.mrb[0].mxu0
  %6853 = vdwg.mxu0
  %v6854 = vadd.f32 %v6314, %v6845
  %v6855 = vadd.f32 %v6315, %v6851
  %v6856 = vld [vmem:[%s1 + $0x98] sm:$0x1]
  %6858 = vset.pattern.permute.xlu0 0
  %6859 = vperm.xlu0 %6858, %v13
  %v6860 = vpop.permute.xlu0 %6859
  %6863 = vset.pattern.permute.xlu0 0
  %6864 = vperm.xlu0 %6863, %v14
  %v6865 = vpop.permute.xlu0 %6864
  %v6867 = vlaneseq
  %v6868 = vshrl.u32 %v6867, 7
  %v6869 = vsub.s32 0, %v6868
  %v6870 = vrot.slane %v6856, %v6869
  %v6871 = vmul.f32 %v6860, %v6870
  %v6872 = vmul.f32 %v6865, %v6870
  %v6873 = vadd.f32 %v6854, %v6871
  %v6874 = vadd.f32 %v6855, %v6872
  %v6875 = vld [vmem:[%s1 + $0xa0] sm:$0x1]
  %v6876 = vlaneseq
  %v6877 = vshrl.u32 %v6876, 7
  %v6878 = vsub.s32 0, %v6877
  %v6879 = vrot.slane %v6875, %v6878
  %v6880 = vadd.f32 %v6873, %v6879
  %v6881 = vadd.f32 %v6874, %v6879
  %v6882 = vmax.f32 %v6880, 0.0
  %v6883 = vmax.f32 %v6881, 0.0
  %v6884 = vld [vmem:[%s1 + $0xa8] sm:$0xff]
  %v6885 = vld [vmem:[%s1 + $0xb0] sm:$0xff]
  %v6886 = vld [vmem:[%s1 + $0xb8] sm:$0xff]
  %v6887 = vld [vmem:[%s1 + $0xc0] sm:$0xff]
  %v6888 = vld [vmem:[%s1 + $0xc8] sm:$0x1]
  %v6889 = vlaneseq
  %v6890 = vshrl.u32 %v6889, 7
  %v6891 = vsub.s32 0, %v6890
  %v6892 = vrot.slane %v6888, %v6891
  %v6894 = vsel %vm2296, %v6882, 0
  %v6897 = vsel %vm2296, %v6883, 0
  %6899 = vmatprep.subr.mxu0 0.0
  %v6900 = vand.u32 %v6884, 4294901760
  %6901 = vmatpush1.msra.mxu0 %v6900
  %6902 = vmatprep.subr.mxu0 0.0
  %v6903 = vand.u32 %v6885, 4294901760
  %6904 = vmatpush1.msra.mxu0 %v6903
  %6905 = vmatprep.subr.mxu0 0.0
  %v6906 = vand.u32 %v6886, 4294901760
  %6907 = vmatpush1.msra.mxu0 %v6906
  %6908 = vmatprep.subr.mxu0 0.0
  %v6909 = vand.u32 %v6887, 4294901760
  %6910 = vmatpush1.msra.mxu0 %v6909
  %6911 = vmatprep.subr.mxu0 0.0
  %6912 = vmatpush1.msra.mxu0 0.0
  %6913 = vmatprep.subr.mxu0 0.0
  %6914 = vmatpush1.msra.mxu0 0.0
  %6915 = vmatprep.subr.mxu0 0.0
  %6916 = vmatpush1.msra.mxu0 0.0
  %6917 = vmatprep.subr.mxu0 0.0
  %6918 = vmatpush1.msra.mxu0 0.0
  %6919 = vmatprep.subr.mxu0 0.0
  %6920 = vmatpush1.msra.mxu0 0.0
  %6921 = vmatprep.subr.mxu0 0.0
  %6922 = vmatpush1.msra.mxu0 0.0
  %6923 = vmatprep.subr.mxu0 0.0
  %6924 = vmatpush1.msra.mxu0 0.0
  %6925 = vmatprep.subr.mxu0 0.0
  %6926 = vmatpush1.msra.mxu0 0.0
  %6927 = vmatprep.subr.mxu0 0.0
  %6928 = vmatpush1.msra.mxu0 0.0
  %6929 = vmatprep.subr.mxu0 0.0
  %6930 = vmatpush1.msra.mxu0 0.0
  %6931 = vmatprep.subr.mxu0 0.0
  %6932 = vmatpush1.msra.mxu0 0.0
  %6933 = vmatprep.subr.mxu0 0.0
  %6934 = vmatpush1.msra.mxu0 0.0
  %6935 = vmatprep.subr.mxu0 0.0
  %6936 = vmatpush1.msra.mxu0 0.0
  %6937 = vmatprep.subr.mxu0 0.0
  %6938 = vmatpush1.msra.mxu0 0.0
  %6939 = vmatprep.subr.mxu0 0.0
  %6940 = vmatpush1.msra.mxu0 0.0
  %6941 = vmatprep.subr.mxu0 0.0
  %6942 = vmatpush1.msra.mxu0 0.0
  %6943 = vmatprep.subr.mxu0 0.0
  %6944 = vmatpush1.msra.mxu0 0.0
  %6945 = vmatprep.subr.mxu0 0.0
  %6946 = vmatpush1.msra.mxu0 0.0
  %6947 = vmatprep.subr.mxu0 0.0
  %6948 = vmatpush1.msra.mxu0 0.0
  %6949 = vmatprep.subr.mxu0 0.0
  %6950 = vmatpush1.msra.mxu0 0.0
  %6951 = vmatprep.subr.mxu0 0.0
  %6952 = vmatpush1.msra.mxu0 0.0
  %6953 = vmatprep.subr.mxu0 0.0
  %6954 = vmatpush1.msra.mxu0 0.0
  %6955 = vmatprep.subr.mxu0 0.0
  %6956 = vmatpush1.msra.mxu0 0.0
  %6957 = vmatprep.subr.mxu0 0.0
  %6958 = vmatpush1.msra.mxu0 0.0
  %6959 = vmatprep.subr.mxu0 0.0
  %6960 = vmatpush1.msra.mxu0 0.0
  %6961 = vmatprep.subr.mxu0 0.0
  %6962 = vmatpush1.msra.mxu0 0.0
  %6963 = vmatprep.subr.mxu0 0.0
  %6964 = vmatpush1.msra.mxu0 0.0
  %6965 = vmatprep.subr.mxu0 0.0
  %6966 = vmatpush1.msra.mxu0 0.0
  %6967 = vmatprep.mubr.f32.mxu0 0.0
  %v6968 = vand.u32 %v6894, 4294901760
  %v6969 = vsub.f32 %v6894, %v6968
  %v6970 = vand.u32 %v6969, 4294901760
  %v6971 = vsub.f32 %v6969, %v6970
  %v6972 = vand.u32 %v6971, 4294901760
  %6973 = vmatmul.mubr.f32.gmra.mrb[0].mxu0 %v6972
  %v6974 = vpop.f32.mrb[0].mxu0
  %v6975 = vadd.f32 %v6892, %v6974
  %v6976 = vpop.f32.mrb[0].mxu0
  %6977 = vmatprep.mubr.f32.mxu0 0.0
  %v6978 = vand.u32 %v6897, 4294901760
  %v6979 = vsub.f32 %v6897, %v6978
  %v6980 = vand.u32 %v6979, 4294901760
  %v6981 = vsub.f32 %v6979, %v6980
  %v6982 = vand.u32 %v6981, 4294901760
  %6983 = vmatmul.mubr.f32.gmra.mrb[0].mxu0 %v6982
  %v6984 = vpop.f32.mrb[0].mxu0
  %v6985 = vadd.f32 %v6892, %v6984
  %v6986 = vpop.f32.mrb[0].mxu0
  %6987 = vdwg.mxu0
  %6988 = vmatprep.subr.mxu0 0.0
  %v6989 = vand.u32 %v6884, 4294901760
  %v6990 = vsub.f32 %v6884, %v6989
  %v6991 = vand.u32 %v6990, 4294901760
  %v6992 = vsub.f32 %v6990, %v6991
  %v6993 = vand.u32 %v6992, 4294901760
  %6994 = vmatpush1.msra.mxu0 %v6993
  %6995 = vmatprep.subr.mxu0 0.0
  %v6996 = vand.u32 %v6885, 4294901760
  %v6997 = vsub.f32 %v6885, %v6996
  %v6998 = vand.u32 %v6997, 4294901760
  %v6999 = vsub.f32 %v6997, %v6998
  %v7000 = vand.u32 %v6999, 4294901760
  %7001 = vmatpush1.msra.mxu0 %v7000
  %7002 = vmatprep.subr.mxu0 0.0
  %v7003 = vand.u32 %v6886, 4294901760
  %v7004 = vsub.f32 %v6886, %v7003
  %v7005 = vand.u32 %v7004, 4294901760
  %v7006 = vsub.f32 %v7004, %v7005
  %v7007 = vand.u32 %v7006, 4294901760
  %7008 = vmatpush1.msra.mxu0 %v7007
  %7009 = vmatprep.subr.mxu0 0.0
  %v7010 = vand.u32 %v6887, 4294901760
  %v7011 = vsub.f32 %v6887, %v7010
  %v7012 = vand.u32 %v7011, 4294901760
  %v7013 = vsub.f32 %v7011, %v7012
  %v7014 = vand.u32 %v7013, 4294901760
  %7015 = vmatpush1.msra.mxu0 %v7014
  %7016 = vmatprep.subr.mxu0 0.0
  %7017 = vmatpush1.msra.mxu0 0.0
  %7018 = vmatprep.subr.mxu0 0.0
  %7019 = vmatpush1.msra.mxu0 0.0
  %7020 = vmatprep.subr.mxu0 0.0
  %7021 = vmatpush1.msra.mxu0 0.0
  %7022 = vmatprep.subr.mxu0 0.0
  %7023 = vmatpush1.msra.mxu0 0.0
  %7024 = vmatprep.subr.mxu0 0.0
  %7025 = vmatpush1.msra.mxu0 0.0
  %7026 = vmatprep.subr.mxu0 0.0
  %7027 = vmatpush1.msra.mxu0 0.0
  %7028 = vmatprep.subr.mxu0 0.0
  %7029 = vmatpush1.msra.mxu0 0.0
  %7030 = vmatprep.subr.mxu0 0.0
  %7031 = vmatpush1.msra.mxu0 0.0
  %7032 = vmatprep.subr.mxu0 0.0
  %7033 = vmatpush1.msra.mxu0 0.0
  %7034 = vmatprep.subr.mxu0 0.0
  %7035 = vmatpush1.msra.mxu0 0.0
  %7036 = vmatprep.subr.mxu0 0.0
  %7037 = vmatpush1.msra.mxu0 0.0
  %7038 = vmatprep.subr.mxu0 0.0
  %7039 = vmatpush1.msra.mxu0 0.0
  %7040 = vmatprep.subr.mxu0 0.0
  %7041 = vmatpush1.msra.mxu0 0.0
  %7042 = vmatprep.subr.mxu0 0.0
  %7043 = vmatpush1.msra.mxu0 0.0
  %7044 = vmatprep.subr.mxu0 0.0
  %7045 = vmatpush1.msra.mxu0 0.0
  %7046 = vmatprep.subr.mxu0 0.0
  %7047 = vmatpush1.msra.mxu0 0.0
  %7048 = vmatprep.subr.mxu0 0.0
  %7049 = vmatpush1.msra.mxu0 0.0
  %7050 = vmatprep.subr.mxu0 0.0
  %7051 = vmatpush1.msra.mxu0 0.0
  %7052 = vmatprep.subr.mxu0 0.0
  %7053 = vmatpush1.msra.mxu0 0.0
  %7054 = vmatprep.subr.mxu0 0.0
  %7055 = vmatpush1.msra.mxu0 0.0
  %7056 = vmatprep.subr.mxu0 0.0
  %7057 = vmatpush1.msra.mxu0 0.0
  %7058 = vmatprep.subr.mxu0 0.0
  %7059 = vmatpush1.msra.mxu0 0.0
  %7060 = vmatprep.subr.mxu0 0.0
  %7061 = vmatpush1.msra.mxu0 0.0
  %7062 = vmatprep.subr.mxu0 0.0
  %7063 = vmatpush1.msra.mxu0 0.0
  %7064 = vmatprep.subr.mxu0 0.0
  %7065 = vmatpush1.msra.mxu0 0.0
  %7066 = vmatprep.subr.mxu0 0.0
  %7067 = vmatpush1.msra.mxu0 0.0
  %7068 = vmatprep.subr.mxu0 0.0
  %7069 = vmatpush1.msra.mxu0 0.0
  %7070 = vmatprep.subr.mxu0 0.0
  %7071 = vmatpush1.msra.mxu0 0.0
  %7072 = vmatprep.mubr.f32.mxu0 0.0
  %v7073 = vand.u32 %v6894, 4294901760
  %7074 = vmatmul.mubr.f32.gmra.mrb[0].mxu0 %v7073
  %v7075 = vpop.f32.mrb[0].mxu0
  %v7076 = vadd.f32 %v6975, %v7075
  %v7077 = vpop.f32.mrb[0].mxu0
  %7078 = vmatprep.mubr.f32.mxu0 0.0
  %v7079 = vand.u32 %v6897, 4294901760
  %7080 = vmatmul.mubr.f32.gmra.mrb[0].mxu0 %v7079
  %v7081 = vpop.f32.mrb[0].mxu0
  %v7082 = vadd.f32 %v6985, %v7081
  %v7083 = vpop.f32.mrb[0].mxu0
  %7084 = vdwg.mxu0
  %7085 = vmatprep.subr.mxu0 0.0
  %v7086 = vand.u32 %v6884, 4294901760
  %v7087 = vsub.f32 %v6884, %v7086
  %7088 = vmatpush1.msra.mxu0 %v7087
  %7089 = vmatprep.subr.mxu0 0.0
  %v7090 = vand.u32 %v6885, 4294901760
  %v7091 = vsub.f32 %v6885, %v7090
  %7092 = vmatpush1.msra.mxu0 %v7091
  %7093 = vmatprep.subr.mxu0 0.0
  %v7094 = vand.u32 %v6886, 4294901760
  %v7095 = vsub.f32 %v6886, %v7094
  %7096 = vmatpush1.msra.mxu0 %v7095
  %7097 = vmatprep.subr.mxu0 0.0
  %v7098 = vand.u32 %v6887, 4294901760
  %v7099 = vsub.f32 %v6887, %v7098
  %7100 = vmatpush1.msra.mxu0 %v7099
  %7101 = vmatprep.subr.mxu0 0.0
  %7102 = vmatpush1.msra.mxu0 0.0
  %7103 = vmatprep.subr.mxu0 0.0
  %7104 = vmatpush1.msra.mxu0 0.0
  %7105 = vmatprep.subr.mxu0 0.0
  %7106 = vmatpush1.msra.mxu0 0.0
  %7107 = vmatprep.subr.mxu0 0.0
  %7108 = vmatpush1.msra.mxu0 0.0
  %7109 = vmatprep.subr.mxu0 0.0
  %7110 = vmatpush1.msra.mxu0 0.0
  %7111 = vmatprep.subr.mxu0 0.0
  %7112 = vmatpush1.msra.mxu0 0.0
  %7113 = vmatprep.subr.mxu0 0.0
  %7114 = vmatpush1.msra.mxu0 0.0
  %7115 = vmatprep.subr.mxu0 0.0
  %7116 = vmatpush1.msra.mxu0 0.0
  %7117 = vmatprep.subr.mxu0 0.0
  %7118 = vmatpush1.msra.mxu0 0.0
  %7119 = vmatprep.subr.mxu0 0.0
  %7120 = vmatpush1.msra.mxu0 0.0
  %7121 = vmatprep.subr.mxu0 0.0
  %7122 = vmatpush1.msra.mxu0 0.0
  %7123 = vmatprep.subr.mxu0 0.0
  %7124 = vmatpush1.msra.mxu0 0.0
  %7125 = vmatprep.subr.mxu0 0.0
  %7126 = vmatpush1.msra.mxu0 0.0
  %7127 = vmatprep.subr.mxu0 0.0
  %7128 = vmatpush1.msra.mxu0 0.0
  %7129 = vmatprep.subr.mxu0 0.0
  %7130 = vmatpush1.msra.mxu0 0.0
  %7131 = vmatprep.subr.mxu0 0.0
  %7132 = vmatpush1.msra.mxu0 0.0
  %7133 = vmatprep.subr.mxu0 0.0
  %7134 = vmatpush1.msra.mxu0 0.0
  %7135 = vmatprep.subr.mxu0 0.0
  %7136 = vmatpush1.msra.mxu0 0.0
  %7137 = vmatprep.subr.mxu0 0.0
  %7138 = vmatpush1.msra.mxu0 0.0
  %7139 = vmatprep.subr.mxu0 0.0
  %7140 = vmatpush1.msra.mxu0 0.0
  %7141 = vmatprep.subr.mxu0 0.0
  %7142 = vmatpush1.msra.mxu0 0.0
  %7143 = vmatprep.subr.mxu0 0.0
  %7144 = vmatpush1.msra.mxu0 0.0
  %7145 = vmatprep.subr.mxu0 0.0
  %7146 = vmatpush1.msra.mxu0 0.0
  %7147 = vmatprep.subr.mxu0 0.0
  %7148 = vmatpush1.msra.mxu0 0.0
  %7149 = vmatprep.subr.mxu0 0.0
  %7150 = vmatpush1.msra.mxu0 0.0
  %7151 = vmatprep.subr.mxu0 0.0
  %7152 = vmatpush1.msra.mxu0 0.0
  %7153 = vmatprep.subr.mxu0 0.0
  %7154 = vmatpush1.msra.mxu0 0.0
  %7155 = vmatprep.subr.mxu0 0.0
  %7156 = vmatpush1.msra.mxu0 0.0
  %7157 = vmatprep.mubr.f32.mxu0 0.0
  %v7158 = vand.u32 %v6894, 4294901760
  %v7159 = vsub.f32 %v6894, %v7158
  %7160 = vmatmul.mubr.f32.gmra.mrb[0].mxu0 %v7159
  %v7161 = vpop.f32.mrb[0].mxu0
  %v7162 = vadd.f32 %v7076, %v7161
  %v7163 = vpop.f32.mrb[0].mxu0
  %7164 = vmatprep.mubr.f32.mxu0 0.0
  %v7165 = vand.u32 %v6897, 4294901760
  %v7166 = vsub.f32 %v6897, %v7165
  %7167 = vmatmul.mubr.f32.gmra.mrb[0].mxu0 %v7166
  %v7168 = vpop.f32.mrb[0].mxu0
  %v7169 = vadd.f32 %v7082, %v7168
  %v7170 = vpop.f32.mrb[0].mxu0
  %7171 = vdwg.mxu0
  %7172 = vmatprep.subr.mxu0 0.0
  %v7173 = vand.u32 %v6884, 4294901760
  %7174 = vmatpush1.msra.mxu0 %v7173
  %7175 = vmatprep.subr.mxu0 0.0
  %v7176 = vand.u32 %v6885, 4294901760
  %7177 = vmatpush1.msra.mxu0 %v7176
  %7178 = vmatprep.subr.mxu0 0.0
  %v7179 = vand.u32 %v6886, 4294901760
  %7180 = vmatpush1.msra.mxu0 %v7179
  %7181 = vmatprep.subr.mxu0 0.0
  %v7182 = vand.u32 %v6887, 4294901760
  %7183 = vmatpush1.msra.mxu0 %v7182
  %7184 = vmatprep.subr.mxu0 0.0
  %7185 = vmatpush1.msra.mxu0 0.0
  %7186 = vmatprep.subr.mxu0 0.0
  %7187 = vmatpush1.msra.mxu0 0.0
  %7188 = vmatprep.subr.mxu0 0.0
  %7189 = vmatpush1.msra.mxu0 0.0
  %7190 = vmatprep.subr.mxu0 0.0
  %7191 = vmatpush1.msra.mxu0 0.0
  %7192 = vmatprep.subr.mxu0 0.0
  %7193 = vmatpush1.msra.mxu0 0.0
  %7194 = vmatprep.subr.mxu0 0.0
  %7195 = vmatpush1.msra.mxu0 0.0
  %7196 = vmatprep.subr.mxu0 0.0
  %7197 = vmatpush1.msra.mxu0 0.0
  %7198 = vmatprep.subr.mxu0 0.0
  %7199 = vmatpush1.msra.mxu0 0.0
  %7200 = vmatprep.subr.mxu0 0.0
  %7201 = vmatpush1.msra.mxu0 0.0
  %7202 = vmatprep.subr.mxu0 0.0
  %7203 = vmatpush1.msra.mxu0 0.0
  %7204 = vmatprep.subr.mxu0 0.0
  %7205 = vmatpush1.msra.mxu0 0.0
  %7206 = vmatprep.subr.mxu0 0.0
  %7207 = vmatpush1.msra.mxu0 0.0
  %7208 = vmatprep.subr.mxu0 0.0
  %7209 = vmatpush1.msra.mxu0 0.0
  %7210 = vmatprep.subr.mxu0 0.0
  %7211 = vmatpush1.msra.mxu0 0.0
  %7212 = vmatprep.subr.mxu0 0.0
  %7213 = vmatpush1.msra.mxu0 0.0
  %7214 = vmatprep.subr.mxu0 0.0
  %7215 = vmatpush1.msra.mxu0 0.0
  %7216 = vmatprep.subr.mxu0 0.0
  %7217 = vmatpush1.msra.mxu0 0.0
  %7218 = vmatprep.subr.mxu0 0.0
  %7219 = vmatpush1.msra.mxu0 0.0
  %7220 = vmatprep.subr.mxu0 0.0
  %7221 = vmatpush1.msra.mxu0 0.0
  %7222 = vmatprep.subr.mxu0 0.0
  %7223 = vmatpush1.msra.mxu0 0.0
  %7224 = vmatprep.subr.mxu0 0.0
  %7225 = vmatpush1.msra.mxu0 0.0
  %7226 = vmatprep.subr.mxu0 0.0
  %7227 = vmatpush1.msra.mxu0 0.0
  %7228 = vmatprep.subr.mxu0 0.0
  %7229 = vmatpush1.msra.mxu0 0.0
  %7230 = vmatprep.subr.mxu0 0.0
  %7231 = vmatpush1.msra.mxu0 0.0
  %7232 = vmatprep.subr.mxu0 0.0
  %7233 = vmatpush1.msra.mxu0 0.0
  %7234 = vmatprep.subr.mxu0 0.0
  %7235 = vmatpush1.msra.mxu0 0.0
  %7236 = vmatprep.subr.mxu0 0.0
  %7237 = vmatpush1.msra.mxu0 0.0
  %7238 = vmatprep.subr.mxu0 0.0
  %7239 = vmatpush1.msra.mxu0 0.0
  %7240 = vmatprep.mubr.f32.mxu0 0.0
  %v7241 = vand.u32 %v6894, 4294901760
  %v7242 = vsub.f32 %v6894, %v7241
  %v7243 = vand.u32 %v7242, 4294901760
  %7244 = vmatmul.mubr.f32.gmra.mrb[0].mxu0 %v7243
  %v7245 = vpop.f32.mrb[0].mxu0
  %v7246 = vadd.f32 %v7162, %v7245
  %v7247 = vpop.f32.mrb[0].mxu0
  %7248 = vmatprep.mubr.f32.mxu0 0.0
  %v7249 = vand.u32 %v6897, 4294901760
  %v7250 = vsub.f32 %v6897, %v7249
  %v7251 = vand.u32 %v7250, 4294901760
  %7252 = vmatmul.mubr.f32.gmra.mrb[0].mxu0 %v7251
  %v7253 = vpop.f32.mrb[0].mxu0
  %v7254 = vadd.f32 %v7169, %v7253
  %v7255 = vpop.f32.mrb[0].mxu0
  %7256 = vdwg.mxu0
  %7257 = vmatprep.subr.mxu0 0.0
  %v7258 = vand.u32 %v6884, 4294901760
  %v7259 = vsub.f32 %v6884, %v7258
  %v7260 = vand.u32 %v7259, 4294901760
  %7261 = vmatpush1.msra.mxu0 %v7260
  %7262 = vmatprep.subr.mxu0 0.0
  %v7263 = vand.u32 %v6885, 4294901760
  %v7264 = vsub.f32 %v6885, %v7263
  %v7265 = vand.u32 %v7264, 4294901760
  %7266 = vmatpush1.msra.mxu0 %v7265
  %7267 = vmatprep.subr.mxu0 0.0
  %v7268 = vand.u32 %v6886, 4294901760
  %v7269 = vsub.f32 %v6886, %v7268
  %v7270 = vand.u32 %v7269, 4294901760
  %7271 = vmatpush1.msra.mxu0 %v7270
  %7272 = vmatprep.subr.mxu0 0.0
  %v7273 = vand.u32 %v6887, 4294901760
  %v7274 = vsub.f32 %v6887, %v7273
  %v7275 = vand.u32 %v7274, 4294901760
  %7276 = vmatpush1.msra.mxu0 %v7275
  %7277 = vmatprep.subr.mxu0 0.0
  %7278 = vmatpush1.msra.mxu0 0.0
  %7279 = vmatprep.subr.mxu0 0.0
  %7280 = vmatpush1.msra.mxu0 0.0
  %7281 = vmatprep.subr.mxu0 0.0
  %7282 = vmatpush1.msra.mxu0 0.0
  %7283 = vmatprep.subr.mxu0 0.0
  %7284 = vmatpush1.msra.mxu0 0.0
  %7285 = vmatprep.subr.mxu0 0.0
  %7286 = vmatpush1.msra.mxu0 0.0
  %7287 = vmatprep.subr.mxu0 0.0
  %7288 = vmatpush1.msra.mxu0 0.0
  %7289 = vmatprep.subr.mxu0 0.0
  %7290 = vmatpush1.msra.mxu0 0.0
  %7291 = vmatprep.subr.mxu0 0.0
  %7292 = vmatpush1.msra.mxu0 0.0
  %7293 = vmatprep.subr.mxu0 0.0
  %7294 = vmatpush1.msra.mxu0 0.0
  %7295 = vmatprep.subr.mxu0 0.0
  %7296 = vmatpush1.msra.mxu0 0.0
  %7297 = vmatprep.subr.mxu0 0.0
  %7298 = vmatpush1.msra.mxu0 0.0
  %7299 = vmatprep.subr.mxu0 0.0
  %7300 = vmatpush1.msra.mxu0 0.0
  %7301 = vmatprep.subr.mxu0 0.0
  %7302 = vmatpush1.msra.mxu0 0.0
  %7303 = vmatprep.subr.mxu0 0.0
  %7304 = vmatpush1.msra.mxu0 0.0
  %7305 = vmatprep.subr.mxu0 0.0
  %7306 = vmatpush1.msra.mxu0 0.0
  %7307 = vmatprep.subr.mxu0 0.0
  %7308 = vmatpush1.msra.mxu0 0.0
  %7309 = vmatprep.subr.mxu0 0.0
  %7310 = vmatpush1.msra.mxu0 0.0
  %7311 = vmatprep.subr.mxu0 0.0
  %7312 = vmatpush1.msra.mxu0 0.0
  %7313 = vmatprep.subr.mxu0 0.0
  %7314 = vmatpush1.msra.mxu0 0.0
  %7315 = vmatprep.subr.mxu0 0.0
  %7316 = vmatpush1.msra.mxu0 0.0
  %7317 = vmatprep.subr.mxu0 0.0
  %7318 = vmatpush1.msra.mxu0 0.0
  %7319 = vmatprep.subr.mxu0 0.0
  %7320 = vmatpush1.msra.mxu0 0.0
  %7321 = vmatprep.subr.mxu0 0.0
  %7322 = vmatpush1.msra.mxu0 0.0
  %7323 = vmatprep.subr.mxu0 0.0
  %7324 = vmatpush1.msra.mxu0 0.0
  %7325 = vmatprep.subr.mxu0 0.0
  %7326 = vmatpush1.msra.mxu0 0.0
  %7327 = vmatprep.subr.mxu0 0.0
  %7328 = vmatpush1.msra.mxu0 0.0
  %7329 = vmatprep.subr.mxu0 0.0
  %7330 = vmatpush1.msra.mxu0 0.0
  %7331 = vmatprep.subr.mxu0 0.0
  %7332 = vmatpush1.msra.mxu0 0.0
  %7333 = vmatprep.mubr.f32.mxu0 0.0
  %v7334 = vand.u32 %v6894, 4294901760
  %7335 = vmatmul.mubr.f32.gmra.mrb[0].mxu0 %v7334
  %v7336 = vpop.f32.mrb[0].mxu0
  %v7337 = vadd.f32 %v7246, %v7336
  %v7338 = vpop.f32.mrb[0].mxu0
  %7339 = vmatprep.mubr.f32.mxu0 0.0
  %v7340 = vand.u32 %v6897, 4294901760
  %7341 = vmatmul.mubr.f32.gmra.mrb[0].mxu0 %v7340
  %v7342 = vpop.f32.mrb[0].mxu0
  %v7343 = vadd.f32 %v7254, %v7342
  %v7344 = vpop.f32.mrb[0].mxu0
  %7345 = vdwg.mxu0
  %7346 = vmatprep.subr.mxu0 0.0
  %v7347 = vand.u32 %v6884, 4294901760
  %7348 = vmatpush1.msra.mxu0 %v7347
  %7349 = vmatprep.subr.mxu0 0.0
  %v7350 = vand.u32 %v6885, 4294901760
  %7351 = vmatpush1.msra.mxu0 %v7350
  %7352 = vmatprep.subr.mxu0 0.0
  %v7353 = vand.u32 %v6886, 4294901760
  %7354 = vmatpush1.msra.mxu0 %v7353
  %7355 = vmatprep.subr.mxu0 0.0
  %v7356 = vand.u32 %v6887, 4294901760
  %7357 = vmatpush1.msra.mxu0 %v7356
  %7358 = vmatprep.subr.mxu0 0.0
  %7359 = vmatpush1.msra.mxu0 0.0
  %7360 = vmatprep.subr.mxu0 0.0
  %7361 = vmatpush1.msra.mxu0 0.0
  %7362 = vmatprep.subr.mxu0 0.0
  %7363 = vmatpush1.msra.mxu0 0.0
  %7364 = vmatprep.subr.mxu0 0.0
  %7365 = vmatpush1.msra.mxu0 0.0
  %7366 = vmatprep.subr.mxu0 0.0
  %7367 = vmatpush1.msra.mxu0 0.0
  %7368 = vmatprep.subr.mxu0 0.0
  %7369 = vmatpush1.msra.mxu0 0.0
  %7370 = vmatprep.subr.mxu0 0.0
  %7371 = vmatpush1.msra.mxu0 0.0
  %7372 = vmatprep.subr.mxu0 0.0
  %7373 = vmatpush1.msra.mxu0 0.0
  %7374 = vmatprep.subr.mxu0 0.0
  %7375 = vmatpush1.msra.mxu0 0.0
  %7376 = vmatprep.subr.mxu0 0.0
  %7377 = vmatpush1.msra.mxu0 0.0
  %7378 = vmatprep.subr.mxu0 0.0
  %7379 = vmatpush1.msra.mxu0 0.0
  %7380 = vmatprep.subr.mxu0 0.0
  %7381 = vmatpush1.msra.mxu0 0.0
  %7382 = vmatprep.subr.mxu0 0.0
  %7383 = vmatpush1.msra.mxu0 0.0
  %7384 = vmatprep.subr.mxu0 0.0
  %7385 = vmatpush1.msra.mxu0 0.0
  %7386 = vmatprep.subr.mxu0 0.0
  %7387 = vmatpush1.msra.mxu0 0.0
  %7388 = vmatprep.subr.mxu0 0.0
  %7389 = vmatpush1.msra.mxu0 0.0
  %7390 = vmatprep.subr.mxu0 0.0
  %7391 = vmatpush1.msra.mxu0 0.0
  %7392 = vmatprep.subr.mxu0 0.0
  %7393 = vmatpush1.msra.mxu0 0.0
  %7394 = vmatprep.subr.mxu0 0.0
  %7395 = vmatpush1.msra.mxu0 0.0
  %7396 = vmatprep.subr.mxu0 0.0
  %7397 = vmatpush1.msra.mxu0 0.0
  %7398 = vmatprep.subr.mxu0 0.0
  %7399 = vmatpush1.msra.mxu0 0.0
  %7400 = vmatprep.subr.mxu0 0.0
  %7401 = vmatpush1.msra.mxu0 0.0
  %7402 = vmatprep.subr.mxu0 0.0
  %7403 = vmatpush1.msra.mxu0 0.0
  %7404 = vmatprep.subr.mxu0 0.0
  %7405 = vmatpush1.msra.mxu0 0.0
  %7406 = vmatprep.subr.mxu0 0.0
  %7407 = vmatpush1.msra.mxu0 0.0
  %7408 = vmatprep.subr.mxu0 0.0
  %7409 = vmatpush1.msra.mxu0 0.0
  %7410 = vmatprep.subr.mxu0 0.0
  %7411 = vmatpush1.msra.mxu0 0.0
  %7412 = vmatprep.subr.mxu0 0.0
  %7413 = vmatpush1.msra.mxu0 0.0
  %7414 = vmatprep.mubr.f32.mxu0 0.0
  %v7415 = vand.u32 %v6894, 4294901760
  %7416 = vmatmul.mubr.f32.gmra.mrb[0].mxu0 %v7415
  %v7417 = vpop.f32.mrb[0].mxu0
  %v7418 = vadd.f32 %v7337, %v7417
  %v7419 = vpop.f32.mrb[0].mxu0
  %7420 = vmatprep.mubr.f32.mxu0 0.0
  %v7421 = vand.u32 %v6897, 4294901760
  %7422 = vmatmul.mubr.f32.gmra.mrb[0].mxu0 %v7421
  %v7423 = vpop.f32.mrb[0].mxu0
  %v7424 = vadd.f32 %v7343, %v7423
  %v7425 = vpop.f32.mrb[0].mxu0
  %7426 = vdwg.mxu0
  %v7427 = vlaneseq
  %v7428 = vshrl.u32 %v7427, 7
  %v7429 = vadd.s32 %v7428, 8
  %v7430 = vlaneseq
  %v7431 = vand.u32 %v7430, 127
  %v7432 = vmul.u32 %v7431, 6
  %vm7433 = vcmp.ge.s32.totalorder %v7428, %v7432
  %vm7434 = vcmp.ge.s32.totalorder %v7429, %v7432
  %v7435 = vadd.s32 %v7431, 1
  %v7436 = vmul.u32 %v7435, 6
  %vm7437 = vcmp.lt.s32.totalorder %v7428, %v7436
  %vm7438 = vcmp.lt.s32.totalorder %v7429, %v7436
  %vm7439 = vmand %vm7433, %vm7437
  %vm7440 = vmand %vm7434, %vm7438
  %7442 = vset.pattern.permute.xlu0 0
  %7443 = vperm.xlu0 %7442, %v7418
  %v7444 = vpop.permute.xlu0 %7443
  %7447 = vset.pattern.permute.xlu0 0
  %7448 = vperm.xlu0 %7447, %v7424
  %v7449 = vpop.permute.xlu0 %7448
  %v7451 = vsel %vm7439, %v7444, 0.0
  %v7452 = vsel %vm7440, %v7449, 0.0
  %v7453 = vsel %vm922, %v7452, 0.0
  %v7454 = vadd.f32 %v7451, %v7453
  %v7455 = vrot.slane %v7454, 4
  %v7456 = vadd.f32 %v7454, %v7455
  %v7457 = vrot.slane %v7456, 2
  %v7458 = vadd.f32 %v7456, %v7457
  %v7459 = vrot.slane %v7458, 1
  %v7460 = vadd.f32 %v7458, %v7459
  %7461 = vst [vmem:[%s2] sm:$0x1] %v7460
  // Predicated region
  $region10: #{fwd.1} parent=0 // pred_check
    _
  $region11: #{fwd.1} parent=0 // pred_check_branch
    %7463 = sbr.rel (0) target = $region13
  $region12: #{fwd.1} parent=0 // pred_region
    _
  $region13: #{fwd.1} parent=0 // pred_fallthru
    _
  // Predicated region
  $region14: #{fwd.1} parent=0 // pred_check
    _
  $region15: #{fwd.1} parent=0 // pred_check_branch
    %7465 = sbr.rel (0) target = $region17
  $region16: #{fwd.1} parent=0 // pred_region
    _
  $region17: #{fwd.1} parent=0 // pred_fallthru
    _

</llo_original>
